<compile_context>
chip_gen: v5e
topology: v5e:2x2
jax: 0.10.0
libtpu: 0.0.40
codegen_flags: <defaults>
</compile_context>

<pallas_src>
import jax
import jax.numpy as jnp
from jax.experimental import pallas as pl
from jax.experimental.pallas import tpu as pltpu


def _round_up(v, m):
    return (v + m - 1) // m * m


def _pick_batch_block(n, max_block=8):
    """Largest divisor of n that is <= max_block while keeping >= 2 grid steps
    (so both TensorCores get work on v7x).  On single-TC chips (v5e/v6e) a
    larger block / fewer steps is marginally better; override via batch_block."""
    if n <= 1:
        return 1
    best = 1
    for d in range(1, min(n, max_block) + 1):
        if n % d == 0 and n // d >= 2:
            best = d
    return best


# ---------------------------------------------------------------------------
# Fused per-stage block: conv3x3(pad=1) + folded-BN + ReLU + MaxPool2d(2)
# ---------------------------------------------------------------------------
def _conv_block(pad_ref, col_ref, acc_ref, act, w_ref, scale_ref, shift_ref):
    """One conv_block for a whole batch block, fully VMEM-resident.

    pad_ref:   (B, H+3, Wp, Cin)  padded-image scratch, Wp = round_up(W+2, 8)
    col_ref:   (Mc, 3*Cin)        kx-im2col scratch, Mc = M + 2*Wp
    acc_ref:   (M, Cout)          f32 accumulator, M = (B*(H+3) - 3) * Wp
    act:       (B, H, W, Cin)     input activations (value)
    w_ref:     (3, 3*Cin, Cout)   conv weights laid out as (ky, kx*Cin+ci, co)
    scale_ref: (1, Cout)          folded BN scale  (gamma / sqrt(var+eps))
    shift_ref: (1, Cout)          folded BN shift  ((conv_bias-mean)*scale+beta)
    returns:   (B, H//2, W//2, Cout)
    """
    B, H, W, Cin = act.shape
    R, Wp = pad_ref.shape[1], pad_ref.shape[2]
    Cout = w_ref.shape[-1]
    M = acc_ref.shape[0]
    Mc = col_ref.shape[0]

    # --- In-kernel zero padding (Conv2d padding=1): zero ONLY the halo; the
    #     interior is fully overwritten each call, so zeroing it would be
    #     redundant masked-store work.  (Never gate this on program_id == 0:
    #     under megacore "parallel" the second core's scratch would stay
    #     uninitialized.)
    pad_ref[:, 0:1, :, :] = jnp.zeros((B, 1, Wp, Cin), jnp.float32)
    pad_ref[:, H + 1:R, :, :] = jnp.zeros((B, R - H - 1, Wp, Cin), jnp.float32)
    pad_ref[:, 1:H + 1, 0:1, :] = jnp.zeros((B, H, 1, Cin), jnp.float32)
    pad_ref[:, 1:H + 1, W + 1:Wp, :] = jnp.zeros((B, H, Wp - W - 1, Cin),
                                                 jnp.float32)
    pad_ref[:, 1:H + 1, 1:W + 1, :] = act

    # Row-major flattened padded images: flat[(b*R + r)*Wp + c] = padded[b,r,c].
    # Wp is a multiple of 8, so this collapse is a pure leading-dim reshape.
    flat = pad_ref[...].reshape(B * R * Wp, Cin)

    # --- kx im2col: col[r, kx*Cin:(kx+1)*Cin] = flat[r + kx].  Three shifted
    #     slab copies replace the six misaligned per-tap operand relayouts.
    for kx in range(3):
        col_ref[:, kx * Cin:(kx + 1) * Cin] = flat[kx:kx + Mc, :]

    # --- Conv as 3 MXU matmuls with K = 3*Cin (instead of 9 with K = Cin):
    #     output row m gets  col[m + ky*Wp] @ w[ky]  for ky in 0..2; ky*Wp is
    #     a multiple of 8 so every LHS slab is sublane-aligned.  Accumulate
    #     into a VMEM scratch ref (v7x folds this into the MXU result buffer).
    for ky in range(3):
        start = ky * Wp
        term = jnp.dot(col_ref[start:start + M, :], w_ref[ky],
                       preferred_element_type=jnp.float32)
        if ky == 0:
            acc_ref[...] = term
        else:
            acc_ref[...] += term

    # --- Folded conv-bias + BatchNorm affine, then ReLU (f32 epilogue).
    y = jnp.maximum(acc_ref[...] * scale_ref[...] + shift_ref[...], 0.0)

    # --- Per image: drop padding/garbage rows & columns, MaxPool2d(2) as two
    #     pairwise reductions (rows first: free leading split; then columns).
    Ho, Wo = H // 2, W // 2
    outs = []
    for b in range(B):
        s0 = b * R * Wp                                   # multiple of 8
        yb = y[s0:s0 + H * Wp, :].reshape(H, Wp, Cout)
        yb = jnp.max(yb.reshape(Ho, 2, Wp, Cout), axis=1)  # row pairs
        yb = yb[:, :W, :]                                  # drop pad columns
        yb = jnp.max(yb.reshape(Ho, Wo, 2, Cout), axis=2)  # column pairs
        outs.append(yb)
    return jnp.stack(outs, axis=0)                         # (B, Ho, Wo, Cout)


# ---------------------------------------------------------------------------
# Fused kernel: whole FeatureExtractor forward for one batch block
# ---------------------------------------------------------------------------
def fused_feature_extractor_kernel(
        x_ref,
        w1_ref, s1_ref, b1_ref,
        w2_ref, s2_ref, b2_ref,
        w3_ref, s3_ref, b3_ref,
        w4_ref, s4_ref, b4_ref,
        o_ref,
        pad1, col1, acc1,
        pad2, col2, acc2,
        pad3, col3, acc3,
        pad4, col4, acc4):
    act = x_ref[...]                                   # (B, H, W, Cin) NHWC
    act = _conv_block(pad1, col1, acc1, act, w1_ref, s1_ref, b1_ref)
    act = _conv_block(pad2, col2, acc2, act, w2_ref, s2_ref, b2_ref)
    act = _conv_block(pad3, col3, acc3, act, w3_ref, s3_ref, b3_ref)
    act = _conv_block(pad4, col4, acc4, act, w4_ref, s4_ref, b4_ref)
    # AdaptiveAvgPool2d((1,1)) + flatten, fused into the same kernel.
    emb = jnp.mean(act, axis=(1, 2))                   # (B, Cemb)
    o_ref[0] = emb.astype(o_ref.dtype)


# ---------------------------------------------------------------------------
# Wrapper
# ---------------------------------------------------------------------------
def feature_extractor_fused(x_nhwc, params, batch_block=None):
    """x_nhwc: (N, H, W, Cin) f32; params: 4 x (w HWIO, scale (1,C), shift (1,C))."""
    N, H, W, c_in = x_nhwc.shape
    if len(params) != 4:
        raise ValueError("expected exactly 4 conv blocks")
    if H % 16 != 0 or W % 16 != 0:
        raise ValueError("spatial dims must be divisible by 16 (4x MaxPool2d(2))")
    B = batch_block if batch_block is not None else _pick_batch_block(N)
    if N % B != 0:
        raise ValueError("batch_block must divide the batch size")
    steps = N // B

    in_specs = [pl.BlockSpec((B, H, W, c_in), lambda n: (n, 0, 0, 0))]
    args = [x_nhwc]
    scratch = []
    h, w, ci = H, W, c_in
    for (wgt, scale, shift) in params:
        co = wgt.shape[-1]
        wk = wgt.reshape(3, 3 * ci, co)         # (ky, kx*Cin+ci, co)
        in_specs += [
            pl.BlockSpec(wk.shape, lambda n: (0, 0, 0)),
            pl.BlockSpec(scale.shape, lambda n: (0, 0)),
            pl.BlockSpec(shift.shape, lambda n: (0, 0)),
        ]
        args += [wk, scale, shift]
        wp = _round_up(w + 2, 8)                # mod-8 padded scratch width
        r = h + 3                               # top pad + H + bottom pad + spare
        m = (B * r - 3) * wp                    # matmul M (covers all valid rows)
        mc = m + 2 * wp
        scratch += [
            pltpu.VMEM((B, r, wp, ci), jnp.float32),   # padded input
            pltpu.VMEM((mc, 3 * ci), jnp.float32),     # kx-im2col columns
            pltpu.VMEM((m, co), jnp.float32),          # f32 accumulator
        ]
        h, w, ci = h // 2, w // 2, co
    c_emb = ci

    out = pl.pallas_call(
        fused_feature_extractor_kernel,
        out_shape=jax.ShapeDtypeStruct((steps, B, c_emb), jnp.float32),
        grid=(steps,),
        in_specs=in_specs,
        out_specs=pl.BlockSpec((1, B, c_emb), lambda n: (n, 0, 0)),
        scratch_shapes=scratch,
        compiler_params=pltpu.CompilerParams(
            dimension_semantics=("parallel",)),
    )(*args)
    return out.reshape(N, c_emb)


# ---------------------------------------------------------------------------
# Parameter construction (deterministic, synthetic)
# ---------------------------------------------------------------------------
def make_block_params(key, cin, cout, eps=1e-5):
    kw, kb, kg, kbeta, krm, krv = jax.random.split(key, 6)
    fan_in = cin * 9
    bound = 1.0 / jnp.sqrt(fan_in)
    w = jax.random.uniform(kw, (3, 3, cin, cout), jnp.float32, -bound, bound)
    b = jax.random.uniform(kb, (cout,), jnp.float32, -bound, bound)
    gamma = jax.random.uniform(kg, (cout,), jnp.float32, 0.5, 1.5)
    beta = 0.1 * jax.random.normal(kbeta, (cout,), jnp.float32)
    rmean = 0.1 * jax.random.normal(krm, (cout,), jnp.float32)
    rvar = jax.random.uniform(krv, (cout,), jnp.float32, 0.5, 1.5)
    scale = gamma / jnp.sqrt(rvar + eps)
    shift = (b - rmean) * scale + beta
    return w, scale.reshape(1, cout), shift.reshape(1, cout)


def make_params(input_channels=3, hidden_size=64, embedding_size=64, seed=0):
    keys = jax.random.split(jax.random.PRNGKey(seed), 4)
    chans = [input_channels, hidden_size, hidden_size, hidden_size, embedding_size]
    return [make_block_params(keys[i], chans[i], chans[i + 1]) for i in range(4)]


# ---------------------------------------------------------------------------
# Forward pass (mirrors FeatureExtractor.forward) and pure-JAX reference
# ---------------------------------------------------------------------------
@jax.jit
def feature_extractor_forward(x_nchw, params):
    # PyTorch NCHW -> NHWC once at the boundary.
    x = jnp.transpose(x_nchw, (0, 2, 3, 1)).astype(jnp.float32)
    return feature_extractor_fused(x, params)


def feature_extractor_reference(x_nchw, params):
    x = jnp.transpose(x_nchw, (0, 2, 3, 1)).astype(jnp.float32)
    for (w, scale, shift) in params:
        x = jax.lax.conv_general_dilated(
            x, w, window_strides=(1, 1), padding="SAME",
            dimension_numbers=("NHWC", "HWIO", "NHWC"),
            precision=jax.lax.Precision.HIGHEST)
        x = jnp.maximum(x * scale[0] + shift[0], 0.0)
        x = jax.lax.reduce_window(x, -jnp.inf, jax.lax.max,
                                  (1, 2, 2, 1), (1, 2, 2, 1), "VALID")
    return jnp.mean(x, axis=(1, 2))


# ---------------------------------------------------------------------------
if __name__ == "__main__":
    # Small module-consistent shapes: batch=4, input_channels=3, spatial=16,
    # hidden_size=embedding_size=32.  Spatial 16 -> 8 -> 4 -> 2 -> 1.
    # batch=4 exercises batch blocking (B_blk=2, grid of 2 steps).
    N, C_IN, HW = 4, 3, 16
    HIDDEN, EMB = 32, 32

    x = jax.random.normal(jax.random.PRNGKey(0), (N, C_IN, HW, HW), jnp.float32)
    params = make_params(input_channels=C_IN, hidden_size=HIDDEN,
                         embedding_size=EMB, seed=0)

    out = feature_extractor_forward(x, params)
    out = jax.block_until_ready(out)

    assert out.shape == (N, EMB), out.shape
    assert out.dtype == jnp.float32, out.dtype

    # Numerical check against a pure-JAX/XLA reference (HIGHEST precision).
    ref = jax.block_until_ready(feature_extractor_reference(x, params))
    assert jnp.allclose(out, ref, rtol=2e-2, atol=2e-2), (
        float(jnp.max(jnp.abs(out - ref))))

    print("KERNEL_OK")
</pallas_src>

<mosaic_0001>
module attributes {stable_mosaic.version = 11 : i64} {
  func.func @fused_feature_extractor_kernel(%arg0: i32, %arg1: memref<2x16x16x3xf32, #tpu.memory_space<vmem>>, %arg2: memref<3x9x32xf32, #tpu.memory_space<vmem>>, %arg3: memref<1x32xf32, #tpu.memory_space<vmem>>, %arg4: memref<1x32xf32, #tpu.memory_space<vmem>>, %arg5: memref<3x96x32xf32, #tpu.memory_space<vmem>>, %arg6: memref<1x32xf32, #tpu.memory_space<vmem>>, %arg7: memref<1x32xf32, #tpu.memory_space<vmem>>, %arg8: memref<3x96x32xf32, #tpu.memory_space<vmem>>, %arg9: memref<1x32xf32, #tpu.memory_space<vmem>>, %arg10: memref<1x32xf32, #tpu.memory_space<vmem>>, %arg11: memref<3x96x32xf32, #tpu.memory_space<vmem>>, %arg12: memref<1x32xf32, #tpu.memory_space<vmem>>, %arg13: memref<1x32xf32, #tpu.memory_space<vmem>>, %arg14: memref<1x2x32xf32, #tpu.memory_space<vmem>>, %arg15: memref<2x19x24x3xf32, #tpu.memory_space<vmem>>, %arg16: memref<888x9xf32, #tpu.memory_space<vmem>>, %arg17: memref<840x32xf32, #tpu.memory_space<vmem>>, %arg18: memref<2x11x16x32xf32, #tpu.memory_space<vmem>>, %arg19: memref<336x96xf32, #tpu.memory_space<vmem>>, %arg20: memref<304x32xf32, #tpu.memory_space<vmem>>, %arg21: memref<2x7x8x32xf32, #tpu.memory_space<vmem>>, %arg22: memref<104x96xf32, #tpu.memory_space<vmem>>, %arg23: memref<88x32xf32, #tpu.memory_space<vmem>>, %arg24: memref<2x5x8x32xf32, #tpu.memory_space<vmem>>, %arg25: memref<72x96xf32, #tpu.memory_space<vmem>>, %arg26: memref<56x32xf32, #tpu.memory_space<vmem>>) attributes {dimension_semantics = [#tpu.dimension_semantics<parallel>], iteration_bounds = array<i64: 2>, scalar_prefetch = 0 : i64, scratch_operands = 12 : i64, tpu.core_type = #tpu.core_type<tc>, window_params = [{transform_indices = @transform_0, window_bounds = array<i64: 2, 16, 16, 3>}, {pipeline_mode = #tpu.pipeline_mode<synchronous>, transform_indices = @transform_1, window_bounds = array<i64: 3, 9, 32>}, {pipeline_mode = #tpu.pipeline_mode<synchronous>, transform_indices = @transform_2, window_bounds = array<i64: 1, 32>}, {pipeline_mode = #tpu.pipeline_mode<synchronous>, transform_indices = @transform_3, window_bounds = array<i64: 1, 32>}, {pipeline_mode = #tpu.pipeline_mode<synchronous>, transform_indices = @transform_4, window_bounds = array<i64: 3, 96, 32>}, {pipeline_mode = #tpu.pipeline_mode<synchronous>, transform_indices = @transform_5, window_bounds = array<i64: 1, 32>}, {pipeline_mode = #tpu.pipeline_mode<synchronous>, transform_indices = @transform_6, window_bounds = array<i64: 1, 32>}, {pipeline_mode = #tpu.pipeline_mode<synchronous>, transform_indices = @transform_7, window_bounds = array<i64: 3, 96, 32>}, {pipeline_mode = #tpu.pipeline_mode<synchronous>, transform_indices = @transform_8, window_bounds = array<i64: 1, 32>}, {pipeline_mode = #tpu.pipeline_mode<synchronous>, transform_indices = @transform_9, window_bounds = array<i64: 1, 32>}, {pipeline_mode = #tpu.pipeline_mode<synchronous>, transform_indices = @transform_10, window_bounds = array<i64: 3, 96, 32>}, {pipeline_mode = #tpu.pipeline_mode<synchronous>, transform_indices = @transform_11, window_bounds = array<i64: 1, 32>}, {pipeline_mode = #tpu.pipeline_mode<synchronous>, transform_indices = @transform_12, window_bounds = array<i64: 1, 32>}, {transform_indices = @transform_13, window_bounds = array<i64: 1, 2, 32>}]} {
    %c0 = arith.constant 0 : index
    %c0_0 = arith.constant 0 : index
    %c0_1 = arith.constant 0 : index
    %c0_2 = arith.constant 0 : index
    %0 = vector.load %arg1[%c0, %c0_0, %c0_1, %c0_2] : memref<2x16x16x3xf32, #tpu.memory_space<vmem>>, vector<2x16x16x3xf32>
    %cst = arith.constant 0.000000e+00 : f32
    %1 = vector.broadcast %cst : f32 to vector<2x1x24x3xf32>
    %c0_3 = arith.constant 0 : index
    %c0_4 = arith.constant 0 : index
    %c0_5 = arith.constant 0 : index
    %c0_6 = arith.constant 0 : index
    %2 = vector.load %arg15[%c0_3, %c0_4, %c0_5, %c0_6] : memref<2x19x24x3xf32, #tpu.memory_space<vmem>>, vector<2x1x24x3xf32>
    tpu.vector_store %arg15[%c0_3, %c0_4, %c0_5, %c0_6], %1 {strides = array<i32>} : memref<2x19x24x3xf32, #tpu.memory_space<vmem>>, vector<2x1x24x3xf32>,
    %cst_7 = arith.constant 0.000000e+00 : f32
    %3 = vector.broadcast %cst_7 : f32 to vector<2x2x24x3xf32>
    %c0_8 = arith.constant 0 : index
    %c17 = arith.constant 17 : index
    %c0_9 = arith.constant 0 : index
    %c0_10 = arith.constant 0 : index
    %4 = vector.load %arg15[%c0_8, %c17, %c0_9, %c0_10] : memref<2x19x24x3xf32, #tpu.memory_space<vmem>>, vector<2x2x24x3xf32>
    tpu.vector_store %arg15[%c0_8, %c17, %c0_9, %c0_10], %3 {strides = array<i32>} : memref<2x19x24x3xf32, #tpu.memory_space<vmem>>, vector<2x2x24x3xf32>,
    %cst_11 = arith.constant 0.000000e+00 : f32
    %5 = vector.broadcast %cst_11 : f32 to vector<2x16x1x3xf32>
    %c0_12 = arith.constant 0 : index
    %c1 = arith.constant 1 : index
    %c0_13 = arith.constant 0 : index
    %c0_14 = arith.constant 0 : index
    %6 = vector.load %arg15[%c0_12, %c1, %c0_13, %c0_14] : memref<2x19x24x3xf32, #tpu.memory_space<vmem>>, vector<2x16x1x3xf32>
    tpu.vector_store %arg15[%c0_12, %c1, %c0_13, %c0_14], %5 {strides = array<i32>} : memref<2x19x24x3xf32, #tpu.memory_space<vmem>>, vector<2x16x1x3xf32>,
    %cst_15 = arith.constant 0.000000e+00 : f32
    %7 = vector.broadcast %cst_15 : f32 to vector<2x16x7x3xf32>
    %c0_16 = arith.constant 0 : index
    %c1_17 = arith.constant 1 : index
    %c17_18 = arith.constant 17 : index
    %c0_19 = arith.constant 0 : index
    %8 = vector.load %arg15[%c0_16, %c1_17, %c17_18, %c0_19] : memref<2x19x24x3xf32, #tpu.memory_space<vmem>>, vector<2x16x7x3xf32>
    tpu.vector_store %arg15[%c0_16, %c1_17, %c17_18, %c0_19], %7 {strides = array<i32>} : memref<2x19x24x3xf32, #tpu.memory_space<vmem>>, vector<2x16x7x3xf32>,
    %c0_20 = arith.constant 0 : index
    %c1_21 = arith.constant 1 : index
    %c1_22 = arith.constant 1 : index
    %c0_23 = arith.constant 0 : index
    %9 = vector.load %arg15[%c0_20, %c1_21, %c1_22, %c0_23] : memref<2x19x24x3xf32, #tpu.memory_space<vmem>>, vector<2x16x16x3xf32>
    tpu.vector_store %arg15[%c0_20, %c1_21, %c1_22, %c0_23], %0 {strides = array<i32>} : memref<2x19x24x3xf32, #tpu.memory_space<vmem>>, vector<2x16x16x3xf32>,
    %c0_24 = arith.constant 0 : index
    %c0_25 = arith.constant 0 : index
    %c0_26 = arith.constant 0 : index
    %c0_27 = arith.constant 0 : index
    %10 = vector.load %arg15[%c0_24, %c0_25, %c0_26, %c0_27] : memref<2x19x24x3xf32, #tpu.memory_space<vmem>>, vector<2x19x24x3xf32>
    %11 = vector.shape_cast %10 : vector<2x19x24x3xf32> to vector<912x3xf32>
    %12 = vector.extract_strided_slice %11 {offsets = [0, 0], sizes = [888, 3], strides = [1, 1]} : vector<912x3xf32> to vector<888x3xf32>
    %c0_28 = arith.constant 0 : index
    %c0_29 = arith.constant 0 : index
    %13 = vector.load %arg16[%c0_28, %c0_29] : memref<888x9xf32, #tpu.memory_space<vmem>>, vector<888x3xf32>
    tpu.vector_store %arg16[%c0_28, %c0_29], %12 {strides = array<i32>} : memref<888x9xf32, #tpu.memory_space<vmem>>, vector<888x3xf32>,
    %14 = vector.extract_strided_slice %11 {offsets = [1, 0], sizes = [888, 3], strides = [1, 1]} : vector<912x3xf32> to vector<888x3xf32>
    %c0_30 = arith.constant 0 : index
    %c3 = arith.constant 3 : index
    %15 = vector.load %arg16[%c0_30, %c3] : memref<888x9xf32, #tpu.memory_space<vmem>>, vector<888x3xf32>
    tpu.vector_store %arg16[%c0_30, %c3], %14 {strides = array<i32>} : memref<888x9xf32, #tpu.memory_space<vmem>>, vector<888x3xf32>,
    %16 = vector.extract_strided_slice %11 {offsets = [2, 0], sizes = [888, 3], strides = [1, 1]} : vector<912x3xf32> to vector<888x3xf32>
    %c0_31 = arith.constant 0 : index
    %c6 = arith.constant 6 : index
    %17 = vector.load %arg16[%c0_31, %c6] : memref<888x9xf32, #tpu.memory_space<vmem>>, vector<888x3xf32>
    tpu.vector_store %arg16[%c0_31, %c6], %16 {strides = array<i32>} : memref<888x9xf32, #tpu.memory_space<vmem>>, vector<888x3xf32>,
    %c0_32 = arith.constant 0 : index
    %c0_33 = arith.constant 0 : index
    %18 = vector.load %arg16[%c0_32, %c0_33] : memref<888x9xf32, #tpu.memory_space<vmem>>, vector<840x9xf32>
    %c0_34 = arith.constant 0 : index
    %c0_35 = arith.constant 0 : index
    %c0_36 = arith.constant 0 : index
    %19 = vector.load %arg2[%c0_34, %c0_35, %c0_36] : memref<3x9x32xf32, #tpu.memory_space<vmem>>, vector<1x9x32xf32>
    %20 = vector.shape_cast %19 : vector<1x9x32xf32> to vector<9x32xf32>
    %cst_37 = arith.constant dense<0.000000e+00> : vector<840x32xf32>
    %21 = tpu.matmul %18, %20, %cst_37 {dimension_numbers = #tpu.dot_dimension_numbers<[1], [0], [0], [1], [0, 0, 1, 1], [], []>} : vector<840x9xf32>, vector<9x32xf32>, vector<840x32xf32> -> vector<840x32xf32>
    %c0_38 = arith.constant 0 : index
    %c0_39 = arith.constant 0 : index
    %22 = vector.load %arg17[%c0_38, %c0_39] : memref<840x32xf32, #tpu.memory_space<vmem>>, vector<840x32xf32>
    tpu.vector_store %arg17[%c0_38, %c0_39], %21 {strides = array<i32>} : memref<840x32xf32, #tpu.memory_space<vmem>>, vector<840x32xf32>,
    %c24 = arith.constant 24 : index
    %c0_40 = arith.constant 0 : index
    %23 = vector.load %arg16[%c24, %c0_40] : memref<888x9xf32, #tpu.memory_space<vmem>>, vector<840x9xf32>
    %c1_41 = arith.constant 1 : index
    %c0_42 = arith.constant 0 : index
    %c0_43 = arith.constant 0 : index
    %24 = vector.load %arg2[%c1_41, %c0_42, %c0_43] : memref<3x9x32xf32, #tpu.memory_space<vmem>>, vector<1x9x32xf32>
    %25 = vector.shape_cast %24 : vector<1x9x32xf32> to vector<9x32xf32>
    %cst_44 = arith.constant dense<0.000000e+00> : vector<840x32xf32>
    %26 = tpu.matmul %23, %25, %cst_44 {dimension_numbers = #tpu.dot_dimension_numbers<[1], [0], [0], [1], [0, 0, 1, 1], [], []>} : vector<840x9xf32>, vector<9x32xf32>, vector<840x32xf32> -> vector<840x32xf32>
    %c0_45 = arith.constant 0 : index
    %c0_46 = arith.constant 0 : index
    %27 = vector.load %arg17[%c0_45, %c0_46] : memref<840x32xf32, #tpu.memory_space<vmem>>, vector<840x32xf32>
    %28 = arith.addf %27, %26 : vector<840x32xf32>
    %c0_47 = arith.constant 0 : index
    %c0_48 = arith.constant 0 : index
    %29 = vector.load %arg17[%c0_47, %c0_48] : memref<840x32xf32, #tpu.memory_space<vmem>>, vector<840x32xf32>
    tpu.vector_store %arg17[%c0_47, %c0_48], %28 {strides = array<i32>} : memref<840x32xf32, #tpu.memory_space<vmem>>, vector<840x32xf32>,
    %c48 = arith.constant 48 : index
    %c0_49 = arith.constant 0 : index
    %30 = vector.load %arg16[%c48, %c0_49] : memref<888x9xf32, #tpu.memory_space<vmem>>, vector<840x9xf32>
    %c2 = arith.constant 2 : index
    %c0_50 = arith.constant 0 : index
    %c0_51 = arith.constant 0 : index
    %31 = vector.load %arg2[%c2, %c0_50, %c0_51] : memref<3x9x32xf32, #tpu.memory_space<vmem>>, vector<1x9x32xf32>
    %32 = vector.shape_cast %31 : vector<1x9x32xf32> to vector<9x32xf32>
    %cst_52 = arith.constant dense<0.000000e+00> : vector<840x32xf32>
    %33 = tpu.matmul %30, %32, %cst_52 {dimension_numbers = #tpu.dot_dimension_numbers<[1], [0], [0], [1], [0, 0, 1, 1], [], []>} : vector<840x9xf32>, vector<9x32xf32>, vector<840x32xf32> -> vector<840x32xf32>
    %c0_53 = arith.constant 0 : index
    %c0_54 = arith.constant 0 : index
    %34 = vector.load %arg17[%c0_53, %c0_54] : memref<840x32xf32, #tpu.memory_space<vmem>>, vector<840x32xf32>
    %35 = arith.addf %34, %33 : vector<840x32xf32>
    %c0_55 = arith.constant 0 : index
    %c0_56 = arith.constant 0 : index
    %36 = vector.load %arg17[%c0_55, %c0_56] : memref<840x32xf32, #tpu.memory_space<vmem>>, vector<840x32xf32>
    tpu.vector_store %arg17[%c0_55, %c0_56], %35 {strides = array<i32>} : memref<840x32xf32, #tpu.memory_space<vmem>>, vector<840x32xf32>,
    %c0_57 = arith.constant 0 : index
    %c0_58 = arith.constant 0 : index
    %37 = vector.load %arg17[%c0_57, %c0_58] : memref<840x32xf32, #tpu.memory_space<vmem>>, vector<840x32xf32>
    %c0_59 = arith.constant 0 : index
    %c0_60 = arith.constant 0 : index
    %38 = vector.load %arg3[%c0_59, %c0_60] : memref<1x32xf32, #tpu.memory_space<vmem>>, vector<1x32xf32>
    %39 = vector.broadcast %38 : vector<1x32xf32> to vector<840x32xf32>
    %40 = arith.mulf %37, %39 : vector<840x32xf32>
    %c0_61 = arith.constant 0 : index
    %c0_62 = arith.constant 0 : index
    %41 = vector.load %arg4[%c0_61, %c0_62] : memref<1x32xf32, #tpu.memory_space<vmem>>, vector<1x32xf32>
    %42 = vector.broadcast %41 : vector<1x32xf32> to vector<840x32xf32>
    %43 = arith.addf %40, %42 : vector<840x32xf32>
    %cst_63 = arith.constant 0.000000e+00 : f32
    %44 = vector.broadcast %cst_63 : f32 to vector<840x32xf32>
    %45 = arith.maximumf %43, %44 : vector<840x32xf32>
    %46 = vector.extract_strided_slice %45 {offsets = [0, 0], sizes = [384, 32], strides = [1, 1]} : vector<840x32xf32> to vector<384x32xf32>
    %47 = vector.shape_cast %46 : vector<384x32xf32> to vector<16x24x32xf32>
    %48 = vector.shape_cast %47 : vector<16x24x32xf32> to vector<8x2x24x32xf32>
    %cst_64 = arith.constant dense<0xFF800000> : vector<8x24x32xf32>
    %49 = vector.multi_reduction <maximumf>, %48, %cst_64 [1] : vector<8x2x24x32xf32> to vector<8x24x32xf32>
    %50 = vector.extract_strided_slice %49 {offsets = [0, 0, 0], sizes = [8, 16, 32], strides = [1, 1, 1]} : vector<8x24x32xf32> to vector<8x16x32xf32>
    %51 = vector.shape_cast %50 : vector<8x16x32xf32> to vector<8x8x2x32xf32>
    %cst_65 = arith.constant dense<0xFF800000> : vector<8x8x32xf32>
    %52 = vector.multi_reduction <maximumf>, %51, %cst_65 [2] : vector<8x8x2x32xf32> to vector<8x8x32xf32>
    %53 = vector.extract_strided_slice %45 {offsets = [456, 0], sizes = [384, 32], strides = [1, 1]} : vector<840x32xf32> to vector<384x32xf32>
    %54 = vector.shape_cast %53 : vector<384x32xf32> to vector<16x24x32xf32>
    %55 = vector.shape_cast %54 : vector<16x24x32xf32> to vector<8x2x24x32xf32>
    %cst_66 = arith.constant dense<0xFF800000> : vector<8x24x32xf32>
    %56 = vector.multi_reduction <maximumf>, %55, %cst_66 [1] : vector<8x2x24x32xf32> to vector<8x24x32xf32>
    %57 = vector.extract_strided_slice %56 {offsets = [0, 0, 0], sizes = [8, 16, 32], strides = [1, 1, 1]} : vector<8x24x32xf32> to vector<8x16x32xf32>
    %58 = vector.shape_cast %57 : vector<8x16x32xf32> to vector<8x8x2x32xf32>
    %cst_67 = arith.constant dense<0xFF800000> : vector<8x8x32xf32>
    %59 = vector.multi_reduction <maximumf>, %58, %cst_67 [2] : vector<8x8x2x32xf32> to vector<8x8x32xf32>
    %60 = vector.shape_cast %52 : vector<8x8x32xf32> to vector<1x8x8x32xf32>
    %61 = vector.shape_cast %59 : vector<8x8x32xf32> to vector<1x8x8x32xf32>
    %62 = tpu.concatenate %60, %61 in 0 : vector<1x8x8x32xf32>, vector<1x8x8x32xf32> -> vector<2x8x8x32xf32>
    %cst_68 = arith.constant 0.000000e+00 : f32
    %63 = vector.broadcast %cst_68 : f32 to vector<2x1x16x32xf32>
    %c0_69 = arith.constant 0 : index
    %c0_70 = arith.constant 0 : index
    %c0_71 = arith.constant 0 : index
    %c0_72 = arith.constant 0 : index
    %64 = vector.load %arg18[%c0_69, %c0_70, %c0_71, %c0_72] : memref<2x11x16x32xf32, #tpu.memory_space<vmem>>, vector<2x1x16x32xf32>
    tpu.vector_store %arg18[%c0_69, %c0_70, %c0_71, %c0_72], %63 {strides = array<i32>} : memref<2x11x16x32xf32, #tpu.memory_space<vmem>>, vector<2x1x16x32xf32>,
    %cst_73 = arith.constant 0.000000e+00 : f32
    %65 = vector.broadcast %cst_73 : f32 to vector<2x2x16x32xf32>
    %c0_74 = arith.constant 0 : index
    %c9 = arith.constant 9 : index
    %c0_75 = arith.constant 0 : index
    %c0_76 = arith.constant 0 : index
    %66 = vector.load %arg18[%c0_74, %c9, %c0_75, %c0_76] : memref<2x11x16x32xf32, #tpu.memory_space<vmem>>, vector<2x2x16x32xf32>
    tpu.vector_store %arg18[%c0_74, %c9, %c0_75, %c0_76], %65 {strides = array<i32>} : memref<2x11x16x32xf32, #tpu.memory_space<vmem>>, vector<2x2x16x32xf32>,
    %cst_77 = arith.constant 0.000000e+00 : f32
    %67 = vector.broadcast %cst_77 : f32 to vector<2x8x1x32xf32>
    %c0_78 = arith.constant 0 : index
    %c1_79 = arith.constant 1 : index
    %c0_80 = arith.constant 0 : index
    %c0_81 = arith.constant 0 : index
    %68 = vector.load %arg18[%c0_78, %c1_79, %c0_80, %c0_81] : memref<2x11x16x32xf32, #tpu.memory_space<vmem>>, vector<2x8x1x32xf32>
    tpu.vector_store %arg18[%c0_78, %c1_79, %c0_80, %c0_81], %67 {strides = array<i32>} : memref<2x11x16x32xf32, #tpu.memory_space<vmem>>, vector<2x8x1x32xf32>,
    %cst_82 = arith.constant 0.000000e+00 : f32
    %69 = vector.broadcast %cst_82 : f32 to vector<2x8x7x32xf32>
    %c0_83 = arith.constant 0 : index
    %c1_84 = arith.constant 1 : index
    %c9_85 = arith.constant 9 : index
    %c0_86 = arith.constant 0 : index
    %70 = vector.load %arg18[%c0_83, %c1_84, %c9_85, %c0_86] : memref<2x11x16x32xf32, #tpu.memory_space<vmem>>, vector<2x8x7x32xf32>
    tpu.vector_store %arg18[%c0_83, %c1_84, %c9_85, %c0_86], %69 {strides = array<i32>} : memref<2x11x16x32xf32, #tpu.memory_space<vmem>>, vector<2x8x7x32xf32>,
    %c0_87 = arith.constant 0 : index
    %c1_88 = arith.constant 1 : index
    %c1_89 = arith.constant 1 : index
    %c0_90 = arith.constant 0 : index
    %71 = vector.load %arg18[%c0_87, %c1_88, %c1_89, %c0_90] : memref<2x11x16x32xf32, #tpu.memory_space<vmem>>, vector<2x8x8x32xf32>
    tpu.vector_store %arg18[%c0_87, %c1_88, %c1_89, %c0_90], %62 {strides = array<i32>} : memref<2x11x16x32xf32, #tpu.memory_space<vmem>>, vector<2x8x8x32xf32>,
    %c0_91 = arith.constant 0 : index
    %c0_92 = arith.constant 0 : index
    %c0_93 = arith.constant 0 : index
    %c0_94 = arith.constant 0 : index
    %72 = vector.load %arg18[%c0_91, %c0_92, %c0_93, %c0_94] : memref<2x11x16x32xf32, #tpu.memory_space<vmem>>, vector<2x11x16x32xf32>
    %73 = vector.shape_cast %72 : vector<2x11x16x32xf32> to vector<352x32xf32>
    %74 = vector.extract_strided_slice %73 {offsets = [0, 0], sizes = [336, 32], strides = [1, 1]} : vector<352x32xf32> to vector<336x32xf32>
    %c0_95 = arith.constant 0 : index
    %c0_96 = arith.constant 0 : index
    %75 = vector.load %arg19[%c0_95, %c0_96] : memref<336x96xf32, #tpu.memory_space<vmem>>, vector<336x32xf32>
    tpu.vector_store %arg19[%c0_95, %c0_96], %74 {strides = array<i32>} : memref<336x96xf32, #tpu.memory_space<vmem>>, vector<336x32xf32>,
    %76 = vector.extract_strided_slice %73 {offsets = [1, 0], sizes = [336, 32], strides = [1, 1]} : vector<352x32xf32> to vector<336x32xf32>
    %c0_97 = arith.constant 0 : index
    %c32 = arith.constant 32 : index
    %77 = vector.load %arg19[%c0_97, %c32] : memref<336x96xf32, #tpu.memory_space<vmem>>, vector<336x32xf32>
    tpu.vector_store %arg19[%c0_97, %c32], %76 {strides = array<i32>} : memref<336x96xf32, #tpu.memory_space<vmem>>, vector<336x32xf32>,
    %78 = vector.extract_strided_slice %73 {offsets = [2, 0], sizes = [336, 32], strides = [1, 1]} : vector<352x32xf32> to vector<336x32xf32>
    %c0_98 = arith.constant 0 : index
    %c64 = arith.constant 64 : index
    %79 = vector.load %arg19[%c0_98, %c64] : memref<336x96xf32, #tpu.memory_space<vmem>>, vector<336x32xf32>
    tpu.vector_store %arg19[%c0_98, %c64], %78 {strides = array<i32>} : memref<336x96xf32, #tpu.memory_space<vmem>>, vector<336x32xf32>,
    %c0_99 = arith.constant 0 : index
    %c0_100 = arith.constant 0 : index
    %80 = vector.load %arg19[%c0_99, %c0_100] : memref<336x96xf32, #tpu.memory_space<vmem>>, vector<304x96xf32>
    %c0_101 = arith.constant 0 : index
    %c0_102 = arith.constant 0 : index
    %c0_103 = arith.constant 0 : index
    %81 = vector.load %arg5[%c0_101, %c0_102, %c0_103] : memref<3x96x32xf32, #tpu.memory_space<vmem>>, vector<1x96x32xf32>
    %82 = vector.shape_cast %81 : vector<1x96x32xf32> to vector<96x32xf32>
    %cst_104 = arith.constant dense<0.000000e+00> : vector<304x32xf32>
    %83 = tpu.matmul %80, %82, %cst_104 {dimension_numbers = #tpu.dot_dimension_numbers<[1], [0], [0], [1], [0, 0, 1, 1], [], []>} : vector<304x96xf32>, vector<96x32xf32>, vector<304x32xf32> -> vector<304x32xf32>
    %c0_105 = arith.constant 0 : index
    %c0_106 = arith.constant 0 : index
    %84 = vector.load %arg20[%c0_105, %c0_106] : memref<304x32xf32, #tpu.memory_space<vmem>>, vector<304x32xf32>
    tpu.vector_store %arg20[%c0_105, %c0_106], %83 {strides = array<i32>} : memref<304x32xf32, #tpu.memory_space<vmem>>, vector<304x32xf32>,
    %c16 = arith.constant 16 : index
    %c0_107 = arith.constant 0 : index
    %85 = vector.load %arg19[%c16, %c0_107] : memref<336x96xf32, #tpu.memory_space<vmem>>, vector<304x96xf32>
    %c1_108 = arith.constant 1 : index
    %c0_109 = arith.constant 0 : index
    %c0_110 = arith.constant 0 : index
    %86 = vector.load %arg5[%c1_108, %c0_109, %c0_110] : memref<3x96x32xf32, #tpu.memory_space<vmem>>, vector<1x96x32xf32>
    %87 = vector.shape_cast %86 : vector<1x96x32xf32> to vector<96x32xf32>
    %cst_111 = arith.constant dense<0.000000e+00> : vector<304x32xf32>
    %88 = tpu.matmul %85, %87, %cst_111 {dimension_numbers = #tpu.dot_dimension_numbers<[1], [0], [0], [1], [0, 0, 1, 1], [], []>} : vector<304x96xf32>, vector<96x32xf32>, vector<304x32xf32> -> vector<304x32xf32>
    %c0_112 = arith.constant 0 : index
    %c0_113 = arith.constant 0 : index
    %89 = vector.load %arg20[%c0_112, %c0_113] : memref<304x32xf32, #tpu.memory_space<vmem>>, vector<304x32xf32>
    %90 = arith.addf %89, %88 : vector<304x32xf32>
    %c0_114 = arith.constant 0 : index
    %c0_115 = arith.constant 0 : index
    %91 = vector.load %arg20[%c0_114, %c0_115] : memref<304x32xf32, #tpu.memory_space<vmem>>, vector<304x32xf32>
    tpu.vector_store %arg20[%c0_114, %c0_115], %90 {strides = array<i32>} : memref<304x32xf32, #tpu.memory_space<vmem>>, vector<304x32xf32>,
    %c32_116 = arith.constant 32 : index
    %c0_117 = arith.constant 0 : index
    %92 = vector.load %arg19[%c32_116, %c0_117] : memref<336x96xf32, #tpu.memory_space<vmem>>, vector<304x96xf32>
    %c2_118 = arith.constant 2 : index
    %c0_119 = arith.constant 0 : index
    %c0_120 = arith.constant 0 : index
    %93 = vector.load %arg5[%c2_118, %c0_119, %c0_120] : memref<3x96x32xf32, #tpu.memory_space<vmem>>, vector<1x96x32xf32>
    %94 = vector.shape_cast %93 : vector<1x96x32xf32> to vector<96x32xf32>
    %cst_121 = arith.constant dense<0.000000e+00> : vector<304x32xf32>
    %95 = tpu.matmul %92, %94, %cst_121 {dimension_numbers = #tpu.dot_dimension_numbers<[1], [0], [0], [1], [0, 0, 1, 1], [], []>} : vector<304x96xf32>, vector<96x32xf32>, vector<304x32xf32> -> vector<304x32xf32>
    %c0_122 = arith.constant 0 : index
    %c0_123 = arith.constant 0 : index
    %96 = vector.load %arg20[%c0_122, %c0_123] : memref<304x32xf32, #tpu.memory_space<vmem>>, vector<304x32xf32>
    %97 = arith.addf %96, %95 : vector<304x32xf32>
    %c0_124 = arith.constant 0 : index
    %c0_125 = arith.constant 0 : index
    %98 = vector.load %arg20[%c0_124, %c0_125] : memref<304x32xf32, #tpu.memory_space<vmem>>, vector<304x32xf32>
    tpu.vector_store %arg20[%c0_124, %c0_125], %97 {strides = array<i32>} : memref<304x32xf32, #tpu.memory_space<vmem>>, vector<304x32xf32>,
    %c0_126 = arith.constant 0 : index
    %c0_127 = arith.constant 0 : index
    %99 = vector.load %arg20[%c0_126, %c0_127] : memref<304x32xf32, #tpu.memory_space<vmem>>, vector<304x32xf32>
    %c0_128 = arith.constant 0 : index
    %c0_129 = arith.constant 0 : index
    %100 = vector.load %arg6[%c0_128, %c0_129] : memref<1x32xf32, #tpu.memory_space<vmem>>, vector<1x32xf32>
    %101 = vector.broadcast %100 : vector<1x32xf32> to vector<304x32xf32>
    %102 = arith.mulf %99, %101 : vector<304x32xf32>
    %c0_130 = arith.constant 0 : index
    %c0_131 = arith.constant 0 : index
    %103 = vector.load %arg7[%c0_130, %c0_131] : memref<1x32xf32, #tpu.memory_space<vmem>>, vector<1x32xf32>
    %104 = vector.broadcast %103 : vector<1x32xf32> to vector<304x32xf32>
    %105 = arith.addf %102, %104 : vector<304x32xf32>
    %cst_132 = arith.constant 0.000000e+00 : f32
    %106 = vector.broadcast %cst_132 : f32 to vector<304x32xf32>
    %107 = arith.maximumf %105, %106 : vector<304x32xf32>
    %108 = vector.extract_strided_slice %107 {offsets = [0, 0], sizes = [128, 32], strides = [1, 1]} : vector<304x32xf32> to vector<128x32xf32>
    %109 = vector.shape_cast %108 : vector<128x32xf32> to vector<8x16x32xf32>
    %110 = vector.shape_cast %109 : vector<8x16x32xf32> to vector<4x2x16x32xf32>
    %cst_133 = arith.constant dense<0xFF800000> : vector<4x16x32xf32>
    %111 = vector.multi_reduction <maximumf>, %110, %cst_133 [1] : vector<4x2x16x32xf32> to vector<4x16x32xf32>
    %112 = vector.extract_strided_slice %111 {offsets = [0, 0, 0], sizes = [4, 8, 32], strides = [1, 1, 1]} : vector<4x16x32xf32> to vector<4x8x32xf32>
    %113 = vector.shape_cast %112 : vector<4x8x32xf32> to vector<4x4x2x32xf32>
    %cst_134 = arith.constant dense<0xFF800000> : vector<4x4x32xf32>
    %114 = vector.multi_reduction <maximumf>, %113, %cst_134 [2] : vector<4x4x2x32xf32> to vector<4x4x32xf32>
    %115 = vector.extract_strided_slice %107 {offsets = [176, 0], sizes = [128, 32], strides = [1, 1]} : vector<304x32xf32> to vector<128x32xf32>
    %116 = vector.shape_cast %115 : vector<128x32xf32> to vector<8x16x32xf32>
    %117 = vector.shape_cast %116 : vector<8x16x32xf32> to vector<4x2x16x32xf32>
    %cst_135 = arith.constant dense<0xFF800000> : vector<4x16x32xf32>
    %118 = vector.multi_reduction <maximumf>, %117, %cst_135 [1] : vector<4x2x16x32xf32> to vector<4x16x32xf32>
    %119 = vector.extract_strided_slice %118 {offsets = [0, 0, 0], sizes = [4, 8, 32], strides = [1, 1, 1]} : vector<4x16x32xf32> to vector<4x8x32xf32>
    %120 = vector.shape_cast %119 : vector<4x8x32xf32> to vector<4x4x2x32xf32>
    %cst_136 = arith.constant dense<0xFF800000> : vector<4x4x32xf32>
    %121 = vector.multi_reduction <maximumf>, %120, %cst_136 [2] : vector<4x4x2x32xf32> to vector<4x4x32xf32>
    %122 = vector.shape_cast %114 : vector<4x4x32xf32> to vector<1x4x4x32xf32>
    %123 = vector.shape_cast %121 : vector<4x4x32xf32> to vector<1x4x4x32xf32>
    %124 = tpu.concatenate %122, %123 in 0 : vector<1x4x4x32xf32>, vector<1x4x4x32xf32> -> vector<2x4x4x32xf32>
    %cst_137 = arith.constant 0.000000e+00 : f32
    %125 = vector.broadcast %cst_137 : f32 to vector<2x1x8x32xf32>
    %c0_138 = arith.constant 0 : index
    %c0_139 = arith.constant 0 : index
    %c0_140 = arith.constant 0 : index
    %c0_141 = arith.constant 0 : index
    %126 = vector.load %arg21[%c0_138, %c0_139, %c0_140, %c0_141] : memref<2x7x8x32xf32, #tpu.memory_space<vmem>>, vector<2x1x8x32xf32>
    tpu.vector_store %arg21[%c0_138, %c0_139, %c0_140, %c0_141], %125 {strides = array<i32>} : memref<2x7x8x32xf32, #tpu.memory_space<vmem>>, vector<2x1x8x32xf32>,
    %cst_142 = arith.constant 0.000000e+00 : f32
    %127 = vector.broadcast %cst_142 : f32 to vector<2x2x8x32xf32>
    %c0_143 = arith.constant 0 : index
    %c5 = arith.constant 5 : index
    %c0_144 = arith.constant 0 : index
    %c0_145 = arith.constant 0 : index
    %128 = vector.load %arg21[%c0_143, %c5, %c0_144, %c0_145] : memref<2x7x8x32xf32, #tpu.memory_space<vmem>>, vector<2x2x8x32xf32>
    tpu.vector_store %arg21[%c0_143, %c5, %c0_144, %c0_145], %127 {strides = array<i32>} : memref<2x7x8x32xf32, #tpu.memory_space<vmem>>, vector<2x2x8x32xf32>,
    %cst_146 = arith.constant 0.000000e+00 : f32
    %129 = vector.broadcast %cst_146 : f32 to vector<2x4x1x32xf32>
    %c0_147 = arith.constant 0 : index
    %c1_148 = arith.constant 1 : index
    %c0_149 = arith.constant 0 : index
    %c0_150 = arith.constant 0 : index
    %130 = vector.load %arg21[%c0_147, %c1_148, %c0_149, %c0_150] : memref<2x7x8x32xf32, #tpu.memory_space<vmem>>, vector<2x4x1x32xf32>
    tpu.vector_store %arg21[%c0_147, %c1_148, %c0_149, %c0_150], %129 {strides = array<i32>} : memref<2x7x8x32xf32, #tpu.memory_space<vmem>>, vector<2x4x1x32xf32>,
    %cst_151 = arith.constant 0.000000e+00 : f32
    %131 = vector.broadcast %cst_151 : f32 to vector<2x4x3x32xf32>
    %c0_152 = arith.constant 0 : index
    %c1_153 = arith.constant 1 : index
    %c5_154 = arith.constant 5 : index
    %c0_155 = arith.constant 0 : index
    %132 = vector.load %arg21[%c0_152, %c1_153, %c5_154, %c0_155] : memref<2x7x8x32xf32, #tpu.memory_space<vmem>>, vector<2x4x3x32xf32>
    tpu.vector_store %arg21[%c0_152, %c1_153, %c5_154, %c0_155], %131 {strides = array<i32>} : memref<2x7x8x32xf32, #tpu.memory_space<vmem>>, vector<2x4x3x32xf32>,
    %c0_156 = arith.constant 0 : index
    %c1_157 = arith.constant 1 : index
    %c1_158 = arith.constant 1 : index
    %c0_159 = arith.constant 0 : index
    %133 = vector.load %arg21[%c0_156, %c1_157, %c1_158, %c0_159] : memref<2x7x8x32xf32, #tpu.memory_space<vmem>>, vector<2x4x4x32xf32>
    tpu.vector_store %arg21[%c0_156, %c1_157, %c1_158, %c0_159], %124 {strides = array<i32>} : memref<2x7x8x32xf32, #tpu.memory_space<vmem>>, vector<2x4x4x32xf32>,
    %c0_160 = arith.constant 0 : index
    %c0_161 = arith.constant 0 : index
    %c0_162 = arith.constant 0 : index
    %c0_163 = arith.constant 0 : index
    %134 = vector.load %arg21[%c0_160, %c0_161, %c0_162, %c0_163] : memref<2x7x8x32xf32, #tpu.memory_space<vmem>>, vector<2x7x8x32xf32>
    %135 = vector.shape_cast %134 : vector<2x7x8x32xf32> to vector<112x32xf32>
    %136 = vector.extract_strided_slice %135 {offsets = [0, 0], sizes = [104, 32], strides = [1, 1]} : vector<112x32xf32> to vector<104x32xf32>
    %c0_164 = arith.constant 0 : index
    %c0_165 = arith.constant 0 : index
    %137 = vector.load %arg22[%c0_164, %c0_165] : memref<104x96xf32, #tpu.memory_space<vmem>>, vector<104x32xf32>
    tpu.vector_store %arg22[%c0_164, %c0_165], %136 {strides = array<i32>} : memref<104x96xf32, #tpu.memory_space<vmem>>, vector<104x32xf32>,
    %138 = vector.extract_strided_slice %135 {offsets = [1, 0], sizes = [104, 32], strides = [1, 1]} : vector<112x32xf32> to vector<104x32xf32>
    %c0_166 = arith.constant 0 : index
    %c32_167 = arith.constant 32 : index
    %139 = vector.load %arg22[%c0_166, %c32_167] : memref<104x96xf32, #tpu.memory_space<vmem>>, vector<104x32xf32>
    tpu.vector_store %arg22[%c0_166, %c32_167], %138 {strides = array<i32>} : memref<104x96xf32, #tpu.memory_space<vmem>>, vector<104x32xf32>,
    %140 = vector.extract_strided_slice %135 {offsets = [2, 0], sizes = [104, 32], strides = [1, 1]} : vector<112x32xf32> to vector<104x32xf32>
    %c0_168 = arith.constant 0 : index
    %c64_169 = arith.constant 64 : index
    %141 = vector.load %arg22[%c0_168, %c64_169] : memref<104x96xf32, #tpu.memory_space<vmem>>, vector<104x32xf32>
    tpu.vector_store %arg22[%c0_168, %c64_169], %140 {strides = array<i32>} : memref<104x96xf32, #tpu.memory_space<vmem>>, vector<104x32xf32>,
    %c0_170 = arith.constant 0 : index
    %c0_171 = arith.constant 0 : index
    %142 = vector.load %arg22[%c0_170, %c0_171] : memref<104x96xf32, #tpu.memory_space<vmem>>, vector<88x96xf32>
    %c0_172 = arith.constant 0 : index
    %c0_173 = arith.constant 0 : index
    %c0_174 = arith.constant 0 : index
    %143 = vector.load %arg8[%c0_172, %c0_173, %c0_174] : memref<3x96x32xf32, #tpu.memory_space<vmem>>, vector<1x96x32xf32>
    %144 = vector.shape_cast %143 : vector<1x96x32xf32> to vector<96x32xf32>
    %cst_175 = arith.constant dense<0.000000e+00> : vector<88x32xf32>
    %145 = tpu.matmul %142, %144, %cst_175 {dimension_numbers = #tpu.dot_dimension_numbers<[1], [0], [0], [1], [0, 0, 1, 1], [], []>} : vector<88x96xf32>, vector<96x32xf32>, vector<88x32xf32> -> vector<88x32xf32>
    %c0_176 = arith.constant 0 : index
    %c0_177 = arith.constant 0 : index
    %146 = vector.load %arg23[%c0_176, %c0_177] : memref<88x32xf32, #tpu.memory_space<vmem>>, vector<88x32xf32>
    tpu.vector_store %arg23[%c0_176, %c0_177], %145 {strides = array<i32>} : memref<88x32xf32, #tpu.memory_space<vmem>>, vector<88x32xf32>,
    %c8 = arith.constant 8 : index
    %c0_178 = arith.constant 0 : index
    %147 = vector.load %arg22[%c8, %c0_178] : memref<104x96xf32, #tpu.memory_space<vmem>>, vector<88x96xf32>
    %c1_179 = arith.constant 1 : index
    %c0_180 = arith.constant 0 : index
    %c0_181 = arith.constant 0 : index
    %148 = vector.load %arg8[%c1_179, %c0_180, %c0_181] : memref<3x96x32xf32, #tpu.memory_space<vmem>>, vector<1x96x32xf32>
    %149 = vector.shape_cast %148 : vector<1x96x32xf32> to vector<96x32xf32>
    %cst_182 = arith.constant dense<0.000000e+00> : vector<88x32xf32>
    %150 = tpu.matmul %147, %149, %cst_182 {dimension_numbers = #tpu.dot_dimension_numbers<[1], [0], [0], [1], [0, 0, 1, 1], [], []>} : vector<88x96xf32>, vector<96x32xf32>, vector<88x32xf32> -> vector<88x32xf32>
    %c0_183 = arith.constant 0 : index
    %c0_184 = arith.constant 0 : index
    %151 = vector.load %arg23[%c0_183, %c0_184] : memref<88x32xf32, #tpu.memory_space<vmem>>, vector<88x32xf32>
    %152 = arith.addf %151, %150 : vector<88x32xf32>
    %c0_185 = arith.constant 0 : index
    %c0_186 = arith.constant 0 : index
    %153 = vector.load %arg23[%c0_185, %c0_186] : memref<88x32xf32, #tpu.memory_space<vmem>>, vector<88x32xf32>
    tpu.vector_store %arg23[%c0_185, %c0_186], %152 {strides = array<i32>} : memref<88x32xf32, #tpu.memory_space<vmem>>, vector<88x32xf32>,
    %c16_187 = arith.constant 16 : index
    %c0_188 = arith.constant 0 : index
    %154 = vector.load %arg22[%c16_187, %c0_188] : memref<104x96xf32, #tpu.memory_space<vmem>>, vector<88x96xf32>
    %c2_189 = arith.constant 2 : index
    %c0_190 = arith.constant 0 : index
    %c0_191 = arith.constant 0 : index
    %155 = vector.load %arg8[%c2_189, %c0_190, %c0_191] : memref<3x96x32xf32, #tpu.memory_space<vmem>>, vector<1x96x32xf32>
    %156 = vector.shape_cast %155 : vector<1x96x32xf32> to vector<96x32xf32>
    %cst_192 = arith.constant dense<0.000000e+00> : vector<88x32xf32>
    %157 = tpu.matmul %154, %156, %cst_192 {dimension_numbers = #tpu.dot_dimension_numbers<[1], [0], [0], [1], [0, 0, 1, 1], [], []>} : vector<88x96xf32>, vector<96x32xf32>, vector<88x32xf32> -> vector<88x32xf32>
    %c0_193 = arith.constant 0 : index
    %c0_194 = arith.constant 0 : index
    %158 = vector.load %arg23[%c0_193, %c0_194] : memref<88x32xf32, #tpu.memory_space<vmem>>, vector<88x32xf32>
    %159 = arith.addf %158, %157 : vector<88x32xf32>
    %c0_195 = arith.constant 0 : index
    %c0_196 = arith.constant 0 : index
    %160 = vector.load %arg23[%c0_195, %c0_196] : memref<88x32xf32, #tpu.memory_space<vmem>>, vector<88x32xf32>
    tpu.vector_store %arg23[%c0_195, %c0_196], %159 {strides = array<i32>} : memref<88x32xf32, #tpu.memory_space<vmem>>, vector<88x32xf32>,
    %c0_197 = arith.constant 0 : index
    %c0_198 = arith.constant 0 : index
    %161 = vector.load %arg23[%c0_197, %c0_198] : memref<88x32xf32, #tpu.memory_space<vmem>>, vector<88x32xf32>
    %c0_199 = arith.constant 0 : index
    %c0_200 = arith.constant 0 : index
    %162 = vector.load %arg9[%c0_199, %c0_200] : memref<1x32xf32, #tpu.memory_space<vmem>>, vector<1x32xf32>
    %163 = vector.broadcast %162 : vector<1x32xf32> to vector<88x32xf32>
    %164 = arith.mulf %161, %163 : vector<88x32xf32>
    %c0_201 = arith.constant 0 : index
    %c0_202 = arith.constant 0 : index
    %165 = vector.load %arg10[%c0_201, %c0_202] : memref<1x32xf32, #tpu.memory_space<vmem>>, vector<1x32xf32>
    %166 = vector.broadcast %165 : vector<1x32xf32> to vector<88x32xf32>
    %167 = arith.addf %164, %166 : vector<88x32xf32>
    %cst_203 = arith.constant 0.000000e+00 : f32
    %168 = vector.broadcast %cst_203 : f32 to vector<88x32xf32>
    %169 = arith.maximumf %167, %168 : vector<88x32xf32>
    %170 = vector.extract_strided_slice %169 {offsets = [0, 0], sizes = [32, 32], strides = [1, 1]} : vector<88x32xf32> to vector<32x32xf32>
    %171 = vector.shape_cast %170 : vector<32x32xf32> to vector<4x8x32xf32>
    %172 = vector.shape_cast %171 : vector<4x8x32xf32> to vector<2x2x8x32xf32>
    %cst_204 = arith.constant dense<0xFF800000> : vector<2x8x32xf32>
    %173 = vector.multi_reduction <maximumf>, %172, %cst_204 [1] : vector<2x2x8x32xf32> to vector<2x8x32xf32>
    %174 = vector.extract_strided_slice %173 {offsets = [0, 0, 0], sizes = [2, 4, 32], strides = [1, 1, 1]} : vector<2x8x32xf32> to vector<2x4x32xf32>
    %175 = vector.shape_cast %174 : vector<2x4x32xf32> to vector<2x2x2x32xf32>
    %cst_205 = arith.constant dense<0xFF800000> : vector<2x2x32xf32>
    %176 = vector.multi_reduction <maximumf>, %175, %cst_205 [2] : vector<2x2x2x32xf32> to vector<2x2x32xf32>
    %177 = vector.extract_strided_slice %169 {offsets = [56, 0], sizes = [32, 32], strides = [1, 1]} : vector<88x32xf32> to vector<32x32xf32>
    %178 = vector.shape_cast %177 : vector<32x32xf32> to vector<4x8x32xf32>
    %179 = vector.shape_cast %178 : vector<4x8x32xf32> to vector<2x2x8x32xf32>
    %cst_206 = arith.constant dense<0xFF800000> : vector<2x8x32xf32>
    %180 = vector.multi_reduction <maximumf>, %179, %cst_206 [1] : vector<2x2x8x32xf32> to vector<2x8x32xf32>
    %181 = vector.extract_strided_slice %180 {offsets = [0, 0, 0], sizes = [2, 4, 32], strides = [1, 1, 1]} : vector<2x8x32xf32> to vector<2x4x32xf32>
    %182 = vector.shape_cast %181 : vector<2x4x32xf32> to vector<2x2x2x32xf32>
    %cst_207 = arith.constant dense<0xFF800000> : vector<2x2x32xf32>
    %183 = vector.multi_reduction <maximumf>, %182, %cst_207 [2] : vector<2x2x2x32xf32> to vector<2x2x32xf32>
    %184 = vector.shape_cast %176 : vector<2x2x32xf32> to vector<1x2x2x32xf32>
    %185 = vector.shape_cast %183 : vector<2x2x32xf32> to vector<1x2x2x32xf32>
    %186 = tpu.concatenate %184, %185 in 0 : vector<1x2x2x32xf32>, vector<1x2x2x32xf32> -> vector<2x2x2x32xf32>
    %cst_208 = arith.constant 0.000000e+00 : f32
    %187 = vector.broadcast %cst_208 : f32 to vector<2x1x8x32xf32>
    %c0_209 = arith.constant 0 : index
    %c0_210 = arith.constant 0 : index
    %c0_211 = arith.constant 0 : index
    %c0_212 = arith.constant 0 : index
    %188 = vector.load %arg24[%c0_209, %c0_210, %c0_211, %c0_212] : memref<2x5x8x32xf32, #tpu.memory_space<vmem>>, vector<2x1x8x32xf32>
    tpu.vector_store %arg24[%c0_209, %c0_210, %c0_211, %c0_212], %187 {strides = array<i32>} : memref<2x5x8x32xf32, #tpu.memory_space<vmem>>, vector<2x1x8x32xf32>,
    %cst_213 = arith.constant 0.000000e+00 : f32
    %189 = vector.broadcast %cst_213 : f32 to vector<2x2x8x32xf32>
    %c0_214 = arith.constant 0 : index
    %c3_215 = arith.constant 3 : index
    %c0_216 = arith.constant 0 : index
    %c0_217 = arith.constant 0 : index
    %190 = vector.load %arg24[%c0_214, %c3_215, %c0_216, %c0_217] : memref<2x5x8x32xf32, #tpu.memory_space<vmem>>, vector<2x2x8x32xf32>
    tpu.vector_store %arg24[%c0_214, %c3_215, %c0_216, %c0_217], %189 {strides = array<i32>} : memref<2x5x8x32xf32, #tpu.memory_space<vmem>>, vector<2x2x8x32xf32>,
    %cst_218 = arith.constant 0.000000e+00 : f32
    %191 = vector.broadcast %cst_218 : f32 to vector<2x2x1x32xf32>
    %c0_219 = arith.constant 0 : index
    %c1_220 = arith.constant 1 : index
    %c0_221 = arith.constant 0 : index
    %c0_222 = arith.constant 0 : index
    %192 = vector.load %arg24[%c0_219, %c1_220, %c0_221, %c0_222] : memref<2x5x8x32xf32, #tpu.memory_space<vmem>>, vector<2x2x1x32xf32>
    tpu.vector_store %arg24[%c0_219, %c1_220, %c0_221, %c0_222], %191 {strides = array<i32>} : memref<2x5x8x32xf32, #tpu.memory_space<vmem>>, vector<2x2x1x32xf32>,
    %cst_223 = arith.constant 0.000000e+00 : f32
    %193 = vector.broadcast %cst_223 : f32 to vector<2x2x5x32xf32>
    %c0_224 = arith.constant 0 : index
    %c1_225 = arith.constant 1 : index
    %c3_226 = arith.constant 3 : index
    %c0_227 = arith.constant 0 : index
    %194 = vector.load %arg24[%c0_224, %c1_225, %c3_226, %c0_227] : memref<2x5x8x32xf32, #tpu.memory_space<vmem>>, vector<2x2x5x32xf32>
    tpu.vector_store %arg24[%c0_224, %c1_225, %c3_226, %c0_227], %193 {strides = array<i32>} : memref<2x5x8x32xf32, #tpu.memory_space<vmem>>, vector<2x2x5x32xf32>,
    %c0_228 = arith.constant 0 : index
    %c1_229 = arith.constant 1 : index
    %c1_230 = arith.constant 1 : index
    %c0_231 = arith.constant 0 : index
    %195 = vector.load %arg24[%c0_228, %c1_229, %c1_230, %c0_231] : memref<2x5x8x32xf32, #tpu.memory_space<vmem>>, vector<2x2x2x32xf32>
    tpu.vector_store %arg24[%c0_228, %c1_229, %c1_230, %c0_231], %186 {strides = array<i32>} : memref<2x5x8x32xf32, #tpu.memory_space<vmem>>, vector<2x2x2x32xf32>,
    %c0_232 = arith.constant 0 : index
    %c0_233 = arith.constant 0 : index
    %c0_234 = arith.constant 0 : index
    %c0_235 = arith.constant 0 : index
    %196 = vector.load %arg24[%c0_232, %c0_233, %c0_234, %c0_235] : memref<2x5x8x32xf32, #tpu.memory_space<vmem>>, vector<2x5x8x32xf32>
    %197 = vector.shape_cast %196 : vector<2x5x8x32xf32> to vector<80x32xf32>
    %198 = vector.extract_strided_slice %197 {offsets = [0, 0], sizes = [72, 32], strides = [1, 1]} : vector<80x32xf32> to vector<72x32xf32>
    %c0_236 = arith.constant 0 : index
    %c0_237 = arith.constant 0 : index
    %199 = vector.load %arg25[%c0_236, %c0_237] : memref<72x96xf32, #tpu.memory_space<vmem>>, vector<72x32xf32>
    tpu.vector_store %arg25[%c0_236, %c0_237], %198 {strides = array<i32>} : memref<72x96xf32, #tpu.memory_space<vmem>>, vector<72x32xf32>,
    %200 = vector.extract_strided_slice %197 {offsets = [1, 0], sizes = [72, 32], strides = [1, 1]} : vector<80x32xf32> to vector<72x32xf32>
    %c0_238 = arith.constant 0 : index
    %c32_239 = arith.constant 32 : index
    %201 = vector.load %arg25[%c0_238, %c32_239] : memref<72x96xf32, #tpu.memory_space<vmem>>, vector<72x32xf32>
    tpu.vector_store %arg25[%c0_238, %c32_239], %200 {strides = array<i32>} : memref<72x96xf32, #tpu.memory_space<vmem>>, vector<72x32xf32>,
    %202 = vector.extract_strided_slice %197 {offsets = [2, 0], sizes = [72, 32], strides = [1, 1]} : vector<80x32xf32> to vector<72x32xf32>
    %c0_240 = arith.constant 0 : index
    %c64_241 = arith.constant 64 : index
    %203 = vector.load %arg25[%c0_240, %c64_241] : memref<72x96xf32, #tpu.memory_space<vmem>>, vector<72x32xf32>
    tpu.vector_store %arg25[%c0_240, %c64_241], %202 {strides = array<i32>} : memref<72x96xf32, #tpu.memory_space<vmem>>, vector<72x32xf32>,
    %c0_242 = arith.constant 0 : index
    %c0_243 = arith.constant 0 : index
    %204 = vector.load %arg25[%c0_242, %c0_243] : memref<72x96xf32, #tpu.memory_space<vmem>>, vector<56x96xf32>
    %c0_244 = arith.constant 0 : index
    %c0_245 = arith.constant 0 : index
    %c0_246 = arith.constant 0 : index
    %205 = vector.load %arg11[%c0_244, %c0_245, %c0_246] : memref<3x96x32xf32, #tpu.memory_space<vmem>>, vector<1x96x32xf32>
    %206 = vector.shape_cast %205 : vector<1x96x32xf32> to vector<96x32xf32>
    %cst_247 = arith.constant dense<0.000000e+00> : vector<56x32xf32>
    %207 = tpu.matmul %204, %206, %cst_247 {dimension_numbers = #tpu.dot_dimension_numbers<[1], [0], [0], [1], [0, 0, 1, 1], [], []>} : vector<56x96xf32>, vector<96x32xf32>, vector<56x32xf32> -> vector<56x32xf32>
    %c0_248 = arith.constant 0 : index
    %c0_249 = arith.constant 0 : index
    %208 = vector.load %arg26[%c0_248, %c0_249] : memref<56x32xf32, #tpu.memory_space<vmem>>, vector<56x32xf32>
    tpu.vector_store %arg26[%c0_248, %c0_249], %207 {strides = array<i32>} : memref<56x32xf32, #tpu.memory_space<vmem>>, vector<56x32xf32>,
    %c8_250 = arith.constant 8 : index
    %c0_251 = arith.constant 0 : index
    %209 = vector.load %arg25[%c8_250, %c0_251] : memref<72x96xf32, #tpu.memory_space<vmem>>, vector<56x96xf32>
    %c1_252 = arith.constant 1 : index
    %c0_253 = arith.constant 0 : index
    %c0_254 = arith.constant 0 : index
    %210 = vector.load %arg11[%c1_252, %c0_253, %c0_254] : memref<3x96x32xf32, #tpu.memory_space<vmem>>, vector<1x96x32xf32>
    %211 = vector.shape_cast %210 : vector<1x96x32xf32> to vector<96x32xf32>
    %cst_255 = arith.constant dense<0.000000e+00> : vector<56x32xf32>
    %212 = tpu.matmul %209, %211, %cst_255 {dimension_numbers = #tpu.dot_dimension_numbers<[1], [0], [0], [1], [0, 0, 1, 1], [], []>} : vector<56x96xf32>, vector<96x32xf32>, vector<56x32xf32> -> vector<56x32xf32>
    %c0_256 = arith.constant 0 : index
    %c0_257 = arith.constant 0 : index
    %213 = vector.load %arg26[%c0_256, %c0_257] : memref<56x32xf32, #tpu.memory_space<vmem>>, vector<56x32xf32>
    %214 = arith.addf %213, %212 : vector<56x32xf32>
    %c0_258 = arith.constant 0 : index
    %c0_259 = arith.constant 0 : index
    %215 = vector.load %arg26[%c0_258, %c0_259] : memref<56x32xf32, #tpu.memory_space<vmem>>, vector<56x32xf32>
    tpu.vector_store %arg26[%c0_258, %c0_259], %214 {strides = array<i32>} : memref<56x32xf32, #tpu.memory_space<vmem>>, vector<56x32xf32>,
    %c16_260 = arith.constant 16 : index
    %c0_261 = arith.constant 0 : index
    %216 = vector.load %arg25[%c16_260, %c0_261] : memref<72x96xf32, #tpu.memory_space<vmem>>, vector<56x96xf32>
    %c2_262 = arith.constant 2 : index
    %c0_263 = arith.constant 0 : index
    %c0_264 = arith.constant 0 : index
    %217 = vector.load %arg11[%c2_262, %c0_263, %c0_264] : memref<3x96x32xf32, #tpu.memory_space<vmem>>, vector<1x96x32xf32>
    %218 = vector.shape_cast %217 : vector<1x96x32xf32> to vector<96x32xf32>
    %cst_265 = arith.constant dense<0.000000e+00> : vector<56x32xf32>
    %219 = tpu.matmul %216, %218, %cst_265 {dimension_numbers = #tpu.dot_dimension_numbers<[1], [0], [0], [1], [0, 0, 1, 1], [], []>} : vector<56x96xf32>, vector<96x32xf32>, vector<56x32xf32> -> vector<56x32xf32>
    %c0_266 = arith.constant 0 : index
    %c0_267 = arith.constant 0 : index
    %220 = vector.load %arg26[%c0_266, %c0_267] : memref<56x32xf32, #tpu.memory_space<vmem>>, vector<56x32xf32>
    %221 = arith.addf %220, %219 : vector<56x32xf32>
    %c0_268 = arith.constant 0 : index
    %c0_269 = arith.constant 0 : index
    %222 = vector.load %arg26[%c0_268, %c0_269] : memref<56x32xf32, #tpu.memory_space<vmem>>, vector<56x32xf32>
    tpu.vector_store %arg26[%c0_268, %c0_269], %221 {strides = array<i32>} : memref<56x32xf32, #tpu.memory_space<vmem>>, vector<56x32xf32>,
    %c0_270 = arith.constant 0 : index
    %c0_271 = arith.constant 0 : index
    %223 = vector.load %arg26[%c0_270, %c0_271] : memref<56x32xf32, #tpu.memory_space<vmem>>, vector<56x32xf32>
    %c0_272 = arith.constant 0 : index
    %c0_273 = arith.constant 0 : index
    %224 = vector.load %arg12[%c0_272, %c0_273] : memref<1x32xf32, #tpu.memory_space<vmem>>, vector<1x32xf32>
    %225 = vector.broadcast %224 : vector<1x32xf32> to vector<56x32xf32>
    %226 = arith.mulf %223, %225 : vector<56x32xf32>
    %c0_274 = arith.constant 0 : index
    %c0_275 = arith.constant 0 : index
    %227 = vector.load %arg13[%c0_274, %c0_275] : memref<1x32xf32, #tpu.memory_space<vmem>>, vector<1x32xf32>
    %228 = vector.broadcast %227 : vector<1x32xf32> to vector<56x32xf32>
    %229 = arith.addf %226, %228 : vector<56x32xf32>
    %cst_276 = arith.constant 0.000000e+00 : f32
    %230 = vector.broadcast %cst_276 : f32 to vector<56x32xf32>
    %231 = arith.maximumf %229, %230 : vector<56x32xf32>
    %232 = vector.extract_strided_slice %231 {offsets = [0, 0], sizes = [16, 32], strides = [1, 1]} : vector<56x32xf32> to vector<16x32xf32>
    %233 = vector.shape_cast %232 : vector<16x32xf32> to vector<2x8x32xf32>
    %234 = vector.shape_cast %233 : vector<2x8x32xf32> to vector<1x2x8x32xf32>
    %cst_277 = arith.constant dense<0xFF800000> : vector<1x8x32xf32>
    %235 = vector.multi_reduction <maximumf>, %234, %cst_277 [1] : vector<1x2x8x32xf32> to vector<1x8x32xf32>
    %236 = vector.extract_strided_slice %235 {offsets = [0, 0, 0], sizes = [1, 2, 32], strides = [1, 1, 1]} : vector<1x8x32xf32> to vector<1x2x32xf32>
    %237 = vector.shape_cast %236 : vector<1x2x32xf32> to vector<1x1x2x32xf32>
    %cst_278 = arith.constant dense<0xFF800000> : vector<1x1x32xf32>
    %238 = vector.multi_reduction <maximumf>, %237, %cst_278 [2] : vector<1x1x2x32xf32> to vector<1x1x32xf32>
    %239 = vector.extract_strided_slice %231 {offsets = [40, 0], sizes = [16, 32], strides = [1, 1]} : vector<56x32xf32> to vector<16x32xf32>
    %240 = vector.shape_cast %239 : vector<16x32xf32> to vector<2x8x32xf32>
    %241 = vector.shape_cast %240 : vector<2x8x32xf32> to vector<1x2x8x32xf32>
    %cst_279 = arith.constant dense<0xFF800000> : vector<1x8x32xf32>
    %242 = vector.multi_reduction <maximumf>, %241, %cst_279 [1] : vector<1x2x8x32xf32> to vector<1x8x32xf32>
    %243 = vector.extract_strided_slice %242 {offsets = [0, 0, 0], sizes = [1, 2, 32], strides = [1, 1, 1]} : vector<1x8x32xf32> to vector<1x2x32xf32>
    %244 = vector.shape_cast %243 : vector<1x2x32xf32> to vector<1x1x2x32xf32>
    %cst_280 = arith.constant dense<0xFF800000> : vector<1x1x32xf32>
    %245 = vector.multi_reduction <maximumf>, %244, %cst_280 [2] : vector<1x1x2x32xf32> to vector<1x1x32xf32>
    %246 = vector.shape_cast %238 : vector<1x1x32xf32> to vector<1x1x1x32xf32>
    %247 = vector.shape_cast %245 : vector<1x1x32xf32> to vector<1x1x1x32xf32>
    %248 = tpu.concatenate %246, %247 in 0 : vector<1x1x1x32xf32>, vector<1x1x1x32xf32> -> vector<2x1x1x32xf32>
    %cst_281 = arith.constant dense<0.000000e+00> : vector<2x32xf32>
    %249 = vector.multi_reduction <add>, %248, %cst_281 [1, 2] : vector<2x1x1x32xf32> to vector<2x32xf32>
    %cst_282 = arith.constant 1.000000e+00 : f32
    %250 = vector.broadcast %cst_282 : f32 to vector<2x32xf32>
    %251 = arith.divf %249, %250 : vector<2x32xf32>
    %c0_283 = arith.constant 0 : index
    %c0_284 = arith.constant 0 : index
    %c0_285 = arith.constant 0 : index
    %252 = vector.load %arg14[%c0_283, %c0_284, %c0_285] : memref<1x2x32xf32, #tpu.memory_space<vmem>>, vector<1x2x32xf32>
    %253 = vector.shape_cast %252 : vector<1x2x32xf32> to vector<2x32xf32>
    %254 = vector.shape_cast %251 : vector<2x32xf32> to vector<1x2x32xf32>
    tpu.vector_store %arg14[%c0_283, %c0_284, %c0_285], %254 {strides = array<i32>} : memref<1x2x32xf32, #tpu.memory_space<vmem>>, vector<1x2x32xf32>,
    return
  }
  func.func @transform_0(%arg0: i32) -> (i32, i32, i32, i32) {
    %c0_i32 = arith.constant 0 : i32
    %c0_i32_0 = arith.constant 0 : i32
    %c0_i32_1 = arith.constant 0 : i32
    %c0_i32_2 = arith.constant 0 : i32
    return %arg0, %c0_i32, %c0_i32_0, %c0_i32_1 : i32, i32, i32, i32
  }
  func.func @transform_1(%arg0: i32) -> (i32, i32, i32) {
    %c0_i32 = arith.constant 0 : i32
    %c0_i32_0 = arith.constant 0 : i32
    %c0_i32_1 = arith.constant 0 : i32
    %c0_i32_2 = arith.constant 0 : i32
    return %c0_i32, %c0_i32_0, %c0_i32_1 : i32, i32, i32
  }
  func.func @transform_2(%arg0: i32) -> (i32, i32) {
    %c0_i32 = arith.constant 0 : i32
    %c0_i32_0 = arith.constant 0 : i32
    %c0_i32_1 = arith.constant 0 : i32
    return %c0_i32, %c0_i32_0 : i32, i32
  }
  func.func @transform_3(%arg0: i32) -> (i32, i32) {
    %c0_i32 = arith.constant 0 : i32
    %c0_i32_0 = arith.constant 0 : i32
    %c0_i32_1 = arith.constant 0 : i32
    return %c0_i32, %c0_i32_0 : i32, i32
  }
  func.func @transform_4(%arg0: i32) -> (i32, i32, i32) {
    %c0_i32 = arith.constant 0 : i32
    %c0_i32_0 = arith.constant 0 : i32
    %c0_i32_1 = arith.constant 0 : i32
    %c0_i32_2 = arith.constant 0 : i32
    return %c0_i32, %c0_i32_0, %c0_i32_1 : i32, i32, i32
  }
  func.func @transform_5(%arg0: i32) -> (i32, i32) {
    %c0_i32 = arith.constant 0 : i32
    %c0_i32_0 = arith.constant 0 : i32
    %c0_i32_1 = arith.constant 0 : i32
    return %c0_i32, %c0_i32_0 : i32, i32
  }
  func.func @transform_6(%arg0: i32) -> (i32, i32) {
    %c0_i32 = arith.constant 0 : i32
    %c0_i32_0 = arith.constant 0 : i32
    %c0_i32_1 = arith.constant 0 : i32
    return %c0_i32, %c0_i32_0 : i32, i32
  }
  func.func @transform_7(%arg0: i32) -> (i32, i32, i32) {
    %c0_i32 = arith.constant 0 : i32
    %c0_i32_0 = arith.constant 0 : i32
    %c0_i32_1 = arith.constant 0 : i32
    %c0_i32_2 = arith.constant 0 : i32
    return %c0_i32, %c0_i32_0, %c0_i32_1 : i32, i32, i32
  }
  func.func @transform_8(%arg0: i32) -> (i32, i32) {
    %c0_i32 = arith.constant 0 : i32
    %c0_i32_0 = arith.constant 0 : i32
    %c0_i32_1 = arith.constant 0 : i32
    return %c0_i32, %c0_i32_0 : i32, i32
  }
  func.func @transform_9(%arg0: i32) -> (i32, i32) {
    %c0_i32 = arith.constant 0 : i32
    %c0_i32_0 = arith.constant 0 : i32
    %c0_i32_1 = arith.constant 0 : i32
    return %c0_i32, %c0_i32_0 : i32, i32
  }
  func.func @transform_10(%arg0: i32) -> (i32, i32, i32) {
    %c0_i32 = arith.constant 0 : i32
    %c0_i32_0 = arith.constant 0 : i32
    %c0_i32_1 = arith.constant 0 : i32
    %c0_i32_2 = arith.constant 0 : i32
    return %c0_i32, %c0_i32_0, %c0_i32_1 : i32, i32, i32
  }
  func.func @transform_11(%arg0: i32) -> (i32, i32) {
    %c0_i32 = arith.constant 0 : i32
    %c0_i32_0 = arith.constant 0 : i32
    %c0_i32_1 = arith.constant 0 : i32
    return %c0_i32, %c0_i32_0 : i32, i32
  }
  func.func @transform_12(%arg0: i32) -> (i32, i32) {
    %c0_i32 = arith.constant 0 : i32
    %c0_i32_0 = arith.constant 0 : i32
    %c0_i32_1 = arith.constant 0 : i32
    return %c0_i32, %c0_i32_0 : i32, i32
  }
  func.func @transform_13(%arg0: i32) -> (i32, i32, i32) {
    %c0_i32 = arith.constant 0 : i32
    %c0_i32_0 = arith.constant 0 : i32
    %c0_i32_1 = arith.constant 0 : i32
    return %arg0, %c0_i32, %c0_i32_0 : i32, i32, i32
  }
}

</mosaic_0001>

<llo_original>
// kernel: feature_extractor_forward.1
$region0: #{feature_extractor_forward.1}
  #allocation0 [shape = 'u32[]', space=smem, size = 0x4, offset = 0x4, fixed_abs, tag = 'smem constant byte address 0x4 - core index']
  #allocation1 [shape = 'u32[72,128]{1,0:T(1,128)}', space=vmem, size = 0x9000, scoped, tag = 'internal scratch']
  #allocation2 [shape = 'f32[2,19,24,3]{3,2,1,0:T(8,128)}', space=vmem, size = 0x72000, scoped, tag = 'scratch operand']
  #allocation3 [shape = 'f32[888,9]{1,0:T(8,128)}', space=vmem, size = 0x6f000, scoped, tag = 'scratch operand']
  #allocation4 [shape = 'f32[840,32]{1,0:T(8,128)}', space=vmem, size = 0x69000, scoped, tag = 'scratch operand']
  #allocation5 [shape = 'f32[2,11,16,32]{3,2,1,0:T(8,128)}', space=vmem, size = 0x2c000, scoped, tag = 'scratch operand']
  #allocation6 [shape = 'f32[336,96]{1,0:T(8,128)}', space=vmem, size = 0x2a000, scoped, tag = 'scratch operand']
  #allocation7 [shape = 'f32[304,32]{1,0:T(8,128)}', space=vmem, size = 0x26000, scoped, tag = 'scratch operand']
  #allocation8 [shape = 'f32[2,7,8,32]{3,2,1,0:T(8,128)}', space=vmem, size = 0xe000, scoped, tag = 'scratch operand']
  #allocation9 [shape = 'f32[104,96]{1,0:T(8,128)}', space=vmem, size = 0xd000, scoped, tag = 'scratch operand']
  #allocation10 [shape = 'f32[88,32]{1,0:T(8,128)}', space=vmem, size = 0xb000, scoped, tag = 'scratch operand']
  #allocation11 [shape = 'f32[2,5,8,32]{3,2,1,0:T(8,128)}', space=vmem, size = 0xa000, scoped, tag = 'scratch operand']
  #allocation12 [shape = 'f32[72,96]{1,0:T(8,128)}', space=vmem, size = 0x9000, scoped, tag = 'scratch operand']
  #allocation13 [shape = 'f32[56,32]{1,0:T(8,128)}', space=vmem, size = 0x7000, scoped, tag = 'scratch operand']
  %s0 = inlined_call_operand.vmem [shape: f32[4,16,16,3], index: 0, kind: input, shape index: {}]
  %s1 = inlined_call_operand.vmem [shape: f32[3,9,32], index: 1, kind: input, shape index: {}]
  %s2 = inlined_call_operand.vmem [shape: f32[1,32], index: 2, kind: input, shape index: {}]
  %s3 = inlined_call_operand.vmem [shape: f32[1,32], index: 3, kind: input, shape index: {}]
  %s4 = inlined_call_operand.vmem [shape: f32[3,96,32], index: 4, kind: input, shape index: {}]
  %s5 = inlined_call_operand.vmem [shape: f32[1,32], index: 5, kind: input, shape index: {}]
  %s6 = inlined_call_operand.vmem [shape: f32[1,32], index: 6, kind: input, shape index: {}]
  %s7 = inlined_call_operand.vmem [shape: f32[3,96,32], index: 7, kind: input, shape index: {}]
  %s8 = inlined_call_operand.vmem [shape: f32[1,32], index: 8, kind: input, shape index: {}]
  %s9 = inlined_call_operand.vmem [shape: f32[1,32], index: 9, kind: input, shape index: {}]
  %s10 = inlined_call_operand.vmem [shape: f32[3,96,32], index: 10, kind: input, shape index: {}]
  %s11 = inlined_call_operand.vmem [shape: f32[1,32], index: 11, kind: input, shape index: {}]
  %s12 = inlined_call_operand.vmem [shape: f32[1,32], index: 12, kind: input, shape index: {}]
  %s13 = inlined_call_operand.hbm [shape: f32[2,2,32], index: 13, kind: output, shape index: {}]
  %s14 = sld [smem:[#allocation0]]
  $region85: #{feature_extractor_forward.1} parent=0
    _
  %s16 = ssub.s32 1, %s14
  %s17 = scalar_select 0, %s16, %s14
  $region1: #{feature_extractor_forward.1} parent=0
    #allocation14 [shape = 'u8[2048]{0}', space=vmem, size = 0x800, scoped, tag = 'output window, operand 0']
    #allocation15 [shape = 's32[2]{0}', space=sflag, size = 0x8, scoped, tag = 'scoped memory for feature_extractor_forward.1']
    %18 = vsyncpa [#allocation15], 0
    %s19 = scalar_lea.sflag [#allocation15], 1
    %20 = vsyncpa %s19, 0
    loop: start=0, step=1, limit=4
    $region2: #{feature_extractor_forward.1} parent=1 // loop_pre_header
      _
    $region3: #{feature_extractor_forward.1} parent=1 // loop_header
      %s22 = sphi 0, %s26
      %p23 = scmp.ge.s32.totalorder %s22, 4
      %s32 = sphi 0, %s34
      %s35 = sphi 0, %s32
      %s36 = sphi 0, %s35
      %s52 = sphi 0, %s36
      %s56 = sphi 0, %s56
      %s58 = sphi 0, %s56
      %s59 = sphi 0, %s58
      %s73 = sphi 0, %s59
      %s77 = sphi 0, %s77
      %s79 = sphi 0, %s77
      %s80 = sphi 0, %s79
      %s94 = sphi 0, %s80
      %s98 = sphi 0, %s98
      %s100 = sphi 0, %s98
      %s101 = sphi 0, %s100
      %s115 = sphi 0, %s101
      %s119 = sphi 0, %s119
      %s121 = sphi 0, %s119
      %s122 = sphi 0, %s121
      %s136 = sphi 0, %s122
      %s140 = sphi 0, %s140
      %s142 = sphi 0, %s140
      %s143 = sphi 0, %s142
      %s157 = sphi 0, %s143
      %s161 = sphi 0, %s161
      %s163 = sphi 0, %s161
      %s164 = sphi 0, %s163
      %s178 = sphi 0, %s164
      %s182 = sphi 0, %s182
      %s184 = sphi 0, %s182
      %s185 = sphi 0, %s184
      %s199 = sphi 0, %s185
      %s203 = sphi 0, %s203
      %s205 = sphi 0, %s203
      %s206 = sphi 0, %s205
      %s220 = sphi 0, %s206
      %s224 = sphi 0, %s224
      %s226 = sphi 0, %s224
      %s227 = sphi 0, %s226
      %s241 = sphi 0, %s227
      %s245 = sphi 0, %s245
      %s247 = sphi 0, %s245
      %s248 = sphi 0, %s247
      %s262 = sphi 0, %s248
      %s266 = sphi 0, %s266
      %s268 = sphi 0, %s266
      %s269 = sphi 0, %s268
      %s283 = sphi 0, %s269
      %s287 = sphi 0, %s287
      %s289 = sphi 0, %s287
      %s290 = sphi 0, %s289
      %s304 = sphi 0, %s290
      %s310 = sphi 0, %s312
      %s313 = sphi 0, %s310
      %s314 = sphi 0, %s313
      %s330 = sphi 0, %s314
    $region4: #{feature_extractor_forward.1} parent=1 // loop_header_branch
      %25 = sbr.rel (%p23) target = $region8
    $region5: #{feature_extractor_forward.1} parent=1 // loop_body
      %s27 = ssub.s32 %s22, 1
      %s28 = ssub.s32 %s22, 2
      %s29 = sadd.s32 %s22, 1
      %s30 = ssub.s32 %s22, %s29
      %p31 = scmp.eq.s32.totalorder %s30, 0
      %s33 = sadd.s32 %s32, 1
      %s34 = scalar_select %p31, %s32, %s33
      %p37 = pneg %p31
      %p38 = scmp.eq.s32.totalorder %s22, 1
      %p39 = por %p37, %p38
      %p40 = scmp.ne.s32.totalorder %s32, %s35
      %p41 = scmp.eq.s32.totalorder %s22, 0
      %p42 = por %p40, %p41
      %p43 = scmp.ne.s32.totalorder %s32, %s35
      %p44 = scmp.eq.s32.totalorder %s27, 1
      %p45 = por %p43, %p44
      %p46 = scmp.ne.s32.totalorder %s35, %s36
      %p47 = scmp.eq.s32.totalorder %s27, 0
      %p48 = por %p46, %p47
      %p49 = scmp.ne.s32.totalorder %s35, %s36
      %p50 = scmp.eq.s32.totalorder %s28, 1
      %p51 = por %p49, %p50
      %p53 = scmp.ne.s32.totalorder %s36, %s52
      %p54 = scmp.eq.s32.totalorder %s28, 0
      %p55 = por %p53, %p54
      %s57 = sadd.s32 %s56, 1
      %p60 = scmp.eq.s32.totalorder %s22, 1
      %p61 = scmp.ne.s32.totalorder %s56, %s58
      %p62 = scmp.eq.s32.totalorder %s22, 0
      %p63 = por %p61, %p62
      %p64 = scmp.ne.s32.totalorder %s56, %s58
      %p65 = scmp.eq.s32.totalorder %s27, 1
      %p66 = por %p64, %p65
      %p67 = scmp.ne.s32.totalorder %s58, %s59
      %p68 = scmp.eq.s32.totalorder %s27, 0
      %p69 = por %p67, %p68
      %p70 = scmp.ne.s32.totalorder %s58, %s59
      %p71 = scmp.eq.s32.totalorder %s28, 1
      %p72 = por %p70, %p71
      %p74 = scmp.ne.s32.totalorder %s59, %s73
      %p75 = scmp.eq.s32.totalorder %s28, 0
      %p76 = por %p74, %p75
      %s78 = sadd.s32 %s77, 1
      %p81 = scmp.eq.s32.totalorder %s22, 1
      %p82 = scmp.ne.s32.totalorder %s77, %s79
      %p83 = scmp.eq.s32.totalorder %s22, 0
      %p84 = por %p82, %p83
      %p85 = scmp.ne.s32.totalorder %s77, %s79
      %p86 = scmp.eq.s32.totalorder %s27, 1
      %p87 = por %p85, %p86
      %p88 = scmp.ne.s32.totalorder %s79, %s80
      %p89 = scmp.eq.s32.totalorder %s27, 0
      %p90 = por %p88, %p89
      %p91 = scmp.ne.s32.totalorder %s79, %s80
      %p92 = scmp.eq.s32.totalorder %s28, 1
      %p93 = por %p91, %p92
      %p95 = scmp.ne.s32.totalorder %s80, %s94
      %p96 = scmp.eq.s32.totalorder %s28, 0
      %p97 = por %p95, %p96
      %s99 = sadd.s32 %s98, 1
      %p102 = scmp.eq.s32.totalorder %s22, 1
      %p103 = scmp.ne.s32.totalorder %s98, %s100
      %p104 = scmp.eq.s32.totalorder %s22, 0
      %p105 = por %p103, %p104
      %p106 = scmp.ne.s32.totalorder %s98, %s100
      %p107 = scmp.eq.s32.totalorder %s27, 1
      %p108 = por %p106, %p107
      %p109 = scmp.ne.s32.totalorder %s100, %s101
      %p110 = scmp.eq.s32.totalorder %s27, 0
      %p111 = por %p109, %p110
      %p112 = scmp.ne.s32.totalorder %s100, %s101
      %p113 = scmp.eq.s32.totalorder %s28, 1
      %p114 = por %p112, %p113
      %p116 = scmp.ne.s32.totalorder %s101, %s115
      %p117 = scmp.eq.s32.totalorder %s28, 0
      %p118 = por %p116, %p117
      %s120 = sadd.s32 %s119, 1
      %p123 = scmp.eq.s32.totalorder %s22, 1
      %p124 = scmp.ne.s32.totalorder %s119, %s121
      %p125 = scmp.eq.s32.totalorder %s22, 0
      %p126 = por %p124, %p125
      %p127 = scmp.ne.s32.totalorder %s119, %s121
      %p128 = scmp.eq.s32.totalorder %s27, 1
      %p129 = por %p127, %p128
      %p130 = scmp.ne.s32.totalorder %s121, %s122
      %p131 = scmp.eq.s32.totalorder %s27, 0
      %p132 = por %p130, %p131
      %p133 = scmp.ne.s32.totalorder %s121, %s122
      %p134 = scmp.eq.s32.totalorder %s28, 1
      %p135 = por %p133, %p134
      %p137 = scmp.ne.s32.totalorder %s122, %s136
      %p138 = scmp.eq.s32.totalorder %s28, 0
      %p139 = por %p137, %p138
      %s141 = sadd.s32 %s140, 1
      %p144 = scmp.eq.s32.totalorder %s22, 1
      %p145 = scmp.ne.s32.totalorder %s140, %s142
      %p146 = scmp.eq.s32.totalorder %s22, 0
      %p147 = por %p145, %p146
      %p148 = scmp.ne.s32.totalorder %s140, %s142
      %p149 = scmp.eq.s32.totalorder %s27, 1
      %p150 = por %p148, %p149
      %p151 = scmp.ne.s32.totalorder %s142, %s143
      %p152 = scmp.eq.s32.totalorder %s27, 0
      %p153 = por %p151, %p152
      %p154 = scmp.ne.s32.totalorder %s142, %s143
      %p155 = scmp.eq.s32.totalorder %s28, 1
      %p156 = por %p154, %p155
      %p158 = scmp.ne.s32.totalorder %s143, %s157
      %p159 = scmp.eq.s32.totalorder %s28, 0
      %p160 = por %p158, %p159
      %s162 = sadd.s32 %s161, 1
      %p165 = scmp.eq.s32.totalorder %s22, 1
      %p166 = scmp.ne.s32.totalorder %s161, %s163
      %p167 = scmp.eq.s32.totalorder %s22, 0
      %p168 = por %p166, %p167
      %p169 = scmp.ne.s32.totalorder %s161, %s163
      %p170 = scmp.eq.s32.totalorder %s27, 1
      %p171 = por %p169, %p170
      %p172 = scmp.ne.s32.totalorder %s163, %s164
      %p173 = scmp.eq.s32.totalorder %s27, 0
      %p174 = por %p172, %p173
      %p175 = scmp.ne.s32.totalorder %s163, %s164
      %p176 = scmp.eq.s32.totalorder %s28, 1
      %p177 = por %p175, %p176
      %p179 = scmp.ne.s32.totalorder %s164, %s178
      %p180 = scmp.eq.s32.totalorder %s28, 0
      %p181 = por %p179, %p180
      %s183 = sadd.s32 %s182, 1
      %p186 = scmp.eq.s32.totalorder %s22, 1
      %p187 = scmp.ne.s32.totalorder %s182, %s184
      %p188 = scmp.eq.s32.totalorder %s22, 0
      %p189 = por %p187, %p188
      %p190 = scmp.ne.s32.totalorder %s182, %s184
      %p191 = scmp.eq.s32.totalorder %s27, 1
      %p192 = por %p190, %p191
      %p193 = scmp.ne.s32.totalorder %s184, %s185
      %p194 = scmp.eq.s32.totalorder %s27, 0
      %p195 = por %p193, %p194
      %p196 = scmp.ne.s32.totalorder %s184, %s185
      %p197 = scmp.eq.s32.totalorder %s28, 1
      %p198 = por %p196, %p197
      %p200 = scmp.ne.s32.totalorder %s185, %s199
      %p201 = scmp.eq.s32.totalorder %s28, 0
      %p202 = por %p200, %p201
      %s204 = sadd.s32 %s203, 1
      %p207 = scmp.eq.s32.totalorder %s22, 1
      %p208 = scmp.ne.s32.totalorder %s203, %s205
      %p209 = scmp.eq.s32.totalorder %s22, 0
      %p210 = por %p208, %p209
      %p211 = scmp.ne.s32.totalorder %s203, %s205
      %p212 = scmp.eq.s32.totalorder %s27, 1
      %p213 = por %p211, %p212
      %p214 = scmp.ne.s32.totalorder %s205, %s206
      %p215 = scmp.eq.s32.totalorder %s27, 0
      %p216 = por %p214, %p215
      %p217 = scmp.ne.s32.totalorder %s205, %s206
      %p218 = scmp.eq.s32.totalorder %s28, 1
      %p219 = por %p217, %p218
      %p221 = scmp.ne.s32.totalorder %s206, %s220
      %p222 = scmp.eq.s32.totalorder %s28, 0
      %p223 = por %p221, %p222
      %s225 = sadd.s32 %s224, 1
      %p228 = scmp.eq.s32.totalorder %s22, 1
      %p229 = scmp.ne.s32.totalorder %s224, %s226
      %p230 = scmp.eq.s32.totalorder %s22, 0
      %p231 = por %p229, %p230
      %p232 = scmp.ne.s32.totalorder %s224, %s226
      %p233 = scmp.eq.s32.totalorder %s27, 1
      %p234 = por %p232, %p233
      %p235 = scmp.ne.s32.totalorder %s226, %s227
      %p236 = scmp.eq.s32.totalorder %s27, 0
      %p237 = por %p235, %p236
      %p238 = scmp.ne.s32.totalorder %s226, %s227
      %p239 = scmp.eq.s32.totalorder %s28, 1
      %p240 = por %p238, %p239
      %p242 = scmp.ne.s32.totalorder %s227, %s241
      %p243 = scmp.eq.s32.totalorder %s28, 0
      %p244 = por %p242, %p243
      %s246 = sadd.s32 %s245, 1
      %p249 = scmp.eq.s32.totalorder %s22, 1
      %p250 = scmp.ne.s32.totalorder %s245, %s247
      %p251 = scmp.eq.s32.totalorder %s22, 0
      %p252 = por %p250, %p251
      %p253 = scmp.ne.s32.totalorder %s245, %s247
      %p254 = scmp.eq.s32.totalorder %s27, 1
      %p255 = por %p253, %p254
      %p256 = scmp.ne.s32.totalorder %s247, %s248
      %p257 = scmp.eq.s32.totalorder %s27, 0
      %p258 = por %p256, %p257
      %p259 = scmp.ne.s32.totalorder %s247, %s248
      %p260 = scmp.eq.s32.totalorder %s28, 1
      %p261 = por %p259, %p260
      %p263 = scmp.ne.s32.totalorder %s248, %s262
      %p264 = scmp.eq.s32.totalorder %s28, 0
      %p265 = por %p263, %p264
      %s267 = sadd.s32 %s266, 1
      %p270 = scmp.eq.s32.totalorder %s22, 1
      %p271 = scmp.ne.s32.totalorder %s266, %s268
      %p272 = scmp.eq.s32.totalorder %s22, 0
      %p273 = por %p271, %p272
      %p274 = scmp.ne.s32.totalorder %s266, %s268
      %p275 = scmp.eq.s32.totalorder %s27, 1
      %p276 = por %p274, %p275
      %p277 = scmp.ne.s32.totalorder %s268, %s269
      %p278 = scmp.eq.s32.totalorder %s27, 0
      %p279 = por %p277, %p278
      %p280 = scmp.ne.s32.totalorder %s268, %s269
      %p281 = scmp.eq.s32.totalorder %s28, 1
      %p282 = por %p280, %p281
      %p284 = scmp.ne.s32.totalorder %s269, %s283
      %p285 = scmp.eq.s32.totalorder %s28, 0
      %p286 = por %p284, %p285
      %s288 = sadd.s32 %s287, 1
      %p291 = scmp.eq.s32.totalorder %s22, 1
      %p292 = scmp.ne.s32.totalorder %s287, %s289
      %p293 = scmp.eq.s32.totalorder %s22, 0
      %p294 = por %p292, %p293
      %p295 = scmp.ne.s32.totalorder %s287, %s289
      %p296 = scmp.eq.s32.totalorder %s27, 1
      %p297 = por %p295, %p296
      %p298 = scmp.ne.s32.totalorder %s289, %s290
      %p299 = scmp.eq.s32.totalorder %s27, 0
      %p300 = por %p298, %p299
      %p301 = scmp.ne.s32.totalorder %s289, %s290
      %p302 = scmp.eq.s32.totalorder %s28, 1
      %p303 = por %p301, %p302
      %p305 = scmp.ne.s32.totalorder %s290, %s304
      %p306 = scmp.eq.s32.totalorder %s28, 0
      %p307 = por %p305, %p306
      %s308 = ssub.s32 %s22, %s29
      %p309 = scmp.eq.s32.totalorder %s308, 0
      %s311 = sadd.s32 %s310, 1
      %s312 = scalar_select %p309, %s310, %s311
      %p315 = pneg %p309
      %p316 = scmp.eq.s32.totalorder %s22, 1
      %p317 = por %p315, %p316
      %p318 = scmp.ne.s32.totalorder %s310, %s313
      %p319 = scmp.eq.s32.totalorder %s22, 0
      %p320 = por %p318, %p319
      %p321 = scmp.ne.s32.totalorder %s310, %s313
      %p322 = scmp.eq.s32.totalorder %s27, 1
      %p323 = por %p321, %p322
      %p324 = scmp.ne.s32.totalorder %s313, %s314
      %p325 = scmp.eq.s32.totalorder %s27, 0
      %p326 = por %p324, %p325
      %p327 = scmp.ne.s32.totalorder %s313, %s314
      %p328 = scmp.eq.s32.totalorder %s28, 1
      %p329 = por %p327, %p328
      %p331 = scmp.ne.s32.totalorder %s314, %s330
      %p332 = scmp.eq.s32.totalorder %s28, 0
      %p333 = por %p331, %p332
      %p334 = scmp.le.s32.totalorder 1, %s22
      %p335 = scmp.lt.s32.totalorder %s22, 3
      %p336 = pnand %p334, %p335
      %p337 = pneg %p336
      // Predicated region
      $region9: #{feature_extractor_forward.1} parent=5 // pred_check
        _
      $region10: #{feature_extractor_forward.1} parent=5 // pred_check_branch
        %339 = sbr.rel (%p336) target = $region12
      $region11: #{feature_extractor_forward.1} parent=5 // pred_region
        %s340 = ssub.s32 %s22, 1
        // Predicated region
        $region13: #{feature_extractor_forward.1} parent=11 // pred_check
          %p341 = pneg %p69
        $region14: #{feature_extractor_forward.1} parent=11 // pred_check_branch
          %343 = sbr.rel (%p341) target = $region16
        $region15: #{feature_extractor_forward.1} parent=11 // pred_region
          _
        $region16: #{feature_extractor_forward.1} parent=11 // pred_fallthru
          _
        // Predicated region
        $region17: #{feature_extractor_forward.1} parent=11 // pred_check
          %p344 = pneg %p90
        $region18: #{feature_extractor_forward.1} parent=11 // pred_check_branch
          %346 = sbr.rel (%p344) target = $region20
        $region19: #{feature_extractor_forward.1} parent=11 // pred_region
          _
        $region20: #{feature_extractor_forward.1} parent=11 // pred_fallthru
          _
        // Predicated region
        $region21: #{feature_extractor_forward.1} parent=11 // pred_check
          %p347 = pneg %p111
        $region22: #{feature_extractor_forward.1} parent=11 // pred_check_branch
          %349 = sbr.rel (%p347) target = $region24
        $region23: #{feature_extractor_forward.1} parent=11 // pred_region
          _
        $region24: #{feature_extractor_forward.1} parent=11 // pred_fallthru
          _
        // Predicated region
        $region25: #{feature_extractor_forward.1} parent=11 // pred_check
          %p350 = pneg %p132
        $region26: #{feature_extractor_forward.1} parent=11 // pred_check_branch
          %352 = sbr.rel (%p350) target = $region28
        $region27: #{feature_extractor_forward.1} parent=11 // pred_region
          _
        $region28: #{feature_extractor_forward.1} parent=11 // pred_fallthru
          _
        // Predicated region
        $region29: #{feature_extractor_forward.1} parent=11 // pred_check
          %p353 = pneg %p153
        $region30: #{feature_extractor_forward.1} parent=11 // pred_check_branch
          %355 = sbr.rel (%p353) target = $region32
        $region31: #{feature_extractor_forward.1} parent=11 // pred_region
          _
        $region32: #{feature_extractor_forward.1} parent=11 // pred_fallthru
          _
        // Predicated region
        $region33: #{feature_extractor_forward.1} parent=11 // pred_check
          %p356 = pneg %p174
        $region34: #{feature_extractor_forward.1} parent=11 // pred_check_branch
          %358 = sbr.rel (%p356) target = $region36
        $region35: #{feature_extractor_forward.1} parent=11 // pred_region
          _
        $region36: #{feature_extractor_forward.1} parent=11 // pred_fallthru
          _
        // Predicated region
        $region37: #{feature_extractor_forward.1} parent=11 // pred_check
          %p359 = pneg %p195
        $region38: #{feature_extractor_forward.1} parent=11 // pred_check_branch
          %361 = sbr.rel (%p359) target = $region40
        $region39: #{feature_extractor_forward.1} parent=11 // pred_region
          _
        $region40: #{feature_extractor_forward.1} parent=11 // pred_fallthru
          _
        // Predicated region
        $region41: #{feature_extractor_forward.1} parent=11 // pred_check
          %p362 = pneg %p216
        $region42: #{feature_extractor_forward.1} parent=11 // pred_check_branch
          %364 = sbr.rel (%p362) target = $region44
        $region43: #{feature_extractor_forward.1} parent=11 // pred_region
          _
        $region44: #{feature_extractor_forward.1} parent=11 // pred_fallthru
          _
        // Predicated region
        $region45: #{feature_extractor_forward.1} parent=11 // pred_check
          %p365 = pneg %p237
        $region46: #{feature_extractor_forward.1} parent=11 // pred_check_branch
          %367 = sbr.rel (%p365) target = $region48
        $region47: #{feature_extractor_forward.1} parent=11 // pred_region
          _
        $region48: #{feature_extractor_forward.1} parent=11 // pred_fallthru
          _
        // Predicated region
        $region49: #{feature_extractor_forward.1} parent=11 // pred_check
          %p368 = pneg %p258
        $region50: #{feature_extractor_forward.1} parent=11 // pred_check_branch
          %370 = sbr.rel (%p368) target = $region52
        $region51: #{feature_extractor_forward.1} parent=11 // pred_region
          _
        $region52: #{feature_extractor_forward.1} parent=11 // pred_fallthru
          _
        // Predicated region
        $region53: #{feature_extractor_forward.1} parent=11 // pred_check
          %p371 = pneg %p279
        $region54: #{feature_extractor_forward.1} parent=11 // pred_check_branch
          %373 = sbr.rel (%p371) target = $region56
        $region55: #{feature_extractor_forward.1} parent=11 // pred_region
          _
        $region56: #{feature_extractor_forward.1} parent=11 // pred_fallthru
          _
        // Predicated region
        $region57: #{feature_extractor_forward.1} parent=11 // pred_check
          %p374 = pneg %p300
        $region58: #{feature_extractor_forward.1} parent=11 // pred_check_branch
          %376 = sbr.rel (%p374) target = $region60
        $region59: #{feature_extractor_forward.1} parent=11 // pred_region
          _
        $region60: #{feature_extractor_forward.1} parent=11 // pred_fallthru
          _
      $region12: #{feature_extractor_forward.1} parent=5 // pred_fallthru
        _
      %p377 = scmp.lt.s32.totalorder %s22, 2
      // Predicated region
      $region61: #{feature_extractor_forward.1} parent=5 // pred_check
        %p378 = pneg %p377
      $region62: #{feature_extractor_forward.1} parent=5 // pred_check_branch
        %380 = sbr.rel (%p378) target = $region64
      $region63: #{feature_extractor_forward.1} parent=5 // pred_region
        // Predicated region
        $region65: #{feature_extractor_forward.1} parent=63 // pred_check
          %p381 = pneg %p42
        $region66: #{feature_extractor_forward.1} parent=63 // pred_check_branch
          %383 = sbr.rel (%p381) target = $region68
        $region67: #{feature_extractor_forward.1} parent=63 // pred_region
          %s384 = smul.u32 2, %s22
          %p385 = scmp.lt.s32.totalorder %s384, 3
          %s386 = scalar_select %p385, %s384, 3
          %s387 = smul.addr %s386, 32
          %s388 = smul.addr %s387, 8
          %s389 = scalar_lea.vmem %s0, %s388
          %s390 = smul.u32 2, %s22
        $region68: #{feature_extractor_forward.1} parent=63 // pred_fallthru
          _
      $region64: #{feature_extractor_forward.1} parent=5 // pred_fallthru
        _
      %p391 = scmp.le.s32.totalorder 1, %s22
      %p392 = scmp.lt.s32.totalorder %s22, 3
      %p393 = pnand %p391, %p392
      %p394 = pneg %p393
      // Predicated region
      $region69: #{feature_extractor_forward.1} parent=5 // pred_check
        _
      $region70: #{feature_extractor_forward.1} parent=5 // pred_check_branch
        %396 = sbr.rel (%p393) target = $region72
      $region71: #{feature_extractor_forward.1} parent=5 // pred_region
        %s397 = ssub.s32 %s22, 1
        %s398 = smul.u32 2, %s27
        %p399 = scmp.lt.s32.totalorder %s398, 3
        %s400 = scalar_select %p399, %s398, 3
        %s401 = smul.addr %s400, 32
        %s402 = smul.addr %s401, 8
        %s403 = scalar_lea.vmem %s0, %s402
        %p404 = pneg %p48
        %p405 = pneg %p45
        %p406 = pneg %p69
        %p407 = pneg %p66
        %p408 = pneg %p90
        %p409 = pneg %p87
        %p410 = pneg %p111
        %p411 = pneg %p108
        %p412 = pneg %p132
        %p413 = pneg %p129
        %p414 = pneg %p153
        %p415 = pneg %p150
        %p416 = pneg %p174
        %p417 = pneg %p171
        %p418 = pneg %p195
        %p419 = pneg %p192
        %p420 = pneg %p216
        %p421 = pneg %p213
        %p422 = pneg %p237
        %p423 = pneg %p234
        %p424 = pneg %p258
        %p425 = pneg %p255
        %p426 = pneg %p279
        %p427 = pneg %p276
        %p428 = pneg %p300
        %p429 = pneg %p297
        %p430 = pneg %p326
        %p431 = pneg %p323
        %s432 = sand.u32 %s313, 1
        %s433 = scalar_lea.sflag [#allocation15], %s432
        %s434 = sand.u32 %s313, 1
        %s435 = smul.addr %s434, 2
        %s436 = scalar_lea.vmem [#allocation14], %s435
        %s437 = smul.u32 2, %s27
        %p438 = scmp.lt.s32.totalorder %s437, 3
        %s439 = scalar_select %p438, %s437, 3
        %s440 = smul.addr %s439, 32
        %s441 = smul.addr %s440, 8
        %s442 = scalar_lea.vmem %s0, %s441
        %s443 = smul.u32 2, %s27
        %v444 = vld [vmem:[%s442] sm:$0xff]
        %v445 = vld [vmem:[%s442 + $0x8] sm:$0xff]
        %v446 = vld [vmem:[%s442 + $0x10] sm:$0xff]
        %v447 = vld [vmem:[%s442 + $0x18] sm:$0xff]
        %v448 = vld [vmem:[%s442 + $0x20] sm:$0xff]
        %v449 = vld [vmem:[%s442 + $0x28] sm:$0xff]
        %v450 = vld [vmem:[%s442 + $0x30] sm:$0xff]
        %v451 = vld [vmem:[%s442 + $0x38] sm:$0xff]
        %v452 = vld [vmem:[%s442 + $0x40] sm:$0xff]
        %v453 = vld [vmem:[%s442 + $0x48] sm:$0xff]
        %v454 = vld [vmem:[%s442 + $0x50] sm:$0xff]
        %v455 = vld [vmem:[%s442 + $0x58] sm:$0xff]
        %v456 = vld [vmem:[%s442 + $0x60] sm:$0xff]
        %v457 = vld [vmem:[%s442 + $0x68] sm:$0xff]
        %v458 = vld [vmem:[%s442 + $0x70] sm:$0xff]
        %v459 = vld [vmem:[%s442 + $0x78] sm:$0xff]
        %v460 = vld [vmem:[%s442 + $0x80] sm:$0xff]
        %v461 = vld [vmem:[%s442 + $0x88] sm:$0xff]
        %v462 = vld [vmem:[%s442 + $0x90] sm:$0xff]
        %v463 = vld [vmem:[%s442 + $0x98] sm:$0xff]
        %v464 = vld [vmem:[%s442 + $0xa0] sm:$0xff]
        %v465 = vld [vmem:[%s442 + $0xa8] sm:$0xff]
        %v466 = vld [vmem:[%s442 + $0xb0] sm:$0xff]
        %v467 = vld [vmem:[%s442 + $0xb8] sm:$0xff]
        %v468 = vld [vmem:[%s442 + $0xc0] sm:$0xff]
        %v469 = vld [vmem:[%s442 + $0xc8] sm:$0xff]
        %v470 = vld [vmem:[%s442 + $0xd0] sm:$0xff]
        %v471 = vld [vmem:[%s442 + $0xd8] sm:$0xff]
        %v472 = vld [vmem:[%s442 + $0xe0] sm:$0xff]
        %v473 = vld [vmem:[%s442 + $0xe8] sm:$0xff]
        %v474 = vld [vmem:[%s442 + $0xf0] sm:$0xff]
        %v475 = vld [vmem:[%s442 + $0xf8] sm:$0xff]
        %v476 = vld [vmem:[%s442 + $0x100] sm:$0xff]
        %v477 = vld [vmem:[%s442 + $0x108] sm:$0xff]
        %v478 = vld [vmem:[%s442 + $0x110] sm:$0xff]
        %v479 = vld [vmem:[%s442 + $0x118] sm:$0xff]
        %v480 = vld [vmem:[%s442 + $0x120] sm:$0xff]
        %v481 = vld [vmem:[%s442 + $0x128] sm:$0xff]
        %v482 = vld [vmem:[%s442 + $0x130] sm:$0xff]
        %v483 = vld [vmem:[%s442 + $0x138] sm:$0xff]
        %v484 = vld [vmem:[%s442 + $0x140] sm:$0xff]
        %v485 = vld [vmem:[%s442 + $0x148] sm:$0xff]
        %v486 = vld [vmem:[%s442 + $0x150] sm:$0xff]
        %v487 = vld [vmem:[%s442 + $0x158] sm:$0xff]
        %v488 = vld [vmem:[%s442 + $0x160] sm:$0xff]
        %v489 = vld [vmem:[%s442 + $0x168] sm:$0xff]
        %v490 = vld [vmem:[%s442 + $0x170] sm:$0xff]
        %v491 = vld [vmem:[%s442 + $0x178] sm:$0xff]
        %v492 = vld [vmem:[%s442 + $0x180] sm:$0xff]
        %v493 = vld [vmem:[%s442 + $0x188] sm:$0xff]
        %v494 = vld [vmem:[%s442 + $0x190] sm:$0xff]
        %v495 = vld [vmem:[%s442 + $0x198] sm:$0xff]
        %v496 = vld [vmem:[%s442 + $0x1a0] sm:$0xff]
        %v497 = vld [vmem:[%s442 + $0x1a8] sm:$0xff]
        %v498 = vld [vmem:[%s442 + $0x1b0] sm:$0xff]
        %v499 = vld [vmem:[%s442 + $0x1b8] sm:$0xff]
        %v500 = vld [vmem:[%s442 + $0x1c0] sm:$0xff]
        %v501 = vld [vmem:[%s442 + $0x1c8] sm:$0xff]
        %v502 = vld [vmem:[%s442 + $0x1d0] sm:$0xff]
        %v503 = vld [vmem:[%s442 + $0x1d8] sm:$0xff]
        %v504 = vld [vmem:[%s442 + $0x1e0] sm:$0xff]
        %v505 = vld [vmem:[%s442 + $0x1e8] sm:$0xff]
        %v506 = vld [vmem:[%s442 + $0x1f0] sm:$0xff]
        %v507 = vld [vmem:[%s442 + $0x1f8] sm:$0xff]
        %vm508 = vcmask 23552
        %509 = vst.msk [vmem:[#allocation2] sm:$0xff] %vm508, 0.0
        %510 = vst.msk [vmem:[#allocation2 + $0x8] sm:$0xff] %vm508, 0.0
        %511 = vst.msk [vmem:[#allocation2 + $0x10] sm:$0xff] %vm508, 0.0
        %512 = vst.msk [vmem:[#allocation2 + $0x1c8] sm:$0xff] %vm508, 0.0
        %513 = vst.msk [vmem:[#allocation2 + $0x1d0] sm:$0xff] %vm508, 0.0
        %514 = vst.msk [vmem:[#allocation2 + $0x1d8] sm:$0xff] %vm508, 0.0
        %s515 = scalar_lea.vmem [#allocation2], 408
        %516 = vst.msk [vmem:[%s515] sm:$0xff] %vm508, 0.0
        %517 = vst.msk [vmem:[%s515 + $0x8] sm:$0xff] %vm508, 0.0
        %518 = vst.msk [vmem:[%s515 + $0x10] sm:$0xff] %vm508, 0.0
        %519 = vst.msk [vmem:[%s515 + $0x18] sm:$0xff] %vm508, 0.0
        %520 = vst.msk [vmem:[%s515 + $0x20] sm:$0xff] %vm508, 0.0
        %521 = vst.msk [vmem:[%s515 + $0x28] sm:$0xff] %vm508, 0.0
        %522 = vst.msk [vmem:[%s515 + $0x1c8] sm:$0xff] %vm508, 0.0
        %523 = vst.msk [vmem:[%s515 + $0x1d0] sm:$0xff] %vm508, 0.0
        %524 = vst.msk [vmem:[%s515 + $0x1d8] sm:$0xff] %vm508, 0.0
        %525 = vst.msk [vmem:[%s515 + $0x1e0] sm:$0xff] %vm508, 0.0
        %526 = vst.msk [vmem:[%s515 + $0x1e8] sm:$0xff] %vm508, 0.0
        %527 = vst.msk [vmem:[%s515 + $0x1f0] sm:$0xff] %vm508, 0.0
        %s528 = scalar_lea.vmem [#allocation2], 24
        %vm529 = vcmask 16384
        %530 = vst.msk [vmem:[%s528] sm:$0x1] %vm529, 0.0
        %531 = vst.msk [vmem:[%s528 + $0x18] sm:$0x1] %vm529, 0.0
        %532 = vst.msk [vmem:[%s528 + $0x30] sm:$0x1] %vm529, 0.0
        %533 = vst.msk [vmem:[%s528 + $0x48] sm:$0x1] %vm529, 0.0
        %534 = vst.msk [vmem:[%s528 + $0x60] sm:$0x1] %vm529, 0.0
        %535 = vst.msk [vmem:[%s528 + $0x78] sm:$0x1] %vm529, 0.0
        %536 = vst.msk [vmem:[%s528 + $0x90] sm:$0x1] %vm529, 0.0
        %537 = vst.msk [vmem:[%s528 + $0xa8] sm:$0x1] %vm529, 0.0
        %538 = vst.msk [vmem:[%s528 + $0xc0] sm:$0x1] %vm529, 0.0
        %539 = vst.msk [vmem:[%s528 + $0xd8] sm:$0x1] %vm529, 0.0
        %540 = vst.msk [vmem:[%s528 + $0xf0] sm:$0x1] %vm529, 0.0
        %541 = vst.msk [vmem:[%s528 + $0x108] sm:$0x1] %vm529, 0.0
        %542 = vst.msk [vmem:[%s528 + $0x120] sm:$0x1] %vm529, 0.0
        %543 = vst.msk [vmem:[%s528 + $0x138] sm:$0x1] %vm529, 0.0
        %544 = vst.msk [vmem:[%s528 + $0x150] sm:$0x1] %vm529, 0.0
        %545 = vst.msk [vmem:[%s528 + $0x168] sm:$0x1] %vm529, 0.0
        %546 = vst.msk [vmem:[%s528 + $0x1c8] sm:$0x1] %vm529, 0.0
        %547 = vst.msk [vmem:[%s528 + $0x1e0] sm:$0x1] %vm529, 0.0
        %548 = vst.msk [vmem:[%s528 + $0x1f8] sm:$0x1] %vm529, 0.0
        %549 = vst.msk [vmem:[%s528 + $0x210] sm:$0x1] %vm529, 0.0
        %550 = vst.msk [vmem:[%s528 + $0x228] sm:$0x1] %vm529, 0.0
        %551 = vst.msk [vmem:[%s528 + $0x240] sm:$0x1] %vm529, 0.0
        %552 = vst.msk [vmem:[%s528 + $0x258] sm:$0x1] %vm529, 0.0
        %553 = vst.msk [vmem:[%s528 + $0x270] sm:$0x1] %vm529, 0.0
        %554 = vst.msk [vmem:[%s528 + $0x288] sm:$0x1] %vm529, 0.0
        %555 = vst.msk [vmem:[%s528 + $0x2a0] sm:$0x1] %vm529, 0.0
        %556 = vst.msk [vmem:[%s528 + $0x2b8] sm:$0x1] %vm529, 0.0
        %557 = vst.msk [vmem:[%s528 + $0x2d0] sm:$0x1] %vm529, 0.0
        %558 = vst.msk [vmem:[%s528 + $0x2e8] sm:$0x1] %vm529, 0.0
        %559 = vst.msk [vmem:[%s528 + $0x300] sm:$0x1] %vm529, 0.0
        %560 = vst.msk [vmem:[%s528 + $0x318] sm:$0x1] %vm529, 0.0
        %561 = vst.msk [vmem:[%s528 + $0x330] sm:$0x1] %vm529, 0.0
        %vm562 = vcmask 22528
        %563 = vst.msk [vmem:[%s528 + $0x11] sm:$0x7f] %vm562, 0.0
        %564 = vst.msk [vmem:[%s528 + $0x29] sm:$0x7f] %vm562, 0.0
        %565 = vst.msk [vmem:[%s528 + $0x41] sm:$0x7f] %vm562, 0.0
        %566 = vst.msk [vmem:[%s528 + $0x59] sm:$0x7f] %vm562, 0.0
        %567 = vst.msk [vmem:[%s528 + $0x71] sm:$0x7f] %vm562, 0.0
        %568 = vst.msk [vmem:[%s528 + $0x89] sm:$0x7f] %vm562, 0.0
        %569 = vst.msk [vmem:[%s528 + $0xa1] sm:$0x7f] %vm562, 0.0
        %570 = vst.msk [vmem:[%s528 + $0xb9] sm:$0x7f] %vm562, 0.0
        %571 = vst.msk [vmem:[%s528 + $0xd1] sm:$0x7f] %vm562, 0.0
        %572 = vst.msk [vmem:[%s528 + $0xe9] sm:$0x7f] %vm562, 0.0
        %573 = vst.msk [vmem:[%s528 + $0x101] sm:$0x7f] %vm562, 0.0
        %574 = vst.msk [vmem:[%s528 + $0x119] sm:$0x7f] %vm562, 0.0
        %575 = vst.msk [vmem:[%s528 + $0x131] sm:$0x7f] %vm562, 0.0
        %576 = vst.msk [vmem:[%s528 + $0x149] sm:$0x7f] %vm562, 0.0
        %577 = vst.msk [vmem:[%s528 + $0x161] sm:$0x7f] %vm562, 0.0
        %578 = vst.msk [vmem:[%s528 + $0x179] sm:$0x7f] %vm562, 0.0
        %579 = vst.msk [vmem:[%s528 + $0x1d9] sm:$0x7f] %vm562, 0.0
        %580 = vst.msk [vmem:[%s528 + $0x1f1] sm:$0x7f] %vm562, 0.0
        %581 = vst.msk [vmem:[%s528 + $0x209] sm:$0x7f] %vm562, 0.0
        %582 = vst.msk [vmem:[%s528 + $0x221] sm:$0x7f] %vm562, 0.0
        %583 = vst.msk [vmem:[%s528 + $0x239] sm:$0x7f] %vm562, 0.0
        %584 = vst.msk [vmem:[%s528 + $0x251] sm:$0x7f] %vm562, 0.0
        %585 = vst.msk [vmem:[%s528 + $0x269] sm:$0x7f] %vm562, 0.0
        %586 = vst.msk [vmem:[%s528 + $0x281] sm:$0x7f] %vm562, 0.0
        %587 = vst.msk [vmem:[%s528 + $0x299] sm:$0x7f] %vm562, 0.0
        %588 = vst.msk [vmem:[%s528 + $0x2b1] sm:$0x7f] %vm562, 0.0
        %589 = vst.msk [vmem:[%s528 + $0x2c9] sm:$0x7f] %vm562, 0.0
        %590 = vst.msk [vmem:[%s528 + $0x2e1] sm:$0x7f] %vm562, 0.0
        %591 = vst.msk [vmem:[%s528 + $0x2f9] sm:$0x7f] %vm562, 0.0
        %592 = vst.msk [vmem:[%s528 + $0x311] sm:$0x7f] %vm562, 0.0
        %593 = vst.msk [vmem:[%s528 + $0x329] sm:$0x7f] %vm562, 0.0
        %594 = vst.msk [vmem:[%s528 + $0x341] sm:$0x7f] %vm562, 0.0
        %595 = vst.msk [vmem:[%s528 + $0x1] sm:$0xff] %vm508, %v444
        %596 = vst.msk [vmem:[%s528 + $0x9] sm:$0xff] %vm508, %v445
        %597 = vst.msk [vmem:[%s528 + $0x19] sm:$0xff] %vm508, %v446
        %598 = vst.msk [vmem:[%s528 + $0x21] sm:$0xff] %vm508, %v447
        %599 = vst.msk [vmem:[%s528 + $0x31] sm:$0xff] %vm508, %v448
        %600 = vst.msk [vmem:[%s528 + $0x39] sm:$0xff] %vm508, %v449
        %601 = vst.msk [vmem:[%s528 + $0x49] sm:$0xff] %vm508, %v450
        %602 = vst.msk [vmem:[%s528 + $0x51] sm:$0xff] %vm508, %v451
        %603 = vst.msk [vmem:[%s528 + $0x61] sm:$0xff] %vm508, %v452
        %604 = vst.msk [vmem:[%s528 + $0x69] sm:$0xff] %vm508, %v453
        %605 = vst.msk [vmem:[%s528 + $0x79] sm:$0xff] %vm508, %v454
        %606 = vst.msk [vmem:[%s528 + $0x81] sm:$0xff] %vm508, %v455
        %607 = vst.msk [vmem:[%s528 + $0x91] sm:$0xff] %vm508, %v456
        %608 = vst.msk [vmem:[%s528 + $0x99] sm:$0xff] %vm508, %v457
        %609 = vst.msk [vmem:[%s528 + $0xa9] sm:$0xff] %vm508, %v458
        %610 = vst.msk [vmem:[%s528 + $0xb1] sm:$0xff] %vm508, %v459
        %611 = vst.msk [vmem:[%s528 + $0xc1] sm:$0xff] %vm508, %v460
        %612 = vst.msk [vmem:[%s528 + $0xc9] sm:$0xff] %vm508, %v461
        %613 = vst.msk [vmem:[%s528 + $0xd9] sm:$0xff] %vm508, %v462
        %614 = vst.msk [vmem:[%s528 + $0xe1] sm:$0xff] %vm508, %v463
        %615 = vst.msk [vmem:[%s528 + $0xf1] sm:$0xff] %vm508, %v464
        %616 = vst.msk [vmem:[%s528 + $0xf9] sm:$0xff] %vm508, %v465
        %617 = vst.msk [vmem:[%s528 + $0x109] sm:$0xff] %vm508, %v466
        %618 = vst.msk [vmem:[%s528 + $0x111] sm:$0xff] %vm508, %v467
        %619 = vst.msk [vmem:[%s528 + $0x121] sm:$0xff] %vm508, %v468
        %620 = vst.msk [vmem:[%s528 + $0x129] sm:$0xff] %vm508, %v469
        %621 = vst.msk [vmem:[%s528 + $0x139] sm:$0xff] %vm508, %v470
        %622 = vst.msk [vmem:[%s528 + $0x141] sm:$0xff] %vm508, %v471
        %623 = vst.msk [vmem:[%s528 + $0x151] sm:$0xff] %vm508, %v472
        %624 = vst.msk [vmem:[%s528 + $0x159] sm:$0xff] %vm508, %v473
        %625 = vst.msk [vmem:[%s528 + $0x169] sm:$0xff] %vm508, %v474
        %626 = vst.msk [vmem:[%s528 + $0x171] sm:$0xff] %vm508, %v475
        %627 = vst.msk [vmem:[%s528 + $0x1c9] sm:$0xff] %vm508, %v476
        %628 = vst.msk [vmem:[%s528 + $0x1d1] sm:$0xff] %vm508, %v477
        %629 = vst.msk [vmem:[%s528 + $0x1e1] sm:$0xff] %vm508, %v478
        %630 = vst.msk [vmem:[%s528 + $0x1e9] sm:$0xff] %vm508, %v479
        %631 = vst.msk [vmem:[%s528 + $0x1f9] sm:$0xff] %vm508, %v480
        %632 = vst.msk [vmem:[%s528 + $0x201] sm:$0xff] %vm508, %v481
        %633 = vst.msk [vmem:[%s528 + $0x211] sm:$0xff] %vm508, %v482
        %634 = vst.msk [vmem:[%s528 + $0x219] sm:$0xff] %vm508, %v483
        %635 = vst.msk [vmem:[%s528 + $0x229] sm:$0xff] %vm508, %v484
        %636 = vst.msk [vmem:[%s528 + $0x231] sm:$0xff] %vm508, %v485
        %637 = vst.msk [vmem:[%s528 + $0x241] sm:$0xff] %vm508, %v486
        %638 = vst.msk [vmem:[%s528 + $0x249] sm:$0xff] %vm508, %v487
        %639 = vst.msk [vmem:[%s528 + $0x259] sm:$0xff] %vm508, %v488
        %640 = vst.msk [vmem:[%s528 + $0x261] sm:$0xff] %vm508, %v489
        %641 = vst.msk [vmem:[%s528 + $0x271] sm:$0xff] %vm508, %v490
        %642 = vst.msk [vmem:[%s528 + $0x279] sm:$0xff] %vm508, %v491
        %643 = vst.msk [vmem:[%s528 + $0x289] sm:$0xff] %vm508, %v492
        %644 = vst.msk [vmem:[%s528 + $0x291] sm:$0xff] %vm508, %v493
        %645 = vst.msk [vmem:[%s528 + $0x2a1] sm:$0xff] %vm508, %v494
        %646 = vst.msk [vmem:[%s528 + $0x2a9] sm:$0xff] %vm508, %v495
        %647 = vst.msk [vmem:[%s528 + $0x2b9] sm:$0xff] %vm508, %v496
        %648 = vst.msk [vmem:[%s528 + $0x2c1] sm:$0xff] %vm508, %v497
        %649 = vst.msk [vmem:[%s528 + $0x2d1] sm:$0xff] %vm508, %v498
        %650 = vst.msk [vmem:[%s528 + $0x2d9] sm:$0xff] %vm508, %v499
        %651 = vst.msk [vmem:[%s528 + $0x2e9] sm:$0xff] %vm508, %v500
        %652 = vst.msk [vmem:[%s528 + $0x2f1] sm:$0xff] %vm508, %v501
        %653 = vst.msk [vmem:[%s528 + $0x301] sm:$0xff] %vm508, %v502
        %654 = vst.msk [vmem:[%s528 + $0x309] sm:$0xff] %vm508, %v503
        %655 = vst.msk [vmem:[%s528 + $0x319] sm:$0xff] %vm508, %v504
        %656 = vst.msk [vmem:[%s528 + $0x321] sm:$0xff] %vm508, %v505
        %657 = vst.msk [vmem:[%s528 + $0x331] sm:$0xff] %vm508, %v506
        %658 = vst.msk [vmem:[%s528 + $0x339] sm:$0xff] %vm508, %v507
        %v659 = vld [vmem:[#allocation2] sm:$0xff]
        %v660 = vld [vmem:[#allocation2 + $0x8] sm:$0xff]
        %v661 = vld [vmem:[#allocation2 + $0x10] sm:$0xff]
        %v662 = vld [vmem:[#allocation2 + $0x18] sm:$0xff]
        %v663 = vld [vmem:[#allocation2 + $0x20] sm:$0xff]
        %v664 = vld [vmem:[#allocation2 + $0x28] sm:$0xff]
        %v665 = vld [vmem:[#allocation2 + $0x30] sm:$0xff]
        %v666 = vld [vmem:[#allocation2 + $0x38] sm:$0xff]
        %v667 = vld [vmem:[#allocation2 + $0x40] sm:$0xff]
        %v668 = vld [vmem:[#allocation2 + $0x48] sm:$0xff]
        %v669 = vld [vmem:[#allocation2 + $0x50] sm:$0xff]
        %v670 = vld [vmem:[#allocation2 + $0x58] sm:$0xff]
        %v671 = vld [vmem:[#allocation2 + $0x60] sm:$0xff]
        %v672 = vld [vmem:[#allocation2 + $0x68] sm:$0xff]
        %v673 = vld [vmem:[#allocation2 + $0x70] sm:$0xff]
        %v674 = vld [vmem:[#allocation2 + $0x78] sm:$0xff]
        %v675 = vld [vmem:[#allocation2 + $0x80] sm:$0xff]
        %v676 = vld [vmem:[#allocation2 + $0x88] sm:$0xff]
        %v677 = vld [vmem:[#allocation2 + $0x90] sm:$0xff]
        %v678 = vld [vmem:[#allocation2 + $0x98] sm:$0xff]
        %v679 = vld [vmem:[#allocation2 + $0xa0] sm:$0xff]
        %v680 = vld [vmem:[#allocation2 + $0xa8] sm:$0xff]
        %v681 = vld [vmem:[#allocation2 + $0xb0] sm:$0xff]
        %v682 = vld [vmem:[#allocation2 + $0xb8] sm:$0xff]
        %v683 = vld [vmem:[#allocation2 + $0xc0] sm:$0xff]
        %v684 = vld [vmem:[#allocation2 + $0xc8] sm:$0xff]
        %v685 = vld [vmem:[#allocation2 + $0xd0] sm:$0xff]
        %v686 = vld [vmem:[#allocation2 + $0xd8] sm:$0xff]
        %v687 = vld [vmem:[#allocation2 + $0xe0] sm:$0xff]
        %v688 = vld [vmem:[#allocation2 + $0xe8] sm:$0xff]
        %v689 = vld [vmem:[#allocation2 + $0xf0] sm:$0xff]
        %v690 = vld [vmem:[#allocation2 + $0xf8] sm:$0xff]
        %v691 = vld [vmem:[#allocation2 + $0x100] sm:$0xff]
        %v692 = vld [vmem:[#allocation2 + $0x108] sm:$0xff]
        %v693 = vld [vmem:[#allocation2 + $0x110] sm:$0xff]
        %v694 = vld [vmem:[#allocation2 + $0x118] sm:$0xff]
        %v695 = vld [vmem:[#allocation2 + $0x120] sm:$0xff]
        %v696 = vld [vmem:[#allocation2 + $0x128] sm:$0xff]
        %v697 = vld [vmem:[#allocation2 + $0x130] sm:$0xff]
        %v698 = vld [vmem:[#allocation2 + $0x138] sm:$0xff]
        %v699 = vld [vmem:[#allocation2 + $0x140] sm:$0xff]
        %v700 = vld [vmem:[#allocation2 + $0x148] sm:$0xff]
        %v701 = vld [vmem:[#allocation2 + $0x150] sm:$0xff]
        %v702 = vld [vmem:[#allocation2 + $0x158] sm:$0xff]
        %v703 = vld [vmem:[#allocation2 + $0x160] sm:$0xff]
        %v704 = vld [vmem:[#allocation2 + $0x168] sm:$0xff]
        %v705 = vld [vmem:[#allocation2 + $0x170] sm:$0xff]
        %v706 = vld [vmem:[#allocation2 + $0x178] sm:$0xff]
        %v707 = vld [vmem:[#allocation2 + $0x180] sm:$0xff]
        %v708 = vld [vmem:[#allocation2 + $0x188] sm:$0xff]
        %v709 = vld [vmem:[#allocation2 + $0x190] sm:$0xff]
        %v710 = vld [vmem:[#allocation2 + $0x198] sm:$0xff]
        %v711 = vld [vmem:[#allocation2 + $0x1a0] sm:$0xff]
        %v712 = vld [vmem:[#allocation2 + $0x1a8] sm:$0xff]
        %v713 = vld [vmem:[#allocation2 + $0x1b0] sm:$0xff]
        %v714 = vld [vmem:[#allocation2 + $0x1b8] sm:$0xff]
        %v715 = vld [vmem:[#allocation2 + $0x1c0] sm:$0xff]
        %v716 = vld [vmem:[#allocation2 + $0x1c8] sm:$0xff]
        %v717 = vld [vmem:[#allocation2 + $0x1d0] sm:$0xff]
        %v718 = vld [vmem:[#allocation2 + $0x1d8] sm:$0xff]
        %v719 = vld [vmem:[#allocation2 + $0x1e0] sm:$0xff]
        %v720 = vld [vmem:[#allocation2 + $0x1e8] sm:$0xff]
        %v721 = vld [vmem:[#allocation2 + $0x1f0] sm:$0xff]
        %v722 = vld [vmem:[#allocation2 + $0x1f8] sm:$0xff]
        %v723 = vld [vmem:[#allocation2 + $0x200] sm:$0xff]
        %v724 = vld [vmem:[#allocation2 + $0x208] sm:$0xff]
        %v725 = vld [vmem:[#allocation2 + $0x210] sm:$0xff]
        %v726 = vld [vmem:[#allocation2 + $0x218] sm:$0xff]
        %v727 = vld [vmem:[#allocation2 + $0x220] sm:$0xff]
        %v728 = vld [vmem:[#allocation2 + $0x228] sm:$0xff]
        %v729 = vld [vmem:[#allocation2 + $0x230] sm:$0xff]
        %v730 = vld [vmem:[#allocation2 + $0x238] sm:$0xff]
        %v731 = vld [vmem:[#allocation2 + $0x240] sm:$0xff]
        %v732 = vld [vmem:[#allocation2 + $0x248] sm:$0xff]
        %v733 = vld [vmem:[#allocation2 + $0x250] sm:$0xff]
        %v734 = vld [vmem:[#allocation2 + $0x258] sm:$0xff]
        %v735 = vld [vmem:[#allocation2 + $0x260] sm:$0xff]
        %v736 = vld [vmem:[#allocation2 + $0x268] sm:$0xff]
        %v737 = vld [vmem:[#allocation2 + $0x270] sm:$0xff]
        %v738 = vld [vmem:[#allocation2 + $0x278] sm:$0xff]
        %v739 = vld [vmem:[#allocation2 + $0x280] sm:$0xff]
        %v740 = vld [vmem:[#allocation2 + $0x288] sm:$0xff]
        %v741 = vld [vmem:[#allocation2 + $0x290] sm:$0xff]
        %v742 = vld [vmem:[#allocation2 + $0x298] sm:$0xff]
        %v743 = vld [vmem:[#allocation2 + $0x2a0] sm:$0xff]
        %v744 = vld [vmem:[#allocation2 + $0x2a8] sm:$0xff]
        %v745 = vld [vmem:[#allocation2 + $0x2b0] sm:$0xff]
        %v746 = vld [vmem:[#allocation2 + $0x2b8] sm:$0xff]
        %v747 = vld [vmem:[#allocation2 + $0x2c0] sm:$0xff]
        %v748 = vld [vmem:[#allocation2 + $0x2c8] sm:$0xff]
        %v749 = vld [vmem:[#allocation2 + $0x2d0] sm:$0xff]
        %v750 = vld [vmem:[#allocation2 + $0x2d8] sm:$0xff]
        %v751 = vld [vmem:[#allocation2 + $0x2e0] sm:$0xff]
        %v752 = vld [vmem:[#allocation2 + $0x2e8] sm:$0xff]
        %v753 = vld [vmem:[#allocation2 + $0x2f0] sm:$0xff]
        %v754 = vld [vmem:[#allocation2 + $0x2f8] sm:$0xff]
        %v755 = vld [vmem:[#allocation2 + $0x300] sm:$0xff]
        %v756 = vld [vmem:[#allocation2 + $0x308] sm:$0xff]
        %v757 = vld [vmem:[#allocation2 + $0x310] sm:$0xff]
        %v758 = vld [vmem:[#allocation2 + $0x318] sm:$0xff]
        %v759 = vld [vmem:[#allocation2 + $0x320] sm:$0xff]
        %v760 = vld [vmem:[#allocation2 + $0x328] sm:$0xff]
        %v761 = vld [vmem:[#allocation2 + $0x330] sm:$0xff]
        %v762 = vld [vmem:[#allocation2 + $0x338] sm:$0xff]
        %v763 = vld [vmem:[#allocation2 + $0x340] sm:$0xff]
        %v764 = vld [vmem:[#allocation2 + $0x348] sm:$0xff]
        %v765 = vld [vmem:[#allocation2 + $0x350] sm:$0xff]
        %v766 = vld [vmem:[#allocation2 + $0x358] sm:$0xff]
        %v767 = vld [vmem:[#allocation2 + $0x360] sm:$0xff]
        %v768 = vld [vmem:[#allocation2 + $0x368] sm:$0xff]
        %v769 = vld [vmem:[#allocation2 + $0x370] sm:$0xff]
        %v770 = vld [vmem:[#allocation2 + $0x378] sm:$0xff]
        %771 = vst.msk [vmem:[#allocation3] sm:$0xff] %vm508, %v659
        %772 = vst.msk [vmem:[#allocation3 + $0x8] sm:$0xff] %vm508, %v660
        %773 = vst.msk [vmem:[#allocation3 + $0x10] sm:$0xff] %vm508, %v661
        %774 = vst.msk [vmem:[#allocation3 + $0x18] sm:$0xff] %vm508, %v662
        %775 = vst.msk [vmem:[#allocation3 + $0x20] sm:$0xff] %vm508, %v663
        %776 = vst.msk [vmem:[#allocation3 + $0x28] sm:$0xff] %vm508, %v664
        %777 = vst.msk [vmem:[#allocation3 + $0x30] sm:$0xff] %vm508, %v665
        %778 = vst.msk [vmem:[#allocation3 + $0x38] sm:$0xff] %vm508, %v666
        %779 = vst.msk [vmem:[#allocation3 + $0x40] sm:$0xff] %vm508, %v667
        %780 = vst.msk [vmem:[#allocation3 + $0x48] sm:$0xff] %vm508, %v668
        %781 = vst.msk [vmem:[#allocation3 + $0x50] sm:$0xff] %vm508, %v669
        %782 = vst.msk [vmem:[#allocation3 + $0x58] sm:$0xff] %vm508, %v670
        %783 = vst.msk [vmem:[#allocation3 + $0x60] sm:$0xff] %vm508, %v671
        %784 = vst.msk [vmem:[#allocation3 + $0x68] sm:$0xff] %vm508, %v672
        %785 = vst.msk [vmem:[#allocation3 + $0x70] sm:$0xff] %vm508, %v673
        %786 = vst.msk [vmem:[#allocation3 + $0x78] sm:$0xff] %vm508, %v674
        %787 = vst.msk [vmem:[#allocation3 + $0x80] sm:$0xff] %vm508, %v675
        %788 = vst.msk [vmem:[#allocation3 + $0x88] sm:$0xff] %vm508, %v676
        %789 = vst.msk [vmem:[#allocation3 + $0x90] sm:$0xff] %vm508, %v677
        %790 = vst.msk [vmem:[#allocation3 + $0x98] sm:$0xff] %vm508, %v678
        %791 = vst.msk [vmem:[#allocation3 + $0xa0] sm:$0xff] %vm508, %v679
        %792 = vst.msk [vmem:[#allocation3 + $0xa8] sm:$0xff] %vm508, %v680
        %793 = vst.msk [vmem:[#allocation3 + $0xb0] sm:$0xff] %vm508, %v681
        %794 = vst.msk [vmem:[#allocation3 + $0xb8] sm:$0xff] %vm508, %v682
        %795 = vst.msk [vmem:[#allocation3 + $0xc0] sm:$0xff] %vm508, %v683
        %796 = vst.msk [vmem:[#allocation3 + $0xc8] sm:$0xff] %vm508, %v684
        %797 = vst.msk [vmem:[#allocation3 + $0xd0] sm:$0xff] %vm508, %v685
        %798 = vst.msk [vmem:[#allocation3 + $0xd8] sm:$0xff] %vm508, %v686
        %799 = vst.msk [vmem:[#allocation3 + $0xe0] sm:$0xff] %vm508, %v687
        %800 = vst.msk [vmem:[#allocation3 + $0xe8] sm:$0xff] %vm508, %v688
        %801 = vst.msk [vmem:[#allocation3 + $0xf0] sm:$0xff] %vm508, %v689
        %802 = vst.msk [vmem:[#allocation3 + $0xf8] sm:$0xff] %vm508, %v690
        %803 = vst.msk [vmem:[#allocation3 + $0x100] sm:$0xff] %vm508, %v691
        %804 = vst.msk [vmem:[#allocation3 + $0x108] sm:$0xff] %vm508, %v692
        %805 = vst.msk [vmem:[#allocation3 + $0x110] sm:$0xff] %vm508, %v693
        %806 = vst.msk [vmem:[#allocation3 + $0x118] sm:$0xff] %vm508, %v694
        %807 = vst.msk [vmem:[#allocation3 + $0x120] sm:$0xff] %vm508, %v695
        %808 = vst.msk [vmem:[#allocation3 + $0x128] sm:$0xff] %vm508, %v696
        %809 = vst.msk [vmem:[#allocation3 + $0x130] sm:$0xff] %vm508, %v697
        %810 = vst.msk [vmem:[#allocation3 + $0x138] sm:$0xff] %vm508, %v698
        %811 = vst.msk [vmem:[#allocation3 + $0x140] sm:$0xff] %vm508, %v699
        %812 = vst.msk [vmem:[#allocation3 + $0x148] sm:$0xff] %vm508, %v700
        %813 = vst.msk [vmem:[#allocation3 + $0x150] sm:$0xff] %vm508, %v701
        %814 = vst.msk [vmem:[#allocation3 + $0x158] sm:$0xff] %vm508, %v702
        %815 = vst.msk [vmem:[#allocation3 + $0x160] sm:$0xff] %vm508, %v703
        %816 = vst.msk [vmem:[#allocation3 + $0x168] sm:$0xff] %vm508, %v704
        %817 = vst.msk [vmem:[#allocation3 + $0x170] sm:$0xff] %vm508, %v705
        %818 = vst.msk [vmem:[#allocation3 + $0x178] sm:$0xff] %vm508, %v706
        %819 = vst.msk [vmem:[#allocation3 + $0x180] sm:$0xff] %vm508, %v707
        %820 = vst.msk [vmem:[#allocation3 + $0x188] sm:$0xff] %vm508, %v708
        %821 = vst.msk [vmem:[#allocation3 + $0x190] sm:$0xff] %vm508, %v709
        %822 = vst.msk [vmem:[#allocation3 + $0x198] sm:$0xff] %vm508, %v710
        %823 = vst.msk [vmem:[#allocation3 + $0x1a0] sm:$0xff] %vm508, %v711
        %824 = vst.msk [vmem:[#allocation3 + $0x1a8] sm:$0xff] %vm508, %v712
        %825 = vst.msk [vmem:[#allocation3 + $0x1b0] sm:$0xff] %vm508, %v713
        %826 = vst.msk [vmem:[#allocation3 + $0x1b8] sm:$0xff] %vm508, %v714
        %827 = vst.msk [vmem:[#allocation3 + $0x1c0] sm:$0xff] %vm508, %v715
        %828 = vst.msk [vmem:[#allocation3 + $0x1c8] sm:$0xff] %vm508, %v716
        %829 = vst.msk [vmem:[#allocation3 + $0x1d0] sm:$0xff] %vm508, %v717
        %830 = vst.msk [vmem:[#allocation3 + $0x1d8] sm:$0xff] %vm508, %v718
        %831 = vst.msk [vmem:[#allocation3 + $0x1e0] sm:$0xff] %vm508, %v719
        %832 = vst.msk [vmem:[#allocation3 + $0x1e8] sm:$0xff] %vm508, %v720
        %833 = vst.msk [vmem:[#allocation3 + $0x1f0] sm:$0xff] %vm508, %v721
        %834 = vst.msk [vmem:[#allocation3 + $0x1f8] sm:$0xff] %vm508, %v722
        %835 = vst.msk [vmem:[#allocation3 + $0x200] sm:$0xff] %vm508, %v723
        %836 = vst.msk [vmem:[#allocation3 + $0x208] sm:$0xff] %vm508, %v724
        %837 = vst.msk [vmem:[#allocation3 + $0x210] sm:$0xff] %vm508, %v725
        %838 = vst.msk [vmem:[#allocation3 + $0x218] sm:$0xff] %vm508, %v726
        %839 = vst.msk [vmem:[#allocation3 + $0x220] sm:$0xff] %vm508, %v727
        %840 = vst.msk [vmem:[#allocation3 + $0x228] sm:$0xff] %vm508, %v728
        %841 = vst.msk [vmem:[#allocation3 + $0x230] sm:$0xff] %vm508, %v729
        %842 = vst.msk [vmem:[#allocation3 + $0x238] sm:$0xff] %vm508, %v730
        %843 = vst.msk [vmem:[#allocation3 + $0x240] sm:$0xff] %vm508, %v731
        %844 = vst.msk [vmem:[#allocation3 + $0x248] sm:$0xff] %vm508, %v732
        %845 = vst.msk [vmem:[#allocation3 + $0x250] sm:$0xff] %vm508, %v733
        %846 = vst.msk [vmem:[#allocation3 + $0x258] sm:$0xff] %vm508, %v734
        %847 = vst.msk [vmem:[#allocation3 + $0x260] sm:$0xff] %vm508, %v735
        %848 = vst.msk [vmem:[#allocation3 + $0x268] sm:$0xff] %vm508, %v736
        %849 = vst.msk [vmem:[#allocation3 + $0x270] sm:$0xff] %vm508, %v737
        %850 = vst.msk [vmem:[#allocation3 + $0x278] sm:$0xff] %vm508, %v738
        %851 = vst.msk [vmem:[#allocation3 + $0x280] sm:$0xff] %vm508, %v739
        %852 = vst.msk [vmem:[#allocation3 + $0x288] sm:$0xff] %vm508, %v740
        %853 = vst.msk [vmem:[#allocation3 + $0x290] sm:$0xff] %vm508, %v741
        %854 = vst.msk [vmem:[#allocation3 + $0x298] sm:$0xff] %vm508, %v742
        %855 = vst.msk [vmem:[#allocation3 + $0x2a0] sm:$0xff] %vm508, %v743
        %856 = vst.msk [vmem:[#allocation3 + $0x2a8] sm:$0xff] %vm508, %v744
        %857 = vst.msk [vmem:[#allocation3 + $0x2b0] sm:$0xff] %vm508, %v745
        %858 = vst.msk [vmem:[#allocation3 + $0x2b8] sm:$0xff] %vm508, %v746
        %859 = vst.msk [vmem:[#allocation3 + $0x2c0] sm:$0xff] %vm508, %v747
        %860 = vst.msk [vmem:[#allocation3 + $0x2c8] sm:$0xff] %vm508, %v748
        %861 = vst.msk [vmem:[#allocation3 + $0x2d0] sm:$0xff] %vm508, %v749
        %862 = vst.msk [vmem:[#allocation3 + $0x2d8] sm:$0xff] %vm508, %v750
        %863 = vst.msk [vmem:[#allocation3 + $0x2e0] sm:$0xff] %vm508, %v751
        %864 = vst.msk [vmem:[#allocation3 + $0x2e8] sm:$0xff] %vm508, %v752
        %865 = vst.msk [vmem:[#allocation3 + $0x2f0] sm:$0xff] %vm508, %v753
        %866 = vst.msk [vmem:[#allocation3 + $0x2f8] sm:$0xff] %vm508, %v754
        %867 = vst.msk [vmem:[#allocation3 + $0x300] sm:$0xff] %vm508, %v755
        %868 = vst.msk [vmem:[#allocation3 + $0x308] sm:$0xff] %vm508, %v756
        %869 = vst.msk [vmem:[#allocation3 + $0x310] sm:$0xff] %vm508, %v757
        %870 = vst.msk [vmem:[#allocation3 + $0x318] sm:$0xff] %vm508, %v758
        %871 = vst.msk [vmem:[#allocation3 + $0x320] sm:$0xff] %vm508, %v759
        %872 = vst.msk [vmem:[#allocation3 + $0x328] sm:$0xff] %vm508, %v760
        %873 = vst.msk [vmem:[#allocation3 + $0x330] sm:$0xff] %vm508, %v761
        %874 = vst.msk [vmem:[#allocation3 + $0x338] sm:$0xff] %vm508, %v762
        %875 = vst.msk [vmem:[#allocation3 + $0x340] sm:$0xff] %vm508, %v763
        %876 = vst.msk [vmem:[#allocation3 + $0x348] sm:$0xff] %vm508, %v764
        %877 = vst.msk [vmem:[#allocation3 + $0x350] sm:$0xff] %vm508, %v765
        %878 = vst.msk [vmem:[#allocation3 + $0x358] sm:$0xff] %vm508, %v766
        %879 = vst.msk [vmem:[#allocation3 + $0x360] sm:$0xff] %vm508, %v767
        %880 = vst.msk [vmem:[#allocation3 + $0x368] sm:$0xff] %vm508, %v768
        %881 = vst.msk [vmem:[#allocation3 + $0x370] sm:$0xff] %vm508, %v769
        %994 = vrot.lane.b32.xlu0 %v659, 3
        %v995 = vpop.permute.xlu0 %994
        %996 = vrot.lane.b32.xlu0 %v660, 3
        %v997 = vpop.permute.xlu0 %996
        %998 = vrot.lane.b32.xlu0 %v661, 3
        %v999 = vpop.permute.xlu0 %998
        %1000 = vrot.lane.b32.xlu0 %v662, 3
        %v1001 = vpop.permute.xlu0 %1000
        %1002 = vrot.lane.b32.xlu0 %v663, 3
        %v1003 = vpop.permute.xlu0 %1002
        %1004 = vrot.lane.b32.xlu0 %v664, 3
        %v1005 = vpop.permute.xlu0 %1004
        %1006 = vrot.lane.b32.xlu0 %v665, 3
        %v1007 = vpop.permute.xlu0 %1006
        %1008 = vrot.lane.b32.xlu0 %v666, 3
        %v1009 = vpop.permute.xlu0 %1008
        %1010 = vrot.lane.b32.xlu0 %v667, 3
        %v1011 = vpop.permute.xlu0 %1010
        %1012 = vrot.lane.b32.xlu0 %v668, 3
        %v1013 = vpop.permute.xlu0 %1012
        %1014 = vrot.lane.b32.xlu0 %v669, 3
        %v1015 = vpop.permute.xlu0 %1014
        %1016 = vrot.lane.b32.xlu0 %v670, 3
        %v1017 = vpop.permute.xlu0 %1016
        %1018 = vrot.lane.b32.xlu0 %v671, 3
        %v1019 = vpop.permute.xlu0 %1018
        %1020 = vrot.lane.b32.xlu0 %v672, 3
        %v1021 = vpop.permute.xlu0 %1020
        %1022 = vrot.lane.b32.xlu0 %v673, 3
        %v1023 = vpop.permute.xlu0 %1022
        %1024 = vrot.lane.b32.xlu0 %v674, 3
        %v1025 = vpop.permute.xlu0 %1024
        %1026 = vrot.lane.b32.xlu0 %v675, 3
        %v1027 = vpop.permute.xlu0 %1026
        %1028 = vrot.lane.b32.xlu0 %v676, 3
        %v1029 = vpop.permute.xlu0 %1028
        %1030 = vrot.lane.b32.xlu0 %v677, 3
        %v1031 = vpop.permute.xlu0 %1030
        %1032 = vrot.lane.b32.xlu0 %v678, 3
        %v1033 = vpop.permute.xlu0 %1032
        %1034 = vrot.lane.b32.xlu0 %v679, 3
        %v1035 = vpop.permute.xlu0 %1034
        %1036 = vrot.lane.b32.xlu0 %v680, 3
        %v1037 = vpop.permute.xlu0 %1036
        %1038 = vrot.lane.b32.xlu0 %v681, 3
        %v1039 = vpop.permute.xlu0 %1038
        %1040 = vrot.lane.b32.xlu0 %v682, 3
        %v1041 = vpop.permute.xlu0 %1040
        %1042 = vrot.lane.b32.xlu0 %v683, 3
        %v1043 = vpop.permute.xlu0 %1042
        %1044 = vrot.lane.b32.xlu0 %v684, 3
        %v1045 = vpop.permute.xlu0 %1044
        %1046 = vrot.lane.b32.xlu0 %v685, 3
        %v1047 = vpop.permute.xlu0 %1046
        %1048 = vrot.lane.b32.xlu0 %v686, 3
        %v1049 = vpop.permute.xlu0 %1048
        %1050 = vrot.lane.b32.xlu0 %v687, 3
        %v1051 = vpop.permute.xlu0 %1050
        %1052 = vrot.lane.b32.xlu0 %v688, 3
        %v1053 = vpop.permute.xlu0 %1052
        %1054 = vrot.lane.b32.xlu0 %v689, 3
        %v1055 = vpop.permute.xlu0 %1054
        %1056 = vrot.lane.b32.xlu0 %v690, 3
        %v1057 = vpop.permute.xlu0 %1056
        %1058 = vrot.lane.b32.xlu0 %v691, 3
        %v1059 = vpop.permute.xlu0 %1058
        %1060 = vrot.lane.b32.xlu0 %v692, 3
        %v1061 = vpop.permute.xlu0 %1060
        %1062 = vrot.lane.b32.xlu0 %v693, 3
        %v1063 = vpop.permute.xlu0 %1062
        %1064 = vrot.lane.b32.xlu0 %v694, 3
        %v1065 = vpop.permute.xlu0 %1064
        %1066 = vrot.lane.b32.xlu0 %v695, 3
        %v1067 = vpop.permute.xlu0 %1066
        %1068 = vrot.lane.b32.xlu0 %v696, 3
        %v1069 = vpop.permute.xlu0 %1068
        %1070 = vrot.lane.b32.xlu0 %v697, 3
        %v1071 = vpop.permute.xlu0 %1070
        %1072 = vrot.lane.b32.xlu0 %v698, 3
        %v1073 = vpop.permute.xlu0 %1072
        %1074 = vrot.lane.b32.xlu0 %v699, 3
        %v1075 = vpop.permute.xlu0 %1074
        %1076 = vrot.lane.b32.xlu0 %v700, 3
        %v1077 = vpop.permute.xlu0 %1076
        %1078 = vrot.lane.b32.xlu0 %v701, 3
        %v1079 = vpop.permute.xlu0 %1078
        %1080 = vrot.lane.b32.xlu0 %v702, 3
        %v1081 = vpop.permute.xlu0 %1080
        %1082 = vrot.lane.b32.xlu0 %v703, 3
        %v1083 = vpop.permute.xlu0 %1082
        %1084 = vrot.lane.b32.xlu0 %v704, 3
        %v1085 = vpop.permute.xlu0 %1084
        %1086 = vrot.lane.b32.xlu0 %v705, 3
        %v1087 = vpop.permute.xlu0 %1086
        %1088 = vrot.lane.b32.xlu0 %v706, 3
        %v1089 = vpop.permute.xlu0 %1088
        %1090 = vrot.lane.b32.xlu0 %v707, 3
        %v1091 = vpop.permute.xlu0 %1090
        %1092 = vrot.lane.b32.xlu0 %v708, 3
        %v1093 = vpop.permute.xlu0 %1092
        %1094 = vrot.lane.b32.xlu0 %v709, 3
        %v1095 = vpop.permute.xlu0 %1094
        %1096 = vrot.lane.b32.xlu0 %v710, 3
        %v1097 = vpop.permute.xlu0 %1096
        %1098 = vrot.lane.b32.xlu0 %v711, 3
        %v1099 = vpop.permute.xlu0 %1098
        %1100 = vrot.lane.b32.xlu0 %v712, 3
        %v1101 = vpop.permute.xlu0 %1100
        %1102 = vrot.lane.b32.xlu0 %v713, 3
        %v1103 = vpop.permute.xlu0 %1102
        %1104 = vrot.lane.b32.xlu0 %v714, 3
        %v1105 = vpop.permute.xlu0 %1104
        %1106 = vrot.lane.b32.xlu0 %v715, 3
        %v1107 = vpop.permute.xlu0 %1106
        %1108 = vrot.lane.b32.xlu0 %v716, 3
        %v1109 = vpop.permute.xlu0 %1108
        %1110 = vrot.lane.b32.xlu0 %v717, 3
        %v1111 = vpop.permute.xlu0 %1110
        %1112 = vrot.lane.b32.xlu0 %v718, 3
        %v1113 = vpop.permute.xlu0 %1112
        %1114 = vrot.lane.b32.xlu0 %v719, 3
        %v1115 = vpop.permute.xlu0 %1114
        %1116 = vrot.lane.b32.xlu0 %v720, 3
        %v1117 = vpop.permute.xlu0 %1116
        %1118 = vrot.lane.b32.xlu0 %v721, 3
        %v1119 = vpop.permute.xlu0 %1118
        %1120 = vrot.lane.b32.xlu0 %v722, 3
        %v1121 = vpop.permute.xlu0 %1120
        %1122 = vrot.lane.b32.xlu0 %v723, 3
        %v1123 = vpop.permute.xlu0 %1122
        %1124 = vrot.lane.b32.xlu0 %v724, 3
        %v1125 = vpop.permute.xlu0 %1124
        %1126 = vrot.lane.b32.xlu0 %v725, 3
        %v1127 = vpop.permute.xlu0 %1126
        %1128 = vrot.lane.b32.xlu0 %v726, 3
        %v1129 = vpop.permute.xlu0 %1128
        %1130 = vrot.lane.b32.xlu0 %v727, 3
        %v1131 = vpop.permute.xlu0 %1130
        %1132 = vrot.lane.b32.xlu0 %v728, 3
        %v1133 = vpop.permute.xlu0 %1132
        %1134 = vrot.lane.b32.xlu0 %v729, 3
        %v1135 = vpop.permute.xlu0 %1134
        %1136 = vrot.lane.b32.xlu0 %v730, 3
        %v1137 = vpop.permute.xlu0 %1136
        %1138 = vrot.lane.b32.xlu0 %v731, 3
        %v1139 = vpop.permute.xlu0 %1138
        %1140 = vrot.lane.b32.xlu0 %v732, 3
        %v1141 = vpop.permute.xlu0 %1140
        %1142 = vrot.lane.b32.xlu0 %v733, 3
        %v1143 = vpop.permute.xlu0 %1142
        %1144 = vrot.lane.b32.xlu0 %v734, 3
        %v1145 = vpop.permute.xlu0 %1144
        %1146 = vrot.lane.b32.xlu0 %v735, 3
        %v1147 = vpop.permute.xlu0 %1146
        %1148 = vrot.lane.b32.xlu0 %v736, 3
        %v1149 = vpop.permute.xlu0 %1148
        %1150 = vrot.lane.b32.xlu0 %v737, 3
        %v1151 = vpop.permute.xlu0 %1150
        %1152 = vrot.lane.b32.xlu0 %v738, 3
        %v1153 = vpop.permute.xlu0 %1152
        %1154 = vrot.lane.b32.xlu0 %v739, 3
        %v1155 = vpop.permute.xlu0 %1154
        %1156 = vrot.lane.b32.xlu0 %v740, 3
        %v1157 = vpop.permute.xlu0 %1156
        %1158 = vrot.lane.b32.xlu0 %v741, 3
        %v1159 = vpop.permute.xlu0 %1158
        %1160 = vrot.lane.b32.xlu0 %v742, 3
        %v1161 = vpop.permute.xlu0 %1160
        %1162 = vrot.lane.b32.xlu0 %v743, 3
        %v1163 = vpop.permute.xlu0 %1162
        %1164 = vrot.lane.b32.xlu0 %v744, 3
        %v1165 = vpop.permute.xlu0 %1164
        %1166 = vrot.lane.b32.xlu0 %v745, 3
        %v1167 = vpop.permute.xlu0 %1166
        %1168 = vrot.lane.b32.xlu0 %v746, 3
        %v1169 = vpop.permute.xlu0 %1168
        %1170 = vrot.lane.b32.xlu0 %v747, 3
        %v1171 = vpop.permute.xlu0 %1170
        %1172 = vrot.lane.b32.xlu0 %v748, 3
        %v1173 = vpop.permute.xlu0 %1172
        %1174 = vrot.lane.b32.xlu0 %v749, 3
        %v1175 = vpop.permute.xlu0 %1174
        %1176 = vrot.lane.b32.xlu0 %v750, 3
        %v1177 = vpop.permute.xlu0 %1176
        %1178 = vrot.lane.b32.xlu0 %v751, 3
        %v1179 = vpop.permute.xlu0 %1178
        %1180 = vrot.lane.b32.xlu0 %v752, 3
        %v1181 = vpop.permute.xlu0 %1180
        %1182 = vrot.lane.b32.xlu0 %v753, 3
        %v1183 = vpop.permute.xlu0 %1182
        %1184 = vrot.lane.b32.xlu0 %v754, 3
        %v1185 = vpop.permute.xlu0 %1184
        %1186 = vrot.lane.b32.xlu0 %v755, 3
        %v1187 = vpop.permute.xlu0 %1186
        %1188 = vrot.lane.b32.xlu0 %v756, 3
        %v1189 = vpop.permute.xlu0 %1188
        %1190 = vrot.lane.b32.xlu0 %v757, 3
        %v1191 = vpop.permute.xlu0 %1190
        %1192 = vrot.lane.b32.xlu0 %v758, 3
        %v1193 = vpop.permute.xlu0 %1192
        %1194 = vrot.lane.b32.xlu0 %v759, 3
        %v1195 = vpop.permute.xlu0 %1194
        %1196 = vrot.lane.b32.xlu0 %v760, 3
        %v1197 = vpop.permute.xlu0 %1196
        %1198 = vrot.lane.b32.xlu0 %v761, 3
        %v1199 = vpop.permute.xlu0 %1198
        %1200 = vrot.lane.b32.xlu0 %v762, 3
        %v1201 = vpop.permute.xlu0 %1200
        %1202 = vrot.lane.b32.xlu0 %v763, 3
        %v1203 = vpop.permute.xlu0 %1202
        %1204 = vrot.lane.b32.xlu0 %v764, 3
        %v1205 = vpop.permute.xlu0 %1204
        %1206 = vrot.lane.b32.xlu0 %v765, 3
        %v1207 = vpop.permute.xlu0 %1206
        %1208 = vrot.lane.b32.xlu0 %v766, 3
        %v1209 = vpop.permute.xlu0 %1208
        %1210 = vrot.lane.b32.xlu0 %v767, 3
        %v1211 = vpop.permute.xlu0 %1210
        %1212 = vrot.lane.b32.xlu0 %v768, 3
        %v1213 = vpop.permute.xlu0 %1212
        %1214 = vrot.lane.b32.xlu0 %v769, 3
        %v1215 = vpop.permute.xlu0 %1214
        %1216 = vrot.lane.b32.xlu0 %v770, 3
        %v1217 = vpop.permute.xlu0 %1216
        %vm1330 = vcmask 48153
        %1331 = vst.msk [vmem:[#allocation3 - $0x1] sm:$0xfe] %vm1330, %v995
        %vm1332 = vcmask 48152
        %1333 = vst.msk [vmem:[#allocation3 + $0x7] sm:$0xff] %vm1332, %v997
        %1334 = vst.msk [vmem:[#allocation3 + $0xf] sm:$0xff] %vm1332, %v999
        %1335 = vst.msk [vmem:[#allocation3 + $0x17] sm:$0xff] %vm1332, %v1001
        %1336 = vst.msk [vmem:[#allocation3 + $0x1f] sm:$0xff] %vm1332, %v1003
        %1337 = vst.msk [vmem:[#allocation3 + $0x27] sm:$0xff] %vm1332, %v1005
        %1338 = vst.msk [vmem:[#allocation3 + $0x2f] sm:$0xff] %vm1332, %v1007
        %1339 = vst.msk [vmem:[#allocation3 + $0x37] sm:$0xff] %vm1332, %v1009
        %1340 = vst.msk [vmem:[#allocation3 + $0x3f] sm:$0xff] %vm1332, %v1011
        %1341 = vst.msk [vmem:[#allocation3 + $0x47] sm:$0xff] %vm1332, %v1013
        %1342 = vst.msk [vmem:[#allocation3 + $0x4f] sm:$0xff] %vm1332, %v1015
        %1343 = vst.msk [vmem:[#allocation3 + $0x57] sm:$0xff] %vm1332, %v1017
        %1344 = vst.msk [vmem:[#allocation3 + $0x5f] sm:$0xff] %vm1332, %v1019
        %1345 = vst.msk [vmem:[#allocation3 + $0x67] sm:$0xff] %vm1332, %v1021
        %1346 = vst.msk [vmem:[#allocation3 + $0x6f] sm:$0xff] %vm1332, %v1023
        %1347 = vst.msk [vmem:[#allocation3 + $0x77] sm:$0xff] %vm1332, %v1025
        %1348 = vst.msk [vmem:[#allocation3 + $0x7f] sm:$0xff] %vm1332, %v1027
        %1349 = vst.msk [vmem:[#allocation3 + $0x87] sm:$0xff] %vm1332, %v1029
        %1350 = vst.msk [vmem:[#allocation3 + $0x8f] sm:$0xff] %vm1332, %v1031
        %1351 = vst.msk [vmem:[#allocation3 + $0x97] sm:$0xff] %vm1332, %v1033
        %1352 = vst.msk [vmem:[#allocation3 + $0x9f] sm:$0xff] %vm1332, %v1035
        %1353 = vst.msk [vmem:[#allocation3 + $0xa7] sm:$0xff] %vm1332, %v1037
        %1354 = vst.msk [vmem:[#allocation3 + $0xaf] sm:$0xff] %vm1332, %v1039
        %1355 = vst.msk [vmem:[#allocation3 + $0xb7] sm:$0xff] %vm1332, %v1041
        %1356 = vst.msk [vmem:[#allocation3 + $0xbf] sm:$0xff] %vm1332, %v1043
        %1357 = vst.msk [vmem:[#allocation3 + $0xc7] sm:$0xff] %vm1332, %v1045
        %1358 = vst.msk [vmem:[#allocation3 + $0xcf] sm:$0xff] %vm1332, %v1047
        %1359 = vst.msk [vmem:[#allocation3 + $0xd7] sm:$0xff] %vm1332, %v1049
        %1360 = vst.msk [vmem:[#allocation3 + $0xdf] sm:$0xff] %vm1332, %v1051
        %1361 = vst.msk [vmem:[#allocation3 + $0xe7] sm:$0xff] %vm1332, %v1053
        %1362 = vst.msk [vmem:[#allocation3 + $0xef] sm:$0xff] %vm1332, %v1055
        %1363 = vst.msk [vmem:[#allocation3 + $0xf7] sm:$0xff] %vm1332, %v1057
        %1364 = vst.msk [vmem:[#allocation3 + $0xff] sm:$0xff] %vm1332, %v1059
        %1365 = vst.msk [vmem:[#allocation3 + $0x107] sm:$0xff] %vm1332, %v1061
        %1366 = vst.msk [vmem:[#allocation3 + $0x10f] sm:$0xff] %vm1332, %v1063
        %1367 = vst.msk [vmem:[#allocation3 + $0x117] sm:$0xff] %vm1332, %v1065
        %1368 = vst.msk [vmem:[#allocation3 + $0x11f] sm:$0xff] %vm1332, %v1067
        %1369 = vst.msk [vmem:[#allocation3 + $0x127] sm:$0xff] %vm1332, %v1069
        %1370 = vst.msk [vmem:[#allocation3 + $0x12f] sm:$0xff] %vm1332, %v1071
        %1371 = vst.msk [vmem:[#allocation3 + $0x137] sm:$0xff] %vm1332, %v1073
        %1372 = vst.msk [vmem:[#allocation3 + $0x13f] sm:$0xff] %vm1332, %v1075
        %1373 = vst.msk [vmem:[#allocation3 + $0x147] sm:$0xff] %vm1332, %v1077
        %1374 = vst.msk [vmem:[#allocation3 + $0x14f] sm:$0xff] %vm1332, %v1079
        %1375 = vst.msk [vmem:[#allocation3 + $0x157] sm:$0xff] %vm1332, %v1081
        %1376 = vst.msk [vmem:[#allocation3 + $0x15f] sm:$0xff] %vm1332, %v1083
        %1377 = vst.msk [vmem:[#allocation3 + $0x167] sm:$0xff] %vm1332, %v1085
        %1378 = vst.msk [vmem:[#allocation3 + $0x16f] sm:$0xff] %vm1332, %v1087
        %1379 = vst.msk [vmem:[#allocation3 + $0x177] sm:$0xff] %vm1332, %v1089
        %1380 = vst.msk [vmem:[#allocation3 + $0x17f] sm:$0xff] %vm1332, %v1091
        %1381 = vst.msk [vmem:[#allocation3 + $0x187] sm:$0xff] %vm1332, %v1093
        %1382 = vst.msk [vmem:[#allocation3 + $0x18f] sm:$0xff] %vm1332, %v1095
        %1383 = vst.msk [vmem:[#allocation3 + $0x197] sm:$0xff] %vm1332, %v1097
        %1384 = vst.msk [vmem:[#allocation3 + $0x19f] sm:$0xff] %vm1332, %v1099
        %1385 = vst.msk [vmem:[#allocation3 + $0x1a7] sm:$0xff] %vm1332, %v1101
        %1386 = vst.msk [vmem:[#allocation3 + $0x1af] sm:$0xff] %vm1332, %v1103
        %1387 = vst.msk [vmem:[#allocation3 + $0x1b7] sm:$0xff] %vm1332, %v1105
        %1388 = vst.msk [vmem:[#allocation3 + $0x1bf] sm:$0xff] %vm1332, %v1107
        %1389 = vst.msk [vmem:[#allocation3 + $0x1c7] sm:$0xff] %vm1332, %v1109
        %1390 = vst.msk [vmem:[#allocation3 + $0x1cf] sm:$0xff] %vm1332, %v1111
        %1391 = vst.msk [vmem:[#allocation3 + $0x1d7] sm:$0xff] %vm1332, %v1113
        %1392 = vst.msk [vmem:[#allocation3 + $0x1df] sm:$0xff] %vm1332, %v1115
        %1393 = vst.msk [vmem:[#allocation3 + $0x1e7] sm:$0xff] %vm1332, %v1117
        %1394 = vst.msk [vmem:[#allocation3 + $0x1ef] sm:$0xff] %vm1332, %v1119
        %1395 = vst.msk [vmem:[#allocation3 + $0x1f7] sm:$0xff] %vm1332, %v1121
        %1396 = vst.msk [vmem:[#allocation3 + $0x1ff] sm:$0xff] %vm1332, %v1123
        %1397 = vst.msk [vmem:[#allocation3 + $0x207] sm:$0xff] %vm1332, %v1125
        %1398 = vst.msk [vmem:[#allocation3 + $0x20f] sm:$0xff] %vm1332, %v1127
        %1399 = vst.msk [vmem:[#allocation3 + $0x217] sm:$0xff] %vm1332, %v1129
        %1400 = vst.msk [vmem:[#allocation3 + $0x21f] sm:$0xff] %vm1332, %v1131
        %1401 = vst.msk [vmem:[#allocation3 + $0x227] sm:$0xff] %vm1332, %v1133
        %1402 = vst.msk [vmem:[#allocation3 + $0x22f] sm:$0xff] %vm1332, %v1135
        %1403 = vst.msk [vmem:[#allocation3 + $0x237] sm:$0xff] %vm1332, %v1137
        %1404 = vst.msk [vmem:[#allocation3 + $0x23f] sm:$0xff] %vm1332, %v1139
        %1405 = vst.msk [vmem:[#allocation3 + $0x247] sm:$0xff] %vm1332, %v1141
        %1406 = vst.msk [vmem:[#allocation3 + $0x24f] sm:$0xff] %vm1332, %v1143
        %1407 = vst.msk [vmem:[#allocation3 + $0x257] sm:$0xff] %vm1332, %v1145
        %1408 = vst.msk [vmem:[#allocation3 + $0x25f] sm:$0xff] %vm1332, %v1147
        %1409 = vst.msk [vmem:[#allocation3 + $0x267] sm:$0xff] %vm1332, %v1149
        %1410 = vst.msk [vmem:[#allocation3 + $0x26f] sm:$0xff] %vm1332, %v1151
        %1411 = vst.msk [vmem:[#allocation3 + $0x277] sm:$0xff] %vm1332, %v1153
        %1412 = vst.msk [vmem:[#allocation3 + $0x27f] sm:$0xff] %vm1332, %v1155
        %1413 = vst.msk [vmem:[#allocation3 + $0x287] sm:$0xff] %vm1332, %v1157
        %1414 = vst.msk [vmem:[#allocation3 + $0x28f] sm:$0xff] %vm1332, %v1159
        %1415 = vst.msk [vmem:[#allocation3 + $0x297] sm:$0xff] %vm1332, %v1161
        %1416 = vst.msk [vmem:[#allocation3 + $0x29f] sm:$0xff] %vm1332, %v1163
        %1417 = vst.msk [vmem:[#allocation3 + $0x2a7] sm:$0xff] %vm1332, %v1165
        %1418 = vst.msk [vmem:[#allocation3 + $0x2af] sm:$0xff] %vm1332, %v1167
        %1419 = vst.msk [vmem:[#allocation3 + $0x2b7] sm:$0xff] %vm1332, %v1169
        %1420 = vst.msk [vmem:[#allocation3 + $0x2bf] sm:$0xff] %vm1332, %v1171
        %1421 = vst.msk [vmem:[#allocation3 + $0x2c7] sm:$0xff] %vm1332, %v1173
        %1422 = vst.msk [vmem:[#allocation3 + $0x2cf] sm:$0xff] %vm1332, %v1175
        %1423 = vst.msk [vmem:[#allocation3 + $0x2d7] sm:$0xff] %vm1332, %v1177
        %1424 = vst.msk [vmem:[#allocation3 + $0x2df] sm:$0xff] %vm1332, %v1179
        %1425 = vst.msk [vmem:[#allocation3 + $0x2e7] sm:$0xff] %vm1332, %v1181
        %1426 = vst.msk [vmem:[#allocation3 + $0x2ef] sm:$0xff] %vm1332, %v1183
        %1427 = vst.msk [vmem:[#allocation3 + $0x2f7] sm:$0xff] %vm1332, %v1185
        %1428 = vst.msk [vmem:[#allocation3 + $0x2ff] sm:$0xff] %vm1332, %v1187
        %1429 = vst.msk [vmem:[#allocation3 + $0x307] sm:$0xff] %vm1332, %v1189
        %1430 = vst.msk [vmem:[#allocation3 + $0x30f] sm:$0xff] %vm1332, %v1191
        %1431 = vst.msk [vmem:[#allocation3 + $0x317] sm:$0xff] %vm1332, %v1193
        %1432 = vst.msk [vmem:[#allocation3 + $0x31f] sm:$0xff] %vm1332, %v1195
        %1433 = vst.msk [vmem:[#allocation3 + $0x327] sm:$0xff] %vm1332, %v1197
        %1434 = vst.msk [vmem:[#allocation3 + $0x32f] sm:$0xff] %vm1332, %v1199
        %1435 = vst.msk [vmem:[#allocation3 + $0x337] sm:$0xff] %vm1332, %v1201
        %1436 = vst.msk [vmem:[#allocation3 + $0x33f] sm:$0xff] %vm1332, %v1203
        %1437 = vst.msk [vmem:[#allocation3 + $0x347] sm:$0xff] %vm1332, %v1205
        %1438 = vst.msk [vmem:[#allocation3 + $0x34f] sm:$0xff] %vm1332, %v1207
        %1439 = vst.msk [vmem:[#allocation3 + $0x357] sm:$0xff] %vm1332, %v1209
        %1440 = vst.msk [vmem:[#allocation3 + $0x35f] sm:$0xff] %vm1332, %v1211
        %1441 = vst.msk [vmem:[#allocation3 + $0x367] sm:$0xff] %vm1332, %v1213
        %1442 = vst.msk [vmem:[#allocation3 + $0x36f] sm:$0xff] %vm1332, %v1215
        %vm1443 = vcmask 40984
        %1444 = vst.msk [vmem:[#allocation3 + $0x377] sm:$0x1] %vm1443, %v1217
        %1445 = vrot.lane.b32.xlu0 %v659, 6
        %v1446 = vpop.permute.xlu0 %1445
        %1447 = vrot.lane.b32.xlu0 %v660, 6
        %v1448 = vpop.permute.xlu0 %1447
        %1449 = vrot.lane.b32.xlu0 %v661, 6
        %v1450 = vpop.permute.xlu0 %1449
        %1451 = vrot.lane.b32.xlu0 %v662, 6
        %v1452 = vpop.permute.xlu0 %1451
        %1453 = vrot.lane.b32.xlu0 %v663, 6
        %v1454 = vpop.permute.xlu0 %1453
        %1455 = vrot.lane.b32.xlu0 %v664, 6
        %v1456 = vpop.permute.xlu0 %1455
        %1457 = vrot.lane.b32.xlu0 %v665, 6
        %v1458 = vpop.permute.xlu0 %1457
        %1459 = vrot.lane.b32.xlu0 %v666, 6
        %v1460 = vpop.permute.xlu0 %1459
        %1461 = vrot.lane.b32.xlu0 %v667, 6
        %v1462 = vpop.permute.xlu0 %1461
        %1463 = vrot.lane.b32.xlu0 %v668, 6
        %v1464 = vpop.permute.xlu0 %1463
        %1465 = vrot.lane.b32.xlu0 %v669, 6
        %v1466 = vpop.permute.xlu0 %1465
        %1467 = vrot.lane.b32.xlu0 %v670, 6
        %v1468 = vpop.permute.xlu0 %1467
        %1469 = vrot.lane.b32.xlu0 %v671, 6
        %v1470 = vpop.permute.xlu0 %1469
        %1471 = vrot.lane.b32.xlu0 %v672, 6
        %v1472 = vpop.permute.xlu0 %1471
        %1473 = vrot.lane.b32.xlu0 %v673, 6
        %v1474 = vpop.permute.xlu0 %1473
        %1475 = vrot.lane.b32.xlu0 %v674, 6
        %v1476 = vpop.permute.xlu0 %1475
        %1477 = vrot.lane.b32.xlu0 %v675, 6
        %v1478 = vpop.permute.xlu0 %1477
        %1479 = vrot.lane.b32.xlu0 %v676, 6
        %v1480 = vpop.permute.xlu0 %1479
        %1481 = vrot.lane.b32.xlu0 %v677, 6
        %v1482 = vpop.permute.xlu0 %1481
        %1483 = vrot.lane.b32.xlu0 %v678, 6
        %v1484 = vpop.permute.xlu0 %1483
        %1485 = vrot.lane.b32.xlu0 %v679, 6
        %v1486 = vpop.permute.xlu0 %1485
        %1487 = vrot.lane.b32.xlu0 %v680, 6
        %v1488 = vpop.permute.xlu0 %1487
        %1489 = vrot.lane.b32.xlu0 %v681, 6
        %v1490 = vpop.permute.xlu0 %1489
        %1491 = vrot.lane.b32.xlu0 %v682, 6
        %v1492 = vpop.permute.xlu0 %1491
        %1493 = vrot.lane.b32.xlu0 %v683, 6
        %v1494 = vpop.permute.xlu0 %1493
        %1495 = vrot.lane.b32.xlu0 %v684, 6
        %v1496 = vpop.permute.xlu0 %1495
        %1497 = vrot.lane.b32.xlu0 %v685, 6
        %v1498 = vpop.permute.xlu0 %1497
        %1499 = vrot.lane.b32.xlu0 %v686, 6
        %v1500 = vpop.permute.xlu0 %1499
        %1501 = vrot.lane.b32.xlu0 %v687, 6
        %v1502 = vpop.permute.xlu0 %1501
        %1503 = vrot.lane.b32.xlu0 %v688, 6
        %v1504 = vpop.permute.xlu0 %1503
        %1505 = vrot.lane.b32.xlu0 %v689, 6
        %v1506 = vpop.permute.xlu0 %1505
        %1507 = vrot.lane.b32.xlu0 %v690, 6
        %v1508 = vpop.permute.xlu0 %1507
        %1509 = vrot.lane.b32.xlu0 %v691, 6
        %v1510 = vpop.permute.xlu0 %1509
        %1511 = vrot.lane.b32.xlu0 %v692, 6
        %v1512 = vpop.permute.xlu0 %1511
        %1513 = vrot.lane.b32.xlu0 %v693, 6
        %v1514 = vpop.permute.xlu0 %1513
        %1515 = vrot.lane.b32.xlu0 %v694, 6
        %v1516 = vpop.permute.xlu0 %1515
        %1517 = vrot.lane.b32.xlu0 %v695, 6
        %v1518 = vpop.permute.xlu0 %1517
        %1519 = vrot.lane.b32.xlu0 %v696, 6
        %v1520 = vpop.permute.xlu0 %1519
        %1521 = vrot.lane.b32.xlu0 %v697, 6
        %v1522 = vpop.permute.xlu0 %1521
        %1523 = vrot.lane.b32.xlu0 %v698, 6
        %v1524 = vpop.permute.xlu0 %1523
        %1525 = vrot.lane.b32.xlu0 %v699, 6
        %v1526 = vpop.permute.xlu0 %1525
        %1527 = vrot.lane.b32.xlu0 %v700, 6
        %v1528 = vpop.permute.xlu0 %1527
        %1529 = vrot.lane.b32.xlu0 %v701, 6
        %v1530 = vpop.permute.xlu0 %1529
        %1531 = vrot.lane.b32.xlu0 %v702, 6
        %v1532 = vpop.permute.xlu0 %1531
        %1533 = vrot.lane.b32.xlu0 %v703, 6
        %v1534 = vpop.permute.xlu0 %1533
        %1535 = vrot.lane.b32.xlu0 %v704, 6
        %v1536 = vpop.permute.xlu0 %1535
        %1537 = vrot.lane.b32.xlu0 %v705, 6
        %v1538 = vpop.permute.xlu0 %1537
        %1539 = vrot.lane.b32.xlu0 %v706, 6
        %v1540 = vpop.permute.xlu0 %1539
        %1541 = vrot.lane.b32.xlu0 %v707, 6
        %v1542 = vpop.permute.xlu0 %1541
        %1543 = vrot.lane.b32.xlu0 %v708, 6
        %v1544 = vpop.permute.xlu0 %1543
        %1545 = vrot.lane.b32.xlu0 %v709, 6
        %v1546 = vpop.permute.xlu0 %1545
        %1547 = vrot.lane.b32.xlu0 %v710, 6
        %v1548 = vpop.permute.xlu0 %1547
        %1549 = vrot.lane.b32.xlu0 %v711, 6
        %v1550 = vpop.permute.xlu0 %1549
        %1551 = vrot.lane.b32.xlu0 %v712, 6
        %v1552 = vpop.permute.xlu0 %1551
        %1553 = vrot.lane.b32.xlu0 %v713, 6
        %v1554 = vpop.permute.xlu0 %1553
        %1555 = vrot.lane.b32.xlu0 %v714, 6
        %v1556 = vpop.permute.xlu0 %1555
        %1557 = vrot.lane.b32.xlu0 %v715, 6
        %v1558 = vpop.permute.xlu0 %1557
        %1559 = vrot.lane.b32.xlu0 %v716, 6
        %v1560 = vpop.permute.xlu0 %1559
        %1561 = vrot.lane.b32.xlu0 %v717, 6
        %v1562 = vpop.permute.xlu0 %1561
        %1563 = vrot.lane.b32.xlu0 %v718, 6
        %v1564 = vpop.permute.xlu0 %1563
        %1565 = vrot.lane.b32.xlu0 %v719, 6
        %v1566 = vpop.permute.xlu0 %1565
        %1567 = vrot.lane.b32.xlu0 %v720, 6
        %v1568 = vpop.permute.xlu0 %1567
        %1569 = vrot.lane.b32.xlu0 %v721, 6
        %v1570 = vpop.permute.xlu0 %1569
        %1571 = vrot.lane.b32.xlu0 %v722, 6
        %v1572 = vpop.permute.xlu0 %1571
        %1573 = vrot.lane.b32.xlu0 %v723, 6
        %v1574 = vpop.permute.xlu0 %1573
        %1575 = vrot.lane.b32.xlu0 %v724, 6
        %v1576 = vpop.permute.xlu0 %1575
        %1577 = vrot.lane.b32.xlu0 %v725, 6
        %v1578 = vpop.permute.xlu0 %1577
        %1579 = vrot.lane.b32.xlu0 %v726, 6
        %v1580 = vpop.permute.xlu0 %1579
        %1581 = vrot.lane.b32.xlu0 %v727, 6
        %v1582 = vpop.permute.xlu0 %1581
        %1583 = vrot.lane.b32.xlu0 %v728, 6
        %v1584 = vpop.permute.xlu0 %1583
        %1585 = vrot.lane.b32.xlu0 %v729, 6
        %v1586 = vpop.permute.xlu0 %1585
        %1587 = vrot.lane.b32.xlu0 %v730, 6
        %v1588 = vpop.permute.xlu0 %1587
        %1589 = vrot.lane.b32.xlu0 %v731, 6
        %v1590 = vpop.permute.xlu0 %1589
        %1591 = vrot.lane.b32.xlu0 %v732, 6
        %v1592 = vpop.permute.xlu0 %1591
        %1593 = vrot.lane.b32.xlu0 %v733, 6
        %v1594 = vpop.permute.xlu0 %1593
        %1595 = vrot.lane.b32.xlu0 %v734, 6
        %v1596 = vpop.permute.xlu0 %1595
        %1597 = vrot.lane.b32.xlu0 %v735, 6
        %v1598 = vpop.permute.xlu0 %1597
        %1599 = vrot.lane.b32.xlu0 %v736, 6
        %v1600 = vpop.permute.xlu0 %1599
        %1601 = vrot.lane.b32.xlu0 %v737, 6
        %v1602 = vpop.permute.xlu0 %1601
        %1603 = vrot.lane.b32.xlu0 %v738, 6
        %v1604 = vpop.permute.xlu0 %1603
        %1605 = vrot.lane.b32.xlu0 %v739, 6
        %v1606 = vpop.permute.xlu0 %1605
        %1607 = vrot.lane.b32.xlu0 %v740, 6
        %v1608 = vpop.permute.xlu0 %1607
        %1609 = vrot.lane.b32.xlu0 %v741, 6
        %v1610 = vpop.permute.xlu0 %1609
        %1611 = vrot.lane.b32.xlu0 %v742, 6
        %v1612 = vpop.permute.xlu0 %1611
        %1613 = vrot.lane.b32.xlu0 %v743, 6
        %v1614 = vpop.permute.xlu0 %1613
        %1615 = vrot.lane.b32.xlu0 %v744, 6
        %v1616 = vpop.permute.xlu0 %1615
        %1617 = vrot.lane.b32.xlu0 %v745, 6
        %v1618 = vpop.permute.xlu0 %1617
        %1619 = vrot.lane.b32.xlu0 %v746, 6
        %v1620 = vpop.permute.xlu0 %1619
        %1621 = vrot.lane.b32.xlu0 %v747, 6
        %v1622 = vpop.permute.xlu0 %1621
        %1623 = vrot.lane.b32.xlu0 %v748, 6
        %v1624 = vpop.permute.xlu0 %1623
        %1625 = vrot.lane.b32.xlu0 %v749, 6
        %v1626 = vpop.permute.xlu0 %1625
        %1627 = vrot.lane.b32.xlu0 %v750, 6
        %v1628 = vpop.permute.xlu0 %1627
        %1629 = vrot.lane.b32.xlu0 %v751, 6
        %v1630 = vpop.permute.xlu0 %1629
        %1631 = vrot.lane.b32.xlu0 %v752, 6
        %v1632 = vpop.permute.xlu0 %1631
        %1633 = vrot.lane.b32.xlu0 %v753, 6
        %v1634 = vpop.permute.xlu0 %1633
        %1635 = vrot.lane.b32.xlu0 %v754, 6
        %v1636 = vpop.permute.xlu0 %1635
        %1637 = vrot.lane.b32.xlu0 %v755, 6
        %v1638 = vpop.permute.xlu0 %1637
        %1639 = vrot.lane.b32.xlu0 %v756, 6
        %v1640 = vpop.permute.xlu0 %1639
        %1641 = vrot.lane.b32.xlu0 %v757, 6
        %v1642 = vpop.permute.xlu0 %1641
        %1643 = vrot.lane.b32.xlu0 %v758, 6
        %v1644 = vpop.permute.xlu0 %1643
        %1645 = vrot.lane.b32.xlu0 %v759, 6
        %v1646 = vpop.permute.xlu0 %1645
        %1647 = vrot.lane.b32.xlu0 %v760, 6
        %v1648 = vpop.permute.xlu0 %1647
        %1649 = vrot.lane.b32.xlu0 %v761, 6
        %v1650 = vpop.permute.xlu0 %1649
        %1651 = vrot.lane.b32.xlu0 %v762, 6
        %v1652 = vpop.permute.xlu0 %1651
        %1653 = vrot.lane.b32.xlu0 %v763, 6
        %v1654 = vpop.permute.xlu0 %1653
        %1655 = vrot.lane.b32.xlu0 %v764, 6
        %v1656 = vpop.permute.xlu0 %1655
        %1657 = vrot.lane.b32.xlu0 %v765, 6
        %v1658 = vpop.permute.xlu0 %1657
        %1659 = vrot.lane.b32.xlu0 %v766, 6
        %v1660 = vpop.permute.xlu0 %1659
        %1661 = vrot.lane.b32.xlu0 %v767, 6
        %v1662 = vpop.permute.xlu0 %1661
        %1663 = vrot.lane.b32.xlu0 %v768, 6
        %v1664 = vpop.permute.xlu0 %1663
        %1665 = vrot.lane.b32.xlu0 %v769, 6
        %v1666 = vpop.permute.xlu0 %1665
        %1667 = vrot.lane.b32.xlu0 %v770, 6
        %v1668 = vpop.permute.xlu0 %1667
        %vm1781 = vcmask 72754
        %1782 = vst.msk [vmem:[#allocation3 - $0x2] sm:$0xfc] %vm1781, %v1446
        %vm1783 = vcmask 72752
        %1784 = vst.msk [vmem:[#allocation3 + $0x6] sm:$0xff] %vm1783, %v1448
        %1785 = vst.msk [vmem:[#allocation3 + $0xe] sm:$0xff] %vm1783, %v1450
        %1786 = vst.msk [vmem:[#allocation3 + $0x16] sm:$0xff] %vm1783, %v1452
        %1787 = vst.msk [vmem:[#allocation3 + $0x1e] sm:$0xff] %vm1783, %v1454
        %1788 = vst.msk [vmem:[#allocation3 + $0x26] sm:$0xff] %vm1783, %v1456
        %1789 = vst.msk [vmem:[#allocation3 + $0x2e] sm:$0xff] %vm1783, %v1458
        %1790 = vst.msk [vmem:[#allocation3 + $0x36] sm:$0xff] %vm1783, %v1460
        %1791 = vst.msk [vmem:[#allocation3 + $0x3e] sm:$0xff] %vm1783, %v1462
        %1792 = vst.msk [vmem:[#allocation3 + $0x46] sm:$0xff] %vm1783, %v1464
        %1793 = vst.msk [vmem:[#allocation3 + $0x4e] sm:$0xff] %vm1783, %v1466
        %1794 = vst.msk [vmem:[#allocation3 + $0x56] sm:$0xff] %vm1783, %v1468
        %1795 = vst.msk [vmem:[#allocation3 + $0x5e] sm:$0xff] %vm1783, %v1470
        %1796 = vst.msk [vmem:[#allocation3 + $0x66] sm:$0xff] %vm1783, %v1472
        %1797 = vst.msk [vmem:[#allocation3 + $0x6e] sm:$0xff] %vm1783, %v1474
        %1798 = vst.msk [vmem:[#allocation3 + $0x76] sm:$0xff] %vm1783, %v1476
        %1799 = vst.msk [vmem:[#allocation3 + $0x7e] sm:$0xff] %vm1783, %v1478
        %1800 = vst.msk [vmem:[#allocation3 + $0x86] sm:$0xff] %vm1783, %v1480
        %1801 = vst.msk [vmem:[#allocation3 + $0x8e] sm:$0xff] %vm1783, %v1482
        %1802 = vst.msk [vmem:[#allocation3 + $0x96] sm:$0xff] %vm1783, %v1484
        %1803 = vst.msk [vmem:[#allocation3 + $0x9e] sm:$0xff] %vm1783, %v1486
        %1804 = vst.msk [vmem:[#allocation3 + $0xa6] sm:$0xff] %vm1783, %v1488
        %1805 = vst.msk [vmem:[#allocation3 + $0xae] sm:$0xff] %vm1783, %v1490
        %1806 = vst.msk [vmem:[#allocation3 + $0xb6] sm:$0xff] %vm1783, %v1492
        %1807 = vst.msk [vmem:[#allocation3 + $0xbe] sm:$0xff] %vm1783, %v1494
        %1808 = vst.msk [vmem:[#allocation3 + $0xc6] sm:$0xff] %vm1783, %v1496
        %1809 = vst.msk [vmem:[#allocation3 + $0xce] sm:$0xff] %vm1783, %v1498
        %1810 = vst.msk [vmem:[#allocation3 + $0xd6] sm:$0xff] %vm1783, %v1500
        %1811 = vst.msk [vmem:[#allocation3 + $0xde] sm:$0xff] %vm1783, %v1502
        %1812 = vst.msk [vmem:[#allocation3 + $0xe6] sm:$0xff] %vm1783, %v1504
        %1813 = vst.msk [vmem:[#allocation3 + $0xee] sm:$0xff] %vm1783, %v1506
        %1814 = vst.msk [vmem:[#allocation3 + $0xf6] sm:$0xff] %vm1783, %v1508
        %1815 = vst.msk [vmem:[#allocation3 + $0xfe] sm:$0xff] %vm1783, %v1510
        %1816 = vst.msk [vmem:[#allocation3 + $0x106] sm:$0xff] %vm1783, %v1512
        %1817 = vst.msk [vmem:[#allocation3 + $0x10e] sm:$0xff] %vm1783, %v1514
        %1818 = vst.msk [vmem:[#allocation3 + $0x116] sm:$0xff] %vm1783, %v1516
        %1819 = vst.msk [vmem:[#allocation3 + $0x11e] sm:$0xff] %vm1783, %v1518
        %1820 = vst.msk [vmem:[#allocation3 + $0x126] sm:$0xff] %vm1783, %v1520
        %1821 = vst.msk [vmem:[#allocation3 + $0x12e] sm:$0xff] %vm1783, %v1522
        %1822 = vst.msk [vmem:[#allocation3 + $0x136] sm:$0xff] %vm1783, %v1524
        %1823 = vst.msk [vmem:[#allocation3 + $0x13e] sm:$0xff] %vm1783, %v1526
        %1824 = vst.msk [vmem:[#allocation3 + $0x146] sm:$0xff] %vm1783, %v1528
        %1825 = vst.msk [vmem:[#allocation3 + $0x14e] sm:$0xff] %vm1783, %v1530
        %1826 = vst.msk [vmem:[#allocation3 + $0x156] sm:$0xff] %vm1783, %v1532
        %1827 = vst.msk [vmem:[#allocation3 + $0x15e] sm:$0xff] %vm1783, %v1534
        %1828 = vst.msk [vmem:[#allocation3 + $0x166] sm:$0xff] %vm1783, %v1536
        %1829 = vst.msk [vmem:[#allocation3 + $0x16e] sm:$0xff] %vm1783, %v1538
        %1830 = vst.msk [vmem:[#allocation3 + $0x176] sm:$0xff] %vm1783, %v1540
        %1831 = vst.msk [vmem:[#allocation3 + $0x17e] sm:$0xff] %vm1783, %v1542
        %1832 = vst.msk [vmem:[#allocation3 + $0x186] sm:$0xff] %vm1783, %v1544
        %1833 = vst.msk [vmem:[#allocation3 + $0x18e] sm:$0xff] %vm1783, %v1546
        %1834 = vst.msk [vmem:[#allocation3 + $0x196] sm:$0xff] %vm1783, %v1548
        %1835 = vst.msk [vmem:[#allocation3 + $0x19e] sm:$0xff] %vm1783, %v1550
        %1836 = vst.msk [vmem:[#allocation3 + $0x1a6] sm:$0xff] %vm1783, %v1552
        %1837 = vst.msk [vmem:[#allocation3 + $0x1ae] sm:$0xff] %vm1783, %v1554
        %1838 = vst.msk [vmem:[#allocation3 + $0x1b6] sm:$0xff] %vm1783, %v1556
        %1839 = vst.msk [vmem:[#allocation3 + $0x1be] sm:$0xff] %vm1783, %v1558
        %1840 = vst.msk [vmem:[#allocation3 + $0x1c6] sm:$0xff] %vm1783, %v1560
        %1841 = vst.msk [vmem:[#allocation3 + $0x1ce] sm:$0xff] %vm1783, %v1562
        %1842 = vst.msk [vmem:[#allocation3 + $0x1d6] sm:$0xff] %vm1783, %v1564
        %1843 = vst.msk [vmem:[#allocation3 + $0x1de] sm:$0xff] %vm1783, %v1566
        %1844 = vst.msk [vmem:[#allocation3 + $0x1e6] sm:$0xff] %vm1783, %v1568
        %1845 = vst.msk [vmem:[#allocation3 + $0x1ee] sm:$0xff] %vm1783, %v1570
        %1846 = vst.msk [vmem:[#allocation3 + $0x1f6] sm:$0xff] %vm1783, %v1572
        %1847 = vst.msk [vmem:[#allocation3 + $0x1fe] sm:$0xff] %vm1783, %v1574
        %1848 = vst.msk [vmem:[#allocation3 + $0x206] sm:$0xff] %vm1783, %v1576
        %1849 = vst.msk [vmem:[#allocation3 + $0x20e] sm:$0xff] %vm1783, %v1578
        %1850 = vst.msk [vmem:[#allocation3 + $0x216] sm:$0xff] %vm1783, %v1580
        %1851 = vst.msk [vmem:[#allocation3 + $0x21e] sm:$0xff] %vm1783, %v1582
        %1852 = vst.msk [vmem:[#allocation3 + $0x226] sm:$0xff] %vm1783, %v1584
        %1853 = vst.msk [vmem:[#allocation3 + $0x22e] sm:$0xff] %vm1783, %v1586
        %1854 = vst.msk [vmem:[#allocation3 + $0x236] sm:$0xff] %vm1783, %v1588
        %1855 = vst.msk [vmem:[#allocation3 + $0x23e] sm:$0xff] %vm1783, %v1590
        %1856 = vst.msk [vmem:[#allocation3 + $0x246] sm:$0xff] %vm1783, %v1592
        %1857 = vst.msk [vmem:[#allocation3 + $0x24e] sm:$0xff] %vm1783, %v1594
        %1858 = vst.msk [vmem:[#allocation3 + $0x256] sm:$0xff] %vm1783, %v1596
        %1859 = vst.msk [vmem:[#allocation3 + $0x25e] sm:$0xff] %vm1783, %v1598
        %1860 = vst.msk [vmem:[#allocation3 + $0x266] sm:$0xff] %vm1783, %v1600
        %1861 = vst.msk [vmem:[#allocation3 + $0x26e] sm:$0xff] %vm1783, %v1602
        %1862 = vst.msk [vmem:[#allocation3 + $0x276] sm:$0xff] %vm1783, %v1604
        %1863 = vst.msk [vmem:[#allocation3 + $0x27e] sm:$0xff] %vm1783, %v1606
        %1864 = vst.msk [vmem:[#allocation3 + $0x286] sm:$0xff] %vm1783, %v1608
        %1865 = vst.msk [vmem:[#allocation3 + $0x28e] sm:$0xff] %vm1783, %v1610
        %1866 = vst.msk [vmem:[#allocation3 + $0x296] sm:$0xff] %vm1783, %v1612
        %1867 = vst.msk [vmem:[#allocation3 + $0x29e] sm:$0xff] %vm1783, %v1614
        %1868 = vst.msk [vmem:[#allocation3 + $0x2a6] sm:$0xff] %vm1783, %v1616
        %1869 = vst.msk [vmem:[#allocation3 + $0x2ae] sm:$0xff] %vm1783, %v1618
        %1870 = vst.msk [vmem:[#allocation3 + $0x2b6] sm:$0xff] %vm1783, %v1620
        %1871 = vst.msk [vmem:[#allocation3 + $0x2be] sm:$0xff] %vm1783, %v1622
        %1872 = vst.msk [vmem:[#allocation3 + $0x2c6] sm:$0xff] %vm1783, %v1624
        %1873 = vst.msk [vmem:[#allocation3 + $0x2ce] sm:$0xff] %vm1783, %v1626
        %1874 = vst.msk [vmem:[#allocation3 + $0x2d6] sm:$0xff] %vm1783, %v1628
        %1875 = vst.msk [vmem:[#allocation3 + $0x2de] sm:$0xff] %vm1783, %v1630
        %1876 = vst.msk [vmem:[#allocation3 + $0x2e6] sm:$0xff] %vm1783, %v1632
        %1877 = vst.msk [vmem:[#allocation3 + $0x2ee] sm:$0xff] %vm1783, %v1634
        %1878 = vst.msk [vmem:[#allocation3 + $0x2f6] sm:$0xff] %vm1783, %v1636
        %1879 = vst.msk [vmem:[#allocation3 + $0x2fe] sm:$0xff] %vm1783, %v1638
        %1880 = vst.msk [vmem:[#allocation3 + $0x306] sm:$0xff] %vm1783, %v1640
        %1881 = vst.msk [vmem:[#allocation3 + $0x30e] sm:$0xff] %vm1783, %v1642
        %1882 = vst.msk [vmem:[#allocation3 + $0x316] sm:$0xff] %vm1783, %v1644
        %1883 = vst.msk [vmem:[#allocation3 + $0x31e] sm:$0xff] %vm1783, %v1646
        %1884 = vst.msk [vmem:[#allocation3 + $0x326] sm:$0xff] %vm1783, %v1648
        %1885 = vst.msk [vmem:[#allocation3 + $0x32e] sm:$0xff] %vm1783, %v1650
        %1886 = vst.msk [vmem:[#allocation3 + $0x336] sm:$0xff] %vm1783, %v1652
        %1887 = vst.msk [vmem:[#allocation3 + $0x33e] sm:$0xff] %vm1783, %v1654
        %1888 = vst.msk [vmem:[#allocation3 + $0x346] sm:$0xff] %vm1783, %v1656
        %1889 = vst.msk [vmem:[#allocation3 + $0x34e] sm:$0xff] %vm1783, %v1658
        %1890 = vst.msk [vmem:[#allocation3 + $0x356] sm:$0xff] %vm1783, %v1660
        %1891 = vst.msk [vmem:[#allocation3 + $0x35e] sm:$0xff] %vm1783, %v1662
        %1892 = vst.msk [vmem:[#allocation3 + $0x366] sm:$0xff] %vm1783, %v1664
        %1893 = vst.msk [vmem:[#allocation3 + $0x36e] sm:$0xff] %vm1783, %v1666
        %vm1894 = vcmask 66608
        %1895 = vst.msk [vmem:[#allocation3 + $0x376] sm:$0x3] %vm1894, %v1668
        %v1896 = vld [vmem:[#allocation3] sm:$0xff]
        %v1897 = vld [vmem:[#allocation3 + $0x8] sm:$0xff]
        %v1898 = vld [vmem:[#allocation3 + $0x10] sm:$0xff]
        %v1899 = vld [vmem:[#allocation3 + $0x18] sm:$0xff]
        %v1900 = vld [vmem:[#allocation3 + $0x20] sm:$0xff]
        %v1901 = vld [vmem:[#allocation3 + $0x28] sm:$0xff]
        %v1902 = vld [vmem:[#allocation3 + $0x30] sm:$0xff]
        %v1903 = vld [vmem:[#allocation3 + $0x38] sm:$0xff]
        %v1904 = vld [vmem:[#allocation3 + $0x40] sm:$0xff]
        %v1905 = vld [vmem:[#allocation3 + $0x48] sm:$0xff]
        %v1906 = vld [vmem:[#allocation3 + $0x50] sm:$0xff]
        %v1907 = vld [vmem:[#allocation3 + $0x58] sm:$0xff]
        %v1908 = vld [vmem:[#allocation3 + $0x60] sm:$0xff]
        %v1909 = vld [vmem:[#allocation3 + $0x68] sm:$0xff]
        %v1910 = vld [vmem:[#allocation3 + $0x70] sm:$0xff]
        %v1911 = vld [vmem:[#allocation3 + $0x78] sm:$0xff]
        %v1912 = vld [vmem:[#allocation3 + $0x80] sm:$0xff]
        %v1913 = vld [vmem:[#allocation3 + $0x88] sm:$0xff]
        %v1914 = vld [vmem:[#allocation3 + $0x90] sm:$0xff]
        %v1915 = vld [vmem:[#allocation3 + $0x98] sm:$0xff]
        %v1916 = vld [vmem:[#allocation3 + $0xa0] sm:$0xff]
        %v1917 = vld [vmem:[#allocation3 + $0xa8] sm:$0xff]
        %v1918 = vld [vmem:[#allocation3 + $0xb0] sm:$0xff]
        %v1919 = vld [vmem:[#allocation3 + $0xb8] sm:$0xff]
        %v1920 = vld [vmem:[#allocation3 + $0xc0] sm:$0xff]
        %v1921 = vld [vmem:[#allocation3 + $0xc8] sm:$0xff]
        %v1922 = vld [vmem:[#allocation3 + $0xd0] sm:$0xff]
        %v1923 = vld [vmem:[#allocation3 + $0xd8] sm:$0xff]
        %v1924 = vld [vmem:[#allocation3 + $0xe0] sm:$0xff]
        %v1925 = vld [vmem:[#allocation3 + $0xe8] sm:$0xff]
        %v1926 = vld [vmem:[#allocation3 + $0xf0] sm:$0xff]
        %v1927 = vld [vmem:[#allocation3 + $0xf8] sm:$0xff]
        %v1928 = vld [vmem:[#allocation3 + $0x100] sm:$0xff]
        %v1929 = vld [vmem:[#allocation3 + $0x108] sm:$0xff]
        %v1930 = vld [vmem:[#allocation3 + $0x110] sm:$0xff]
        %v1931 = vld [vmem:[#allocation3 + $0x118] sm:$0xff]
        %v1932 = vld [vmem:[#allocation3 + $0x120] sm:$0xff]
        %v1933 = vld [vmem:[#allocation3 + $0x128] sm:$0xff]
        %v1934 = vld [vmem:[#allocation3 + $0x130] sm:$0xff]
        %v1935 = vld [vmem:[#allocation3 + $0x138] sm:$0xff]
        %v1936 = vld [vmem:[#allocation3 + $0x140] sm:$0xff]
        %v1937 = vld [vmem:[#allocation3 + $0x148] sm:$0xff]
        %v1938 = vld [vmem:[#allocation3 + $0x150] sm:$0xff]
        %v1939 = vld [vmem:[#allocation3 + $0x158] sm:$0xff]
        %v1940 = vld [vmem:[#allocation3 + $0x160] sm:$0xff]
        %v1941 = vld [vmem:[#allocation3 + $0x168] sm:$0xff]
        %v1942 = vld [vmem:[#allocation3 + $0x170] sm:$0xff]
        %v1943 = vld [vmem:[#allocation3 + $0x178] sm:$0xff]
        %v1944 = vld [vmem:[#allocation3 + $0x180] sm:$0xff]
        %v1945 = vld [vmem:[#allocation3 + $0x188] sm:$0xff]
        %v1946 = vld [vmem:[#allocation3 + $0x190] sm:$0xff]
        %v1947 = vld [vmem:[#allocation3 + $0x198] sm:$0xff]
        %v1948 = vld [vmem:[#allocation3 + $0x1a0] sm:$0xff]
        %v1949 = vld [vmem:[#allocation3 + $0x1a8] sm:$0xff]
        %v1950 = vld [vmem:[#allocation3 + $0x1b0] sm:$0xff]
        %v1951 = vld [vmem:[#allocation3 + $0x1b8] sm:$0xff]
        %v1952 = vld [vmem:[#allocation3 + $0x1c0] sm:$0xff]
        %v1953 = vld [vmem:[#allocation3 + $0x1c8] sm:$0xff]
        %v1954 = vld [vmem:[#allocation3 + $0x1d0] sm:$0xff]
        %v1955 = vld [vmem:[#allocation3 + $0x1d8] sm:$0xff]
        %v1956 = vld [vmem:[#allocation3 + $0x1e0] sm:$0xff]
        %v1957 = vld [vmem:[#allocation3 + $0x1e8] sm:$0xff]
        %v1958 = vld [vmem:[#allocation3 + $0x1f0] sm:$0xff]
        %v1959 = vld [vmem:[#allocation3 + $0x1f8] sm:$0xff]
        %v1960 = vld [vmem:[#allocation3 + $0x200] sm:$0xff]
        %v1961 = vld [vmem:[#allocation3 + $0x208] sm:$0xff]
        %v1962 = vld [vmem:[#allocation3 + $0x210] sm:$0xff]
        %v1963 = vld [vmem:[#allocation3 + $0x218] sm:$0xff]
        %v1964 = vld [vmem:[#allocation3 + $0x220] sm:$0xff]
        %v1965 = vld [vmem:[#allocation3 + $0x228] sm:$0xff]
        %v1966 = vld [vmem:[#allocation3 + $0x230] sm:$0xff]
        %v1967 = vld [vmem:[#allocation3 + $0x238] sm:$0xff]
        %v1968 = vld [vmem:[#allocation3 + $0x240] sm:$0xff]
        %v1969 = vld [vmem:[#allocation3 + $0x248] sm:$0xff]
        %v1970 = vld [vmem:[#allocation3 + $0x250] sm:$0xff]
        %v1971 = vld [vmem:[#allocation3 + $0x258] sm:$0xff]
        %v1972 = vld [vmem:[#allocation3 + $0x260] sm:$0xff]
        %v1973 = vld [vmem:[#allocation3 + $0x268] sm:$0xff]
        %v1974 = vld [vmem:[#allocation3 + $0x270] sm:$0xff]
        %v1975 = vld [vmem:[#allocation3 + $0x278] sm:$0xff]
        %v1976 = vld [vmem:[#allocation3 + $0x280] sm:$0xff]
        %v1977 = vld [vmem:[#allocation3 + $0x288] sm:$0xff]
        %v1978 = vld [vmem:[#allocation3 + $0x290] sm:$0xff]
        %v1979 = vld [vmem:[#allocation3 + $0x298] sm:$0xff]
        %v1980 = vld [vmem:[#allocation3 + $0x2a0] sm:$0xff]
        %v1981 = vld [vmem:[#allocation3 + $0x2a8] sm:$0xff]
        %v1982 = vld [vmem:[#allocation3 + $0x2b0] sm:$0xff]
        %v1983 = vld [vmem:[#allocation3 + $0x2b8] sm:$0xff]
        %v1984 = vld [vmem:[#allocation3 + $0x2c0] sm:$0xff]
        %v1985 = vld [vmem:[#allocation3 + $0x2c8] sm:$0xff]
        %v1986 = vld [vmem:[#allocation3 + $0x2d0] sm:$0xff]
        %v1987 = vld [vmem:[#allocation3 + $0x2d8] sm:$0xff]
        %v1988 = vld [vmem:[#allocation3 + $0x2e0] sm:$0xff]
        %v1989 = vld [vmem:[#allocation3 + $0x2e8] sm:$0xff]
        %v1990 = vld [vmem:[#allocation3 + $0x2f0] sm:$0xff]
        %v1991 = vld [vmem:[#allocation3 + $0x2f8] sm:$0xff]
        %v1992 = vld [vmem:[#allocation3 + $0x300] sm:$0xff]
        %v1993 = vld [vmem:[#allocation3 + $0x308] sm:$0xff]
        %v1994 = vld [vmem:[#allocation3 + $0x310] sm:$0xff]
        %v1995 = vld [vmem:[#allocation3 + $0x318] sm:$0xff]
        %v1996 = vld [vmem:[#allocation3 + $0x320] sm:$0xff]
        %v1997 = vld [vmem:[#allocation3 + $0x328] sm:$0xff]
        %v1998 = vld [vmem:[#allocation3 + $0x330] sm:$0xff]
        %v1999 = vld [vmem:[#allocation3 + $0x338] sm:$0xff]
        %v2000 = vld [vmem:[#allocation3 + $0x340] sm:$0xff]
        %v2001 = vld [vmem:[%s1] sm:$0xff]
        %v2002 = vld [vmem:[%s1 + $0x8] sm:$0x1]
        %vm2003 = vcmask 72704
        %v2005 = vsel %vm2003, %v1896, 0
        %v2008 = vsel %vm2003, %v1897, 0
        %v2011 = vsel %vm2003, %v1898, 0
        %v2014 = vsel %vm2003, %v1899, 0
        %v2017 = vsel %vm2003, %v1900, 0
        %v2020 = vsel %vm2003, %v1901, 0
        %v2023 = vsel %vm2003, %v1902, 0
        %v2026 = vsel %vm2003, %v1903, 0
        %v2029 = vsel %vm2003, %v1904, 0
        %v2032 = vsel %vm2003, %v1905, 0
        %v2035 = vsel %vm2003, %v1906, 0
        %v2038 = vsel %vm2003, %v1907, 0
        %v2041 = vsel %vm2003, %v1908, 0
        %v2044 = vsel %vm2003, %v1909, 0
        %v2047 = vsel %vm2003, %v1910, 0
        %v2050 = vsel %vm2003, %v1911, 0
        %v2053 = vsel %vm2003, %v1912, 0
        %v2056 = vsel %vm2003, %v1913, 0
        %v2059 = vsel %vm2003, %v1914, 0
        %v2062 = vsel %vm2003, %v1915, 0
        %v2065 = vsel %vm2003, %v1916, 0
        %v2068 = vsel %vm2003, %v1917, 0
        %v2071 = vsel %vm2003, %v1918, 0
        %v2074 = vsel %vm2003, %v1919, 0
        %v2077 = vsel %vm2003, %v1920, 0
        %v2080 = vsel %vm2003, %v1921, 0
        %v2083 = vsel %vm2003, %v1922, 0
        %v2086 = vsel %vm2003, %v1923, 0
        %v2089 = vsel %vm2003, %v1924, 0
        %v2092 = vsel %vm2003, %v1925, 0
        %v2095 = vsel %vm2003, %v1926, 0
        %v2098 = vsel %vm2003, %v1927, 0
        %v2101 = vsel %vm2003, %v1928, 0
        %v2104 = vsel %vm2003, %v1929, 0
        %v2107 = vsel %vm2003, %v1930, 0
        %v2110 = vsel %vm2003, %v1931, 0
        %v2113 = vsel %vm2003, %v1932, 0
        %v2116 = vsel %vm2003, %v1933, 0
        %v2119 = vsel %vm2003, %v1934, 0
        %v2122 = vsel %vm2003, %v1935, 0
        %v2125 = vsel %vm2003, %v1936, 0
        %v2128 = vsel %vm2003, %v1937, 0
        %v2131 = vsel %vm2003, %v1938, 0
        %v2134 = vsel %vm2003, %v1939, 0
        %v2137 = vsel %vm2003, %v1940, 0
        %v2140 = vsel %vm2003, %v1941, 0
        %v2143 = vsel %vm2003, %v1942, 0
        %v2146 = vsel %vm2003, %v1943, 0
        %v2149 = vsel %vm2003, %v1944, 0
        %v2152 = vsel %vm2003, %v1945, 0
        %v2155 = vsel %vm2003, %v1946, 0
        %v2158 = vsel %vm2003, %v1947, 0
        %v2161 = vsel %vm2003, %v1948, 0
        %v2164 = vsel %vm2003, %v1949, 0
        %v2167 = vsel %vm2003, %v1950, 0
        %v2170 = vsel %vm2003, %v1951, 0
        %v2173 = vsel %vm2003, %v1952, 0
        %v2176 = vsel %vm2003, %v1953, 0
        %v2179 = vsel %vm2003, %v1954, 0
        %v2182 = vsel %vm2003, %v1955, 0
        %v2185 = vsel %vm2003, %v1956, 0
        %v2188 = vsel %vm2003, %v1957, 0
        %v2191 = vsel %vm2003, %v1958, 0
        %v2194 = vsel %vm2003, %v1959, 0
        %v2197 = vsel %vm2003, %v1960, 0
        %v2200 = vsel %vm2003, %v1961, 0
        %v2203 = vsel %vm2003, %v1962, 0
        %v2206 = vsel %vm2003, %v1963, 0
        %v2209 = vsel %vm2003, %v1964, 0
        %v2212 = vsel %vm2003, %v1965, 0
        %v2215 = vsel %vm2003, %v1966, 0
        %v2218 = vsel %vm2003, %v1967, 0
        %v2221 = vsel %vm2003, %v1968, 0
        %v2224 = vsel %vm2003, %v1969, 0
        %v2227 = vsel %vm2003, %v1970, 0
        %v2230 = vsel %vm2003, %v1971, 0
        %v2233 = vsel %vm2003, %v1972, 0
        %v2236 = vsel %vm2003, %v1973, 0
        %v2239 = vsel %vm2003, %v1974, 0
        %v2242 = vsel %vm2003, %v1975, 0
        %v2245 = vsel %vm2003, %v1976, 0
        %v2248 = vsel %vm2003, %v1977, 0
        %v2251 = vsel %vm2003, %v1978, 0
        %v2254 = vsel %vm2003, %v1979, 0
        %v2257 = vsel %vm2003, %v1980, 0
        %v2260 = vsel %vm2003, %v1981, 0
        %v2263 = vsel %vm2003, %v1982, 0
        %v2266 = vsel %vm2003, %v1983, 0
        %v2269 = vsel %vm2003, %v1984, 0
        %v2272 = vsel %vm2003, %v1985, 0
        %v2275 = vsel %vm2003, %v1986, 0
        %v2278 = vsel %vm2003, %v1987, 0
        %v2281 = vsel %vm2003, %v1988, 0
        %v2284 = vsel %vm2003, %v1989, 0
        %v2287 = vsel %vm2003, %v1990, 0
        %v2290 = vsel %vm2003, %v1991, 0
        %v2293 = vsel %vm2003, %v1992, 0
        %v2296 = vsel %vm2003, %v1993, 0
        %v2299 = vsel %vm2003, %v1994, 0
        %v2302 = vsel %vm2003, %v1995, 0
        %v2305 = vsel %vm2003, %v1996, 0
        %v2308 = vsel %vm2003, %v1997, 0
        %v2311 = vsel %vm2003, %v1998, 0
        %v2314 = vsel %vm2003, %v1999, 0
        %v2317 = vsel %vm2003, %v2000, 0
        %vm2319 = vcmask 1040384
        %v2321 = vsel %vm2319, %v2002, 0
        %2323 = vmatpush.msra.mxu0 0.0
        %2324 = vmatpush.msra.mxu0 0.0
        %2325 = vmatpush.msra.mxu0 0.0
        %2326 = vmatpush.msra.mxu0 0.0
        %2327 = vmatpush.msra.mxu0 0.0
        %2328 = vmatpush.msra.mxu0 0.0
        %2329 = vmatpush.msra.mxu0 0.0
        %2330 = vmatpush.msra.mxu0 0.0
        %2331 = vmatpush.msra.mxu0 0.0
        %2332 = vmatpush.msra.mxu0 0.0
        %2333 = vmatpush.msra.mxu0 0.0
        %2334 = vmatpush.msra.mxu0 0.0
        %2335 = vmatpush.msra.mxu0 0.0
        %2336 = vmatpush.msra.mxu0 0.0
        %2337 = vmatpush.msra.mxu0 %v2321
        %2338 = vmatpush.msra.mxu0 %v2001
        %2339 = vmatmul.f32.gmra.mxu0 %v2005
        %v2340 = vpop.f32.mrf.mxu0
        %v2341 = vadd.f32 0.0, %v2340
        %2342 = vmatmul.f32.gmra.mxu0 %v2008
        %v2343 = vpop.f32.mrf.mxu0
        %v2344 = vadd.f32 0.0, %v2343
        %2345 = vmatmul.f32.gmra.mxu0 %v2011
        %v2346 = vpop.f32.mrf.mxu0
        %v2347 = vadd.f32 0.0, %v2346
        %2348 = vmatmul.f32.gmra.mxu0 %v2014
        %v2349 = vpop.f32.mrf.mxu0
        %v2350 = vadd.f32 0.0, %v2349
        %2351 = vmatmul.f32.gmra.mxu0 %v2017
        %v2352 = vpop.f32.mrf.mxu0
        %v2353 = vadd.f32 0.0, %v2352
        %2354 = vmatmul.f32.gmra.mxu0 %v2020
        %v2355 = vpop.f32.mrf.mxu0
        %v2356 = vadd.f32 0.0, %v2355
        %2357 = vmatmul.f32.gmra.mxu0 %v2023
        %v2358 = vpop.f32.mrf.mxu0
        %v2359 = vadd.f32 0.0, %v2358
        %2360 = vmatmul.f32.gmra.mxu0 %v2026
        %v2361 = vpop.f32.mrf.mxu0
        %v2362 = vadd.f32 0.0, %v2361
        %2363 = vmatmul.f32.gmra.mxu0 %v2029
        %v2364 = vpop.f32.mrf.mxu0
        %v2365 = vadd.f32 0.0, %v2364
        %2366 = vmatmul.f32.gmra.mxu0 %v2032
        %v2367 = vpop.f32.mrf.mxu0
        %v2368 = vadd.f32 0.0, %v2367
        %2369 = vmatmul.f32.gmra.mxu0 %v2035
        %v2370 = vpop.f32.mrf.mxu0
        %v2371 = vadd.f32 0.0, %v2370
        %2372 = vmatmul.f32.gmra.mxu0 %v2038
        %v2373 = vpop.f32.mrf.mxu0
        %v2374 = vadd.f32 0.0, %v2373
        %2375 = vmatmul.f32.gmra.mxu0 %v2041
        %v2376 = vpop.f32.mrf.mxu0
        %v2377 = vadd.f32 0.0, %v2376
        %2378 = vmatmul.f32.gmra.mxu0 %v2044
        %v2379 = vpop.f32.mrf.mxu0
        %v2380 = vadd.f32 0.0, %v2379
        %2381 = vmatmul.f32.gmra.mxu0 %v2047
        %v2382 = vpop.f32.mrf.mxu0
        %v2383 = vadd.f32 0.0, %v2382
        %2384 = vmatmul.f32.gmra.mxu0 %v2050
        %v2385 = vpop.f32.mrf.mxu0
        %v2386 = vadd.f32 0.0, %v2385
        %2387 = vmatmul.f32.gmra.mxu0 %v2053
        %v2388 = vpop.f32.mrf.mxu0
        %v2389 = vadd.f32 0.0, %v2388
        %2390 = vmatmul.f32.gmra.mxu0 %v2056
        %v2391 = vpop.f32.mrf.mxu0
        %v2392 = vadd.f32 0.0, %v2391
        %2393 = vmatmul.f32.gmra.mxu0 %v2059
        %v2394 = vpop.f32.mrf.mxu0
        %v2395 = vadd.f32 0.0, %v2394
        %2396 = vmatmul.f32.gmra.mxu0 %v2062
        %v2397 = vpop.f32.mrf.mxu0
        %v2398 = vadd.f32 0.0, %v2397
        %2399 = vmatmul.f32.gmra.mxu0 %v2065
        %v2400 = vpop.f32.mrf.mxu0
        %v2401 = vadd.f32 0.0, %v2400
        %2402 = vmatmul.f32.gmra.mxu0 %v2068
        %v2403 = vpop.f32.mrf.mxu0
        %v2404 = vadd.f32 0.0, %v2403
        %2405 = vmatmul.f32.gmra.mxu0 %v2071
        %v2406 = vpop.f32.mrf.mxu0
        %v2407 = vadd.f32 0.0, %v2406
        %2408 = vmatmul.f32.gmra.mxu0 %v2074
        %v2409 = vpop.f32.mrf.mxu0
        %v2410 = vadd.f32 0.0, %v2409
        %2411 = vmatmul.f32.gmra.mxu0 %v2077
        %v2412 = vpop.f32.mrf.mxu0
        %v2413 = vadd.f32 0.0, %v2412
        %2414 = vmatmul.f32.gmra.mxu0 %v2080
        %v2415 = vpop.f32.mrf.mxu0
        %v2416 = vadd.f32 0.0, %v2415
        %2417 = vmatmul.f32.gmra.mxu0 %v2083
        %v2418 = vpop.f32.mrf.mxu0
        %v2419 = vadd.f32 0.0, %v2418
        %2420 = vmatmul.f32.gmra.mxu0 %v2086
        %v2421 = vpop.f32.mrf.mxu0
        %v2422 = vadd.f32 0.0, %v2421
        %2423 = vmatmul.f32.gmra.mxu0 %v2089
        %v2424 = vpop.f32.mrf.mxu0
        %v2425 = vadd.f32 0.0, %v2424
        %2426 = vmatmul.f32.gmra.mxu0 %v2092
        %v2427 = vpop.f32.mrf.mxu0
        %v2428 = vadd.f32 0.0, %v2427
        %2429 = vmatmul.f32.gmra.mxu0 %v2095
        %v2430 = vpop.f32.mrf.mxu0
        %v2431 = vadd.f32 0.0, %v2430
        %2432 = vmatmul.f32.gmra.mxu0 %v2098
        %v2433 = vpop.f32.mrf.mxu0
        %v2434 = vadd.f32 0.0, %v2433
        %2435 = vmatmul.f32.gmra.mxu0 %v2101
        %v2436 = vpop.f32.mrf.mxu0
        %v2437 = vadd.f32 0.0, %v2436
        %2438 = vmatmul.f32.gmra.mxu0 %v2104
        %v2439 = vpop.f32.mrf.mxu0
        %v2440 = vadd.f32 0.0, %v2439
        %2441 = vmatmul.f32.gmra.mxu0 %v2107
        %v2442 = vpop.f32.mrf.mxu0
        %v2443 = vadd.f32 0.0, %v2442
        %2444 = vmatmul.f32.gmra.mxu0 %v2110
        %v2445 = vpop.f32.mrf.mxu0
        %v2446 = vadd.f32 0.0, %v2445
        %2447 = vmatmul.f32.gmra.mxu0 %v2113
        %v2448 = vpop.f32.mrf.mxu0
        %v2449 = vadd.f32 0.0, %v2448
        %2450 = vmatmul.f32.gmra.mxu0 %v2116
        %v2451 = vpop.f32.mrf.mxu0
        %v2452 = vadd.f32 0.0, %v2451
        %2453 = vmatmul.f32.gmra.mxu0 %v2119
        %v2454 = vpop.f32.mrf.mxu0
        %v2455 = vadd.f32 0.0, %v2454
        %2456 = vmatmul.f32.gmra.mxu0 %v2122
        %v2457 = vpop.f32.mrf.mxu0
        %v2458 = vadd.f32 0.0, %v2457
        %2459 = vmatmul.f32.gmra.mxu0 %v2125
        %v2460 = vpop.f32.mrf.mxu0
        %v2461 = vadd.f32 0.0, %v2460
        %2462 = vmatmul.f32.gmra.mxu0 %v2128
        %v2463 = vpop.f32.mrf.mxu0
        %v2464 = vadd.f32 0.0, %v2463
        %2465 = vmatmul.f32.gmra.mxu0 %v2131
        %v2466 = vpop.f32.mrf.mxu0
        %v2467 = vadd.f32 0.0, %v2466
        %2468 = vmatmul.f32.gmra.mxu0 %v2134
        %v2469 = vpop.f32.mrf.mxu0
        %v2470 = vadd.f32 0.0, %v2469
        %2471 = vmatmul.f32.gmra.mxu0 %v2137
        %v2472 = vpop.f32.mrf.mxu0
        %v2473 = vadd.f32 0.0, %v2472
        %2474 = vmatmul.f32.gmra.mxu0 %v2140
        %v2475 = vpop.f32.mrf.mxu0
        %v2476 = vadd.f32 0.0, %v2475
        %2477 = vmatmul.f32.gmra.mxu0 %v2143
        %v2478 = vpop.f32.mrf.mxu0
        %v2479 = vadd.f32 0.0, %v2478
        %2480 = vmatmul.f32.gmra.mxu0 %v2146
        %v2481 = vpop.f32.mrf.mxu0
        %v2482 = vadd.f32 0.0, %v2481
        %2483 = vmatmul.f32.gmra.mxu0 %v2149
        %v2484 = vpop.f32.mrf.mxu0
        %v2485 = vadd.f32 0.0, %v2484
        %2486 = vmatmul.f32.gmra.mxu0 %v2152
        %v2487 = vpop.f32.mrf.mxu0
        %v2488 = vadd.f32 0.0, %v2487
        %2489 = vmatmul.f32.gmra.mxu0 %v2155
        %v2490 = vpop.f32.mrf.mxu0
        %v2491 = vadd.f32 0.0, %v2490
        %2492 = vmatmul.f32.gmra.mxu0 %v2158
        %v2493 = vpop.f32.mrf.mxu0
        %v2494 = vadd.f32 0.0, %v2493
        %2495 = vmatmul.f32.gmra.mxu0 %v2161
        %v2496 = vpop.f32.mrf.mxu0
        %v2497 = vadd.f32 0.0, %v2496
        %2498 = vmatmul.f32.gmra.mxu0 %v2164
        %v2499 = vpop.f32.mrf.mxu0
        %v2500 = vadd.f32 0.0, %v2499
        %2501 = vmatmul.f32.gmra.mxu0 %v2167
        %v2502 = vpop.f32.mrf.mxu0
        %v2503 = vadd.f32 0.0, %v2502
        %2504 = vmatmul.f32.gmra.mxu0 %v2170
        %v2505 = vpop.f32.mrf.mxu0
        %v2506 = vadd.f32 0.0, %v2505
        %2507 = vmatmul.f32.gmra.mxu0 %v2173
        %v2508 = vpop.f32.mrf.mxu0
        %v2509 = vadd.f32 0.0, %v2508
        %2510 = vmatmul.f32.gmra.mxu0 %v2176
        %v2511 = vpop.f32.mrf.mxu0
        %v2512 = vadd.f32 0.0, %v2511
        %2513 = vmatmul.f32.gmra.mxu0 %v2179
        %v2514 = vpop.f32.mrf.mxu0
        %v2515 = vadd.f32 0.0, %v2514
        %2516 = vmatmul.f32.gmra.mxu0 %v2182
        %v2517 = vpop.f32.mrf.mxu0
        %v2518 = vadd.f32 0.0, %v2517
        %2519 = vmatmul.f32.gmra.mxu0 %v2185
        %v2520 = vpop.f32.mrf.mxu0
        %v2521 = vadd.f32 0.0, %v2520
        %2522 = vmatmul.f32.gmra.mxu0 %v2188
        %v2523 = vpop.f32.mrf.mxu0
        %v2524 = vadd.f32 0.0, %v2523
        %2525 = vmatmul.f32.gmra.mxu0 %v2191
        %v2526 = vpop.f32.mrf.mxu0
        %v2527 = vadd.f32 0.0, %v2526
        %2528 = vmatmul.f32.gmra.mxu0 %v2194
        %v2529 = vpop.f32.mrf.mxu0
        %v2530 = vadd.f32 0.0, %v2529
        %2531 = vmatmul.f32.gmra.mxu0 %v2197
        %v2532 = vpop.f32.mrf.mxu0
        %v2533 = vadd.f32 0.0, %v2532
        %2534 = vmatmul.f32.gmra.mxu0 %v2200
        %v2535 = vpop.f32.mrf.mxu0
        %v2536 = vadd.f32 0.0, %v2535
        %2537 = vmatmul.f32.gmra.mxu0 %v2203
        %v2538 = vpop.f32.mrf.mxu0
        %v2539 = vadd.f32 0.0, %v2538
        %2540 = vmatmul.f32.gmra.mxu0 %v2206
        %v2541 = vpop.f32.mrf.mxu0
        %v2542 = vadd.f32 0.0, %v2541
        %2543 = vmatmul.f32.gmra.mxu0 %v2209
        %v2544 = vpop.f32.mrf.mxu0
        %v2545 = vadd.f32 0.0, %v2544
        %2546 = vmatmul.f32.gmra.mxu0 %v2212
        %v2547 = vpop.f32.mrf.mxu0
        %v2548 = vadd.f32 0.0, %v2547
        %2549 = vmatmul.f32.gmra.mxu0 %v2215
        %v2550 = vpop.f32.mrf.mxu0
        %v2551 = vadd.f32 0.0, %v2550
        %2552 = vmatmul.f32.gmra.mxu0 %v2218
        %v2553 = vpop.f32.mrf.mxu0
        %v2554 = vadd.f32 0.0, %v2553
        %2555 = vmatmul.f32.gmra.mxu0 %v2221
        %v2556 = vpop.f32.mrf.mxu0
        %v2557 = vadd.f32 0.0, %v2556
        %2558 = vmatmul.f32.gmra.mxu0 %v2224
        %v2559 = vpop.f32.mrf.mxu0
        %v2560 = vadd.f32 0.0, %v2559
        %2561 = vmatmul.f32.gmra.mxu0 %v2227
        %v2562 = vpop.f32.mrf.mxu0
        %v2563 = vadd.f32 0.0, %v2562
        %2564 = vmatmul.f32.gmra.mxu0 %v2230
        %v2565 = vpop.f32.mrf.mxu0
        %v2566 = vadd.f32 0.0, %v2565
        %2567 = vmatmul.f32.gmra.mxu0 %v2233
        %v2568 = vpop.f32.mrf.mxu0
        %v2569 = vadd.f32 0.0, %v2568
        %2570 = vmatmul.f32.gmra.mxu0 %v2236
        %v2571 = vpop.f32.mrf.mxu0
        %v2572 = vadd.f32 0.0, %v2571
        %2573 = vmatmul.f32.gmra.mxu0 %v2239
        %v2574 = vpop.f32.mrf.mxu0
        %v2575 = vadd.f32 0.0, %v2574
        %2576 = vmatmul.f32.gmra.mxu0 %v2242
        %v2577 = vpop.f32.mrf.mxu0
        %v2578 = vadd.f32 0.0, %v2577
        %2579 = vmatmul.f32.gmra.mxu0 %v2245
        %v2580 = vpop.f32.mrf.mxu0
        %v2581 = vadd.f32 0.0, %v2580
        %2582 = vmatmul.f32.gmra.mxu0 %v2248
        %v2583 = vpop.f32.mrf.mxu0
        %v2584 = vadd.f32 0.0, %v2583
        %2585 = vmatmul.f32.gmra.mxu0 %v2251
        %v2586 = vpop.f32.mrf.mxu0
        %v2587 = vadd.f32 0.0, %v2586
        %2588 = vmatmul.f32.gmra.mxu0 %v2254
        %v2589 = vpop.f32.mrf.mxu0
        %v2590 = vadd.f32 0.0, %v2589
        %2591 = vmatmul.f32.gmra.mxu0 %v2257
        %v2592 = vpop.f32.mrf.mxu0
        %v2593 = vadd.f32 0.0, %v2592
        %2594 = vmatmul.f32.gmra.mxu0 %v2260
        %v2595 = vpop.f32.mrf.mxu0
        %v2596 = vadd.f32 0.0, %v2595
        %2597 = vmatmul.f32.gmra.mxu0 %v2263
        %v2598 = vpop.f32.mrf.mxu0
        %v2599 = vadd.f32 0.0, %v2598
        %2600 = vmatmul.f32.gmra.mxu0 %v2266
        %v2601 = vpop.f32.mrf.mxu0
        %v2602 = vadd.f32 0.0, %v2601
        %2603 = vmatmul.f32.gmra.mxu0 %v2269
        %v2604 = vpop.f32.mrf.mxu0
        %v2605 = vadd.f32 0.0, %v2604
        %2606 = vmatmul.f32.gmra.mxu0 %v2272
        %v2607 = vpop.f32.mrf.mxu0
        %v2608 = vadd.f32 0.0, %v2607
        %2609 = vmatmul.f32.gmra.mxu0 %v2275
        %v2610 = vpop.f32.mrf.mxu0
        %v2611 = vadd.f32 0.0, %v2610
        %2612 = vmatmul.f32.gmra.mxu0 %v2278
        %v2613 = vpop.f32.mrf.mxu0
        %v2614 = vadd.f32 0.0, %v2613
        %2615 = vmatmul.f32.gmra.mxu0 %v2281
        %v2616 = vpop.f32.mrf.mxu0
        %v2617 = vadd.f32 0.0, %v2616
        %2618 = vmatmul.f32.gmra.mxu0 %v2284
        %v2619 = vpop.f32.mrf.mxu0
        %v2620 = vadd.f32 0.0, %v2619
        %2621 = vmatmul.f32.gmra.mxu0 %v2287
        %v2622 = vpop.f32.mrf.mxu0
        %v2623 = vadd.f32 0.0, %v2622
        %2624 = vmatmul.f32.gmra.mxu0 %v2290
        %v2625 = vpop.f32.mrf.mxu0
        %v2626 = vadd.f32 0.0, %v2625
        %2627 = vmatmul.f32.gmra.mxu0 %v2293
        %v2628 = vpop.f32.mrf.mxu0
        %v2629 = vadd.f32 0.0, %v2628
        %2630 = vmatmul.f32.gmra.mxu0 %v2296
        %v2631 = vpop.f32.mrf.mxu0
        %v2632 = vadd.f32 0.0, %v2631
        %2633 = vmatmul.f32.gmra.mxu0 %v2299
        %v2634 = vpop.f32.mrf.mxu0
        %v2635 = vadd.f32 0.0, %v2634
        %2636 = vmatmul.f32.gmra.mxu0 %v2302
        %v2637 = vpop.f32.mrf.mxu0
        %v2638 = vadd.f32 0.0, %v2637
        %2639 = vmatmul.f32.gmra.mxu0 %v2305
        %v2640 = vpop.f32.mrf.mxu0
        %v2641 = vadd.f32 0.0, %v2640
        %2642 = vmatmul.f32.gmra.mxu0 %v2308
        %v2643 = vpop.f32.mrf.mxu0
        %v2644 = vadd.f32 0.0, %v2643
        %2645 = vmatmul.f32.gmra.mxu0 %v2311
        %v2646 = vpop.f32.mrf.mxu0
        %v2647 = vadd.f32 0.0, %v2646
        %2648 = vmatmul.f32.gmra.mxu0 %v2314
        %v2649 = vpop.f32.mrf.mxu0
        %v2650 = vadd.f32 0.0, %v2649
        %2651 = vmatmul.f32.gmra.mxu0 %v2317
        %v2652 = vpop.f32.mrf.mxu0
        %v2653 = vadd.f32 0.0, %v2652
        %2654 = vdwg.mxu0
        %vm2655 = vcmask 261120
        %2656 = vst.msk [vmem:[#allocation4] sm:$0xff] %vm2655, %v2341
        %2657 = vst.msk [vmem:[#allocation4 + $0x8] sm:$0xff] %vm2655, %v2344
        %2658 = vst.msk [vmem:[#allocation4 + $0x10] sm:$0xff] %vm2655, %v2347
        %2659 = vst.msk [vmem:[#allocation4 + $0x18] sm:$0xff] %vm2655, %v2350
        %2660 = vst.msk [vmem:[#allocation4 + $0x20] sm:$0xff] %vm2655, %v2353
        %2661 = vst.msk [vmem:[#allocation4 + $0x28] sm:$0xff] %vm2655, %v2356
        %2662 = vst.msk [vmem:[#allocation4 + $0x30] sm:$0xff] %vm2655, %v2359
        %2663 = vst.msk [vmem:[#allocation4 + $0x38] sm:$0xff] %vm2655, %v2362
        %2664 = vst.msk [vmem:[#allocation4 + $0x40] sm:$0xff] %vm2655, %v2365
        %2665 = vst.msk [vmem:[#allocation4 + $0x48] sm:$0xff] %vm2655, %v2368
        %2666 = vst.msk [vmem:[#allocation4 + $0x50] sm:$0xff] %vm2655, %v2371
        %2667 = vst.msk [vmem:[#allocation4 + $0x58] sm:$0xff] %vm2655, %v2374
        %2668 = vst.msk [vmem:[#allocation4 + $0x60] sm:$0xff] %vm2655, %v2377
        %2669 = vst.msk [vmem:[#allocation4 + $0x68] sm:$0xff] %vm2655, %v2380
        %2670 = vst.msk [vmem:[#allocation4 + $0x70] sm:$0xff] %vm2655, %v2383
        %2671 = vst.msk [vmem:[#allocation4 + $0x78] sm:$0xff] %vm2655, %v2386
        %2672 = vst.msk [vmem:[#allocation4 + $0x80] sm:$0xff] %vm2655, %v2389
        %2673 = vst.msk [vmem:[#allocation4 + $0x88] sm:$0xff] %vm2655, %v2392
        %2674 = vst.msk [vmem:[#allocation4 + $0x90] sm:$0xff] %vm2655, %v2395
        %2675 = vst.msk [vmem:[#allocation4 + $0x98] sm:$0xff] %vm2655, %v2398
        %2676 = vst.msk [vmem:[#allocation4 + $0xa0] sm:$0xff] %vm2655, %v2401
        %2677 = vst.msk [vmem:[#allocation4 + $0xa8] sm:$0xff] %vm2655, %v2404
        %2678 = vst.msk [vmem:[#allocation4 + $0xb0] sm:$0xff] %vm2655, %v2407
        %2679 = vst.msk [vmem:[#allocation4 + $0xb8] sm:$0xff] %vm2655, %v2410
        %2680 = vst.msk [vmem:[#allocation4 + $0xc0] sm:$0xff] %vm2655, %v2413
        %2681 = vst.msk [vmem:[#allocation4 + $0xc8] sm:$0xff] %vm2655, %v2416
        %2682 = vst.msk [vmem:[#allocation4 + $0xd0] sm:$0xff] %vm2655, %v2419
        %2683 = vst.msk [vmem:[#allocation4 + $0xd8] sm:$0xff] %vm2655, %v2422
        %2684 = vst.msk [vmem:[#allocation4 + $0xe0] sm:$0xff] %vm2655, %v2425
        %2685 = vst.msk [vmem:[#allocation4 + $0xe8] sm:$0xff] %vm2655, %v2428
        %2686 = vst.msk [vmem:[#allocation4 + $0xf0] sm:$0xff] %vm2655, %v2431
        %2687 = vst.msk [vmem:[#allocation4 + $0xf8] sm:$0xff] %vm2655, %v2434
        %2688 = vst.msk [vmem:[#allocation4 + $0x100] sm:$0xff] %vm2655, %v2437
        %2689 = vst.msk [vmem:[#allocation4 + $0x108] sm:$0xff] %vm2655, %v2440
        %2690 = vst.msk [vmem:[#allocation4 + $0x110] sm:$0xff] %vm2655, %v2443
        %2691 = vst.msk [vmem:[#allocation4 + $0x118] sm:$0xff] %vm2655, %v2446
        %2692 = vst.msk [vmem:[#allocation4 + $0x120] sm:$0xff] %vm2655, %v2449
        %2693 = vst.msk [vmem:[#allocation4 + $0x128] sm:$0xff] %vm2655, %v2452
        %2694 = vst.msk [vmem:[#allocation4 + $0x130] sm:$0xff] %vm2655, %v2455
        %2695 = vst.msk [vmem:[#allocation4 + $0x138] sm:$0xff] %vm2655, %v2458
        %2696 = vst.msk [vmem:[#allocation4 + $0x140] sm:$0xff] %vm2655, %v2461
        %2697 = vst.msk [vmem:[#allocation4 + $0x148] sm:$0xff] %vm2655, %v2464
        %2698 = vst.msk [vmem:[#allocation4 + $0x150] sm:$0xff] %vm2655, %v2467
        %2699 = vst.msk [vmem:[#allocation4 + $0x158] sm:$0xff] %vm2655, %v2470
        %2700 = vst.msk [vmem:[#allocation4 + $0x160] sm:$0xff] %vm2655, %v2473
        %2701 = vst.msk [vmem:[#allocation4 + $0x168] sm:$0xff] %vm2655, %v2476
        %2702 = vst.msk [vmem:[#allocation4 + $0x170] sm:$0xff] %vm2655, %v2479
        %2703 = vst.msk [vmem:[#allocation4 + $0x178] sm:$0xff] %vm2655, %v2482
        %2704 = vst.msk [vmem:[#allocation4 + $0x180] sm:$0xff] %vm2655, %v2485
        %2705 = vst.msk [vmem:[#allocation4 + $0x188] sm:$0xff] %vm2655, %v2488
        %2706 = vst.msk [vmem:[#allocation4 + $0x190] sm:$0xff] %vm2655, %v2491
        %2707 = vst.msk [vmem:[#allocation4 + $0x198] sm:$0xff] %vm2655, %v2494
        %2708 = vst.msk [vmem:[#allocation4 + $0x1a0] sm:$0xff] %vm2655, %v2497
        %2709 = vst.msk [vmem:[#allocation4 + $0x1a8] sm:$0xff] %vm2655, %v2500
        %2710 = vst.msk [vmem:[#allocation4 + $0x1b0] sm:$0xff] %vm2655, %v2503
        %2711 = vst.msk [vmem:[#allocation4 + $0x1b8] sm:$0xff] %vm2655, %v2506
        %2712 = vst.msk [vmem:[#allocation4 + $0x1c0] sm:$0xff] %vm2655, %v2509
        %2713 = vst.msk [vmem:[#allocation4 + $0x1c8] sm:$0xff] %vm2655, %v2512
        %2714 = vst.msk [vmem:[#allocation4 + $0x1d0] sm:$0xff] %vm2655, %v2515
        %2715 = vst.msk [vmem:[#allocation4 + $0x1d8] sm:$0xff] %vm2655, %v2518
        %2716 = vst.msk [vmem:[#allocation4 + $0x1e0] sm:$0xff] %vm2655, %v2521
        %2717 = vst.msk [vmem:[#allocation4 + $0x1e8] sm:$0xff] %vm2655, %v2524
        %2718 = vst.msk [vmem:[#allocation4 + $0x1f0] sm:$0xff] %vm2655, %v2527
        %2719 = vst.msk [vmem:[#allocation4 + $0x1f8] sm:$0xff] %vm2655, %v2530
        %2720 = vst.msk [vmem:[#allocation4 + $0x200] sm:$0xff] %vm2655, %v2533
        %2721 = vst.msk [vmem:[#allocation4 + $0x208] sm:$0xff] %vm2655, %v2536
        %2722 = vst.msk [vmem:[#allocation4 + $0x210] sm:$0xff] %vm2655, %v2539
        %2723 = vst.msk [vmem:[#allocation4 + $0x218] sm:$0xff] %vm2655, %v2542
        %2724 = vst.msk [vmem:[#allocation4 + $0x220] sm:$0xff] %vm2655, %v2545
        %2725 = vst.msk [vmem:[#allocation4 + $0x228] sm:$0xff] %vm2655, %v2548
        %2726 = vst.msk [vmem:[#allocation4 + $0x230] sm:$0xff] %vm2655, %v2551
        %2727 = vst.msk [vmem:[#allocation4 + $0x238] sm:$0xff] %vm2655, %v2554
        %2728 = vst.msk [vmem:[#allocation4 + $0x240] sm:$0xff] %vm2655, %v2557
        %2729 = vst.msk [vmem:[#allocation4 + $0x248] sm:$0xff] %vm2655, %v2560
        %2730 = vst.msk [vmem:[#allocation4 + $0x250] sm:$0xff] %vm2655, %v2563
        %2731 = vst.msk [vmem:[#allocation4 + $0x258] sm:$0xff] %vm2655, %v2566
        %2732 = vst.msk [vmem:[#allocation4 + $0x260] sm:$0xff] %vm2655, %v2569
        %2733 = vst.msk [vmem:[#allocation4 + $0x268] sm:$0xff] %vm2655, %v2572
        %2734 = vst.msk [vmem:[#allocation4 + $0x270] sm:$0xff] %vm2655, %v2575
        %2735 = vst.msk [vmem:[#allocation4 + $0x278] sm:$0xff] %vm2655, %v2578
        %2736 = vst.msk [vmem:[#allocation4 + $0x280] sm:$0xff] %vm2655, %v2581
        %2737 = vst.msk [vmem:[#allocation4 + $0x288] sm:$0xff] %vm2655, %v2584
        %2738 = vst.msk [vmem:[#allocation4 + $0x290] sm:$0xff] %vm2655, %v2587
        %2739 = vst.msk [vmem:[#allocation4 + $0x298] sm:$0xff] %vm2655, %v2590
        %2740 = vst.msk [vmem:[#allocation4 + $0x2a0] sm:$0xff] %vm2655, %v2593
        %2741 = vst.msk [vmem:[#allocation4 + $0x2a8] sm:$0xff] %vm2655, %v2596
        %2742 = vst.msk [vmem:[#allocation4 + $0x2b0] sm:$0xff] %vm2655, %v2599
        %2743 = vst.msk [vmem:[#allocation4 + $0x2b8] sm:$0xff] %vm2655, %v2602
        %2744 = vst.msk [vmem:[#allocation4 + $0x2c0] sm:$0xff] %vm2655, %v2605
        %2745 = vst.msk [vmem:[#allocation4 + $0x2c8] sm:$0xff] %vm2655, %v2608
        %2746 = vst.msk [vmem:[#allocation4 + $0x2d0] sm:$0xff] %vm2655, %v2611
        %2747 = vst.msk [vmem:[#allocation4 + $0x2d8] sm:$0xff] %vm2655, %v2614
        %2748 = vst.msk [vmem:[#allocation4 + $0x2e0] sm:$0xff] %vm2655, %v2617
        %2749 = vst.msk [vmem:[#allocation4 + $0x2e8] sm:$0xff] %vm2655, %v2620
        %2750 = vst.msk [vmem:[#allocation4 + $0x2f0] sm:$0xff] %vm2655, %v2623
        %2751 = vst.msk [vmem:[#allocation4 + $0x2f8] sm:$0xff] %vm2655, %v2626
        %2752 = vst.msk [vmem:[#allocation4 + $0x300] sm:$0xff] %vm2655, %v2629
        %2753 = vst.msk [vmem:[#allocation4 + $0x308] sm:$0xff] %vm2655, %v2632
        %2754 = vst.msk [vmem:[#allocation4 + $0x310] sm:$0xff] %vm2655, %v2635
        %2755 = vst.msk [vmem:[#allocation4 + $0x318] sm:$0xff] %vm2655, %v2638
        %2756 = vst.msk [vmem:[#allocation4 + $0x320] sm:$0xff] %vm2655, %v2641
        %2757 = vst.msk [vmem:[#allocation4 + $0x328] sm:$0xff] %vm2655, %v2644
        %2758 = vst.msk [vmem:[#allocation4 + $0x330] sm:$0xff] %vm2655, %v2647
        %2759 = vst.msk [vmem:[#allocation4 + $0x338] sm:$0xff] %vm2655, %v2650
        %2760 = vst.msk [vmem:[#allocation4 + $0x340] sm:$0xff] %vm2655, %v2653
        %v2761 = vld [vmem:[#allocation3 + $0x18] sm:$0xff]
        %v2762 = vld [vmem:[#allocation3 + $0x20] sm:$0xff]
        %v2763 = vld [vmem:[#allocation3 + $0x28] sm:$0xff]
        %v2764 = vld [vmem:[#allocation3 + $0x30] sm:$0xff]
        %v2765 = vld [vmem:[#allocation3 + $0x38] sm:$0xff]
        %v2766 = vld [vmem:[#allocation3 + $0x40] sm:$0xff]
        %v2767 = vld [vmem:[#allocation3 + $0x48] sm:$0xff]
        %v2768 = vld [vmem:[#allocation3 + $0x50] sm:$0xff]
        %v2769 = vld [vmem:[#allocation3 + $0x58] sm:$0xff]
        %v2770 = vld [vmem:[#allocation3 + $0x60] sm:$0xff]
        %v2771 = vld [vmem:[#allocation3 + $0x68] sm:$0xff]
        %v2772 = vld [vmem:[#allocation3 + $0x70] sm:$0xff]
        %v2773 = vld [vmem:[#allocation3 + $0x78] sm:$0xff]
        %v2774 = vld [vmem:[#allocation3 + $0x80] sm:$0xff]
        %v2775 = vld [vmem:[#allocation3 + $0x88] sm:$0xff]
        %v2776 = vld [vmem:[#allocation3 + $0x90] sm:$0xff]
        %v2777 = vld [vmem:[#allocation3 + $0x98] sm:$0xff]
        %v2778 = vld [vmem:[#allocation3 + $0xa0] sm:$0xff]
        %v2779 = vld [vmem:[#allocation3 + $0xa8] sm:$0xff]
        %v2780 = vld [vmem:[#allocation3 + $0xb0] sm:$0xff]
        %v2781 = vld [vmem:[#allocation3 + $0xb8] sm:$0xff]
        %v2782 = vld [vmem:[#allocation3 + $0xc0] sm:$0xff]
        %v2783 = vld [vmem:[#allocation3 + $0xc8] sm:$0xff]
        %v2784 = vld [vmem:[#allocation3 + $0xd0] sm:$0xff]
        %v2785 = vld [vmem:[#allocation3 + $0xd8] sm:$0xff]
        %v2786 = vld [vmem:[#allocation3 + $0xe0] sm:$0xff]
        %v2787 = vld [vmem:[#allocation3 + $0xe8] sm:$0xff]
        %v2788 = vld [vmem:[#allocation3 + $0xf0] sm:$0xff]
        %v2789 = vld [vmem:[#allocation3 + $0xf8] sm:$0xff]
        %v2790 = vld [vmem:[#allocation3 + $0x100] sm:$0xff]
        %v2791 = vld [vmem:[#allocation3 + $0x108] sm:$0xff]
        %v2792 = vld [vmem:[#allocation3 + $0x110] sm:$0xff]
        %v2793 = vld [vmem:[#allocation3 + $0x118] sm:$0xff]
        %v2794 = vld [vmem:[#allocation3 + $0x120] sm:$0xff]
        %v2795 = vld [vmem:[#allocation3 + $0x128] sm:$0xff]
        %v2796 = vld [vmem:[#allocation3 + $0x130] sm:$0xff]
        %v2797 = vld [vmem:[#allocation3 + $0x138] sm:$0xff]
        %v2798 = vld [vmem:[#allocation3 + $0x140] sm:$0xff]
        %v2799 = vld [vmem:[#allocation3 + $0x148] sm:$0xff]
        %v2800 = vld [vmem:[#allocation3 + $0x150] sm:$0xff]
        %v2801 = vld [vmem:[#allocation3 + $0x158] sm:$0xff]
        %v2802 = vld [vmem:[#allocation3 + $0x160] sm:$0xff]
        %v2803 = vld [vmem:[#allocation3 + $0x168] sm:$0xff]
        %v2804 = vld [vmem:[#allocation3 + $0x170] sm:$0xff]
        %v2805 = vld [vmem:[#allocation3 + $0x178] sm:$0xff]
        %v2806 = vld [vmem:[#allocation3 + $0x180] sm:$0xff]
        %v2807 = vld [vmem:[#allocation3 + $0x188] sm:$0xff]
        %v2808 = vld [vmem:[#allocation3 + $0x190] sm:$0xff]
        %v2809 = vld [vmem:[#allocation3 + $0x198] sm:$0xff]
        %v2810 = vld [vmem:[#allocation3 + $0x1a0] sm:$0xff]
        %v2811 = vld [vmem:[#allocation3 + $0x1a8] sm:$0xff]
        %v2812 = vld [vmem:[#allocation3 + $0x1b0] sm:$0xff]
        %v2813 = vld [vmem:[#allocation3 + $0x1b8] sm:$0xff]
        %v2814 = vld [vmem:[#allocation3 + $0x1c0] sm:$0xff]
        %v2815 = vld [vmem:[#allocation3 + $0x1c8] sm:$0xff]
        %v2816 = vld [vmem:[#allocation3 + $0x1d0] sm:$0xff]
        %v2817 = vld [vmem:[#allocation3 + $0x1d8] sm:$0xff]
        %v2818 = vld [vmem:[#allocation3 + $0x1e0] sm:$0xff]
        %v2819 = vld [vmem:[#allocation3 + $0x1e8] sm:$0xff]
        %v2820 = vld [vmem:[#allocation3 + $0x1f0] sm:$0xff]
        %v2821 = vld [vmem:[#allocation3 + $0x1f8] sm:$0xff]
        %v2822 = vld [vmem:[#allocation3 + $0x200] sm:$0xff]
        %v2823 = vld [vmem:[#allocation3 + $0x208] sm:$0xff]
        %v2824 = vld [vmem:[#allocation3 + $0x210] sm:$0xff]
        %v2825 = vld [vmem:[#allocation3 + $0x218] sm:$0xff]
        %v2826 = vld [vmem:[#allocation3 + $0x220] sm:$0xff]
        %v2827 = vld [vmem:[#allocation3 + $0x228] sm:$0xff]
        %v2828 = vld [vmem:[#allocation3 + $0x230] sm:$0xff]
        %v2829 = vld [vmem:[#allocation3 + $0x238] sm:$0xff]
        %v2830 = vld [vmem:[#allocation3 + $0x240] sm:$0xff]
        %v2831 = vld [vmem:[#allocation3 + $0x248] sm:$0xff]
        %v2832 = vld [vmem:[#allocation3 + $0x250] sm:$0xff]
        %v2833 = vld [vmem:[#allocation3 + $0x258] sm:$0xff]
        %v2834 = vld [vmem:[#allocation3 + $0x260] sm:$0xff]
        %v2835 = vld [vmem:[#allocation3 + $0x268] sm:$0xff]
        %v2836 = vld [vmem:[#allocation3 + $0x270] sm:$0xff]
        %v2837 = vld [vmem:[#allocation3 + $0x278] sm:$0xff]
        %v2838 = vld [vmem:[#allocation3 + $0x280] sm:$0xff]
        %v2839 = vld [vmem:[#allocation3 + $0x288] sm:$0xff]
        %v2840 = vld [vmem:[#allocation3 + $0x290] sm:$0xff]
        %v2841 = vld [vmem:[#allocation3 + $0x298] sm:$0xff]
        %v2842 = vld [vmem:[#allocation3 + $0x2a0] sm:$0xff]
        %v2843 = vld [vmem:[#allocation3 + $0x2a8] sm:$0xff]
        %v2844 = vld [vmem:[#allocation3 + $0x2b0] sm:$0xff]
        %v2845 = vld [vmem:[#allocation3 + $0x2b8] sm:$0xff]
        %v2846 = vld [vmem:[#allocation3 + $0x2c0] sm:$0xff]
        %v2847 = vld [vmem:[#allocation3 + $0x2c8] sm:$0xff]
        %v2848 = vld [vmem:[#allocation3 + $0x2d0] sm:$0xff]
        %v2849 = vld [vmem:[#allocation3 + $0x2d8] sm:$0xff]
        %v2850 = vld [vmem:[#allocation3 + $0x2e0] sm:$0xff]
        %v2851 = vld [vmem:[#allocation3 + $0x2e8] sm:$0xff]
        %v2852 = vld [vmem:[#allocation3 + $0x2f0] sm:$0xff]
        %v2853 = vld [vmem:[#allocation3 + $0x2f8] sm:$0xff]
        %v2854 = vld [vmem:[#allocation3 + $0x300] sm:$0xff]
        %v2855 = vld [vmem:[#allocation3 + $0x308] sm:$0xff]
        %v2856 = vld [vmem:[#allocation3 + $0x310] sm:$0xff]
        %v2857 = vld [vmem:[#allocation3 + $0x318] sm:$0xff]
        %v2858 = vld [vmem:[#allocation3 + $0x320] sm:$0xff]
        %v2859 = vld [vmem:[#allocation3 + $0x328] sm:$0xff]
        %v2860 = vld [vmem:[#allocation3 + $0x330] sm:$0xff]
        %v2861 = vld [vmem:[#allocation3 + $0x338] sm:$0xff]
        %v2862 = vld [vmem:[#allocation3 + $0x340] sm:$0xff]
        %v2863 = vld [vmem:[#allocation3 + $0x348] sm:$0xff]
        %v2864 = vld [vmem:[#allocation3 + $0x350] sm:$0xff]
        %v2865 = vld [vmem:[#allocation3 + $0x358] sm:$0xff]
        %s2866 = scalar_lea.vmem %s1, 16
        %v2867 = vld [vmem:[%s2866] sm:$0xff]
        %v2868 = vld [vmem:[%s2866 + $0x8] sm:$0x1]
        %v2870 = vsel %vm2003, %v2761, 0
        %v2873 = vsel %vm2003, %v2762, 0
        %v2876 = vsel %vm2003, %v2763, 0
        %v2879 = vsel %vm2003, %v2764, 0
        %v2882 = vsel %vm2003, %v2765, 0
        %v2885 = vsel %vm2003, %v2766, 0
        %v2888 = vsel %vm2003, %v2767, 0
        %v2891 = vsel %vm2003, %v2768, 0
        %v2894 = vsel %vm2003, %v2769, 0
        %v2897 = vsel %vm2003, %v2770, 0
        %v2900 = vsel %vm2003, %v2771, 0
        %v2903 = vsel %vm2003, %v2772, 0
        %v2906 = vsel %vm2003, %v2773, 0
        %v2909 = vsel %vm2003, %v2774, 0
        %v2912 = vsel %vm2003, %v2775, 0
        %v2915 = vsel %vm2003, %v2776, 0
        %v2918 = vsel %vm2003, %v2777, 0
        %v2921 = vsel %vm2003, %v2778, 0
        %v2924 = vsel %vm2003, %v2779, 0
        %v2927 = vsel %vm2003, %v2780, 0
        %v2930 = vsel %vm2003, %v2781, 0
        %v2933 = vsel %vm2003, %v2782, 0
        %v2936 = vsel %vm2003, %v2783, 0
        %v2939 = vsel %vm2003, %v2784, 0
        %v2942 = vsel %vm2003, %v2785, 0
        %v2945 = vsel %vm2003, %v2786, 0
        %v2948 = vsel %vm2003, %v2787, 0
        %v2951 = vsel %vm2003, %v2788, 0
        %v2954 = vsel %vm2003, %v2789, 0
        %v2957 = vsel %vm2003, %v2790, 0
        %v2960 = vsel %vm2003, %v2791, 0
        %v2963 = vsel %vm2003, %v2792, 0
        %v2966 = vsel %vm2003, %v2793, 0
        %v2969 = vsel %vm2003, %v2794, 0
        %v2972 = vsel %vm2003, %v2795, 0
        %v2975 = vsel %vm2003, %v2796, 0
        %v2978 = vsel %vm2003, %v2797, 0
        %v2981 = vsel %vm2003, %v2798, 0
        %v2984 = vsel %vm2003, %v2799, 0
        %v2987 = vsel %vm2003, %v2800, 0
        %v2990 = vsel %vm2003, %v2801, 0
        %v2993 = vsel %vm2003, %v2802, 0
        %v2996 = vsel %vm2003, %v2803, 0
        %v2999 = vsel %vm2003, %v2804, 0
        %v3002 = vsel %vm2003, %v2805, 0
        %v3005 = vsel %vm2003, %v2806, 0
        %v3008 = vsel %vm2003, %v2807, 0
        %v3011 = vsel %vm2003, %v2808, 0
        %v3014 = vsel %vm2003, %v2809, 0
        %v3017 = vsel %vm2003, %v2810, 0
        %v3020 = vsel %vm2003, %v2811, 0
        %v3023 = vsel %vm2003, %v2812, 0
        %v3026 = vsel %vm2003, %v2813, 0
        %v3029 = vsel %vm2003, %v2814, 0
        %v3032 = vsel %vm2003, %v2815, 0
        %v3035 = vsel %vm2003, %v2816, 0
        %v3038 = vsel %vm2003, %v2817, 0
        %v3041 = vsel %vm2003, %v2818, 0
        %v3044 = vsel %vm2003, %v2819, 0
        %v3047 = vsel %vm2003, %v2820, 0
        %v3050 = vsel %vm2003, %v2821, 0
        %v3053 = vsel %vm2003, %v2822, 0
        %v3056 = vsel %vm2003, %v2823, 0
        %v3059 = vsel %vm2003, %v2824, 0
        %v3062 = vsel %vm2003, %v2825, 0
        %v3065 = vsel %vm2003, %v2826, 0
        %v3068 = vsel %vm2003, %v2827, 0
        %v3071 = vsel %vm2003, %v2828, 0
        %v3074 = vsel %vm2003, %v2829, 0
        %v3077 = vsel %vm2003, %v2830, 0
        %v3080 = vsel %vm2003, %v2831, 0
        %v3083 = vsel %vm2003, %v2832, 0
        %v3086 = vsel %vm2003, %v2833, 0
        %v3089 = vsel %vm2003, %v2834, 0
        %v3092 = vsel %vm2003, %v2835, 0
        %v3095 = vsel %vm2003, %v2836, 0
        %v3098 = vsel %vm2003, %v2837, 0
        %v3101 = vsel %vm2003, %v2838, 0
        %v3104 = vsel %vm2003, %v2839, 0
        %v3107 = vsel %vm2003, %v2840, 0
        %v3110 = vsel %vm2003, %v2841, 0
        %v3113 = vsel %vm2003, %v2842, 0
        %v3116 = vsel %vm2003, %v2843, 0
        %v3119 = vsel %vm2003, %v2844, 0
        %v3122 = vsel %vm2003, %v2845, 0
        %v3125 = vsel %vm2003, %v2846, 0
        %v3128 = vsel %vm2003, %v2847, 0
        %v3131 = vsel %vm2003, %v2848, 0
        %v3134 = vsel %vm2003, %v2849, 0
        %v3137 = vsel %vm2003, %v2850, 0
        %v3140 = vsel %vm2003, %v2851, 0
        %v3143 = vsel %vm2003, %v2852, 0
        %v3146 = vsel %vm2003, %v2853, 0
        %v3149 = vsel %vm2003, %v2854, 0
        %v3152 = vsel %vm2003, %v2855, 0
        %v3155 = vsel %vm2003, %v2856, 0
        %v3158 = vsel %vm2003, %v2857, 0
        %v3161 = vsel %vm2003, %v2858, 0
        %v3164 = vsel %vm2003, %v2859, 0
        %v3167 = vsel %vm2003, %v2860, 0
        %v3170 = vsel %vm2003, %v2861, 0
        %v3173 = vsel %vm2003, %v2862, 0
        %v3176 = vsel %vm2003, %v2863, 0
        %v3179 = vsel %vm2003, %v2864, 0
        %v3182 = vsel %vm2003, %v2865, 0
        %v3185 = vsel %vm2319, %v2868, 0
        %3187 = vmatpush.msra.mxu0 0.0
        %3188 = vmatpush.msra.mxu0 0.0
        %3189 = vmatpush.msra.mxu0 0.0
        %3190 = vmatpush.msra.mxu0 0.0
        %3191 = vmatpush.msra.mxu0 0.0
        %3192 = vmatpush.msra.mxu0 0.0
        %3193 = vmatpush.msra.mxu0 0.0
        %3194 = vmatpush.msra.mxu0 0.0
        %3195 = vmatpush.msra.mxu0 0.0
        %3196 = vmatpush.msra.mxu0 0.0
        %3197 = vmatpush.msra.mxu0 0.0
        %3198 = vmatpush.msra.mxu0 0.0
        %3199 = vmatpush.msra.mxu0 0.0
        %3200 = vmatpush.msra.mxu0 0.0
        %3201 = vmatpush.msra.mxu0 %v3185
        %3202 = vmatpush.msra.mxu0 %v2867
        %3203 = vmatmul.f32.gmra.mxu0 %v2870
        %v3204 = vpop.f32.mrf.mxu0
        %v3205 = vadd.f32 0.0, %v3204
        %3206 = vmatmul.f32.gmra.mxu0 %v2873
        %v3207 = vpop.f32.mrf.mxu0
        %v3208 = vadd.f32 0.0, %v3207
        %3209 = vmatmul.f32.gmra.mxu0 %v2876
        %v3210 = vpop.f32.mrf.mxu0
        %v3211 = vadd.f32 0.0, %v3210
        %3212 = vmatmul.f32.gmra.mxu0 %v2879
        %v3213 = vpop.f32.mrf.mxu0
        %v3214 = vadd.f32 0.0, %v3213
        %3215 = vmatmul.f32.gmra.mxu0 %v2882
        %v3216 = vpop.f32.mrf.mxu0
        %v3217 = vadd.f32 0.0, %v3216
        %3218 = vmatmul.f32.gmra.mxu0 %v2885
        %v3219 = vpop.f32.mrf.mxu0
        %v3220 = vadd.f32 0.0, %v3219
        %3221 = vmatmul.f32.gmra.mxu0 %v2888
        %v3222 = vpop.f32.mrf.mxu0
        %v3223 = vadd.f32 0.0, %v3222
        %3224 = vmatmul.f32.gmra.mxu0 %v2891
        %v3225 = vpop.f32.mrf.mxu0
        %v3226 = vadd.f32 0.0, %v3225
        %3227 = vmatmul.f32.gmra.mxu0 %v2894
        %v3228 = vpop.f32.mrf.mxu0
        %v3229 = vadd.f32 0.0, %v3228
        %3230 = vmatmul.f32.gmra.mxu0 %v2897
        %v3231 = vpop.f32.mrf.mxu0
        %v3232 = vadd.f32 0.0, %v3231
        %3233 = vmatmul.f32.gmra.mxu0 %v2900
        %v3234 = vpop.f32.mrf.mxu0
        %v3235 = vadd.f32 0.0, %v3234
        %3236 = vmatmul.f32.gmra.mxu0 %v2903
        %v3237 = vpop.f32.mrf.mxu0
        %v3238 = vadd.f32 0.0, %v3237
        %3239 = vmatmul.f32.gmra.mxu0 %v2906
        %v3240 = vpop.f32.mrf.mxu0
        %v3241 = vadd.f32 0.0, %v3240
        %3242 = vmatmul.f32.gmra.mxu0 %v2909
        %v3243 = vpop.f32.mrf.mxu0
        %v3244 = vadd.f32 0.0, %v3243
        %3245 = vmatmul.f32.gmra.mxu0 %v2912
        %v3246 = vpop.f32.mrf.mxu0
        %v3247 = vadd.f32 0.0, %v3246
        %3248 = vmatmul.f32.gmra.mxu0 %v2915
        %v3249 = vpop.f32.mrf.mxu0
        %v3250 = vadd.f32 0.0, %v3249
        %3251 = vmatmul.f32.gmra.mxu0 %v2918
        %v3252 = vpop.f32.mrf.mxu0
        %v3253 = vadd.f32 0.0, %v3252
        %3254 = vmatmul.f32.gmra.mxu0 %v2921
        %v3255 = vpop.f32.mrf.mxu0
        %v3256 = vadd.f32 0.0, %v3255
        %3257 = vmatmul.f32.gmra.mxu0 %v2924
        %v3258 = vpop.f32.mrf.mxu0
        %v3259 = vadd.f32 0.0, %v3258
        %3260 = vmatmul.f32.gmra.mxu0 %v2927
        %v3261 = vpop.f32.mrf.mxu0
        %v3262 = vadd.f32 0.0, %v3261
        %3263 = vmatmul.f32.gmra.mxu0 %v2930
        %v3264 = vpop.f32.mrf.mxu0
        %v3265 = vadd.f32 0.0, %v3264
        %3266 = vmatmul.f32.gmra.mxu0 %v2933
        %v3267 = vpop.f32.mrf.mxu0
        %v3268 = vadd.f32 0.0, %v3267
        %3269 = vmatmul.f32.gmra.mxu0 %v2936
        %v3270 = vpop.f32.mrf.mxu0
        %v3271 = vadd.f32 0.0, %v3270
        %3272 = vmatmul.f32.gmra.mxu0 %v2939
        %v3273 = vpop.f32.mrf.mxu0
        %v3274 = vadd.f32 0.0, %v3273
        %3275 = vmatmul.f32.gmra.mxu0 %v2942
        %v3276 = vpop.f32.mrf.mxu0
        %v3277 = vadd.f32 0.0, %v3276
        %3278 = vmatmul.f32.gmra.mxu0 %v2945
        %v3279 = vpop.f32.mrf.mxu0
        %v3280 = vadd.f32 0.0, %v3279
        %3281 = vmatmul.f32.gmra.mxu0 %v2948
        %v3282 = vpop.f32.mrf.mxu0
        %v3283 = vadd.f32 0.0, %v3282
        %3284 = vmatmul.f32.gmra.mxu0 %v2951
        %v3285 = vpop.f32.mrf.mxu0
        %v3286 = vadd.f32 0.0, %v3285
        %3287 = vmatmul.f32.gmra.mxu0 %v2954
        %v3288 = vpop.f32.mrf.mxu0
        %v3289 = vadd.f32 0.0, %v3288
        %3290 = vmatmul.f32.gmra.mxu0 %v2957
        %v3291 = vpop.f32.mrf.mxu0
        %v3292 = vadd.f32 0.0, %v3291
        %3293 = vmatmul.f32.gmra.mxu0 %v2960
        %v3294 = vpop.f32.mrf.mxu0
        %v3295 = vadd.f32 0.0, %v3294
        %3296 = vmatmul.f32.gmra.mxu0 %v2963
        %v3297 = vpop.f32.mrf.mxu0
        %v3298 = vadd.f32 0.0, %v3297
        %3299 = vmatmul.f32.gmra.mxu0 %v2966
        %v3300 = vpop.f32.mrf.mxu0
        %v3301 = vadd.f32 0.0, %v3300
        %3302 = vmatmul.f32.gmra.mxu0 %v2969
        %v3303 = vpop.f32.mrf.mxu0
        %v3304 = vadd.f32 0.0, %v3303
        %3305 = vmatmul.f32.gmra.mxu0 %v2972
        %v3306 = vpop.f32.mrf.mxu0
        %v3307 = vadd.f32 0.0, %v3306
        %3308 = vmatmul.f32.gmra.mxu0 %v2975
        %v3309 = vpop.f32.mrf.mxu0
        %v3310 = vadd.f32 0.0, %v3309
        %3311 = vmatmul.f32.gmra.mxu0 %v2978
        %v3312 = vpop.f32.mrf.mxu0
        %v3313 = vadd.f32 0.0, %v3312
        %3314 = vmatmul.f32.gmra.mxu0 %v2981
        %v3315 = vpop.f32.mrf.mxu0
        %v3316 = vadd.f32 0.0, %v3315
        %3317 = vmatmul.f32.gmra.mxu0 %v2984
        %v3318 = vpop.f32.mrf.mxu0
        %v3319 = vadd.f32 0.0, %v3318
        %3320 = vmatmul.f32.gmra.mxu0 %v2987
        %v3321 = vpop.f32.mrf.mxu0
        %v3322 = vadd.f32 0.0, %v3321
        %3323 = vmatmul.f32.gmra.mxu0 %v2990
        %v3324 = vpop.f32.mrf.mxu0
        %v3325 = vadd.f32 0.0, %v3324
        %3326 = vmatmul.f32.gmra.mxu0 %v2993
        %v3327 = vpop.f32.mrf.mxu0
        %v3328 = vadd.f32 0.0, %v3327
        %3329 = vmatmul.f32.gmra.mxu0 %v2996
        %v3330 = vpop.f32.mrf.mxu0
        %v3331 = vadd.f32 0.0, %v3330
        %3332 = vmatmul.f32.gmra.mxu0 %v2999
        %v3333 = vpop.f32.mrf.mxu0
        %v3334 = vadd.f32 0.0, %v3333
        %3335 = vmatmul.f32.gmra.mxu0 %v3002
        %v3336 = vpop.f32.mrf.mxu0
        %v3337 = vadd.f32 0.0, %v3336
        %3338 = vmatmul.f32.gmra.mxu0 %v3005
        %v3339 = vpop.f32.mrf.mxu0
        %v3340 = vadd.f32 0.0, %v3339
        %3341 = vmatmul.f32.gmra.mxu0 %v3008
        %v3342 = vpop.f32.mrf.mxu0
        %v3343 = vadd.f32 0.0, %v3342
        %3344 = vmatmul.f32.gmra.mxu0 %v3011
        %v3345 = vpop.f32.mrf.mxu0
        %v3346 = vadd.f32 0.0, %v3345
        %3347 = vmatmul.f32.gmra.mxu0 %v3014
        %v3348 = vpop.f32.mrf.mxu0
        %v3349 = vadd.f32 0.0, %v3348
        %3350 = vmatmul.f32.gmra.mxu0 %v3017
        %v3351 = vpop.f32.mrf.mxu0
        %v3352 = vadd.f32 0.0, %v3351
        %3353 = vmatmul.f32.gmra.mxu0 %v3020
        %v3354 = vpop.f32.mrf.mxu0
        %v3355 = vadd.f32 0.0, %v3354
        %3356 = vmatmul.f32.gmra.mxu0 %v3023
        %v3357 = vpop.f32.mrf.mxu0
        %v3358 = vadd.f32 0.0, %v3357
        %3359 = vmatmul.f32.gmra.mxu0 %v3026
        %v3360 = vpop.f32.mrf.mxu0
        %v3361 = vadd.f32 0.0, %v3360
        %3362 = vmatmul.f32.gmra.mxu0 %v3029
        %v3363 = vpop.f32.mrf.mxu0
        %v3364 = vadd.f32 0.0, %v3363
        %3365 = vmatmul.f32.gmra.mxu0 %v3032
        %v3366 = vpop.f32.mrf.mxu0
        %v3367 = vadd.f32 0.0, %v3366
        %3368 = vmatmul.f32.gmra.mxu0 %v3035
        %v3369 = vpop.f32.mrf.mxu0
        %v3370 = vadd.f32 0.0, %v3369
        %3371 = vmatmul.f32.gmra.mxu0 %v3038
        %v3372 = vpop.f32.mrf.mxu0
        %v3373 = vadd.f32 0.0, %v3372
        %3374 = vmatmul.f32.gmra.mxu0 %v3041
        %v3375 = vpop.f32.mrf.mxu0
        %v3376 = vadd.f32 0.0, %v3375
        %3377 = vmatmul.f32.gmra.mxu0 %v3044
        %v3378 = vpop.f32.mrf.mxu0
        %v3379 = vadd.f32 0.0, %v3378
        %3380 = vmatmul.f32.gmra.mxu0 %v3047
        %v3381 = vpop.f32.mrf.mxu0
        %v3382 = vadd.f32 0.0, %v3381
        %3383 = vmatmul.f32.gmra.mxu0 %v3050
        %v3384 = vpop.f32.mrf.mxu0
        %v3385 = vadd.f32 0.0, %v3384
        %3386 = vmatmul.f32.gmra.mxu0 %v3053
        %v3387 = vpop.f32.mrf.mxu0
        %v3388 = vadd.f32 0.0, %v3387
        %3389 = vmatmul.f32.gmra.mxu0 %v3056
        %v3390 = vpop.f32.mrf.mxu0
        %v3391 = vadd.f32 0.0, %v3390
        %3392 = vmatmul.f32.gmra.mxu0 %v3059
        %v3393 = vpop.f32.mrf.mxu0
        %v3394 = vadd.f32 0.0, %v3393
        %3395 = vmatmul.f32.gmra.mxu0 %v3062
        %v3396 = vpop.f32.mrf.mxu0
        %v3397 = vadd.f32 0.0, %v3396
        %3398 = vmatmul.f32.gmra.mxu0 %v3065
        %v3399 = vpop.f32.mrf.mxu0
        %v3400 = vadd.f32 0.0, %v3399
        %3401 = vmatmul.f32.gmra.mxu0 %v3068
        %v3402 = vpop.f32.mrf.mxu0
        %v3403 = vadd.f32 0.0, %v3402
        %3404 = vmatmul.f32.gmra.mxu0 %v3071
        %v3405 = vpop.f32.mrf.mxu0
        %v3406 = vadd.f32 0.0, %v3405
        %3407 = vmatmul.f32.gmra.mxu0 %v3074
        %v3408 = vpop.f32.mrf.mxu0
        %v3409 = vadd.f32 0.0, %v3408
        %3410 = vmatmul.f32.gmra.mxu0 %v3077
        %v3411 = vpop.f32.mrf.mxu0
        %v3412 = vadd.f32 0.0, %v3411
        %3413 = vmatmul.f32.gmra.mxu0 %v3080
        %v3414 = vpop.f32.mrf.mxu0
        %v3415 = vadd.f32 0.0, %v3414
        %3416 = vmatmul.f32.gmra.mxu0 %v3083
        %v3417 = vpop.f32.mrf.mxu0
        %v3418 = vadd.f32 0.0, %v3417
        %3419 = vmatmul.f32.gmra.mxu0 %v3086
        %v3420 = vpop.f32.mrf.mxu0
        %v3421 = vadd.f32 0.0, %v3420
        %3422 = vmatmul.f32.gmra.mxu0 %v3089
        %v3423 = vpop.f32.mrf.mxu0
        %v3424 = vadd.f32 0.0, %v3423
        %3425 = vmatmul.f32.gmra.mxu0 %v3092
        %v3426 = vpop.f32.mrf.mxu0
        %v3427 = vadd.f32 0.0, %v3426
        %3428 = vmatmul.f32.gmra.mxu0 %v3095
        %v3429 = vpop.f32.mrf.mxu0
        %v3430 = vadd.f32 0.0, %v3429
        %3431 = vmatmul.f32.gmra.mxu0 %v3098
        %v3432 = vpop.f32.mrf.mxu0
        %v3433 = vadd.f32 0.0, %v3432
        %3434 = vmatmul.f32.gmra.mxu0 %v3101
        %v3435 = vpop.f32.mrf.mxu0
        %v3436 = vadd.f32 0.0, %v3435
        %3437 = vmatmul.f32.gmra.mxu0 %v3104
        %v3438 = vpop.f32.mrf.mxu0
        %v3439 = vadd.f32 0.0, %v3438
        %3440 = vmatmul.f32.gmra.mxu0 %v3107
        %v3441 = vpop.f32.mrf.mxu0
        %v3442 = vadd.f32 0.0, %v3441
        %3443 = vmatmul.f32.gmra.mxu0 %v3110
        %v3444 = vpop.f32.mrf.mxu0
        %v3445 = vadd.f32 0.0, %v3444
        %3446 = vmatmul.f32.gmra.mxu0 %v3113
        %v3447 = vpop.f32.mrf.mxu0
        %v3448 = vadd.f32 0.0, %v3447
        %3449 = vmatmul.f32.gmra.mxu0 %v3116
        %v3450 = vpop.f32.mrf.mxu0
        %v3451 = vadd.f32 0.0, %v3450
        %3452 = vmatmul.f32.gmra.mxu0 %v3119
        %v3453 = vpop.f32.mrf.mxu0
        %v3454 = vadd.f32 0.0, %v3453
        %3455 = vmatmul.f32.gmra.mxu0 %v3122
        %v3456 = vpop.f32.mrf.mxu0
        %v3457 = vadd.f32 0.0, %v3456
        %3458 = vmatmul.f32.gmra.mxu0 %v3125
        %v3459 = vpop.f32.mrf.mxu0
        %v3460 = vadd.f32 0.0, %v3459
        %3461 = vmatmul.f32.gmra.mxu0 %v3128
        %v3462 = vpop.f32.mrf.mxu0
        %v3463 = vadd.f32 0.0, %v3462
        %3464 = vmatmul.f32.gmra.mxu0 %v3131
        %v3465 = vpop.f32.mrf.mxu0
        %v3466 = vadd.f32 0.0, %v3465
        %3467 = vmatmul.f32.gmra.mxu0 %v3134
        %v3468 = vpop.f32.mrf.mxu0
        %v3469 = vadd.f32 0.0, %v3468
        %3470 = vmatmul.f32.gmra.mxu0 %v3137
        %v3471 = vpop.f32.mrf.mxu0
        %v3472 = vadd.f32 0.0, %v3471
        %3473 = vmatmul.f32.gmra.mxu0 %v3140
        %v3474 = vpop.f32.mrf.mxu0
        %v3475 = vadd.f32 0.0, %v3474
        %3476 = vmatmul.f32.gmra.mxu0 %v3143
        %v3477 = vpop.f32.mrf.mxu0
        %v3478 = vadd.f32 0.0, %v3477
        %3479 = vmatmul.f32.gmra.mxu0 %v3146
        %v3480 = vpop.f32.mrf.mxu0
        %v3481 = vadd.f32 0.0, %v3480
        %3482 = vmatmul.f32.gmra.mxu0 %v3149
        %v3483 = vpop.f32.mrf.mxu0
        %v3484 = vadd.f32 0.0, %v3483
        %3485 = vmatmul.f32.gmra.mxu0 %v3152
        %v3486 = vpop.f32.mrf.mxu0
        %v3487 = vadd.f32 0.0, %v3486
        %3488 = vmatmul.f32.gmra.mxu0 %v3155
        %v3489 = vpop.f32.mrf.mxu0
        %v3490 = vadd.f32 0.0, %v3489
        %3491 = vmatmul.f32.gmra.mxu0 %v3158
        %v3492 = vpop.f32.mrf.mxu0
        %v3493 = vadd.f32 0.0, %v3492
        %3494 = vmatmul.f32.gmra.mxu0 %v3161
        %v3495 = vpop.f32.mrf.mxu0
        %v3496 = vadd.f32 0.0, %v3495
        %3497 = vmatmul.f32.gmra.mxu0 %v3164
        %v3498 = vpop.f32.mrf.mxu0
        %v3499 = vadd.f32 0.0, %v3498
        %3500 = vmatmul.f32.gmra.mxu0 %v3167
        %v3501 = vpop.f32.mrf.mxu0
        %v3502 = vadd.f32 0.0, %v3501
        %3503 = vmatmul.f32.gmra.mxu0 %v3170
        %v3504 = vpop.f32.mrf.mxu0
        %v3505 = vadd.f32 0.0, %v3504
        %3506 = vmatmul.f32.gmra.mxu0 %v3173
        %v3507 = vpop.f32.mrf.mxu0
        %v3508 = vadd.f32 0.0, %v3507
        %3509 = vmatmul.f32.gmra.mxu0 %v3176
        %v3510 = vpop.f32.mrf.mxu0
        %v3511 = vadd.f32 0.0, %v3510
        %3512 = vmatmul.f32.gmra.mxu0 %v3179
        %v3513 = vpop.f32.mrf.mxu0
        %v3514 = vadd.f32 0.0, %v3513
        %3515 = vmatmul.f32.gmra.mxu0 %v3182
        %v3516 = vpop.f32.mrf.mxu0
        %v3517 = vadd.f32 0.0, %v3516
        %3518 = vdwg.mxu0
        %v3519 = vld [vmem:[#allocation4] sm:$0xff]
        %v3520 = vld [vmem:[#allocation4 + $0x8] sm:$0xff]
        %v3521 = vld [vmem:[#allocation4 + $0x10] sm:$0xff]
        %v3522 = vld [vmem:[#allocation4 + $0x18] sm:$0xff]
        %v3523 = vld [vmem:[#allocation4 + $0x20] sm:$0xff]
        %v3524 = vld [vmem:[#allocation4 + $0x28] sm:$0xff]
        %v3525 = vld [vmem:[#allocation4 + $0x30] sm:$0xff]
        %v3526 = vld [vmem:[#allocation4 + $0x38] sm:$0xff]
        %v3527 = vld [vmem:[#allocation4 + $0x40] sm:$0xff]
        %v3528 = vld [vmem:[#allocation4 + $0x48] sm:$0xff]
        %v3529 = vld [vmem:[#allocation4 + $0x50] sm:$0xff]
        %v3530 = vld [vmem:[#allocation4 + $0x58] sm:$0xff]
        %v3531 = vld [vmem:[#allocation4 + $0x60] sm:$0xff]
        %v3532 = vld [vmem:[#allocation4 + $0x68] sm:$0xff]
        %v3533 = vld [vmem:[#allocation4 + $0x70] sm:$0xff]
        %v3534 = vld [vmem:[#allocation4 + $0x78] sm:$0xff]
        %v3535 = vld [vmem:[#allocation4 + $0x80] sm:$0xff]
        %v3536 = vld [vmem:[#allocation4 + $0x88] sm:$0xff]
        %v3537 = vld [vmem:[#allocation4 + $0x90] sm:$0xff]
        %v3538 = vld [vmem:[#allocation4 + $0x98] sm:$0xff]
        %v3539 = vld [vmem:[#allocation4 + $0xa0] sm:$0xff]
        %v3540 = vld [vmem:[#allocation4 + $0xa8] sm:$0xff]
        %v3541 = vld [vmem:[#allocation4 + $0xb0] sm:$0xff]
        %v3542 = vld [vmem:[#allocation4 + $0xb8] sm:$0xff]
        %v3543 = vld [vmem:[#allocation4 + $0xc0] sm:$0xff]
        %v3544 = vld [vmem:[#allocation4 + $0xc8] sm:$0xff]
        %v3545 = vld [vmem:[#allocation4 + $0xd0] sm:$0xff]
        %v3546 = vld [vmem:[#allocation4 + $0xd8] sm:$0xff]
        %v3547 = vld [vmem:[#allocation4 + $0xe0] sm:$0xff]
        %v3548 = vld [vmem:[#allocation4 + $0xe8] sm:$0xff]
        %v3549 = vld [vmem:[#allocation4 + $0xf0] sm:$0xff]
        %v3550 = vld [vmem:[#allocation4 + $0xf8] sm:$0xff]
        %v3551 = vld [vmem:[#allocation4 + $0x100] sm:$0xff]
        %v3552 = vld [vmem:[#allocation4 + $0x108] sm:$0xff]
        %v3553 = vld [vmem:[#allocation4 + $0x110] sm:$0xff]
        %v3554 = vld [vmem:[#allocation4 + $0x118] sm:$0xff]
        %v3555 = vld [vmem:[#allocation4 + $0x120] sm:$0xff]
        %v3556 = vld [vmem:[#allocation4 + $0x128] sm:$0xff]
        %v3557 = vld [vmem:[#allocation4 + $0x130] sm:$0xff]
        %v3558 = vld [vmem:[#allocation4 + $0x138] sm:$0xff]
        %v3559 = vld [vmem:[#allocation4 + $0x140] sm:$0xff]
        %v3560 = vld [vmem:[#allocation4 + $0x148] sm:$0xff]
        %v3561 = vld [vmem:[#allocation4 + $0x150] sm:$0xff]
        %v3562 = vld [vmem:[#allocation4 + $0x158] sm:$0xff]
        %v3563 = vld [vmem:[#allocation4 + $0x160] sm:$0xff]
        %v3564 = vld [vmem:[#allocation4 + $0x168] sm:$0xff]
        %v3565 = vld [vmem:[#allocation4 + $0x170] sm:$0xff]
        %v3566 = vld [vmem:[#allocation4 + $0x178] sm:$0xff]
        %v3567 = vld [vmem:[#allocation4 + $0x180] sm:$0xff]
        %v3568 = vld [vmem:[#allocation4 + $0x188] sm:$0xff]
        %v3569 = vld [vmem:[#allocation4 + $0x190] sm:$0xff]
        %v3570 = vld [vmem:[#allocation4 + $0x198] sm:$0xff]
        %v3571 = vld [vmem:[#allocation4 + $0x1a0] sm:$0xff]
        %v3572 = vld [vmem:[#allocation4 + $0x1a8] sm:$0xff]
        %v3573 = vld [vmem:[#allocation4 + $0x1b0] sm:$0xff]
        %v3574 = vld [vmem:[#allocation4 + $0x1b8] sm:$0xff]
        %v3575 = vld [vmem:[#allocation4 + $0x1c0] sm:$0xff]
        %v3576 = vld [vmem:[#allocation4 + $0x1c8] sm:$0xff]
        %v3577 = vld [vmem:[#allocation4 + $0x1d0] sm:$0xff]
        %v3578 = vld [vmem:[#allocation4 + $0x1d8] sm:$0xff]
        %v3579 = vld [vmem:[#allocation4 + $0x1e0] sm:$0xff]
        %v3580 = vld [vmem:[#allocation4 + $0x1e8] sm:$0xff]
        %v3581 = vld [vmem:[#allocation4 + $0x1f0] sm:$0xff]
        %v3582 = vld [vmem:[#allocation4 + $0x1f8] sm:$0xff]
        %v3583 = vld [vmem:[#allocation4 + $0x200] sm:$0xff]
        %v3584 = vld [vmem:[#allocation4 + $0x208] sm:$0xff]
        %v3585 = vld [vmem:[#allocation4 + $0x210] sm:$0xff]
        %v3586 = vld [vmem:[#allocation4 + $0x218] sm:$0xff]
        %v3587 = vld [vmem:[#allocation4 + $0x220] sm:$0xff]
        %v3588 = vld [vmem:[#allocation4 + $0x228] sm:$0xff]
        %v3589 = vld [vmem:[#allocation4 + $0x230] sm:$0xff]
        %v3590 = vld [vmem:[#allocation4 + $0x238] sm:$0xff]
        %v3591 = vld [vmem:[#allocation4 + $0x240] sm:$0xff]
        %v3592 = vld [vmem:[#allocation4 + $0x248] sm:$0xff]
        %v3593 = vld [vmem:[#allocation4 + $0x250] sm:$0xff]
        %v3594 = vld [vmem:[#allocation4 + $0x258] sm:$0xff]
        %v3595 = vld [vmem:[#allocation4 + $0x260] sm:$0xff]
        %v3596 = vld [vmem:[#allocation4 + $0x268] sm:$0xff]
        %v3597 = vld [vmem:[#allocation4 + $0x270] sm:$0xff]
        %v3598 = vld [vmem:[#allocation4 + $0x278] sm:$0xff]
        %v3599 = vld [vmem:[#allocation4 + $0x280] sm:$0xff]
        %v3600 = vld [vmem:[#allocation4 + $0x288] sm:$0xff]
        %v3601 = vld [vmem:[#allocation4 + $0x290] sm:$0xff]
        %v3602 = vld [vmem:[#allocation4 + $0x298] sm:$0xff]
        %v3603 = vld [vmem:[#allocation4 + $0x2a0] sm:$0xff]
        %v3604 = vld [vmem:[#allocation4 + $0x2a8] sm:$0xff]
        %v3605 = vld [vmem:[#allocation4 + $0x2b0] sm:$0xff]
        %v3606 = vld [vmem:[#allocation4 + $0x2b8] sm:$0xff]
        %v3607 = vld [vmem:[#allocation4 + $0x2c0] sm:$0xff]
        %v3608 = vld [vmem:[#allocation4 + $0x2c8] sm:$0xff]
        %v3609 = vld [vmem:[#allocation4 + $0x2d0] sm:$0xff]
        %v3610 = vld [vmem:[#allocation4 + $0x2d8] sm:$0xff]
        %v3611 = vld [vmem:[#allocation4 + $0x2e0] sm:$0xff]
        %v3612 = vld [vmem:[#allocation4 + $0x2e8] sm:$0xff]
        %v3613 = vld [vmem:[#allocation4 + $0x2f0] sm:$0xff]
        %v3614 = vld [vmem:[#allocation4 + $0x2f8] sm:$0xff]
        %v3615 = vld [vmem:[#allocation4 + $0x300] sm:$0xff]
        %v3616 = vld [vmem:[#allocation4 + $0x308] sm:$0xff]
        %v3617 = vld [vmem:[#allocation4 + $0x310] sm:$0xff]
        %v3618 = vld [vmem:[#allocation4 + $0x318] sm:$0xff]
        %v3619 = vld [vmem:[#allocation4 + $0x320] sm:$0xff]
        %v3620 = vld [vmem:[#allocation4 + $0x328] sm:$0xff]
        %v3621 = vld [vmem:[#allocation4 + $0x330] sm:$0xff]
        %v3622 = vld [vmem:[#allocation4 + $0x338] sm:$0xff]
        %v3623 = vld [vmem:[#allocation4 + $0x340] sm:$0xff]
        %v3624 = vadd.f32 %v3519, %v3205
        %v3625 = vadd.f32 %v3520, %v3208
        %v3626 = vadd.f32 %v3521, %v3211
        %v3627 = vadd.f32 %v3522, %v3214
        %v3628 = vadd.f32 %v3523, %v3217
        %v3629 = vadd.f32 %v3524, %v3220
        %v3630 = vadd.f32 %v3525, %v3223
        %v3631 = vadd.f32 %v3526, %v3226
        %v3632 = vadd.f32 %v3527, %v3229
        %v3633 = vadd.f32 %v3528, %v3232
        %v3634 = vadd.f32 %v3529, %v3235
        %v3635 = vadd.f32 %v3530, %v3238
        %v3636 = vadd.f32 %v3531, %v3241
        %v3637 = vadd.f32 %v3532, %v3244
        %v3638 = vadd.f32 %v3533, %v3247
        %v3639 = vadd.f32 %v3534, %v3250
        %v3640 = vadd.f32 %v3535, %v3253
        %v3641 = vadd.f32 %v3536, %v3256
        %v3642 = vadd.f32 %v3537, %v3259
        %v3643 = vadd.f32 %v3538, %v3262
        %v3644 = vadd.f32 %v3539, %v3265
        %v3645 = vadd.f32 %v3540, %v3268
        %v3646 = vadd.f32 %v3541, %v3271
        %v3647 = vadd.f32 %v3542, %v3274
        %v3648 = vadd.f32 %v3543, %v3277
        %v3649 = vadd.f32 %v3544, %v3280
        %v3650 = vadd.f32 %v3545, %v3283
        %v3651 = vadd.f32 %v3546, %v3286
        %v3652 = vadd.f32 %v3547, %v3289
        %v3653 = vadd.f32 %v3548, %v3292
        %v3654 = vadd.f32 %v3549, %v3295
        %v3655 = vadd.f32 %v3550, %v3298
        %v3656 = vadd.f32 %v3551, %v3301
        %v3657 = vadd.f32 %v3552, %v3304
        %v3658 = vadd.f32 %v3553, %v3307
        %v3659 = vadd.f32 %v3554, %v3310
        %v3660 = vadd.f32 %v3555, %v3313
        %v3661 = vadd.f32 %v3556, %v3316
        %v3662 = vadd.f32 %v3557, %v3319
        %v3663 = vadd.f32 %v3558, %v3322
        %v3664 = vadd.f32 %v3559, %v3325
        %v3665 = vadd.f32 %v3560, %v3328
        %v3666 = vadd.f32 %v3561, %v3331
        %v3667 = vadd.f32 %v3562, %v3334
        %v3668 = vadd.f32 %v3563, %v3337
        %v3669 = vadd.f32 %v3564, %v3340
        %v3670 = vadd.f32 %v3565, %v3343
        %v3671 = vadd.f32 %v3566, %v3346
        %v3672 = vadd.f32 %v3567, %v3349
        %v3673 = vadd.f32 %v3568, %v3352
        %v3674 = vadd.f32 %v3569, %v3355
        %v3675 = vadd.f32 %v3570, %v3358
        %v3676 = vadd.f32 %v3571, %v3361
        %v3677 = vadd.f32 %v3572, %v3364
        %v3678 = vadd.f32 %v3573, %v3367
        %v3679 = vadd.f32 %v3574, %v3370
        %v3680 = vadd.f32 %v3575, %v3373
        %v3681 = vadd.f32 %v3576, %v3376
        %v3682 = vadd.f32 %v3577, %v3379
        %v3683 = vadd.f32 %v3578, %v3382
        %v3684 = vadd.f32 %v3579, %v3385
        %v3685 = vadd.f32 %v3580, %v3388
        %v3686 = vadd.f32 %v3581, %v3391
        %v3687 = vadd.f32 %v3582, %v3394
        %v3688 = vadd.f32 %v3583, %v3397
        %v3689 = vadd.f32 %v3584, %v3400
        %v3690 = vadd.f32 %v3585, %v3403
        %v3691 = vadd.f32 %v3586, %v3406
        %v3692 = vadd.f32 %v3587, %v3409
        %v3693 = vadd.f32 %v3588, %v3412
        %v3694 = vadd.f32 %v3589, %v3415
        %v3695 = vadd.f32 %v3590, %v3418
        %v3696 = vadd.f32 %v3591, %v3421
        %v3697 = vadd.f32 %v3592, %v3424
        %v3698 = vadd.f32 %v3593, %v3427
        %v3699 = vadd.f32 %v3594, %v3430
        %v3700 = vadd.f32 %v3595, %v3433
        %v3701 = vadd.f32 %v3596, %v3436
        %v3702 = vadd.f32 %v3597, %v3439
        %v3703 = vadd.f32 %v3598, %v3442
        %v3704 = vadd.f32 %v3599, %v3445
        %v3705 = vadd.f32 %v3600, %v3448
        %v3706 = vadd.f32 %v3601, %v3451
        %v3707 = vadd.f32 %v3602, %v3454
        %v3708 = vadd.f32 %v3603, %v3457
        %v3709 = vadd.f32 %v3604, %v3460
        %v3710 = vadd.f32 %v3605, %v3463
        %v3711 = vadd.f32 %v3606, %v3466
        %v3712 = vadd.f32 %v3607, %v3469
        %v3713 = vadd.f32 %v3608, %v3472
        %v3714 = vadd.f32 %v3609, %v3475
        %v3715 = vadd.f32 %v3610, %v3478
        %v3716 = vadd.f32 %v3611, %v3481
        %v3717 = vadd.f32 %v3612, %v3484
        %v3718 = vadd.f32 %v3613, %v3487
        %v3719 = vadd.f32 %v3614, %v3490
        %v3720 = vadd.f32 %v3615, %v3493
        %v3721 = vadd.f32 %v3616, %v3496
        %v3722 = vadd.f32 %v3617, %v3499
        %v3723 = vadd.f32 %v3618, %v3502
        %v3724 = vadd.f32 %v3619, %v3505
        %v3725 = vadd.f32 %v3620, %v3508
        %v3726 = vadd.f32 %v3621, %v3511
        %v3727 = vadd.f32 %v3622, %v3514
        %v3728 = vadd.f32 %v3623, %v3517
        %3729 = vst.msk [vmem:[#allocation4] sm:$0xff] %vm2655, %v3624
        %3730 = vst.msk [vmem:[#allocation4 + $0x8] sm:$0xff] %vm2655, %v3625
        %3731 = vst.msk [vmem:[#allocation4 + $0x10] sm:$0xff] %vm2655, %v3626
        %3732 = vst.msk [vmem:[#allocation4 + $0x18] sm:$0xff] %vm2655, %v3627
        %3733 = vst.msk [vmem:[#allocation4 + $0x20] sm:$0xff] %vm2655, %v3628
        %3734 = vst.msk [vmem:[#allocation4 + $0x28] sm:$0xff] %vm2655, %v3629
        %3735 = vst.msk [vmem:[#allocation4 + $0x30] sm:$0xff] %vm2655, %v3630
        %3736 = vst.msk [vmem:[#allocation4 + $0x38] sm:$0xff] %vm2655, %v3631
        %3737 = vst.msk [vmem:[#allocation4 + $0x40] sm:$0xff] %vm2655, %v3632
        %3738 = vst.msk [vmem:[#allocation4 + $0x48] sm:$0xff] %vm2655, %v3633
        %3739 = vst.msk [vmem:[#allocation4 + $0x50] sm:$0xff] %vm2655, %v3634
        %3740 = vst.msk [vmem:[#allocation4 + $0x58] sm:$0xff] %vm2655, %v3635
        %3741 = vst.msk [vmem:[#allocation4 + $0x60] sm:$0xff] %vm2655, %v3636
        %3742 = vst.msk [vmem:[#allocation4 + $0x68] sm:$0xff] %vm2655, %v3637
        %3743 = vst.msk [vmem:[#allocation4 + $0x70] sm:$0xff] %vm2655, %v3638
        %3744 = vst.msk [vmem:[#allocation4 + $0x78] sm:$0xff] %vm2655, %v3639
        %3745 = vst.msk [vmem:[#allocation4 + $0x80] sm:$0xff] %vm2655, %v3640
        %3746 = vst.msk [vmem:[#allocation4 + $0x88] sm:$0xff] %vm2655, %v3641
        %3747 = vst.msk [vmem:[#allocation4 + $0x90] sm:$0xff] %vm2655, %v3642
        %3748 = vst.msk [vmem:[#allocation4 + $0x98] sm:$0xff] %vm2655, %v3643
        %3749 = vst.msk [vmem:[#allocation4 + $0xa0] sm:$0xff] %vm2655, %v3644
        %3750 = vst.msk [vmem:[#allocation4 + $0xa8] sm:$0xff] %vm2655, %v3645
        %3751 = vst.msk [vmem:[#allocation4 + $0xb0] sm:$0xff] %vm2655, %v3646
        %3752 = vst.msk [vmem:[#allocation4 + $0xb8] sm:$0xff] %vm2655, %v3647
        %3753 = vst.msk [vmem:[#allocation4 + $0xc0] sm:$0xff] %vm2655, %v3648
        %3754 = vst.msk [vmem:[#allocation4 + $0xc8] sm:$0xff] %vm2655, %v3649
        %3755 = vst.msk [vmem:[#allocation4 + $0xd0] sm:$0xff] %vm2655, %v3650
        %3756 = vst.msk [vmem:[#allocation4 + $0xd8] sm:$0xff] %vm2655, %v3651
        %3757 = vst.msk [vmem:[#allocation4 + $0xe0] sm:$0xff] %vm2655, %v3652
        %3758 = vst.msk [vmem:[#allocation4 + $0xe8] sm:$0xff] %vm2655, %v3653
        %3759 = vst.msk [vmem:[#allocation4 + $0xf0] sm:$0xff] %vm2655, %v3654
        %3760 = vst.msk [vmem:[#allocation4 + $0xf8] sm:$0xff] %vm2655, %v3655
        %3761 = vst.msk [vmem:[#allocation4 + $0x100] sm:$0xff] %vm2655, %v3656
        %3762 = vst.msk [vmem:[#allocation4 + $0x108] sm:$0xff] %vm2655, %v3657
        %3763 = vst.msk [vmem:[#allocation4 + $0x110] sm:$0xff] %vm2655, %v3658
        %3764 = vst.msk [vmem:[#allocation4 + $0x118] sm:$0xff] %vm2655, %v3659
        %3765 = vst.msk [vmem:[#allocation4 + $0x120] sm:$0xff] %vm2655, %v3660
        %3766 = vst.msk [vmem:[#allocation4 + $0x128] sm:$0xff] %vm2655, %v3661
        %3767 = vst.msk [vmem:[#allocation4 + $0x130] sm:$0xff] %vm2655, %v3662
        %3768 = vst.msk [vmem:[#allocation4 + $0x138] sm:$0xff] %vm2655, %v3663
        %3769 = vst.msk [vmem:[#allocation4 + $0x140] sm:$0xff] %vm2655, %v3664
        %3770 = vst.msk [vmem:[#allocation4 + $0x148] sm:$0xff] %vm2655, %v3665
        %3771 = vst.msk [vmem:[#allocation4 + $0x150] sm:$0xff] %vm2655, %v3666
        %3772 = vst.msk [vmem:[#allocation4 + $0x158] sm:$0xff] %vm2655, %v3667
        %3773 = vst.msk [vmem:[#allocation4 + $0x160] sm:$0xff] %vm2655, %v3668
        %3774 = vst.msk [vmem:[#allocation4 + $0x168] sm:$0xff] %vm2655, %v3669
        %3775 = vst.msk [vmem:[#allocation4 + $0x170] sm:$0xff] %vm2655, %v3670
        %3776 = vst.msk [vmem:[#allocation4 + $0x178] sm:$0xff] %vm2655, %v3671
        %3777 = vst.msk [vmem:[#allocation4 + $0x180] sm:$0xff] %vm2655, %v3672
        %3778 = vst.msk [vmem:[#allocation4 + $0x188] sm:$0xff] %vm2655, %v3673
        %3779 = vst.msk [vmem:[#allocation4 + $0x190] sm:$0xff] %vm2655, %v3674
        %3780 = vst.msk [vmem:[#allocation4 + $0x198] sm:$0xff] %vm2655, %v3675
        %3781 = vst.msk [vmem:[#allocation4 + $0x1a0] sm:$0xff] %vm2655, %v3676
        %3782 = vst.msk [vmem:[#allocation4 + $0x1a8] sm:$0xff] %vm2655, %v3677
        %3783 = vst.msk [vmem:[#allocation4 + $0x1b0] sm:$0xff] %vm2655, %v3678
        %3784 = vst.msk [vmem:[#allocation4 + $0x1b8] sm:$0xff] %vm2655, %v3679
        %3785 = vst.msk [vmem:[#allocation4 + $0x1c0] sm:$0xff] %vm2655, %v3680
        %3786 = vst.msk [vmem:[#allocation4 + $0x1c8] sm:$0xff] %vm2655, %v3681
        %3787 = vst.msk [vmem:[#allocation4 + $0x1d0] sm:$0xff] %vm2655, %v3682
        %3788 = vst.msk [vmem:[#allocation4 + $0x1d8] sm:$0xff] %vm2655, %v3683
        %3789 = vst.msk [vmem:[#allocation4 + $0x1e0] sm:$0xff] %vm2655, %v3684
        %3790 = vst.msk [vmem:[#allocation4 + $0x1e8] sm:$0xff] %vm2655, %v3685
        %3791 = vst.msk [vmem:[#allocation4 + $0x1f0] sm:$0xff] %vm2655, %v3686
        %3792 = vst.msk [vmem:[#allocation4 + $0x1f8] sm:$0xff] %vm2655, %v3687
        %3793 = vst.msk [vmem:[#allocation4 + $0x200] sm:$0xff] %vm2655, %v3688
        %3794 = vst.msk [vmem:[#allocation4 + $0x208] sm:$0xff] %vm2655, %v3689
        %3795 = vst.msk [vmem:[#allocation4 + $0x210] sm:$0xff] %vm2655, %v3690
        %3796 = vst.msk [vmem:[#allocation4 + $0x218] sm:$0xff] %vm2655, %v3691
        %3797 = vst.msk [vmem:[#allocation4 + $0x220] sm:$0xff] %vm2655, %v3692
        %3798 = vst.msk [vmem:[#allocation4 + $0x228] sm:$0xff] %vm2655, %v3693
        %3799 = vst.msk [vmem:[#allocation4 + $0x230] sm:$0xff] %vm2655, %v3694
        %3800 = vst.msk [vmem:[#allocation4 + $0x238] sm:$0xff] %vm2655, %v3695
        %3801 = vst.msk [vmem:[#allocation4 + $0x240] sm:$0xff] %vm2655, %v3696
        %3802 = vst.msk [vmem:[#allocation4 + $0x248] sm:$0xff] %vm2655, %v3697
        %3803 = vst.msk [vmem:[#allocation4 + $0x250] sm:$0xff] %vm2655, %v3698
        %3804 = vst.msk [vmem:[#allocation4 + $0x258] sm:$0xff] %vm2655, %v3699
        %3805 = vst.msk [vmem:[#allocation4 + $0x260] sm:$0xff] %vm2655, %v3700
        %3806 = vst.msk [vmem:[#allocation4 + $0x268] sm:$0xff] %vm2655, %v3701
        %3807 = vst.msk [vmem:[#allocation4 + $0x270] sm:$0xff] %vm2655, %v3702
        %3808 = vst.msk [vmem:[#allocation4 + $0x278] sm:$0xff] %vm2655, %v3703
        %3809 = vst.msk [vmem:[#allocation4 + $0x280] sm:$0xff] %vm2655, %v3704
        %3810 = vst.msk [vmem:[#allocation4 + $0x288] sm:$0xff] %vm2655, %v3705
        %3811 = vst.msk [vmem:[#allocation4 + $0x290] sm:$0xff] %vm2655, %v3706
        %3812 = vst.msk [vmem:[#allocation4 + $0x298] sm:$0xff] %vm2655, %v3707
        %3813 = vst.msk [vmem:[#allocation4 + $0x2a0] sm:$0xff] %vm2655, %v3708
        %3814 = vst.msk [vmem:[#allocation4 + $0x2a8] sm:$0xff] %vm2655, %v3709
        %3815 = vst.msk [vmem:[#allocation4 + $0x2b0] sm:$0xff] %vm2655, %v3710
        %3816 = vst.msk [vmem:[#allocation4 + $0x2b8] sm:$0xff] %vm2655, %v3711
        %3817 = vst.msk [vmem:[#allocation4 + $0x2c0] sm:$0xff] %vm2655, %v3712
        %3818 = vst.msk [vmem:[#allocation4 + $0x2c8] sm:$0xff] %vm2655, %v3713
        %3819 = vst.msk [vmem:[#allocation4 + $0x2d0] sm:$0xff] %vm2655, %v3714
        %3820 = vst.msk [vmem:[#allocation4 + $0x2d8] sm:$0xff] %vm2655, %v3715
        %3821 = vst.msk [vmem:[#allocation4 + $0x2e0] sm:$0xff] %vm2655, %v3716
        %3822 = vst.msk [vmem:[#allocation4 + $0x2e8] sm:$0xff] %vm2655, %v3717
        %3823 = vst.msk [vmem:[#allocation4 + $0x2f0] sm:$0xff] %vm2655, %v3718
        %3824 = vst.msk [vmem:[#allocation4 + $0x2f8] sm:$0xff] %vm2655, %v3719
        %3825 = vst.msk [vmem:[#allocation4 + $0x300] sm:$0xff] %vm2655, %v3720
        %3826 = vst.msk [vmem:[#allocation4 + $0x308] sm:$0xff] %vm2655, %v3721
        %3827 = vst.msk [vmem:[#allocation4 + $0x310] sm:$0xff] %vm2655, %v3722
        %3828 = vst.msk [vmem:[#allocation4 + $0x318] sm:$0xff] %vm2655, %v3723
        %3829 = vst.msk [vmem:[#allocation4 + $0x320] sm:$0xff] %vm2655, %v3724
        %3830 = vst.msk [vmem:[#allocation4 + $0x328] sm:$0xff] %vm2655, %v3725
        %3831 = vst.msk [vmem:[#allocation4 + $0x330] sm:$0xff] %vm2655, %v3726
        %3832 = vst.msk [vmem:[#allocation4 + $0x338] sm:$0xff] %vm2655, %v3727
        %3833 = vst.msk [vmem:[#allocation4 + $0x340] sm:$0xff] %vm2655, %v3728
        %v3834 = vld [vmem:[#allocation3 + $0x30] sm:$0xff]
        %v3835 = vld [vmem:[#allocation3 + $0x38] sm:$0xff]
        %v3836 = vld [vmem:[#allocation3 + $0x40] sm:$0xff]
        %v3837 = vld [vmem:[#allocation3 + $0x48] sm:$0xff]
        %v3838 = vld [vmem:[#allocation3 + $0x50] sm:$0xff]
        %v3839 = vld [vmem:[#allocation3 + $0x58] sm:$0xff]
        %v3840 = vld [vmem:[#allocation3 + $0x60] sm:$0xff]
        %v3841 = vld [vmem:[#allocation3 + $0x68] sm:$0xff]
        %v3842 = vld [vmem:[#allocation3 + $0x70] sm:$0xff]
        %v3843 = vld [vmem:[#allocation3 + $0x78] sm:$0xff]
        %v3844 = vld [vmem:[#allocation3 + $0x80] sm:$0xff]
        %v3845 = vld [vmem:[#allocation3 + $0x88] sm:$0xff]
        %v3846 = vld [vmem:[#allocation3 + $0x90] sm:$0xff]
        %v3847 = vld [vmem:[#allocation3 + $0x98] sm:$0xff]
        %v3848 = vld [vmem:[#allocation3 + $0xa0] sm:$0xff]
        %v3849 = vld [vmem:[#allocation3 + $0xa8] sm:$0xff]
        %v3850 = vld [vmem:[#allocation3 + $0xb0] sm:$0xff]
        %v3851 = vld [vmem:[#allocation3 + $0xb8] sm:$0xff]
        %v3852 = vld [vmem:[#allocation3 + $0xc0] sm:$0xff]
        %v3853 = vld [vmem:[#allocation3 + $0xc8] sm:$0xff]
        %v3854 = vld [vmem:[#allocation3 + $0xd0] sm:$0xff]
        %v3855 = vld [vmem:[#allocation3 + $0xd8] sm:$0xff]
        %v3856 = vld [vmem:[#allocation3 + $0xe0] sm:$0xff]
        %v3857 = vld [vmem:[#allocation3 + $0xe8] sm:$0xff]
        %v3858 = vld [vmem:[#allocation3 + $0xf0] sm:$0xff]
        %v3859 = vld [vmem:[#allocation3 + $0xf8] sm:$0xff]
        %v3860 = vld [vmem:[#allocation3 + $0x100] sm:$0xff]
        %v3861 = vld [vmem:[#allocation3 + $0x108] sm:$0xff]
        %v3862 = vld [vmem:[#allocation3 + $0x110] sm:$0xff]
        %v3863 = vld [vmem:[#allocation3 + $0x118] sm:$0xff]
        %v3864 = vld [vmem:[#allocation3 + $0x120] sm:$0xff]
        %v3865 = vld [vmem:[#allocation3 + $0x128] sm:$0xff]
        %v3866 = vld [vmem:[#allocation3 + $0x130] sm:$0xff]
        %v3867 = vld [vmem:[#allocation3 + $0x138] sm:$0xff]
        %v3868 = vld [vmem:[#allocation3 + $0x140] sm:$0xff]
        %v3869 = vld [vmem:[#allocation3 + $0x148] sm:$0xff]
        %v3870 = vld [vmem:[#allocation3 + $0x150] sm:$0xff]
        %v3871 = vld [vmem:[#allocation3 + $0x158] sm:$0xff]
        %v3872 = vld [vmem:[#allocation3 + $0x160] sm:$0xff]
        %v3873 = vld [vmem:[#allocation3 + $0x168] sm:$0xff]
        %v3874 = vld [vmem:[#allocation3 + $0x170] sm:$0xff]
        %v3875 = vld [vmem:[#allocation3 + $0x178] sm:$0xff]
        %v3876 = vld [vmem:[#allocation3 + $0x180] sm:$0xff]
        %v3877 = vld [vmem:[#allocation3 + $0x188] sm:$0xff]
        %v3878 = vld [vmem:[#allocation3 + $0x190] sm:$0xff]
        %v3879 = vld [vmem:[#allocation3 + $0x198] sm:$0xff]
        %v3880 = vld [vmem:[#allocation3 + $0x1a0] sm:$0xff]
        %v3881 = vld [vmem:[#allocation3 + $0x1a8] sm:$0xff]
        %v3882 = vld [vmem:[#allocation3 + $0x1b0] sm:$0xff]
        %v3883 = vld [vmem:[#allocation3 + $0x1b8] sm:$0xff]
        %v3884 = vld [vmem:[#allocation3 + $0x1c0] sm:$0xff]
        %v3885 = vld [vmem:[#allocation3 + $0x1c8] sm:$0xff]
        %v3886 = vld [vmem:[#allocation3 + $0x1d0] sm:$0xff]
        %v3887 = vld [vmem:[#allocation3 + $0x1d8] sm:$0xff]
        %v3888 = vld [vmem:[#allocation3 + $0x1e0] sm:$0xff]
        %v3889 = vld [vmem:[#allocation3 + $0x1e8] sm:$0xff]
        %v3890 = vld [vmem:[#allocation3 + $0x1f0] sm:$0xff]
        %v3891 = vld [vmem:[#allocation3 + $0x1f8] sm:$0xff]
        %v3892 = vld [vmem:[#allocation3 + $0x200] sm:$0xff]
        %v3893 = vld [vmem:[#allocation3 + $0x208] sm:$0xff]
        %v3894 = vld [vmem:[#allocation3 + $0x210] sm:$0xff]
        %v3895 = vld [vmem:[#allocation3 + $0x218] sm:$0xff]
        %v3896 = vld [vmem:[#allocation3 + $0x220] sm:$0xff]
        %v3897 = vld [vmem:[#allocation3 + $0x228] sm:$0xff]
        %v3898 = vld [vmem:[#allocation3 + $0x230] sm:$0xff]
        %v3899 = vld [vmem:[#allocation3 + $0x238] sm:$0xff]
        %v3900 = vld [vmem:[#allocation3 + $0x240] sm:$0xff]
        %v3901 = vld [vmem:[#allocation3 + $0x248] sm:$0xff]
        %v3902 = vld [vmem:[#allocation3 + $0x250] sm:$0xff]
        %v3903 = vld [vmem:[#allocation3 + $0x258] sm:$0xff]
        %v3904 = vld [vmem:[#allocation3 + $0x260] sm:$0xff]
        %v3905 = vld [vmem:[#allocation3 + $0x268] sm:$0xff]
        %v3906 = vld [vmem:[#allocation3 + $0x270] sm:$0xff]
        %v3907 = vld [vmem:[#allocation3 + $0x278] sm:$0xff]
        %v3908 = vld [vmem:[#allocation3 + $0x280] sm:$0xff]
        %v3909 = vld [vmem:[#allocation3 + $0x288] sm:$0xff]
        %v3910 = vld [vmem:[#allocation3 + $0x290] sm:$0xff]
        %v3911 = vld [vmem:[#allocation3 + $0x298] sm:$0xff]
        %v3912 = vld [vmem:[#allocation3 + $0x2a0] sm:$0xff]
        %v3913 = vld [vmem:[#allocation3 + $0x2a8] sm:$0xff]
        %v3914 = vld [vmem:[#allocation3 + $0x2b0] sm:$0xff]
        %v3915 = vld [vmem:[#allocation3 + $0x2b8] sm:$0xff]
        %v3916 = vld [vmem:[#allocation3 + $0x2c0] sm:$0xff]
        %v3917 = vld [vmem:[#allocation3 + $0x2c8] sm:$0xff]
        %v3918 = vld [vmem:[#allocation3 + $0x2d0] sm:$0xff]
        %v3919 = vld [vmem:[#allocation3 + $0x2d8] sm:$0xff]
        %v3920 = vld [vmem:[#allocation3 + $0x2e0] sm:$0xff]
        %v3921 = vld [vmem:[#allocation3 + $0x2e8] sm:$0xff]
        %v3922 = vld [vmem:[#allocation3 + $0x2f0] sm:$0xff]
        %v3923 = vld [vmem:[#allocation3 + $0x2f8] sm:$0xff]
        %v3924 = vld [vmem:[#allocation3 + $0x300] sm:$0xff]
        %v3925 = vld [vmem:[#allocation3 + $0x308] sm:$0xff]
        %v3926 = vld [vmem:[#allocation3 + $0x310] sm:$0xff]
        %v3927 = vld [vmem:[#allocation3 + $0x318] sm:$0xff]
        %v3928 = vld [vmem:[#allocation3 + $0x320] sm:$0xff]
        %v3929 = vld [vmem:[#allocation3 + $0x328] sm:$0xff]
        %v3930 = vld [vmem:[#allocation3 + $0x330] sm:$0xff]
        %v3931 = vld [vmem:[#allocation3 + $0x338] sm:$0xff]
        %v3932 = vld [vmem:[#allocation3 + $0x340] sm:$0xff]
        %v3933 = vld [vmem:[#allocation3 + $0x348] sm:$0xff]
        %v3934 = vld [vmem:[#allocation3 + $0x350] sm:$0xff]
        %v3935 = vld [vmem:[#allocation3 + $0x358] sm:$0xff]
        %v3936 = vld [vmem:[#allocation3 + $0x360] sm:$0xff]
        %v3937 = vld [vmem:[#allocation3 + $0x368] sm:$0xff]
        %v3938 = vld [vmem:[#allocation3 + $0x370] sm:$0xff]
        %s3939 = scalar_lea.vmem %s1, 32
        %v3940 = vld [vmem:[%s3939] sm:$0xff]
        %v3941 = vld [vmem:[%s3939 + $0x8] sm:$0x1]
        %v3943 = vsel %vm2003, %v3834, 0
        %v3946 = vsel %vm2003, %v3835, 0
        %v3949 = vsel %vm2003, %v3836, 0
        %v3952 = vsel %vm2003, %v3837, 0
        %v3955 = vsel %vm2003, %v3838, 0
        %v3958 = vsel %vm2003, %v3839, 0
        %v3961 = vsel %vm2003, %v3840, 0
        %v3964 = vsel %vm2003, %v3841, 0
        %v3967 = vsel %vm2003, %v3842, 0
        %v3970 = vsel %vm2003, %v3843, 0
        %v3973 = vsel %vm2003, %v3844, 0
        %v3976 = vsel %vm2003, %v3845, 0
        %v3979 = vsel %vm2003, %v3846, 0
        %v3982 = vsel %vm2003, %v3847, 0
        %v3985 = vsel %vm2003, %v3848, 0
        %v3988 = vsel %vm2003, %v3849, 0
        %v3991 = vsel %vm2003, %v3850, 0
        %v3994 = vsel %vm2003, %v3851, 0
        %v3997 = vsel %vm2003, %v3852, 0
        %v4000 = vsel %vm2003, %v3853, 0
        %v4003 = vsel %vm2003, %v3854, 0
        %v4006 = vsel %vm2003, %v3855, 0
        %v4009 = vsel %vm2003, %v3856, 0
        %v4012 = vsel %vm2003, %v3857, 0
        %v4015 = vsel %vm2003, %v3858, 0
        %v4018 = vsel %vm2003, %v3859, 0
        %v4021 = vsel %vm2003, %v3860, 0
        %v4024 = vsel %vm2003, %v3861, 0
        %v4027 = vsel %vm2003, %v3862, 0
        %v4030 = vsel %vm2003, %v3863, 0
        %v4033 = vsel %vm2003, %v3864, 0
        %v4036 = vsel %vm2003, %v3865, 0
        %v4039 = vsel %vm2003, %v3866, 0
        %v4042 = vsel %vm2003, %v3867, 0
        %v4045 = vsel %vm2003, %v3868, 0
        %v4048 = vsel %vm2003, %v3869, 0
        %v4051 = vsel %vm2003, %v3870, 0
        %v4054 = vsel %vm2003, %v3871, 0
        %v4057 = vsel %vm2003, %v3872, 0
        %v4060 = vsel %vm2003, %v3873, 0
        %v4063 = vsel %vm2003, %v3874, 0
        %v4066 = vsel %vm2003, %v3875, 0
        %v4069 = vsel %vm2003, %v3876, 0
        %v4072 = vsel %vm2003, %v3877, 0
        %v4075 = vsel %vm2003, %v3878, 0
        %v4078 = vsel %vm2003, %v3879, 0
        %v4081 = vsel %vm2003, %v3880, 0
        %v4084 = vsel %vm2003, %v3881, 0
        %v4087 = vsel %vm2003, %v3882, 0
        %v4090 = vsel %vm2003, %v3883, 0
        %v4093 = vsel %vm2003, %v3884, 0
        %v4096 = vsel %vm2003, %v3885, 0
        %v4099 = vsel %vm2003, %v3886, 0
        %v4102 = vsel %vm2003, %v3887, 0
        %v4105 = vsel %vm2003, %v3888, 0
        %v4108 = vsel %vm2003, %v3889, 0
        %v4111 = vsel %vm2003, %v3890, 0
        %v4114 = vsel %vm2003, %v3891, 0
        %v4117 = vsel %vm2003, %v3892, 0
        %v4120 = vsel %vm2003, %v3893, 0
        %v4123 = vsel %vm2003, %v3894, 0
        %v4126 = vsel %vm2003, %v3895, 0
        %v4129 = vsel %vm2003, %v3896, 0
        %v4132 = vsel %vm2003, %v3897, 0
        %v4135 = vsel %vm2003, %v3898, 0
        %v4138 = vsel %vm2003, %v3899, 0
        %v4141 = vsel %vm2003, %v3900, 0
        %v4144 = vsel %vm2003, %v3901, 0
        %v4147 = vsel %vm2003, %v3902, 0
        %v4150 = vsel %vm2003, %v3903, 0
        %v4153 = vsel %vm2003, %v3904, 0
        %v4156 = vsel %vm2003, %v3905, 0
        %v4159 = vsel %vm2003, %v3906, 0
        %v4162 = vsel %vm2003, %v3907, 0
        %v4165 = vsel %vm2003, %v3908, 0
        %v4168 = vsel %vm2003, %v3909, 0
        %v4171 = vsel %vm2003, %v3910, 0
        %v4174 = vsel %vm2003, %v3911, 0
        %v4177 = vsel %vm2003, %v3912, 0
        %v4180 = vsel %vm2003, %v3913, 0
        %v4183 = vsel %vm2003, %v3914, 0
        %v4186 = vsel %vm2003, %v3915, 0
        %v4189 = vsel %vm2003, %v3916, 0
        %v4192 = vsel %vm2003, %v3917, 0
        %v4195 = vsel %vm2003, %v3918, 0
        %v4198 = vsel %vm2003, %v3919, 0
        %v4201 = vsel %vm2003, %v3920, 0
        %v4204 = vsel %vm2003, %v3921, 0
        %v4207 = vsel %vm2003, %v3922, 0
        %v4210 = vsel %vm2003, %v3923, 0
        %v4213 = vsel %vm2003, %v3924, 0
        %v4216 = vsel %vm2003, %v3925, 0
        %v4219 = vsel %vm2003, %v3926, 0
        %v4222 = vsel %vm2003, %v3927, 0
        %v4225 = vsel %vm2003, %v3928, 0
        %v4228 = vsel %vm2003, %v3929, 0
        %v4231 = vsel %vm2003, %v3930, 0
        %v4234 = vsel %vm2003, %v3931, 0
        %v4237 = vsel %vm2003, %v3932, 0
        %v4240 = vsel %vm2003, %v3933, 0
        %v4243 = vsel %vm2003, %v3934, 0
        %v4246 = vsel %vm2003, %v3935, 0
        %v4249 = vsel %vm2003, %v3936, 0
        %v4252 = vsel %vm2003, %v3937, 0
        %v4255 = vsel %vm2003, %v3938, 0
        %v4258 = vsel %vm2319, %v3941, 0
        %4260 = vmatpush.msra.mxu0 0.0
        %4261 = vmatpush.msra.mxu0 0.0
        %4262 = vmatpush.msra.mxu0 0.0
        %4263 = vmatpush.msra.mxu0 0.0
        %4264 = vmatpush.msra.mxu0 0.0
        %4265 = vmatpush.msra.mxu0 0.0
        %4266 = vmatpush.msra.mxu0 0.0
        %4267 = vmatpush.msra.mxu0 0.0
        %4268 = vmatpush.msra.mxu0 0.0
        %4269 = vmatpush.msra.mxu0 0.0
        %4270 = vmatpush.msra.mxu0 0.0
        %4271 = vmatpush.msra.mxu0 0.0
        %4272 = vmatpush.msra.mxu0 0.0
        %4273 = vmatpush.msra.mxu0 0.0
        %4274 = vmatpush.msra.mxu0 %v4258
        %4275 = vmatpush.msra.mxu0 %v3940
        %4276 = vmatmul.f32.gmra.mxu0 %v3943
        %v4277 = vpop.f32.mrf.mxu0
        %v4278 = vadd.f32 0.0, %v4277
        %4279 = vmatmul.f32.gmra.mxu0 %v3946
        %v4280 = vpop.f32.mrf.mxu0
        %v4281 = vadd.f32 0.0, %v4280
        %4282 = vmatmul.f32.gmra.mxu0 %v3949
        %v4283 = vpop.f32.mrf.mxu0
        %v4284 = vadd.f32 0.0, %v4283
        %4285 = vmatmul.f32.gmra.mxu0 %v3952
        %v4286 = vpop.f32.mrf.mxu0
        %v4287 = vadd.f32 0.0, %v4286
        %4288 = vmatmul.f32.gmra.mxu0 %v3955
        %v4289 = vpop.f32.mrf.mxu0
        %v4290 = vadd.f32 0.0, %v4289
        %4291 = vmatmul.f32.gmra.mxu0 %v3958
        %v4292 = vpop.f32.mrf.mxu0
        %v4293 = vadd.f32 0.0, %v4292
        %4294 = vmatmul.f32.gmra.mxu0 %v3961
        %v4295 = vpop.f32.mrf.mxu0
        %v4296 = vadd.f32 0.0, %v4295
        %4297 = vmatmul.f32.gmra.mxu0 %v3964
        %v4298 = vpop.f32.mrf.mxu0
        %v4299 = vadd.f32 0.0, %v4298
        %4300 = vmatmul.f32.gmra.mxu0 %v3967
        %v4301 = vpop.f32.mrf.mxu0
        %v4302 = vadd.f32 0.0, %v4301
        %4303 = vmatmul.f32.gmra.mxu0 %v3970
        %v4304 = vpop.f32.mrf.mxu0
        %v4305 = vadd.f32 0.0, %v4304
        %4306 = vmatmul.f32.gmra.mxu0 %v3973
        %v4307 = vpop.f32.mrf.mxu0
        %v4308 = vadd.f32 0.0, %v4307
        %4309 = vmatmul.f32.gmra.mxu0 %v3976
        %v4310 = vpop.f32.mrf.mxu0
        %v4311 = vadd.f32 0.0, %v4310
        %4312 = vmatmul.f32.gmra.mxu0 %v3979
        %v4313 = vpop.f32.mrf.mxu0
        %v4314 = vadd.f32 0.0, %v4313
        %4315 = vmatmul.f32.gmra.mxu0 %v3982
        %v4316 = vpop.f32.mrf.mxu0
        %v4317 = vadd.f32 0.0, %v4316
        %4318 = vmatmul.f32.gmra.mxu0 %v3985
        %v4319 = vpop.f32.mrf.mxu0
        %v4320 = vadd.f32 0.0, %v4319
        %4321 = vmatmul.f32.gmra.mxu0 %v3988
        %v4322 = vpop.f32.mrf.mxu0
        %v4323 = vadd.f32 0.0, %v4322
        %4324 = vmatmul.f32.gmra.mxu0 %v3991
        %v4325 = vpop.f32.mrf.mxu0
        %v4326 = vadd.f32 0.0, %v4325
        %4327 = vmatmul.f32.gmra.mxu0 %v3994
        %v4328 = vpop.f32.mrf.mxu0
        %v4329 = vadd.f32 0.0, %v4328
        %4330 = vmatmul.f32.gmra.mxu0 %v3997
        %v4331 = vpop.f32.mrf.mxu0
        %v4332 = vadd.f32 0.0, %v4331
        %4333 = vmatmul.f32.gmra.mxu0 %v4000
        %v4334 = vpop.f32.mrf.mxu0
        %v4335 = vadd.f32 0.0, %v4334
        %4336 = vmatmul.f32.gmra.mxu0 %v4003
        %v4337 = vpop.f32.mrf.mxu0
        %v4338 = vadd.f32 0.0, %v4337
        %4339 = vmatmul.f32.gmra.mxu0 %v4006
        %v4340 = vpop.f32.mrf.mxu0
        %v4341 = vadd.f32 0.0, %v4340
        %4342 = vmatmul.f32.gmra.mxu0 %v4009
        %v4343 = vpop.f32.mrf.mxu0
        %v4344 = vadd.f32 0.0, %v4343
        %4345 = vmatmul.f32.gmra.mxu0 %v4012
        %v4346 = vpop.f32.mrf.mxu0
        %v4347 = vadd.f32 0.0, %v4346
        %4348 = vmatmul.f32.gmra.mxu0 %v4015
        %v4349 = vpop.f32.mrf.mxu0
        %v4350 = vadd.f32 0.0, %v4349
        %4351 = vmatmul.f32.gmra.mxu0 %v4018
        %v4352 = vpop.f32.mrf.mxu0
        %v4353 = vadd.f32 0.0, %v4352
        %4354 = vmatmul.f32.gmra.mxu0 %v4021
        %v4355 = vpop.f32.mrf.mxu0
        %v4356 = vadd.f32 0.0, %v4355
        %4357 = vmatmul.f32.gmra.mxu0 %v4024
        %v4358 = vpop.f32.mrf.mxu0
        %v4359 = vadd.f32 0.0, %v4358
        %4360 = vmatmul.f32.gmra.mxu0 %v4027
        %v4361 = vpop.f32.mrf.mxu0
        %v4362 = vadd.f32 0.0, %v4361
        %4363 = vmatmul.f32.gmra.mxu0 %v4030
        %v4364 = vpop.f32.mrf.mxu0
        %v4365 = vadd.f32 0.0, %v4364
        %4366 = vmatmul.f32.gmra.mxu0 %v4033
        %v4367 = vpop.f32.mrf.mxu0
        %v4368 = vadd.f32 0.0, %v4367
        %4369 = vmatmul.f32.gmra.mxu0 %v4036
        %v4370 = vpop.f32.mrf.mxu0
        %v4371 = vadd.f32 0.0, %v4370
        %4372 = vmatmul.f32.gmra.mxu0 %v4039
        %v4373 = vpop.f32.mrf.mxu0
        %v4374 = vadd.f32 0.0, %v4373
        %4375 = vmatmul.f32.gmra.mxu0 %v4042
        %v4376 = vpop.f32.mrf.mxu0
        %v4377 = vadd.f32 0.0, %v4376
        %4378 = vmatmul.f32.gmra.mxu0 %v4045
        %v4379 = vpop.f32.mrf.mxu0
        %v4380 = vadd.f32 0.0, %v4379
        %4381 = vmatmul.f32.gmra.mxu0 %v4048
        %v4382 = vpop.f32.mrf.mxu0
        %v4383 = vadd.f32 0.0, %v4382
        %4384 = vmatmul.f32.gmra.mxu0 %v4051
        %v4385 = vpop.f32.mrf.mxu0
        %v4386 = vadd.f32 0.0, %v4385
        %4387 = vmatmul.f32.gmra.mxu0 %v4054
        %v4388 = vpop.f32.mrf.mxu0
        %v4389 = vadd.f32 0.0, %v4388
        %4390 = vmatmul.f32.gmra.mxu0 %v4057
        %v4391 = vpop.f32.mrf.mxu0
        %v4392 = vadd.f32 0.0, %v4391
        %4393 = vmatmul.f32.gmra.mxu0 %v4060
        %v4394 = vpop.f32.mrf.mxu0
        %v4395 = vadd.f32 0.0, %v4394
        %4396 = vmatmul.f32.gmra.mxu0 %v4063
        %v4397 = vpop.f32.mrf.mxu0
        %v4398 = vadd.f32 0.0, %v4397
        %4399 = vmatmul.f32.gmra.mxu0 %v4066
        %v4400 = vpop.f32.mrf.mxu0
        %v4401 = vadd.f32 0.0, %v4400
        %4402 = vmatmul.f32.gmra.mxu0 %v4069
        %v4403 = vpop.f32.mrf.mxu0
        %v4404 = vadd.f32 0.0, %v4403
        %4405 = vmatmul.f32.gmra.mxu0 %v4072
        %v4406 = vpop.f32.mrf.mxu0
        %v4407 = vadd.f32 0.0, %v4406
        %4408 = vmatmul.f32.gmra.mxu0 %v4075
        %v4409 = vpop.f32.mrf.mxu0
        %v4410 = vadd.f32 0.0, %v4409
        %4411 = vmatmul.f32.gmra.mxu0 %v4078
        %v4412 = vpop.f32.mrf.mxu0
        %v4413 = vadd.f32 0.0, %v4412
        %4414 = vmatmul.f32.gmra.mxu0 %v4081
        %v4415 = vpop.f32.mrf.mxu0
        %v4416 = vadd.f32 0.0, %v4415
        %4417 = vmatmul.f32.gmra.mxu0 %v4084
        %v4418 = vpop.f32.mrf.mxu0
        %v4419 = vadd.f32 0.0, %v4418
        %4420 = vmatmul.f32.gmra.mxu0 %v4087
        %v4421 = vpop.f32.mrf.mxu0
        %v4422 = vadd.f32 0.0, %v4421
        %4423 = vmatmul.f32.gmra.mxu0 %v4090
        %v4424 = vpop.f32.mrf.mxu0
        %v4425 = vadd.f32 0.0, %v4424
        %4426 = vmatmul.f32.gmra.mxu0 %v4093
        %v4427 = vpop.f32.mrf.mxu0
        %v4428 = vadd.f32 0.0, %v4427
        %4429 = vmatmul.f32.gmra.mxu0 %v4096
        %v4430 = vpop.f32.mrf.mxu0
        %v4431 = vadd.f32 0.0, %v4430
        %4432 = vmatmul.f32.gmra.mxu0 %v4099
        %v4433 = vpop.f32.mrf.mxu0
        %v4434 = vadd.f32 0.0, %v4433
        %4435 = vmatmul.f32.gmra.mxu0 %v4102
        %v4436 = vpop.f32.mrf.mxu0
        %v4437 = vadd.f32 0.0, %v4436
        %4438 = vmatmul.f32.gmra.mxu0 %v4105
        %v4439 = vpop.f32.mrf.mxu0
        %v4440 = vadd.f32 0.0, %v4439
        %4441 = vmatmul.f32.gmra.mxu0 %v4108
        %v4442 = vpop.f32.mrf.mxu0
        %v4443 = vadd.f32 0.0, %v4442
        %4444 = vmatmul.f32.gmra.mxu0 %v4111
        %v4445 = vpop.f32.mrf.mxu0
        %v4446 = vadd.f32 0.0, %v4445
        %4447 = vmatmul.f32.gmra.mxu0 %v4114
        %v4448 = vpop.f32.mrf.mxu0
        %v4449 = vadd.f32 0.0, %v4448
        %4450 = vmatmul.f32.gmra.mxu0 %v4117
        %v4451 = vpop.f32.mrf.mxu0
        %v4452 = vadd.f32 0.0, %v4451
        %4453 = vmatmul.f32.gmra.mxu0 %v4120
        %v4454 = vpop.f32.mrf.mxu0
        %v4455 = vadd.f32 0.0, %v4454
        %4456 = vmatmul.f32.gmra.mxu0 %v4123
        %v4457 = vpop.f32.mrf.mxu0
        %v4458 = vadd.f32 0.0, %v4457
        %4459 = vmatmul.f32.gmra.mxu0 %v4126
        %v4460 = vpop.f32.mrf.mxu0
        %v4461 = vadd.f32 0.0, %v4460
        %4462 = vmatmul.f32.gmra.mxu0 %v4129
        %v4463 = vpop.f32.mrf.mxu0
        %v4464 = vadd.f32 0.0, %v4463
        %4465 = vmatmul.f32.gmra.mxu0 %v4132
        %v4466 = vpop.f32.mrf.mxu0
        %v4467 = vadd.f32 0.0, %v4466
        %4468 = vmatmul.f32.gmra.mxu0 %v4135
        %v4469 = vpop.f32.mrf.mxu0
        %v4470 = vadd.f32 0.0, %v4469
        %4471 = vmatmul.f32.gmra.mxu0 %v4138
        %v4472 = vpop.f32.mrf.mxu0
        %v4473 = vadd.f32 0.0, %v4472
        %4474 = vmatmul.f32.gmra.mxu0 %v4141
        %v4475 = vpop.f32.mrf.mxu0
        %v4476 = vadd.f32 0.0, %v4475
        %4477 = vmatmul.f32.gmra.mxu0 %v4144
        %v4478 = vpop.f32.mrf.mxu0
        %v4479 = vadd.f32 0.0, %v4478
        %4480 = vmatmul.f32.gmra.mxu0 %v4147
        %v4481 = vpop.f32.mrf.mxu0
        %v4482 = vadd.f32 0.0, %v4481
        %4483 = vmatmul.f32.gmra.mxu0 %v4150
        %v4484 = vpop.f32.mrf.mxu0
        %v4485 = vadd.f32 0.0, %v4484
        %4486 = vmatmul.f32.gmra.mxu0 %v4153
        %v4487 = vpop.f32.mrf.mxu0
        %v4488 = vadd.f32 0.0, %v4487
        %4489 = vmatmul.f32.gmra.mxu0 %v4156
        %v4490 = vpop.f32.mrf.mxu0
        %v4491 = vadd.f32 0.0, %v4490
        %4492 = vmatmul.f32.gmra.mxu0 %v4159
        %v4493 = vpop.f32.mrf.mxu0
        %v4494 = vadd.f32 0.0, %v4493
        %4495 = vmatmul.f32.gmra.mxu0 %v4162
        %v4496 = vpop.f32.mrf.mxu0
        %v4497 = vadd.f32 0.0, %v4496
        %4498 = vmatmul.f32.gmra.mxu0 %v4165
        %v4499 = vpop.f32.mrf.mxu0
        %v4500 = vadd.f32 0.0, %v4499
        %4501 = vmatmul.f32.gmra.mxu0 %v4168
        %v4502 = vpop.f32.mrf.mxu0
        %v4503 = vadd.f32 0.0, %v4502
        %4504 = vmatmul.f32.gmra.mxu0 %v4171
        %v4505 = vpop.f32.mrf.mxu0
        %v4506 = vadd.f32 0.0, %v4505
        %4507 = vmatmul.f32.gmra.mxu0 %v4174
        %v4508 = vpop.f32.mrf.mxu0
        %v4509 = vadd.f32 0.0, %v4508
        %4510 = vmatmul.f32.gmra.mxu0 %v4177
        %v4511 = vpop.f32.mrf.mxu0
        %v4512 = vadd.f32 0.0, %v4511
        %4513 = vmatmul.f32.gmra.mxu0 %v4180
        %v4514 = vpop.f32.mrf.mxu0
        %v4515 = vadd.f32 0.0, %v4514
        %4516 = vmatmul.f32.gmra.mxu0 %v4183
        %v4517 = vpop.f32.mrf.mxu0
        %v4518 = vadd.f32 0.0, %v4517
        %4519 = vmatmul.f32.gmra.mxu0 %v4186
        %v4520 = vpop.f32.mrf.mxu0
        %v4521 = vadd.f32 0.0, %v4520
        %4522 = vmatmul.f32.gmra.mxu0 %v4189
        %v4523 = vpop.f32.mrf.mxu0
        %v4524 = vadd.f32 0.0, %v4523
        %4525 = vmatmul.f32.gmra.mxu0 %v4192
        %v4526 = vpop.f32.mrf.mxu0
        %v4527 = vadd.f32 0.0, %v4526
        %4528 = vmatmul.f32.gmra.mxu0 %v4195
        %v4529 = vpop.f32.mrf.mxu0
        %v4530 = vadd.f32 0.0, %v4529
        %4531 = vmatmul.f32.gmra.mxu0 %v4198
        %v4532 = vpop.f32.mrf.mxu0
        %v4533 = vadd.f32 0.0, %v4532
        %4534 = vmatmul.f32.gmra.mxu0 %v4201
        %v4535 = vpop.f32.mrf.mxu0
        %v4536 = vadd.f32 0.0, %v4535
        %4537 = vmatmul.f32.gmra.mxu0 %v4204
        %v4538 = vpop.f32.mrf.mxu0
        %v4539 = vadd.f32 0.0, %v4538
        %4540 = vmatmul.f32.gmra.mxu0 %v4207
        %v4541 = vpop.f32.mrf.mxu0
        %v4542 = vadd.f32 0.0, %v4541
        %4543 = vmatmul.f32.gmra.mxu0 %v4210
        %v4544 = vpop.f32.mrf.mxu0
        %v4545 = vadd.f32 0.0, %v4544
        %4546 = vmatmul.f32.gmra.mxu0 %v4213
        %v4547 = vpop.f32.mrf.mxu0
        %v4548 = vadd.f32 0.0, %v4547
        %4549 = vmatmul.f32.gmra.mxu0 %v4216
        %v4550 = vpop.f32.mrf.mxu0
        %v4551 = vadd.f32 0.0, %v4550
        %4552 = vmatmul.f32.gmra.mxu0 %v4219
        %v4553 = vpop.f32.mrf.mxu0
        %v4554 = vadd.f32 0.0, %v4553
        %4555 = vmatmul.f32.gmra.mxu0 %v4222
        %v4556 = vpop.f32.mrf.mxu0
        %v4557 = vadd.f32 0.0, %v4556
        %4558 = vmatmul.f32.gmra.mxu0 %v4225
        %v4559 = vpop.f32.mrf.mxu0
        %v4560 = vadd.f32 0.0, %v4559
        %4561 = vmatmul.f32.gmra.mxu0 %v4228
        %v4562 = vpop.f32.mrf.mxu0
        %v4563 = vadd.f32 0.0, %v4562
        %4564 = vmatmul.f32.gmra.mxu0 %v4231
        %v4565 = vpop.f32.mrf.mxu0
        %v4566 = vadd.f32 0.0, %v4565
        %4567 = vmatmul.f32.gmra.mxu0 %v4234
        %v4568 = vpop.f32.mrf.mxu0
        %v4569 = vadd.f32 0.0, %v4568
        %4570 = vmatmul.f32.gmra.mxu0 %v4237
        %v4571 = vpop.f32.mrf.mxu0
        %v4572 = vadd.f32 0.0, %v4571
        %4573 = vmatmul.f32.gmra.mxu0 %v4240
        %v4574 = vpop.f32.mrf.mxu0
        %v4575 = vadd.f32 0.0, %v4574
        %4576 = vmatmul.f32.gmra.mxu0 %v4243
        %v4577 = vpop.f32.mrf.mxu0
        %v4578 = vadd.f32 0.0, %v4577
        %4579 = vmatmul.f32.gmra.mxu0 %v4246
        %v4580 = vpop.f32.mrf.mxu0
        %v4581 = vadd.f32 0.0, %v4580
        %4582 = vmatmul.f32.gmra.mxu0 %v4249
        %v4583 = vpop.f32.mrf.mxu0
        %v4584 = vadd.f32 0.0, %v4583
        %4585 = vmatmul.f32.gmra.mxu0 %v4252
        %v4586 = vpop.f32.mrf.mxu0
        %v4587 = vadd.f32 0.0, %v4586
        %4588 = vmatmul.f32.gmra.mxu0 %v4255
        %v4589 = vpop.f32.mrf.mxu0
        %v4590 = vadd.f32 0.0, %v4589
        %4591 = vdwg.mxu0
        %v4592 = vld [vmem:[#allocation4] sm:$0xff]
        %v4593 = vld [vmem:[#allocation4 + $0x8] sm:$0xff]
        %v4594 = vld [vmem:[#allocation4 + $0x10] sm:$0xff]
        %v4595 = vld [vmem:[#allocation4 + $0x18] sm:$0xff]
        %v4596 = vld [vmem:[#allocation4 + $0x20] sm:$0xff]
        %v4597 = vld [vmem:[#allocation4 + $0x28] sm:$0xff]
        %v4598 = vld [vmem:[#allocation4 + $0x30] sm:$0xff]
        %v4599 = vld [vmem:[#allocation4 + $0x38] sm:$0xff]
        %v4600 = vld [vmem:[#allocation4 + $0x40] sm:$0xff]
        %v4601 = vld [vmem:[#allocation4 + $0x48] sm:$0xff]
        %v4602 = vld [vmem:[#allocation4 + $0x50] sm:$0xff]
        %v4603 = vld [vmem:[#allocation4 + $0x58] sm:$0xff]
        %v4604 = vld [vmem:[#allocation4 + $0x60] sm:$0xff]
        %v4605 = vld [vmem:[#allocation4 + $0x68] sm:$0xff]
        %v4606 = vld [vmem:[#allocation4 + $0x70] sm:$0xff]
        %v4607 = vld [vmem:[#allocation4 + $0x78] sm:$0xff]
        %v4608 = vld [vmem:[#allocation4 + $0x80] sm:$0xff]
        %v4609 = vld [vmem:[#allocation4 + $0x88] sm:$0xff]
        %v4610 = vld [vmem:[#allocation4 + $0x90] sm:$0xff]
        %v4611 = vld [vmem:[#allocation4 + $0x98] sm:$0xff]
        %v4612 = vld [vmem:[#allocation4 + $0xa0] sm:$0xff]
        %v4613 = vld [vmem:[#allocation4 + $0xa8] sm:$0xff]
        %v4614 = vld [vmem:[#allocation4 + $0xb0] sm:$0xff]
        %v4615 = vld [vmem:[#allocation4 + $0xb8] sm:$0xff]
        %v4616 = vld [vmem:[#allocation4 + $0xc0] sm:$0xff]
        %v4617 = vld [vmem:[#allocation4 + $0xc8] sm:$0xff]
        %v4618 = vld [vmem:[#allocation4 + $0xd0] sm:$0xff]
        %v4619 = vld [vmem:[#allocation4 + $0xd8] sm:$0xff]
        %v4620 = vld [vmem:[#allocation4 + $0xe0] sm:$0xff]
        %v4621 = vld [vmem:[#allocation4 + $0xe8] sm:$0xff]
        %v4622 = vld [vmem:[#allocation4 + $0xf0] sm:$0xff]
        %v4623 = vld [vmem:[#allocation4 + $0xf8] sm:$0xff]
        %v4624 = vld [vmem:[#allocation4 + $0x100] sm:$0xff]
        %v4625 = vld [vmem:[#allocation4 + $0x108] sm:$0xff]
        %v4626 = vld [vmem:[#allocation4 + $0x110] sm:$0xff]
        %v4627 = vld [vmem:[#allocation4 + $0x118] sm:$0xff]
        %v4628 = vld [vmem:[#allocation4 + $0x120] sm:$0xff]
        %v4629 = vld [vmem:[#allocation4 + $0x128] sm:$0xff]
        %v4630 = vld [vmem:[#allocation4 + $0x130] sm:$0xff]
        %v4631 = vld [vmem:[#allocation4 + $0x138] sm:$0xff]
        %v4632 = vld [vmem:[#allocation4 + $0x140] sm:$0xff]
        %v4633 = vld [vmem:[#allocation4 + $0x148] sm:$0xff]
        %v4634 = vld [vmem:[#allocation4 + $0x150] sm:$0xff]
        %v4635 = vld [vmem:[#allocation4 + $0x158] sm:$0xff]
        %v4636 = vld [vmem:[#allocation4 + $0x160] sm:$0xff]
        %v4637 = vld [vmem:[#allocation4 + $0x168] sm:$0xff]
        %v4638 = vld [vmem:[#allocation4 + $0x170] sm:$0xff]
        %v4639 = vld [vmem:[#allocation4 + $0x178] sm:$0xff]
        %v4640 = vld [vmem:[#allocation4 + $0x180] sm:$0xff]
        %v4641 = vld [vmem:[#allocation4 + $0x188] sm:$0xff]
        %v4642 = vld [vmem:[#allocation4 + $0x190] sm:$0xff]
        %v4643 = vld [vmem:[#allocation4 + $0x198] sm:$0xff]
        %v4644 = vld [vmem:[#allocation4 + $0x1a0] sm:$0xff]
        %v4645 = vld [vmem:[#allocation4 + $0x1a8] sm:$0xff]
        %v4646 = vld [vmem:[#allocation4 + $0x1b0] sm:$0xff]
        %v4647 = vld [vmem:[#allocation4 + $0x1b8] sm:$0xff]
        %v4648 = vld [vmem:[#allocation4 + $0x1c0] sm:$0xff]
        %v4649 = vld [vmem:[#allocation4 + $0x1c8] sm:$0xff]
        %v4650 = vld [vmem:[#allocation4 + $0x1d0] sm:$0xff]
        %v4651 = vld [vmem:[#allocation4 + $0x1d8] sm:$0xff]
        %v4652 = vld [vmem:[#allocation4 + $0x1e0] sm:$0xff]
        %v4653 = vld [vmem:[#allocation4 + $0x1e8] sm:$0xff]
        %v4654 = vld [vmem:[#allocation4 + $0x1f0] sm:$0xff]
        %v4655 = vld [vmem:[#allocation4 + $0x1f8] sm:$0xff]
        %v4656 = vld [vmem:[#allocation4 + $0x200] sm:$0xff]
        %v4657 = vld [vmem:[#allocation4 + $0x208] sm:$0xff]
        %v4658 = vld [vmem:[#allocation4 + $0x210] sm:$0xff]
        %v4659 = vld [vmem:[#allocation4 + $0x218] sm:$0xff]
        %v4660 = vld [vmem:[#allocation4 + $0x220] sm:$0xff]
        %v4661 = vld [vmem:[#allocation4 + $0x228] sm:$0xff]
        %v4662 = vld [vmem:[#allocation4 + $0x230] sm:$0xff]
        %v4663 = vld [vmem:[#allocation4 + $0x238] sm:$0xff]
        %v4664 = vld [vmem:[#allocation4 + $0x240] sm:$0xff]
        %v4665 = vld [vmem:[#allocation4 + $0x248] sm:$0xff]
        %v4666 = vld [vmem:[#allocation4 + $0x250] sm:$0xff]
        %v4667 = vld [vmem:[#allocation4 + $0x258] sm:$0xff]
        %v4668 = vld [vmem:[#allocation4 + $0x260] sm:$0xff]
        %v4669 = vld [vmem:[#allocation4 + $0x268] sm:$0xff]
        %v4670 = vld [vmem:[#allocation4 + $0x270] sm:$0xff]
        %v4671 = vld [vmem:[#allocation4 + $0x278] sm:$0xff]
        %v4672 = vld [vmem:[#allocation4 + $0x280] sm:$0xff]
        %v4673 = vld [vmem:[#allocation4 + $0x288] sm:$0xff]
        %v4674 = vld [vmem:[#allocation4 + $0x290] sm:$0xff]
        %v4675 = vld [vmem:[#allocation4 + $0x298] sm:$0xff]
        %v4676 = vld [vmem:[#allocation4 + $0x2a0] sm:$0xff]
        %v4677 = vld [vmem:[#allocation4 + $0x2a8] sm:$0xff]
        %v4678 = vld [vmem:[#allocation4 + $0x2b0] sm:$0xff]
        %v4679 = vld [vmem:[#allocation4 + $0x2b8] sm:$0xff]
        %v4680 = vld [vmem:[#allocation4 + $0x2c0] sm:$0xff]
        %v4681 = vld [vmem:[#allocation4 + $0x2c8] sm:$0xff]
        %v4682 = vld [vmem:[#allocation4 + $0x2d0] sm:$0xff]
        %v4683 = vld [vmem:[#allocation4 + $0x2d8] sm:$0xff]
        %v4684 = vld [vmem:[#allocation4 + $0x2e0] sm:$0xff]
        %v4685 = vld [vmem:[#allocation4 + $0x2e8] sm:$0xff]
        %v4686 = vld [vmem:[#allocation4 + $0x2f0] sm:$0xff]
        %v4687 = vld [vmem:[#allocation4 + $0x2f8] sm:$0xff]
        %v4688 = vld [vmem:[#allocation4 + $0x300] sm:$0xff]
        %v4689 = vld [vmem:[#allocation4 + $0x308] sm:$0xff]
        %v4690 = vld [vmem:[#allocation4 + $0x310] sm:$0xff]
        %v4691 = vld [vmem:[#allocation4 + $0x318] sm:$0xff]
        %v4692 = vld [vmem:[#allocation4 + $0x320] sm:$0xff]
        %v4693 = vld [vmem:[#allocation4 + $0x328] sm:$0xff]
        %v4694 = vld [vmem:[#allocation4 + $0x330] sm:$0xff]
        %v4695 = vld [vmem:[#allocation4 + $0x338] sm:$0xff]
        %v4696 = vld [vmem:[#allocation4 + $0x340] sm:$0xff]
        %v4697 = vadd.f32 %v4592, %v4278
        %v4698 = vadd.f32 %v4593, %v4281
        %v4699 = vadd.f32 %v4594, %v4284
        %v4700 = vadd.f32 %v4595, %v4287
        %v4701 = vadd.f32 %v4596, %v4290
        %v4702 = vadd.f32 %v4597, %v4293
        %v4703 = vadd.f32 %v4598, %v4296
        %v4704 = vadd.f32 %v4599, %v4299
        %v4705 = vadd.f32 %v4600, %v4302
        %v4706 = vadd.f32 %v4601, %v4305
        %v4707 = vadd.f32 %v4602, %v4308
        %v4708 = vadd.f32 %v4603, %v4311
        %v4709 = vadd.f32 %v4604, %v4314
        %v4710 = vadd.f32 %v4605, %v4317
        %v4711 = vadd.f32 %v4606, %v4320
        %v4712 = vadd.f32 %v4607, %v4323
        %v4713 = vadd.f32 %v4608, %v4326
        %v4714 = vadd.f32 %v4609, %v4329
        %v4715 = vadd.f32 %v4610, %v4332
        %v4716 = vadd.f32 %v4611, %v4335
        %v4717 = vadd.f32 %v4612, %v4338
        %v4718 = vadd.f32 %v4613, %v4341
        %v4719 = vadd.f32 %v4614, %v4344
        %v4720 = vadd.f32 %v4615, %v4347
        %v4721 = vadd.f32 %v4616, %v4350
        %v4722 = vadd.f32 %v4617, %v4353
        %v4723 = vadd.f32 %v4618, %v4356
        %v4724 = vadd.f32 %v4619, %v4359
        %v4725 = vadd.f32 %v4620, %v4362
        %v4726 = vadd.f32 %v4621, %v4365
        %v4727 = vadd.f32 %v4622, %v4368
        %v4728 = vadd.f32 %v4623, %v4371
        %v4729 = vadd.f32 %v4624, %v4374
        %v4730 = vadd.f32 %v4625, %v4377
        %v4731 = vadd.f32 %v4626, %v4380
        %v4732 = vadd.f32 %v4627, %v4383
        %v4733 = vadd.f32 %v4628, %v4386
        %v4734 = vadd.f32 %v4629, %v4389
        %v4735 = vadd.f32 %v4630, %v4392
        %v4736 = vadd.f32 %v4631, %v4395
        %v4737 = vadd.f32 %v4632, %v4398
        %v4738 = vadd.f32 %v4633, %v4401
        %v4739 = vadd.f32 %v4634, %v4404
        %v4740 = vadd.f32 %v4635, %v4407
        %v4741 = vadd.f32 %v4636, %v4410
        %v4742 = vadd.f32 %v4637, %v4413
        %v4743 = vadd.f32 %v4638, %v4416
        %v4744 = vadd.f32 %v4639, %v4419
        %v4745 = vadd.f32 %v4640, %v4422
        %v4746 = vadd.f32 %v4641, %v4425
        %v4747 = vadd.f32 %v4642, %v4428
        %v4748 = vadd.f32 %v4643, %v4431
        %v4749 = vadd.f32 %v4644, %v4434
        %v4750 = vadd.f32 %v4645, %v4437
        %v4751 = vadd.f32 %v4646, %v4440
        %v4752 = vadd.f32 %v4647, %v4443
        %v4753 = vadd.f32 %v4648, %v4446
        %v4754 = vadd.f32 %v4649, %v4449
        %v4755 = vadd.f32 %v4650, %v4452
        %v4756 = vadd.f32 %v4651, %v4455
        %v4757 = vadd.f32 %v4652, %v4458
        %v4758 = vadd.f32 %v4653, %v4461
        %v4759 = vadd.f32 %v4654, %v4464
        %v4760 = vadd.f32 %v4655, %v4467
        %v4761 = vadd.f32 %v4656, %v4470
        %v4762 = vadd.f32 %v4657, %v4473
        %v4763 = vadd.f32 %v4658, %v4476
        %v4764 = vadd.f32 %v4659, %v4479
        %v4765 = vadd.f32 %v4660, %v4482
        %v4766 = vadd.f32 %v4661, %v4485
        %v4767 = vadd.f32 %v4662, %v4488
        %v4768 = vadd.f32 %v4663, %v4491
        %v4769 = vadd.f32 %v4664, %v4494
        %v4770 = vadd.f32 %v4665, %v4497
        %v4771 = vadd.f32 %v4666, %v4500
        %v4772 = vadd.f32 %v4667, %v4503
        %v4773 = vadd.f32 %v4668, %v4506
        %v4774 = vadd.f32 %v4669, %v4509
        %v4775 = vadd.f32 %v4670, %v4512
        %v4776 = vadd.f32 %v4671, %v4515
        %v4777 = vadd.f32 %v4672, %v4518
        %v4778 = vadd.f32 %v4673, %v4521
        %v4779 = vadd.f32 %v4674, %v4524
        %v4780 = vadd.f32 %v4675, %v4527
        %v4781 = vadd.f32 %v4676, %v4530
        %v4782 = vadd.f32 %v4677, %v4533
        %v4783 = vadd.f32 %v4678, %v4536
        %v4784 = vadd.f32 %v4679, %v4539
        %v4785 = vadd.f32 %v4680, %v4542
        %v4786 = vadd.f32 %v4681, %v4545
        %v4787 = vadd.f32 %v4682, %v4548
        %v4788 = vadd.f32 %v4683, %v4551
        %v4789 = vadd.f32 %v4684, %v4554
        %v4790 = vadd.f32 %v4685, %v4557
        %v4791 = vadd.f32 %v4686, %v4560
        %v4792 = vadd.f32 %v4687, %v4563
        %v4793 = vadd.f32 %v4688, %v4566
        %v4794 = vadd.f32 %v4689, %v4569
        %v4795 = vadd.f32 %v4690, %v4572
        %v4796 = vadd.f32 %v4691, %v4575
        %v4797 = vadd.f32 %v4692, %v4578
        %v4798 = vadd.f32 %v4693, %v4581
        %v4799 = vadd.f32 %v4694, %v4584
        %v4800 = vadd.f32 %v4695, %v4587
        %v4801 = vadd.f32 %v4696, %v4590
        %4802 = vst.msk [vmem:[#allocation4] sm:$0xff] %vm2655, %v4697
        %4803 = vst.msk [vmem:[#allocation4 + $0x8] sm:$0xff] %vm2655, %v4698
        %4804 = vst.msk [vmem:[#allocation4 + $0x10] sm:$0xff] %vm2655, %v4699
        %4805 = vst.msk [vmem:[#allocation4 + $0x18] sm:$0xff] %vm2655, %v4700
        %4806 = vst.msk [vmem:[#allocation4 + $0x20] sm:$0xff] %vm2655, %v4701
        %4807 = vst.msk [vmem:[#allocation4 + $0x28] sm:$0xff] %vm2655, %v4702
        %4808 = vst.msk [vmem:[#allocation4 + $0x30] sm:$0xff] %vm2655, %v4703
        %4809 = vst.msk [vmem:[#allocation4 + $0x38] sm:$0xff] %vm2655, %v4704
        %4810 = vst.msk [vmem:[#allocation4 + $0x40] sm:$0xff] %vm2655, %v4705
        %4811 = vst.msk [vmem:[#allocation4 + $0x48] sm:$0xff] %vm2655, %v4706
        %4812 = vst.msk [vmem:[#allocation4 + $0x50] sm:$0xff] %vm2655, %v4707
        %4813 = vst.msk [vmem:[#allocation4 + $0x58] sm:$0xff] %vm2655, %v4708
        %4814 = vst.msk [vmem:[#allocation4 + $0x60] sm:$0xff] %vm2655, %v4709
        %4815 = vst.msk [vmem:[#allocation4 + $0x68] sm:$0xff] %vm2655, %v4710
        %4816 = vst.msk [vmem:[#allocation4 + $0x70] sm:$0xff] %vm2655, %v4711
        %4817 = vst.msk [vmem:[#allocation4 + $0x78] sm:$0xff] %vm2655, %v4712
        %4818 = vst.msk [vmem:[#allocation4 + $0x80] sm:$0xff] %vm2655, %v4713
        %4819 = vst.msk [vmem:[#allocation4 + $0x88] sm:$0xff] %vm2655, %v4714
        %4820 = vst.msk [vmem:[#allocation4 + $0x90] sm:$0xff] %vm2655, %v4715
        %4821 = vst.msk [vmem:[#allocation4 + $0x98] sm:$0xff] %vm2655, %v4716
        %4822 = vst.msk [vmem:[#allocation4 + $0xa0] sm:$0xff] %vm2655, %v4717
        %4823 = vst.msk [vmem:[#allocation4 + $0xa8] sm:$0xff] %vm2655, %v4718
        %4824 = vst.msk [vmem:[#allocation4 + $0xb0] sm:$0xff] %vm2655, %v4719
        %4825 = vst.msk [vmem:[#allocation4 + $0xb8] sm:$0xff] %vm2655, %v4720
        %4826 = vst.msk [vmem:[#allocation4 + $0xc0] sm:$0xff] %vm2655, %v4721
        %4827 = vst.msk [vmem:[#allocation4 + $0xc8] sm:$0xff] %vm2655, %v4722
        %4828 = vst.msk [vmem:[#allocation4 + $0xd0] sm:$0xff] %vm2655, %v4723
        %4829 = vst.msk [vmem:[#allocation4 + $0xd8] sm:$0xff] %vm2655, %v4724
        %4830 = vst.msk [vmem:[#allocation4 + $0xe0] sm:$0xff] %vm2655, %v4725
        %4831 = vst.msk [vmem:[#allocation4 + $0xe8] sm:$0xff] %vm2655, %v4726
        %4832 = vst.msk [vmem:[#allocation4 + $0xf0] sm:$0xff] %vm2655, %v4727
        %4833 = vst.msk [vmem:[#allocation4 + $0xf8] sm:$0xff] %vm2655, %v4728
        %4834 = vst.msk [vmem:[#allocation4 + $0x100] sm:$0xff] %vm2655, %v4729
        %4835 = vst.msk [vmem:[#allocation4 + $0x108] sm:$0xff] %vm2655, %v4730
        %4836 = vst.msk [vmem:[#allocation4 + $0x110] sm:$0xff] %vm2655, %v4731
        %4837 = vst.msk [vmem:[#allocation4 + $0x118] sm:$0xff] %vm2655, %v4732
        %4838 = vst.msk [vmem:[#allocation4 + $0x120] sm:$0xff] %vm2655, %v4733
        %4839 = vst.msk [vmem:[#allocation4 + $0x128] sm:$0xff] %vm2655, %v4734
        %4840 = vst.msk [vmem:[#allocation4 + $0x130] sm:$0xff] %vm2655, %v4735
        %4841 = vst.msk [vmem:[#allocation4 + $0x138] sm:$0xff] %vm2655, %v4736
        %4842 = vst.msk [vmem:[#allocation4 + $0x140] sm:$0xff] %vm2655, %v4737
        %4843 = vst.msk [vmem:[#allocation4 + $0x148] sm:$0xff] %vm2655, %v4738
        %4844 = vst.msk [vmem:[#allocation4 + $0x150] sm:$0xff] %vm2655, %v4739
        %4845 = vst.msk [vmem:[#allocation4 + $0x158] sm:$0xff] %vm2655, %v4740
        %4846 = vst.msk [vmem:[#allocation4 + $0x160] sm:$0xff] %vm2655, %v4741
        %4847 = vst.msk [vmem:[#allocation4 + $0x168] sm:$0xff] %vm2655, %v4742
        %4848 = vst.msk [vmem:[#allocation4 + $0x170] sm:$0xff] %vm2655, %v4743
        %4849 = vst.msk [vmem:[#allocation4 + $0x178] sm:$0xff] %vm2655, %v4744
        %4850 = vst.msk [vmem:[#allocation4 + $0x180] sm:$0xff] %vm2655, %v4745
        %4851 = vst.msk [vmem:[#allocation4 + $0x188] sm:$0xff] %vm2655, %v4746
        %4852 = vst.msk [vmem:[#allocation4 + $0x190] sm:$0xff] %vm2655, %v4747
        %4853 = vst.msk [vmem:[#allocation4 + $0x198] sm:$0xff] %vm2655, %v4748
        %4854 = vst.msk [vmem:[#allocation4 + $0x1a0] sm:$0xff] %vm2655, %v4749
        %4855 = vst.msk [vmem:[#allocation4 + $0x1a8] sm:$0xff] %vm2655, %v4750
        %4856 = vst.msk [vmem:[#allocation4 + $0x1b0] sm:$0xff] %vm2655, %v4751
        %4857 = vst.msk [vmem:[#allocation4 + $0x1b8] sm:$0xff] %vm2655, %v4752
        %4858 = vst.msk [vmem:[#allocation4 + $0x1c0] sm:$0xff] %vm2655, %v4753
        %4859 = vst.msk [vmem:[#allocation4 + $0x1c8] sm:$0xff] %vm2655, %v4754
        %4860 = vst.msk [vmem:[#allocation4 + $0x1d0] sm:$0xff] %vm2655, %v4755
        %4861 = vst.msk [vmem:[#allocation4 + $0x1d8] sm:$0xff] %vm2655, %v4756
        %4862 = vst.msk [vmem:[#allocation4 + $0x1e0] sm:$0xff] %vm2655, %v4757
        %4863 = vst.msk [vmem:[#allocation4 + $0x1e8] sm:$0xff] %vm2655, %v4758
        %4864 = vst.msk [vmem:[#allocation4 + $0x1f0] sm:$0xff] %vm2655, %v4759
        %4865 = vst.msk [vmem:[#allocation4 + $0x1f8] sm:$0xff] %vm2655, %v4760
        %4866 = vst.msk [vmem:[#allocation4 + $0x200] sm:$0xff] %vm2655, %v4761
        %4867 = vst.msk [vmem:[#allocation4 + $0x208] sm:$0xff] %vm2655, %v4762
        %4868 = vst.msk [vmem:[#allocation4 + $0x210] sm:$0xff] %vm2655, %v4763
        %4869 = vst.msk [vmem:[#allocation4 + $0x218] sm:$0xff] %vm2655, %v4764
        %4870 = vst.msk [vmem:[#allocation4 + $0x220] sm:$0xff] %vm2655, %v4765
        %4871 = vst.msk [vmem:[#allocation4 + $0x228] sm:$0xff] %vm2655, %v4766
        %4872 = vst.msk [vmem:[#allocation4 + $0x230] sm:$0xff] %vm2655, %v4767
        %4873 = vst.msk [vmem:[#allocation4 + $0x238] sm:$0xff] %vm2655, %v4768
        %4874 = vst.msk [vmem:[#allocation4 + $0x240] sm:$0xff] %vm2655, %v4769
        %4875 = vst.msk [vmem:[#allocation4 + $0x248] sm:$0xff] %vm2655, %v4770
        %4876 = vst.msk [vmem:[#allocation4 + $0x250] sm:$0xff] %vm2655, %v4771
        %4877 = vst.msk [vmem:[#allocation4 + $0x258] sm:$0xff] %vm2655, %v4772
        %4878 = vst.msk [vmem:[#allocation4 + $0x260] sm:$0xff] %vm2655, %v4773
        %4879 = vst.msk [vmem:[#allocation4 + $0x268] sm:$0xff] %vm2655, %v4774
        %4880 = vst.msk [vmem:[#allocation4 + $0x270] sm:$0xff] %vm2655, %v4775
        %4881 = vst.msk [vmem:[#allocation4 + $0x278] sm:$0xff] %vm2655, %v4776
        %4882 = vst.msk [vmem:[#allocation4 + $0x280] sm:$0xff] %vm2655, %v4777
        %4883 = vst.msk [vmem:[#allocation4 + $0x288] sm:$0xff] %vm2655, %v4778
        %4884 = vst.msk [vmem:[#allocation4 + $0x290] sm:$0xff] %vm2655, %v4779
        %4885 = vst.msk [vmem:[#allocation4 + $0x298] sm:$0xff] %vm2655, %v4780
        %4886 = vst.msk [vmem:[#allocation4 + $0x2a0] sm:$0xff] %vm2655, %v4781
        %4887 = vst.msk [vmem:[#allocation4 + $0x2a8] sm:$0xff] %vm2655, %v4782
        %4888 = vst.msk [vmem:[#allocation4 + $0x2b0] sm:$0xff] %vm2655, %v4783
        %4889 = vst.msk [vmem:[#allocation4 + $0x2b8] sm:$0xff] %vm2655, %v4784
        %4890 = vst.msk [vmem:[#allocation4 + $0x2c0] sm:$0xff] %vm2655, %v4785
        %4891 = vst.msk [vmem:[#allocation4 + $0x2c8] sm:$0xff] %vm2655, %v4786
        %4892 = vst.msk [vmem:[#allocation4 + $0x2d0] sm:$0xff] %vm2655, %v4787
        %4893 = vst.msk [vmem:[#allocation4 + $0x2d8] sm:$0xff] %vm2655, %v4788
        %4894 = vst.msk [vmem:[#allocation4 + $0x2e0] sm:$0xff] %vm2655, %v4789
        %4895 = vst.msk [vmem:[#allocation4 + $0x2e8] sm:$0xff] %vm2655, %v4790
        %4896 = vst.msk [vmem:[#allocation4 + $0x2f0] sm:$0xff] %vm2655, %v4791
        %4897 = vst.msk [vmem:[#allocation4 + $0x2f8] sm:$0xff] %vm2655, %v4792
        %4898 = vst.msk [vmem:[#allocation4 + $0x300] sm:$0xff] %vm2655, %v4793
        %4899 = vst.msk [vmem:[#allocation4 + $0x308] sm:$0xff] %vm2655, %v4794
        %4900 = vst.msk [vmem:[#allocation4 + $0x310] sm:$0xff] %vm2655, %v4795
        %4901 = vst.msk [vmem:[#allocation4 + $0x318] sm:$0xff] %vm2655, %v4796
        %4902 = vst.msk [vmem:[#allocation4 + $0x320] sm:$0xff] %vm2655, %v4797
        %4903 = vst.msk [vmem:[#allocation4 + $0x328] sm:$0xff] %vm2655, %v4798
        %4904 = vst.msk [vmem:[#allocation4 + $0x330] sm:$0xff] %vm2655, %v4799
        %4905 = vst.msk [vmem:[#allocation4 + $0x338] sm:$0xff] %vm2655, %v4800
        %4906 = vst.msk [vmem:[#allocation4 + $0x340] sm:$0xff] %vm2655, %v4801
        %v4907 = vld [vmem:[#allocation4] sm:$0xff]
        %v4908 = vld [vmem:[#allocation4 + $0x8] sm:$0xff]
        %v4909 = vld [vmem:[#allocation4 + $0x18] sm:$0xff]
        %v4910 = vld [vmem:[#allocation4 + $0x20] sm:$0xff]
        %v4911 = vld [vmem:[#allocation4 + $0x30] sm:$0xff]
        %v4912 = vld [vmem:[#allocation4 + $0x38] sm:$0xff]
        %v4913 = vld [vmem:[#allocation4 + $0x48] sm:$0xff]
        %v4914 = vld [vmem:[#allocation4 + $0x50] sm:$0xff]
        %v4915 = vld [vmem:[#allocation4 + $0x60] sm:$0xff]
        %v4916 = vld [vmem:[#allocation4 + $0x68] sm:$0xff]
        %v4917 = vld [vmem:[#allocation4 + $0x78] sm:$0xff]
        %v4918 = vld [vmem:[#allocation4 + $0x80] sm:$0xff]
        %v4919 = vld [vmem:[#allocation4 + $0x90] sm:$0xff]
        %v4920 = vld [vmem:[#allocation4 + $0x98] sm:$0xff]
        %v4921 = vld [vmem:[#allocation4 + $0xa8] sm:$0xff]
        %v4922 = vld [vmem:[#allocation4 + $0xb0] sm:$0xff]
        %v4923 = vld [vmem:[#allocation4 + $0xc0] sm:$0xff]
        %v4924 = vld [vmem:[#allocation4 + $0xc8] sm:$0xff]
        %v4925 = vld [vmem:[#allocation4 + $0xd8] sm:$0xff]
        %v4926 = vld [vmem:[#allocation4 + $0xe0] sm:$0xff]
        %v4927 = vld [vmem:[#allocation4 + $0xf0] sm:$0xff]
        %v4928 = vld [vmem:[#allocation4 + $0xf8] sm:$0xff]
        %v4929 = vld [vmem:[#allocation4 + $0x108] sm:$0xff]
        %v4930 = vld [vmem:[#allocation4 + $0x110] sm:$0xff]
        %v4931 = vld [vmem:[#allocation4 + $0x120] sm:$0xff]
        %v4932 = vld [vmem:[#allocation4 + $0x128] sm:$0xff]
        %v4933 = vld [vmem:[#allocation4 + $0x138] sm:$0xff]
        %v4934 = vld [vmem:[#allocation4 + $0x140] sm:$0xff]
        %v4935 = vld [vmem:[#allocation4 + $0x150] sm:$0xff]
        %v4936 = vld [vmem:[#allocation4 + $0x158] sm:$0xff]
        %v4937 = vld [vmem:[#allocation4 + $0x168] sm:$0xff]
        %v4938 = vld [vmem:[#allocation4 + $0x170] sm:$0xff]
        %v4939 = vld [vmem:[#allocation4 + $0x1c8] sm:$0xff]
        %v4940 = vld [vmem:[#allocation4 + $0x1d0] sm:$0xff]
        %v4941 = vld [vmem:[#allocation4 + $0x1e0] sm:$0xff]
        %v4942 = vld [vmem:[#allocation4 + $0x1e8] sm:$0xff]
        %v4943 = vld [vmem:[#allocation4 + $0x1f8] sm:$0xff]
        %v4944 = vld [vmem:[#allocation4 + $0x200] sm:$0xff]
        %v4945 = vld [vmem:[#allocation4 + $0x210] sm:$0xff]
        %v4946 = vld [vmem:[#allocation4 + $0x218] sm:$0xff]
        %v4947 = vld [vmem:[#allocation4 + $0x228] sm:$0xff]
        %v4948 = vld [vmem:[#allocation4 + $0x230] sm:$0xff]
        %v4949 = vld [vmem:[#allocation4 + $0x240] sm:$0xff]
        %v4950 = vld [vmem:[#allocation4 + $0x248] sm:$0xff]
        %v4951 = vld [vmem:[#allocation4 + $0x258] sm:$0xff]
        %v4952 = vld [vmem:[#allocation4 + $0x260] sm:$0xff]
        %v4953 = vld [vmem:[#allocation4 + $0x270] sm:$0xff]
        %v4954 = vld [vmem:[#allocation4 + $0x278] sm:$0xff]
        %v4955 = vld [vmem:[#allocation4 + $0x288] sm:$0xff]
        %v4956 = vld [vmem:[#allocation4 + $0x290] sm:$0xff]
        %v4957 = vld [vmem:[#allocation4 + $0x2a0] sm:$0xff]
        %v4958 = vld [vmem:[#allocation4 + $0x2a8] sm:$0xff]
        %v4959 = vld [vmem:[#allocation4 + $0x2b8] sm:$0xff]
        %v4960 = vld [vmem:[#allocation4 + $0x2c0] sm:$0xff]
        %v4961 = vld [vmem:[#allocation4 + $0x2d0] sm:$0xff]
        %v4962 = vld [vmem:[#allocation4 + $0x2d8] sm:$0xff]
        %v4963 = vld [vmem:[#allocation4 + $0x2e8] sm:$0xff]
        %v4964 = vld [vmem:[#allocation4 + $0x2f0] sm:$0xff]
        %v4965 = vld [vmem:[#allocation4 + $0x300] sm:$0xff]
        %v4966 = vld [vmem:[#allocation4 + $0x308] sm:$0xff]
        %v4967 = vld [vmem:[#allocation4 + $0x318] sm:$0xff]
        %v4968 = vld [vmem:[#allocation4 + $0x320] sm:$0xff]
        %v4969 = vld [vmem:[#allocation4 + $0x330] sm:$0xff]
        %v4970 = vld [vmem:[#allocation4 + $0x338] sm:$0xff]
        %v4971 = vld [vmem:[%s2] sm:$0x1]
        %v4973 = vperm.slane %v4971, 0
        %v4975 = vmul.f32 %v4907, %v4973
        %v4976 = vmul.f32 %v4908, %v4973
        %v4977 = vmul.f32 %v4909, %v4973
        %v4978 = vmul.f32 %v4910, %v4973
        %v4979 = vmul.f32 %v4911, %v4973
        %v4980 = vmul.f32 %v4912, %v4973
        %v4981 = vmul.f32 %v4913, %v4973
        %v4982 = vmul.f32 %v4914, %v4973
        %v4983 = vmul.f32 %v4915, %v4973
        %v4984 = vmul.f32 %v4916, %v4973
        %v4985 = vmul.f32 %v4917, %v4973
        %v4986 = vmul.f32 %v4918, %v4973
        %v4987 = vmul.f32 %v4919, %v4973
        %v4988 = vmul.f32 %v4920, %v4973
        %v4989 = vmul.f32 %v4921, %v4973
        %v4990 = vmul.f32 %v4922, %v4973
        %v4991 = vmul.f32 %v4923, %v4973
        %v4992 = vmul.f32 %v4924, %v4973
        %v4993 = vmul.f32 %v4925, %v4973
        %v4994 = vmul.f32 %v4926, %v4973
        %v4995 = vmul.f32 %v4927, %v4973
        %v4996 = vmul.f32 %v4928, %v4973
        %v4997 = vmul.f32 %v4929, %v4973
        %v4998 = vmul.f32 %v4930, %v4973
        %v4999 = vmul.f32 %v4931, %v4973
        %v5000 = vmul.f32 %v4932, %v4973
        %v5001 = vmul.f32 %v4933, %v4973
        %v5002 = vmul.f32 %v4934, %v4973
        %v5003 = vmul.f32 %v4935, %v4973
        %v5004 = vmul.f32 %v4936, %v4973
        %v5005 = vmul.f32 %v4937, %v4973
        %v5006 = vmul.f32 %v4938, %v4973
        %v5007 = vmul.f32 %v4939, %v4973
        %v5008 = vmul.f32 %v4940, %v4973
        %v5009 = vmul.f32 %v4941, %v4973
        %v5010 = vmul.f32 %v4942, %v4973
        %v5011 = vmul.f32 %v4943, %v4973
        %v5012 = vmul.f32 %v4944, %v4973
        %v5013 = vmul.f32 %v4945, %v4973
        %v5014 = vmul.f32 %v4946, %v4973
        %v5015 = vmul.f32 %v4947, %v4973
        %v5016 = vmul.f32 %v4948, %v4973
        %v5017 = vmul.f32 %v4949, %v4973
        %v5018 = vmul.f32 %v4950, %v4973
        %v5019 = vmul.f32 %v4951, %v4973
        %v5020 = vmul.f32 %v4952, %v4973
        %v5021 = vmul.f32 %v4953, %v4973
        %v5022 = vmul.f32 %v4954, %v4973
        %v5023 = vmul.f32 %v4955, %v4973
        %v5024 = vmul.f32 %v4956, %v4973
        %v5025 = vmul.f32 %v4957, %v4973
        %v5026 = vmul.f32 %v4958, %v4973
        %v5027 = vmul.f32 %v4959, %v4973
        %v5028 = vmul.f32 %v4960, %v4973
        %v5029 = vmul.f32 %v4961, %v4973
        %v5030 = vmul.f32 %v4962, %v4973
        %v5031 = vmul.f32 %v4963, %v4973
        %v5032 = vmul.f32 %v4964, %v4973
        %v5033 = vmul.f32 %v4965, %v4973
        %v5034 = vmul.f32 %v4966, %v4973
        %v5035 = vmul.f32 %v4967, %v4973
        %v5036 = vmul.f32 %v4968, %v4973
        %v5037 = vmul.f32 %v4969, %v4973
        %v5038 = vmul.f32 %v4970, %v4973
        %v5039 = vld [vmem:[%s3] sm:$0x1]
        %v5041 = vperm.slane %v5039, 0
        %v5043 = vadd.f32 %v4975, %v5041
        %v5044 = vadd.f32 %v4976, %v5041
        %v5045 = vadd.f32 %v4977, %v5041
        %v5046 = vadd.f32 %v4978, %v5041
        %v5047 = vadd.f32 %v4979, %v5041
        %v5048 = vadd.f32 %v4980, %v5041
        %v5049 = vadd.f32 %v4981, %v5041
        %v5050 = vadd.f32 %v4982, %v5041
        %v5051 = vadd.f32 %v4983, %v5041
        %v5052 = vadd.f32 %v4984, %v5041
        %v5053 = vadd.f32 %v4985, %v5041
        %v5054 = vadd.f32 %v4986, %v5041
        %v5055 = vadd.f32 %v4987, %v5041
        %v5056 = vadd.f32 %v4988, %v5041
        %v5057 = vadd.f32 %v4989, %v5041
        %v5058 = vadd.f32 %v4990, %v5041
        %v5059 = vadd.f32 %v4991, %v5041
        %v5060 = vadd.f32 %v4992, %v5041
        %v5061 = vadd.f32 %v4993, %v5041
        %v5062 = vadd.f32 %v4994, %v5041
        %v5063 = vadd.f32 %v4995, %v5041
        %v5064 = vadd.f32 %v4996, %v5041
        %v5065 = vadd.f32 %v4997, %v5041
        %v5066 = vadd.f32 %v4998, %v5041
        %v5067 = vadd.f32 %v4999, %v5041
        %v5068 = vadd.f32 %v5000, %v5041
        %v5069 = vadd.f32 %v5001, %v5041
        %v5070 = vadd.f32 %v5002, %v5041
        %v5071 = vadd.f32 %v5003, %v5041
        %v5072 = vadd.f32 %v5004, %v5041
        %v5073 = vadd.f32 %v5005, %v5041
        %v5074 = vadd.f32 %v5006, %v5041
        %v5075 = vadd.f32 %v5007, %v5041
        %v5076 = vadd.f32 %v5008, %v5041
        %v5077 = vadd.f32 %v5009, %v5041
        %v5078 = vadd.f32 %v5010, %v5041
        %v5079 = vadd.f32 %v5011, %v5041
        %v5080 = vadd.f32 %v5012, %v5041
        %v5081 = vadd.f32 %v5013, %v5041
        %v5082 = vadd.f32 %v5014, %v5041
        %v5083 = vadd.f32 %v5015, %v5041
        %v5084 = vadd.f32 %v5016, %v5041
        %v5085 = vadd.f32 %v5017, %v5041
        %v5086 = vadd.f32 %v5018, %v5041
        %v5087 = vadd.f32 %v5019, %v5041
        %v5088 = vadd.f32 %v5020, %v5041
        %v5089 = vadd.f32 %v5021, %v5041
        %v5090 = vadd.f32 %v5022, %v5041
        %v5091 = vadd.f32 %v5023, %v5041
        %v5092 = vadd.f32 %v5024, %v5041
        %v5093 = vadd.f32 %v5025, %v5041
        %v5094 = vadd.f32 %v5026, %v5041
        %v5095 = vadd.f32 %v5027, %v5041
        %v5096 = vadd.f32 %v5028, %v5041
        %v5097 = vadd.f32 %v5029, %v5041
        %v5098 = vadd.f32 %v5030, %v5041
        %v5099 = vadd.f32 %v5031, %v5041
        %v5100 = vadd.f32 %v5032, %v5041
        %v5101 = vadd.f32 %v5033, %v5041
        %v5102 = vadd.f32 %v5034, %v5041
        %v5103 = vadd.f32 %v5035, %v5041
        %v5104 = vadd.f32 %v5036, %v5041
        %v5105 = vadd.f32 %v5037, %v5041
        %v5106 = vadd.f32 %v5038, %v5041
        %v5107 = vmax.f32 %v5043, 0.0
        %v5108 = vmax.f32 %v5044, 0.0
        %v5109 = vmax.f32 %v5045, 0.0
        %v5110 = vmax.f32 %v5046, 0.0
        %v5111 = vmax.f32 %v5047, 0.0
        %v5112 = vmax.f32 %v5048, 0.0
        %v5113 = vmax.f32 %v5049, 0.0
        %v5114 = vmax.f32 %v5050, 0.0
        %v5115 = vmax.f32 %v5051, 0.0
        %v5116 = vmax.f32 %v5052, 0.0
        %v5117 = vmax.f32 %v5053, 0.0
        %v5118 = vmax.f32 %v5054, 0.0
        %v5119 = vmax.f32 %v5055, 0.0
        %v5120 = vmax.f32 %v5056, 0.0
        %v5121 = vmax.f32 %v5057, 0.0
        %v5122 = vmax.f32 %v5058, 0.0
        %v5123 = vmax.f32 %v5059, 0.0
        %v5124 = vmax.f32 %v5060, 0.0
        %v5125 = vmax.f32 %v5061, 0.0
        %v5126 = vmax.f32 %v5062, 0.0
        %v5127 = vmax.f32 %v5063, 0.0
        %v5128 = vmax.f32 %v5064, 0.0
        %v5129 = vmax.f32 %v5065, 0.0
        %v5130 = vmax.f32 %v5066, 0.0
        %v5131 = vmax.f32 %v5067, 0.0
        %v5132 = vmax.f32 %v5068, 0.0
        %v5133 = vmax.f32 %v5069, 0.0
        %v5134 = vmax.f32 %v5070, 0.0
        %v5135 = vmax.f32 %v5071, 0.0
        %v5136 = vmax.f32 %v5072, 0.0
        %v5137 = vmax.f32 %v5073, 0.0
        %v5138 = vmax.f32 %v5074, 0.0
        %v5139 = vmax.f32 %v5075, 0.0
        %v5140 = vmax.f32 %v5076, 0.0
        %v5141 = vmax.f32 %v5077, 0.0
        %v5142 = vmax.f32 %v5078, 0.0
        %v5143 = vmax.f32 %v5079, 0.0
        %v5144 = vmax.f32 %v5080, 0.0
        %v5145 = vmax.f32 %v5081, 0.0
        %v5146 = vmax.f32 %v5082, 0.0
        %v5147 = vmax.f32 %v5083, 0.0
        %v5148 = vmax.f32 %v5084, 0.0
        %v5149 = vmax.f32 %v5085, 0.0
        %v5150 = vmax.f32 %v5086, 0.0
        %v5151 = vmax.f32 %v5087, 0.0
        %v5152 = vmax.f32 %v5088, 0.0
        %v5153 = vmax.f32 %v5089, 0.0
        %v5154 = vmax.f32 %v5090, 0.0
        %v5155 = vmax.f32 %v5091, 0.0
        %v5156 = vmax.f32 %v5092, 0.0
        %v5157 = vmax.f32 %v5093, 0.0
        %v5158 = vmax.f32 %v5094, 0.0
        %v5159 = vmax.f32 %v5095, 0.0
        %v5160 = vmax.f32 %v5096, 0.0
        %v5161 = vmax.f32 %v5097, 0.0
        %v5162 = vmax.f32 %v5098, 0.0
        %v5163 = vmax.f32 %v5099, 0.0
        %v5164 = vmax.f32 %v5100, 0.0
        %v5165 = vmax.f32 %v5101, 0.0
        %v5166 = vmax.f32 %v5102, 0.0
        %v5167 = vmax.f32 %v5103, 0.0
        %v5168 = vmax.f32 %v5104, 0.0
        %v5169 = vmax.f32 %v5105, 0.0
        %v5170 = vmax.f32 %v5106, 0.0
        %v5171 = vsel %vm2655, %v5107, -inf
        %v5172 = vsel %vm2655, %v5109, -inf
        %v5173 = vmax.f32 %v5171, %v5172
        %v5174 = vsel %vm2655, %v5108, -inf
        %v5175 = vsel %vm2655, %v5110, -inf
        %v5176 = vmax.f32 %v5174, %v5175
        %v5177 = vsel %vm2655, %v5111, -inf
        %v5178 = vsel %vm2655, %v5113, -inf
        %v5179 = vmax.f32 %v5177, %v5178
        %v5180 = vsel %vm2655, %v5112, -inf
        %v5181 = vsel %vm2655, %v5114, -inf
        %v5182 = vmax.f32 %v5180, %v5181
        %v5183 = vsel %vm2655, %v5115, -inf
        %v5184 = vsel %vm2655, %v5117, -inf
        %v5185 = vmax.f32 %v5183, %v5184
        %v5186 = vsel %vm2655, %v5116, -inf
        %v5187 = vsel %vm2655, %v5118, -inf
        %v5188 = vmax.f32 %v5186, %v5187
        %v5189 = vsel %vm2655, %v5119, -inf
        %v5190 = vsel %vm2655, %v5121, -inf
        %v5191 = vmax.f32 %v5189, %v5190
        %v5192 = vsel %vm2655, %v5120, -inf
        %v5193 = vsel %vm2655, %v5122, -inf
        %v5194 = vmax.f32 %v5192, %v5193
        %v5195 = vsel %vm2655, %v5123, -inf
        %v5196 = vsel %vm2655, %v5125, -inf
        %v5197 = vmax.f32 %v5195, %v5196
        %v5198 = vsel %vm2655, %v5124, -inf
        %v5199 = vsel %vm2655, %v5126, -inf
        %v5200 = vmax.f32 %v5198, %v5199
        %v5201 = vsel %vm2655, %v5127, -inf
        %v5202 = vsel %vm2655, %v5129, -inf
        %v5203 = vmax.f32 %v5201, %v5202
        %v5204 = vsel %vm2655, %v5128, -inf
        %v5205 = vsel %vm2655, %v5130, -inf
        %v5206 = vmax.f32 %v5204, %v5205
        %v5207 = vsel %vm2655, %v5131, -inf
        %v5208 = vsel %vm2655, %v5133, -inf
        %v5209 = vmax.f32 %v5207, %v5208
        %v5210 = vsel %vm2655, %v5132, -inf
        %v5211 = vsel %vm2655, %v5134, -inf
        %v5212 = vmax.f32 %v5210, %v5211
        %v5213 = vsel %vm2655, %v5135, -inf
        %v5214 = vsel %vm2655, %v5137, -inf
        %v5215 = vmax.f32 %v5213, %v5214
        %v5216 = vsel %vm2655, %v5136, -inf
        %v5217 = vsel %vm2655, %v5138, -inf
        %v5218 = vmax.f32 %v5216, %v5217
        %v5235 = vrot.slane %v5173, 2
        %v5236 = vrot.slane %v5173, 4
        %v5237 = vrot.slane %v5173, 6
        %v5238 = vrot.slane %v5176, 2
        %v5239 = vrot.slane %v5176, 4
        %v5240 = vrot.slane %v5176, 6
        %v5241 = vrot.slane %v5179, 2
        %v5242 = vrot.slane %v5179, 4
        %v5243 = vrot.slane %v5179, 6
        %v5244 = vrot.slane %v5182, 2
        %v5245 = vrot.slane %v5182, 4
        %v5246 = vrot.slane %v5182, 6
        %v5247 = vrot.slane %v5185, 2
        %v5248 = vrot.slane %v5185, 4
        %v5249 = vrot.slane %v5185, 6
        %v5250 = vrot.slane %v5188, 2
        %v5251 = vrot.slane %v5188, 4
        %v5252 = vrot.slane %v5188, 6
        %v5253 = vrot.slane %v5191, 2
        %v5254 = vrot.slane %v5191, 4
        %v5255 = vrot.slane %v5191, 6
        %v5256 = vrot.slane %v5194, 2
        %v5257 = vrot.slane %v5194, 4
        %v5258 = vrot.slane %v5194, 6
        %v5259 = vrot.slane %v5197, 2
        %v5260 = vrot.slane %v5197, 4
        %v5261 = vrot.slane %v5197, 6
        %v5262 = vrot.slane %v5200, 2
        %v5263 = vrot.slane %v5200, 4
        %v5264 = vrot.slane %v5200, 6
        %v5265 = vrot.slane %v5203, 2
        %v5266 = vrot.slane %v5203, 4
        %v5267 = vrot.slane %v5203, 6
        %v5268 = vrot.slane %v5206, 2
        %v5269 = vrot.slane %v5206, 4
        %v5270 = vrot.slane %v5206, 6
        %v5271 = vrot.slane %v5209, 2
        %v5272 = vrot.slane %v5209, 4
        %v5273 = vrot.slane %v5209, 6
        %v5274 = vrot.slane %v5212, 2
        %v5275 = vrot.slane %v5212, 4
        %v5276 = vrot.slane %v5212, 6
        %v5277 = vrot.slane %v5215, 2
        %v5278 = vrot.slane %v5215, 4
        %v5279 = vrot.slane %v5215, 6
        %v5280 = vrot.slane %v5218, 2
        %v5281 = vrot.slane %v5218, 4
        %v5282 = vrot.slane %v5218, 6
        %vm5331 = vcmask 254976
        %v5332 = vsel %vm5331, %v5173, -inf
        %v5333 = vrot.slane %v5332, 4
        %v5334 = vmax.f32 %v5332, %v5333
        %v5335 = vrot.slane %v5334, 2
        %v5336 = vmax.f32 %v5334, %v5335
        %v5337 = vrot.slane %v5336, 1
        %v5338 = vmax.f32 %v5336, %v5337
        %v5339 = vsel %vm5331, %v5235, -inf
        %v5340 = vrot.slane %v5339, 4
        %v5341 = vmax.f32 %v5339, %v5340
        %v5342 = vrot.slane %v5341, 2
        %v5343 = vmax.f32 %v5341, %v5342
        %v5344 = vrot.slane %v5343, 1
        %v5345 = vmax.f32 %v5343, %v5344
        %v5346 = vsel %vm5331, %v5236, -inf
        %v5347 = vrot.slane %v5346, 4
        %v5348 = vmax.f32 %v5346, %v5347
        %v5349 = vrot.slane %v5348, 2
        %v5350 = vmax.f32 %v5348, %v5349
        %v5351 = vrot.slane %v5350, 1
        %v5352 = vmax.f32 %v5350, %v5351
        %v5353 = vsel %vm5331, %v5237, -inf
        %v5354 = vrot.slane %v5353, 4
        %v5355 = vmax.f32 %v5353, %v5354
        %v5356 = vrot.slane %v5355, 2
        %v5357 = vmax.f32 %v5355, %v5356
        %v5358 = vrot.slane %v5357, 1
        %v5359 = vmax.f32 %v5357, %v5358
        %v5360 = vsel %vm5331, %v5176, -inf
        %v5361 = vrot.slane %v5360, 4
        %v5362 = vmax.f32 %v5360, %v5361
        %v5363 = vrot.slane %v5362, 2
        %v5364 = vmax.f32 %v5362, %v5363
        %v5365 = vrot.slane %v5364, 1
        %v5366 = vmax.f32 %v5364, %v5365
        %v5367 = vsel %vm5331, %v5238, -inf
        %v5368 = vrot.slane %v5367, 4
        %v5369 = vmax.f32 %v5367, %v5368
        %v5370 = vrot.slane %v5369, 2
        %v5371 = vmax.f32 %v5369, %v5370
        %v5372 = vrot.slane %v5371, 1
        %v5373 = vmax.f32 %v5371, %v5372
        %v5374 = vsel %vm5331, %v5239, -inf
        %v5375 = vrot.slane %v5374, 4
        %v5376 = vmax.f32 %v5374, %v5375
        %v5377 = vrot.slane %v5376, 2
        %v5378 = vmax.f32 %v5376, %v5377
        %v5379 = vrot.slane %v5378, 1
        %v5380 = vmax.f32 %v5378, %v5379
        %v5381 = vsel %vm5331, %v5240, -inf
        %v5382 = vrot.slane %v5381, 4
        %v5383 = vmax.f32 %v5381, %v5382
        %v5384 = vrot.slane %v5383, 2
        %v5385 = vmax.f32 %v5383, %v5384
        %v5386 = vrot.slane %v5385, 1
        %v5387 = vmax.f32 %v5385, %v5386
        %v5388 = vsel %vm5331, %v5179, -inf
        %v5389 = vrot.slane %v5388, 4
        %v5390 = vmax.f32 %v5388, %v5389
        %v5391 = vrot.slane %v5390, 2
        %v5392 = vmax.f32 %v5390, %v5391
        %v5393 = vrot.slane %v5392, 1
        %v5394 = vmax.f32 %v5392, %v5393
        %v5395 = vsel %vm5331, %v5241, -inf
        %v5396 = vrot.slane %v5395, 4
        %v5397 = vmax.f32 %v5395, %v5396
        %v5398 = vrot.slane %v5397, 2
        %v5399 = vmax.f32 %v5397, %v5398
        %v5400 = vrot.slane %v5399, 1
        %v5401 = vmax.f32 %v5399, %v5400
        %v5402 = vsel %vm5331, %v5242, -inf
        %v5403 = vrot.slane %v5402, 4
        %v5404 = vmax.f32 %v5402, %v5403
        %v5405 = vrot.slane %v5404, 2
        %v5406 = vmax.f32 %v5404, %v5405
        %v5407 = vrot.slane %v5406, 1
        %v5408 = vmax.f32 %v5406, %v5407
        %v5409 = vsel %vm5331, %v5243, -inf
        %v5410 = vrot.slane %v5409, 4
        %v5411 = vmax.f32 %v5409, %v5410
        %v5412 = vrot.slane %v5411, 2
        %v5413 = vmax.f32 %v5411, %v5412
        %v5414 = vrot.slane %v5413, 1
        %v5415 = vmax.f32 %v5413, %v5414
        %v5416 = vsel %vm5331, %v5182, -inf
        %v5417 = vrot.slane %v5416, 4
        %v5418 = vmax.f32 %v5416, %v5417
        %v5419 = vrot.slane %v5418, 2
        %v5420 = vmax.f32 %v5418, %v5419
        %v5421 = vrot.slane %v5420, 1
        %v5422 = vmax.f32 %v5420, %v5421
        %v5423 = vsel %vm5331, %v5244, -inf
        %v5424 = vrot.slane %v5423, 4
        %v5425 = vmax.f32 %v5423, %v5424
        %v5426 = vrot.slane %v5425, 2
        %v5427 = vmax.f32 %v5425, %v5426
        %v5428 = vrot.slane %v5427, 1
        %v5429 = vmax.f32 %v5427, %v5428
        %v5430 = vsel %vm5331, %v5245, -inf
        %v5431 = vrot.slane %v5430, 4
        %v5432 = vmax.f32 %v5430, %v5431
        %v5433 = vrot.slane %v5432, 2
        %v5434 = vmax.f32 %v5432, %v5433
        %v5435 = vrot.slane %v5434, 1
        %v5436 = vmax.f32 %v5434, %v5435
        %v5437 = vsel %vm5331, %v5246, -inf
        %v5438 = vrot.slane %v5437, 4
        %v5439 = vmax.f32 %v5437, %v5438
        %v5440 = vrot.slane %v5439, 2
        %v5441 = vmax.f32 %v5439, %v5440
        %v5442 = vrot.slane %v5441, 1
        %v5443 = vmax.f32 %v5441, %v5442
        %v5444 = vsel %vm5331, %v5185, -inf
        %v5445 = vrot.slane %v5444, 4
        %v5446 = vmax.f32 %v5444, %v5445
        %v5447 = vrot.slane %v5446, 2
        %v5448 = vmax.f32 %v5446, %v5447
        %v5449 = vrot.slane %v5448, 1
        %v5450 = vmax.f32 %v5448, %v5449
        %v5451 = vsel %vm5331, %v5247, -inf
        %v5452 = vrot.slane %v5451, 4
        %v5453 = vmax.f32 %v5451, %v5452
        %v5454 = vrot.slane %v5453, 2
        %v5455 = vmax.f32 %v5453, %v5454
        %v5456 = vrot.slane %v5455, 1
        %v5457 = vmax.f32 %v5455, %v5456
        %v5458 = vsel %vm5331, %v5248, -inf
        %v5459 = vrot.slane %v5458, 4
        %v5460 = vmax.f32 %v5458, %v5459
        %v5461 = vrot.slane %v5460, 2
        %v5462 = vmax.f32 %v5460, %v5461
        %v5463 = vrot.slane %v5462, 1
        %v5464 = vmax.f32 %v5462, %v5463
        %v5465 = vsel %vm5331, %v5249, -inf
        %v5466 = vrot.slane %v5465, 4
        %v5467 = vmax.f32 %v5465, %v5466
        %v5468 = vrot.slane %v5467, 2
        %v5469 = vmax.f32 %v5467, %v5468
        %v5470 = vrot.slane %v5469, 1
        %v5471 = vmax.f32 %v5469, %v5470
        %v5472 = vsel %vm5331, %v5188, -inf
        %v5473 = vrot.slane %v5472, 4
        %v5474 = vmax.f32 %v5472, %v5473
        %v5475 = vrot.slane %v5474, 2
        %v5476 = vmax.f32 %v5474, %v5475
        %v5477 = vrot.slane %v5476, 1
        %v5478 = vmax.f32 %v5476, %v5477
        %v5479 = vsel %vm5331, %v5250, -inf
        %v5480 = vrot.slane %v5479, 4
        %v5481 = vmax.f32 %v5479, %v5480
        %v5482 = vrot.slane %v5481, 2
        %v5483 = vmax.f32 %v5481, %v5482
        %v5484 = vrot.slane %v5483, 1
        %v5485 = vmax.f32 %v5483, %v5484
        %v5486 = vsel %vm5331, %v5251, -inf
        %v5487 = vrot.slane %v5486, 4
        %v5488 = vmax.f32 %v5486, %v5487
        %v5489 = vrot.slane %v5488, 2
        %v5490 = vmax.f32 %v5488, %v5489
        %v5491 = vrot.slane %v5490, 1
        %v5492 = vmax.f32 %v5490, %v5491
        %v5493 = vsel %vm5331, %v5252, -inf
        %v5494 = vrot.slane %v5493, 4
        %v5495 = vmax.f32 %v5493, %v5494
        %v5496 = vrot.slane %v5495, 2
        %v5497 = vmax.f32 %v5495, %v5496
        %v5498 = vrot.slane %v5497, 1
        %v5499 = vmax.f32 %v5497, %v5498
        %v5500 = vsel %vm5331, %v5191, -inf
        %v5501 = vrot.slane %v5500, 4
        %v5502 = vmax.f32 %v5500, %v5501
        %v5503 = vrot.slane %v5502, 2
        %v5504 = vmax.f32 %v5502, %v5503
        %v5505 = vrot.slane %v5504, 1
        %v5506 = vmax.f32 %v5504, %v5505
        %v5507 = vsel %vm5331, %v5253, -inf
        %v5508 = vrot.slane %v5507, 4
        %v5509 = vmax.f32 %v5507, %v5508
        %v5510 = vrot.slane %v5509, 2
        %v5511 = vmax.f32 %v5509, %v5510
        %v5512 = vrot.slane %v5511, 1
        %v5513 = vmax.f32 %v5511, %v5512
        %v5514 = vsel %vm5331, %v5254, -inf
        %v5515 = vrot.slane %v5514, 4
        %v5516 = vmax.f32 %v5514, %v5515
        %v5517 = vrot.slane %v5516, 2
        %v5518 = vmax.f32 %v5516, %v5517
        %v5519 = vrot.slane %v5518, 1
        %v5520 = vmax.f32 %v5518, %v5519
        %v5521 = vsel %vm5331, %v5255, -inf
        %v5522 = vrot.slane %v5521, 4
        %v5523 = vmax.f32 %v5521, %v5522
        %v5524 = vrot.slane %v5523, 2
        %v5525 = vmax.f32 %v5523, %v5524
        %v5526 = vrot.slane %v5525, 1
        %v5527 = vmax.f32 %v5525, %v5526
        %v5528 = vsel %vm5331, %v5194, -inf
        %v5529 = vrot.slane %v5528, 4
        %v5530 = vmax.f32 %v5528, %v5529
        %v5531 = vrot.slane %v5530, 2
        %v5532 = vmax.f32 %v5530, %v5531
        %v5533 = vrot.slane %v5532, 1
        %v5534 = vmax.f32 %v5532, %v5533
        %v5535 = vsel %vm5331, %v5256, -inf
        %v5536 = vrot.slane %v5535, 4
        %v5537 = vmax.f32 %v5535, %v5536
        %v5538 = vrot.slane %v5537, 2
        %v5539 = vmax.f32 %v5537, %v5538
        %v5540 = vrot.slane %v5539, 1
        %v5541 = vmax.f32 %v5539, %v5540
        %v5542 = vsel %vm5331, %v5257, -inf
        %v5543 = vrot.slane %v5542, 4
        %v5544 = vmax.f32 %v5542, %v5543
        %v5545 = vrot.slane %v5544, 2
        %v5546 = vmax.f32 %v5544, %v5545
        %v5547 = vrot.slane %v5546, 1
        %v5548 = vmax.f32 %v5546, %v5547
        %v5549 = vsel %vm5331, %v5258, -inf
        %v5550 = vrot.slane %v5549, 4
        %v5551 = vmax.f32 %v5549, %v5550
        %v5552 = vrot.slane %v5551, 2
        %v5553 = vmax.f32 %v5551, %v5552
        %v5554 = vrot.slane %v5553, 1
        %v5555 = vmax.f32 %v5553, %v5554
        %v5556 = vsel %vm5331, %v5197, -inf
        %v5557 = vrot.slane %v5556, 4
        %v5558 = vmax.f32 %v5556, %v5557
        %v5559 = vrot.slane %v5558, 2
        %v5560 = vmax.f32 %v5558, %v5559
        %v5561 = vrot.slane %v5560, 1
        %v5562 = vmax.f32 %v5560, %v5561
        %v5563 = vsel %vm5331, %v5259, -inf
        %v5564 = vrot.slane %v5563, 4
        %v5565 = vmax.f32 %v5563, %v5564
        %v5566 = vrot.slane %v5565, 2
        %v5567 = vmax.f32 %v5565, %v5566
        %v5568 = vrot.slane %v5567, 1
        %v5569 = vmax.f32 %v5567, %v5568
        %v5570 = vsel %vm5331, %v5260, -inf
        %v5571 = vrot.slane %v5570, 4
        %v5572 = vmax.f32 %v5570, %v5571
        %v5573 = vrot.slane %v5572, 2
        %v5574 = vmax.f32 %v5572, %v5573
        %v5575 = vrot.slane %v5574, 1
        %v5576 = vmax.f32 %v5574, %v5575
        %v5577 = vsel %vm5331, %v5261, -inf
        %v5578 = vrot.slane %v5577, 4
        %v5579 = vmax.f32 %v5577, %v5578
        %v5580 = vrot.slane %v5579, 2
        %v5581 = vmax.f32 %v5579, %v5580
        %v5582 = vrot.slane %v5581, 1
        %v5583 = vmax.f32 %v5581, %v5582
        %v5584 = vsel %vm5331, %v5200, -inf
        %v5585 = vrot.slane %v5584, 4
        %v5586 = vmax.f32 %v5584, %v5585
        %v5587 = vrot.slane %v5586, 2
        %v5588 = vmax.f32 %v5586, %v5587
        %v5589 = vrot.slane %v5588, 1
        %v5590 = vmax.f32 %v5588, %v5589
        %v5591 = vsel %vm5331, %v5262, -inf
        %v5592 = vrot.slane %v5591, 4
        %v5593 = vmax.f32 %v5591, %v5592
        %v5594 = vrot.slane %v5593, 2
        %v5595 = vmax.f32 %v5593, %v5594
        %v5596 = vrot.slane %v5595, 1
        %v5597 = vmax.f32 %v5595, %v5596
        %v5598 = vsel %vm5331, %v5263, -inf
        %v5599 = vrot.slane %v5598, 4
        %v5600 = vmax.f32 %v5598, %v5599
        %v5601 = vrot.slane %v5600, 2
        %v5602 = vmax.f32 %v5600, %v5601
        %v5603 = vrot.slane %v5602, 1
        %v5604 = vmax.f32 %v5602, %v5603
        %v5605 = vsel %vm5331, %v5264, -inf
        %v5606 = vrot.slane %v5605, 4
        %v5607 = vmax.f32 %v5605, %v5606
        %v5608 = vrot.slane %v5607, 2
        %v5609 = vmax.f32 %v5607, %v5608
        %v5610 = vrot.slane %v5609, 1
        %v5611 = vmax.f32 %v5609, %v5610
        %v5612 = vsel %vm5331, %v5203, -inf
        %v5613 = vrot.slane %v5612, 4
        %v5614 = vmax.f32 %v5612, %v5613
        %v5615 = vrot.slane %v5614, 2
        %v5616 = vmax.f32 %v5614, %v5615
        %v5617 = vrot.slane %v5616, 1
        %v5618 = vmax.f32 %v5616, %v5617
        %v5619 = vsel %vm5331, %v5265, -inf
        %v5620 = vrot.slane %v5619, 4
        %v5621 = vmax.f32 %v5619, %v5620
        %v5622 = vrot.slane %v5621, 2
        %v5623 = vmax.f32 %v5621, %v5622
        %v5624 = vrot.slane %v5623, 1
        %v5625 = vmax.f32 %v5623, %v5624
        %v5626 = vsel %vm5331, %v5266, -inf
        %v5627 = vrot.slane %v5626, 4
        %v5628 = vmax.f32 %v5626, %v5627
        %v5629 = vrot.slane %v5628, 2
        %v5630 = vmax.f32 %v5628, %v5629
        %v5631 = vrot.slane %v5630, 1
        %v5632 = vmax.f32 %v5630, %v5631
        %v5633 = vsel %vm5331, %v5267, -inf
        %v5634 = vrot.slane %v5633, 4
        %v5635 = vmax.f32 %v5633, %v5634
        %v5636 = vrot.slane %v5635, 2
        %v5637 = vmax.f32 %v5635, %v5636
        %v5638 = vrot.slane %v5637, 1
        %v5639 = vmax.f32 %v5637, %v5638
        %v5640 = vsel %vm5331, %v5206, -inf
        %v5641 = vrot.slane %v5640, 4
        %v5642 = vmax.f32 %v5640, %v5641
        %v5643 = vrot.slane %v5642, 2
        %v5644 = vmax.f32 %v5642, %v5643
        %v5645 = vrot.slane %v5644, 1
        %v5646 = vmax.f32 %v5644, %v5645
        %v5647 = vsel %vm5331, %v5268, -inf
        %v5648 = vrot.slane %v5647, 4
        %v5649 = vmax.f32 %v5647, %v5648
        %v5650 = vrot.slane %v5649, 2
        %v5651 = vmax.f32 %v5649, %v5650
        %v5652 = vrot.slane %v5651, 1
        %v5653 = vmax.f32 %v5651, %v5652
        %v5654 = vsel %vm5331, %v5269, -inf
        %v5655 = vrot.slane %v5654, 4
        %v5656 = vmax.f32 %v5654, %v5655
        %v5657 = vrot.slane %v5656, 2
        %v5658 = vmax.f32 %v5656, %v5657
        %v5659 = vrot.slane %v5658, 1
        %v5660 = vmax.f32 %v5658, %v5659
        %v5661 = vsel %vm5331, %v5270, -inf
        %v5662 = vrot.slane %v5661, 4
        %v5663 = vmax.f32 %v5661, %v5662
        %v5664 = vrot.slane %v5663, 2
        %v5665 = vmax.f32 %v5663, %v5664
        %v5666 = vrot.slane %v5665, 1
        %v5667 = vmax.f32 %v5665, %v5666
        %v5668 = vsel %vm5331, %v5209, -inf
        %v5669 = vrot.slane %v5668, 4
        %v5670 = vmax.f32 %v5668, %v5669
        %v5671 = vrot.slane %v5670, 2
        %v5672 = vmax.f32 %v5670, %v5671
        %v5673 = vrot.slane %v5672, 1
        %v5674 = vmax.f32 %v5672, %v5673
        %v5675 = vsel %vm5331, %v5271, -inf
        %v5676 = vrot.slane %v5675, 4
        %v5677 = vmax.f32 %v5675, %v5676
        %v5678 = vrot.slane %v5677, 2
        %v5679 = vmax.f32 %v5677, %v5678
        %v5680 = vrot.slane %v5679, 1
        %v5681 = vmax.f32 %v5679, %v5680
        %v5682 = vsel %vm5331, %v5272, -inf
        %v5683 = vrot.slane %v5682, 4
        %v5684 = vmax.f32 %v5682, %v5683
        %v5685 = vrot.slane %v5684, 2
        %v5686 = vmax.f32 %v5684, %v5685
        %v5687 = vrot.slane %v5686, 1
        %v5688 = vmax.f32 %v5686, %v5687
        %v5689 = vsel %vm5331, %v5273, -inf
        %v5690 = vrot.slane %v5689, 4
        %v5691 = vmax.f32 %v5689, %v5690
        %v5692 = vrot.slane %v5691, 2
        %v5693 = vmax.f32 %v5691, %v5692
        %v5694 = vrot.slane %v5693, 1
        %v5695 = vmax.f32 %v5693, %v5694
        %v5696 = vsel %vm5331, %v5212, -inf
        %v5697 = vrot.slane %v5696, 4
        %v5698 = vmax.f32 %v5696, %v5697
        %v5699 = vrot.slane %v5698, 2
        %v5700 = vmax.f32 %v5698, %v5699
        %v5701 = vrot.slane %v5700, 1
        %v5702 = vmax.f32 %v5700, %v5701
        %v5703 = vsel %vm5331, %v5274, -inf
        %v5704 = vrot.slane %v5703, 4
        %v5705 = vmax.f32 %v5703, %v5704
        %v5706 = vrot.slane %v5705, 2
        %v5707 = vmax.f32 %v5705, %v5706
        %v5708 = vrot.slane %v5707, 1
        %v5709 = vmax.f32 %v5707, %v5708
        %v5710 = vsel %vm5331, %v5275, -inf
        %v5711 = vrot.slane %v5710, 4
        %v5712 = vmax.f32 %v5710, %v5711
        %v5713 = vrot.slane %v5712, 2
        %v5714 = vmax.f32 %v5712, %v5713
        %v5715 = vrot.slane %v5714, 1
        %v5716 = vmax.f32 %v5714, %v5715
        %v5717 = vsel %vm5331, %v5276, -inf
        %v5718 = vrot.slane %v5717, 4
        %v5719 = vmax.f32 %v5717, %v5718
        %v5720 = vrot.slane %v5719, 2
        %v5721 = vmax.f32 %v5719, %v5720
        %v5722 = vrot.slane %v5721, 1
        %v5723 = vmax.f32 %v5721, %v5722
        %v5724 = vsel %vm5331, %v5215, -inf
        %v5725 = vrot.slane %v5724, 4
        %v5726 = vmax.f32 %v5724, %v5725
        %v5727 = vrot.slane %v5726, 2
        %v5728 = vmax.f32 %v5726, %v5727
        %v5729 = vrot.slane %v5728, 1
        %v5730 = vmax.f32 %v5728, %v5729
        %v5731 = vsel %vm5331, %v5277, -inf
        %v5732 = vrot.slane %v5731, 4
        %v5733 = vmax.f32 %v5731, %v5732
        %v5734 = vrot.slane %v5733, 2
        %v5735 = vmax.f32 %v5733, %v5734
        %v5736 = vrot.slane %v5735, 1
        %v5737 = vmax.f32 %v5735, %v5736
        %v5738 = vsel %vm5331, %v5278, -inf
        %v5739 = vrot.slane %v5738, 4
        %v5740 = vmax.f32 %v5738, %v5739
        %v5741 = vrot.slane %v5740, 2
        %v5742 = vmax.f32 %v5740, %v5741
        %v5743 = vrot.slane %v5742, 1
        %v5744 = vmax.f32 %v5742, %v5743
        %v5745 = vsel %vm5331, %v5279, -inf
        %v5746 = vrot.slane %v5745, 4
        %v5747 = vmax.f32 %v5745, %v5746
        %v5748 = vrot.slane %v5747, 2
        %v5749 = vmax.f32 %v5747, %v5748
        %v5750 = vrot.slane %v5749, 1
        %v5751 = vmax.f32 %v5749, %v5750
        %v5752 = vsel %vm5331, %v5218, -inf
        %v5753 = vrot.slane %v5752, 4
        %v5754 = vmax.f32 %v5752, %v5753
        %v5755 = vrot.slane %v5754, 2
        %v5756 = vmax.f32 %v5754, %v5755
        %v5757 = vrot.slane %v5756, 1
        %v5758 = vmax.f32 %v5756, %v5757
        %v5759 = vsel %vm5331, %v5280, -inf
        %v5760 = vrot.slane %v5759, 4
        %v5761 = vmax.f32 %v5759, %v5760
        %v5762 = vrot.slane %v5761, 2
        %v5763 = vmax.f32 %v5761, %v5762
        %v5764 = vrot.slane %v5763, 1
        %v5765 = vmax.f32 %v5763, %v5764
        %v5766 = vsel %vm5331, %v5281, -inf
        %v5767 = vrot.slane %v5766, 4
        %v5768 = vmax.f32 %v5766, %v5767
        %v5769 = vrot.slane %v5768, 2
        %v5770 = vmax.f32 %v5768, %v5769
        %v5771 = vrot.slane %v5770, 1
        %v5772 = vmax.f32 %v5770, %v5771
        %v5773 = vsel %vm5331, %v5282, -inf
        %v5774 = vrot.slane %v5773, 4
        %v5775 = vmax.f32 %v5773, %v5774
        %v5776 = vrot.slane %v5775, 2
        %v5777 = vmax.f32 %v5775, %v5776
        %v5778 = vrot.slane %v5777, 1
        %v5779 = vmax.f32 %v5777, %v5778
        %v5780 = vsel %vm2655, %v5139, -inf
        %v5781 = vsel %vm2655, %v5141, -inf
        %v5782 = vmax.f32 %v5780, %v5781
        %v5783 = vsel %vm2655, %v5140, -inf
        %v5784 = vsel %vm2655, %v5142, -inf
        %v5785 = vmax.f32 %v5783, %v5784
        %v5786 = vsel %vm2655, %v5143, -inf
        %v5787 = vsel %vm2655, %v5145, -inf
        %v5788 = vmax.f32 %v5786, %v5787
        %v5789 = vsel %vm2655, %v5144, -inf
        %v5790 = vsel %vm2655, %v5146, -inf
        %v5791 = vmax.f32 %v5789, %v5790
        %v5792 = vsel %vm2655, %v5147, -inf
        %v5793 = vsel %vm2655, %v5149, -inf
        %v5794 = vmax.f32 %v5792, %v5793
        %v5795 = vsel %vm2655, %v5148, -inf
        %v5796 = vsel %vm2655, %v5150, -inf
        %v5797 = vmax.f32 %v5795, %v5796
        %v5798 = vsel %vm2655, %v5151, -inf
        %v5799 = vsel %vm2655, %v5153, -inf
        %v5800 = vmax.f32 %v5798, %v5799
        %v5801 = vsel %vm2655, %v5152, -inf
        %v5802 = vsel %vm2655, %v5154, -inf
        %v5803 = vmax.f32 %v5801, %v5802
        %v5804 = vsel %vm2655, %v5155, -inf
        %v5805 = vsel %vm2655, %v5157, -inf
        %v5806 = vmax.f32 %v5804, %v5805
        %v5807 = vsel %vm2655, %v5156, -inf
        %v5808 = vsel %vm2655, %v5158, -inf
        %v5809 = vmax.f32 %v5807, %v5808
        %v5810 = vsel %vm2655, %v5159, -inf
        %v5811 = vsel %vm2655, %v5161, -inf
        %v5812 = vmax.f32 %v5810, %v5811
        %v5813 = vsel %vm2655, %v5160, -inf
        %v5814 = vsel %vm2655, %v5162, -inf
        %v5815 = vmax.f32 %v5813, %v5814
        %v5816 = vsel %vm2655, %v5163, -inf
        %v5817 = vsel %vm2655, %v5165, -inf
        %v5818 = vmax.f32 %v5816, %v5817
        %v5819 = vsel %vm2655, %v5164, -inf
        %v5820 = vsel %vm2655, %v5166, -inf
        %v5821 = vmax.f32 %v5819, %v5820
        %v5822 = vsel %vm2655, %v5167, -inf
        %v5823 = vsel %vm2655, %v5169, -inf
        %v5824 = vmax.f32 %v5822, %v5823
        %v5825 = vsel %vm2655, %v5168, -inf
        %v5826 = vsel %vm2655, %v5170, -inf
        %v5827 = vmax.f32 %v5825, %v5826
        %v5844 = vrot.slane %v5782, 2
        %v5845 = vrot.slane %v5782, 4
        %v5846 = vrot.slane %v5782, 6
        %v5847 = vrot.slane %v5785, 2
        %v5848 = vrot.slane %v5785, 4
        %v5849 = vrot.slane %v5785, 6
        %v5850 = vrot.slane %v5788, 2
        %v5851 = vrot.slane %v5788, 4
        %v5852 = vrot.slane %v5788, 6
        %v5853 = vrot.slane %v5791, 2
        %v5854 = vrot.slane %v5791, 4
        %v5855 = vrot.slane %v5791, 6
        %v5856 = vrot.slane %v5794, 2
        %v5857 = vrot.slane %v5794, 4
        %v5858 = vrot.slane %v5794, 6
        %v5859 = vrot.slane %v5797, 2
        %v5860 = vrot.slane %v5797, 4
        %v5861 = vrot.slane %v5797, 6
        %v5862 = vrot.slane %v5800, 2
        %v5863 = vrot.slane %v5800, 4
        %v5864 = vrot.slane %v5800, 6
        %v5865 = vrot.slane %v5803, 2
        %v5866 = vrot.slane %v5803, 4
        %v5867 = vrot.slane %v5803, 6
        %v5868 = vrot.slane %v5806, 2
        %v5869 = vrot.slane %v5806, 4
        %v5870 = vrot.slane %v5806, 6
        %v5871 = vrot.slane %v5809, 2
        %v5872 = vrot.slane %v5809, 4
        %v5873 = vrot.slane %v5809, 6
        %v5874 = vrot.slane %v5812, 2
        %v5875 = vrot.slane %v5812, 4
        %v5876 = vrot.slane %v5812, 6
        %v5877 = vrot.slane %v5815, 2
        %v5878 = vrot.slane %v5815, 4
        %v5879 = vrot.slane %v5815, 6
        %v5880 = vrot.slane %v5818, 2
        %v5881 = vrot.slane %v5818, 4
        %v5882 = vrot.slane %v5818, 6
        %v5883 = vrot.slane %v5821, 2
        %v5884 = vrot.slane %v5821, 4
        %v5885 = vrot.slane %v5821, 6
        %v5886 = vrot.slane %v5824, 2
        %v5887 = vrot.slane %v5824, 4
        %v5888 = vrot.slane %v5824, 6
        %v5889 = vrot.slane %v5827, 2
        %v5890 = vrot.slane %v5827, 4
        %v5891 = vrot.slane %v5827, 6
        %v5940 = vsel %vm5331, %v5782, -inf
        %v5941 = vrot.slane %v5940, 4
        %v5942 = vmax.f32 %v5940, %v5941
        %v5943 = vrot.slane %v5942, 2
        %v5944 = vmax.f32 %v5942, %v5943
        %v5945 = vrot.slane %v5944, 1
        %v5946 = vmax.f32 %v5944, %v5945
        %v5947 = vsel %vm5331, %v5844, -inf
        %v5948 = vrot.slane %v5947, 4
        %v5949 = vmax.f32 %v5947, %v5948
        %v5950 = vrot.slane %v5949, 2
        %v5951 = vmax.f32 %v5949, %v5950
        %v5952 = vrot.slane %v5951, 1
        %v5953 = vmax.f32 %v5951, %v5952
        %v5954 = vsel %vm5331, %v5845, -inf
        %v5955 = vrot.slane %v5954, 4
        %v5956 = vmax.f32 %v5954, %v5955
        %v5957 = vrot.slane %v5956, 2
        %v5958 = vmax.f32 %v5956, %v5957
        %v5959 = vrot.slane %v5958, 1
        %v5960 = vmax.f32 %v5958, %v5959
        %v5961 = vsel %vm5331, %v5846, -inf
        %v5962 = vrot.slane %v5961, 4
        %v5963 = vmax.f32 %v5961, %v5962
        %v5964 = vrot.slane %v5963, 2
        %v5965 = vmax.f32 %v5963, %v5964
        %v5966 = vrot.slane %v5965, 1
        %v5967 = vmax.f32 %v5965, %v5966
        %v5968 = vsel %vm5331, %v5785, -inf
        %v5969 = vrot.slane %v5968, 4
        %v5970 = vmax.f32 %v5968, %v5969
        %v5971 = vrot.slane %v5970, 2
        %v5972 = vmax.f32 %v5970, %v5971
        %v5973 = vrot.slane %v5972, 1
        %v5974 = vmax.f32 %v5972, %v5973
        %v5975 = vsel %vm5331, %v5847, -inf
        %v5976 = vrot.slane %v5975, 4
        %v5977 = vmax.f32 %v5975, %v5976
        %v5978 = vrot.slane %v5977, 2
        %v5979 = vmax.f32 %v5977, %v5978
        %v5980 = vrot.slane %v5979, 1
        %v5981 = vmax.f32 %v5979, %v5980
        %v5982 = vsel %vm5331, %v5848, -inf
        %v5983 = vrot.slane %v5982, 4
        %v5984 = vmax.f32 %v5982, %v5983
        %v5985 = vrot.slane %v5984, 2
        %v5986 = vmax.f32 %v5984, %v5985
        %v5987 = vrot.slane %v5986, 1
        %v5988 = vmax.f32 %v5986, %v5987
        %v5989 = vsel %vm5331, %v5849, -inf
        %v5990 = vrot.slane %v5989, 4
        %v5991 = vmax.f32 %v5989, %v5990
        %v5992 = vrot.slane %v5991, 2
        %v5993 = vmax.f32 %v5991, %v5992
        %v5994 = vrot.slane %v5993, 1
        %v5995 = vmax.f32 %v5993, %v5994
        %v5996 = vsel %vm5331, %v5788, -inf
        %v5997 = vrot.slane %v5996, 4
        %v5998 = vmax.f32 %v5996, %v5997
        %v5999 = vrot.slane %v5998, 2
        %v6000 = vmax.f32 %v5998, %v5999
        %v6001 = vrot.slane %v6000, 1
        %v6002 = vmax.f32 %v6000, %v6001
        %v6003 = vsel %vm5331, %v5850, -inf
        %v6004 = vrot.slane %v6003, 4
        %v6005 = vmax.f32 %v6003, %v6004
        %v6006 = vrot.slane %v6005, 2
        %v6007 = vmax.f32 %v6005, %v6006
        %v6008 = vrot.slane %v6007, 1
        %v6009 = vmax.f32 %v6007, %v6008
        %v6010 = vsel %vm5331, %v5851, -inf
        %v6011 = vrot.slane %v6010, 4
        %v6012 = vmax.f32 %v6010, %v6011
        %v6013 = vrot.slane %v6012, 2
        %v6014 = vmax.f32 %v6012, %v6013
        %v6015 = vrot.slane %v6014, 1
        %v6016 = vmax.f32 %v6014, %v6015
        %v6017 = vsel %vm5331, %v5852, -inf
        %v6018 = vrot.slane %v6017, 4
        %v6019 = vmax.f32 %v6017, %v6018
        %v6020 = vrot.slane %v6019, 2
        %v6021 = vmax.f32 %v6019, %v6020
        %v6022 = vrot.slane %v6021, 1
        %v6023 = vmax.f32 %v6021, %v6022
        %v6024 = vsel %vm5331, %v5791, -inf
        %v6025 = vrot.slane %v6024, 4
        %v6026 = vmax.f32 %v6024, %v6025
        %v6027 = vrot.slane %v6026, 2
        %v6028 = vmax.f32 %v6026, %v6027
        %v6029 = vrot.slane %v6028, 1
        %v6030 = vmax.f32 %v6028, %v6029
        %v6031 = vsel %vm5331, %v5853, -inf
        %v6032 = vrot.slane %v6031, 4
        %v6033 = vmax.f32 %v6031, %v6032
        %v6034 = vrot.slane %v6033, 2
        %v6035 = vmax.f32 %v6033, %v6034
        %v6036 = vrot.slane %v6035, 1
        %v6037 = vmax.f32 %v6035, %v6036
        %v6038 = vsel %vm5331, %v5854, -inf
        %v6039 = vrot.slane %v6038, 4
        %v6040 = vmax.f32 %v6038, %v6039
        %v6041 = vrot.slane %v6040, 2
        %v6042 = vmax.f32 %v6040, %v6041
        %v6043 = vrot.slane %v6042, 1
        %v6044 = vmax.f32 %v6042, %v6043
        %v6045 = vsel %vm5331, %v5855, -inf
        %v6046 = vrot.slane %v6045, 4
        %v6047 = vmax.f32 %v6045, %v6046
        %v6048 = vrot.slane %v6047, 2
        %v6049 = vmax.f32 %v6047, %v6048
        %v6050 = vrot.slane %v6049, 1
        %v6051 = vmax.f32 %v6049, %v6050
        %v6052 = vsel %vm5331, %v5794, -inf
        %v6053 = vrot.slane %v6052, 4
        %v6054 = vmax.f32 %v6052, %v6053
        %v6055 = vrot.slane %v6054, 2
        %v6056 = vmax.f32 %v6054, %v6055
        %v6057 = vrot.slane %v6056, 1
        %v6058 = vmax.f32 %v6056, %v6057
        %v6059 = vsel %vm5331, %v5856, -inf
        %v6060 = vrot.slane %v6059, 4
        %v6061 = vmax.f32 %v6059, %v6060
        %v6062 = vrot.slane %v6061, 2
        %v6063 = vmax.f32 %v6061, %v6062
        %v6064 = vrot.slane %v6063, 1
        %v6065 = vmax.f32 %v6063, %v6064
        %v6066 = vsel %vm5331, %v5857, -inf
        %v6067 = vrot.slane %v6066, 4
        %v6068 = vmax.f32 %v6066, %v6067
        %v6069 = vrot.slane %v6068, 2
        %v6070 = vmax.f32 %v6068, %v6069
        %v6071 = vrot.slane %v6070, 1
        %v6072 = vmax.f32 %v6070, %v6071
        %v6073 = vsel %vm5331, %v5858, -inf
        %v6074 = vrot.slane %v6073, 4
        %v6075 = vmax.f32 %v6073, %v6074
        %v6076 = vrot.slane %v6075, 2
        %v6077 = vmax.f32 %v6075, %v6076
        %v6078 = vrot.slane %v6077, 1
        %v6079 = vmax.f32 %v6077, %v6078
        %v6080 = vsel %vm5331, %v5797, -inf
        %v6081 = vrot.slane %v6080, 4
        %v6082 = vmax.f32 %v6080, %v6081
        %v6083 = vrot.slane %v6082, 2
        %v6084 = vmax.f32 %v6082, %v6083
        %v6085 = vrot.slane %v6084, 1
        %v6086 = vmax.f32 %v6084, %v6085
        %v6087 = vsel %vm5331, %v5859, -inf
        %v6088 = vrot.slane %v6087, 4
        %v6089 = vmax.f32 %v6087, %v6088
        %v6090 = vrot.slane %v6089, 2
        %v6091 = vmax.f32 %v6089, %v6090
        %v6092 = vrot.slane %v6091, 1
        %v6093 = vmax.f32 %v6091, %v6092
        %v6094 = vsel %vm5331, %v5860, -inf
        %v6095 = vrot.slane %v6094, 4
        %v6096 = vmax.f32 %v6094, %v6095
        %v6097 = vrot.slane %v6096, 2
        %v6098 = vmax.f32 %v6096, %v6097
        %v6099 = vrot.slane %v6098, 1
        %v6100 = vmax.f32 %v6098, %v6099
        %v6101 = vsel %vm5331, %v5861, -inf
        %v6102 = vrot.slane %v6101, 4
        %v6103 = vmax.f32 %v6101, %v6102
        %v6104 = vrot.slane %v6103, 2
        %v6105 = vmax.f32 %v6103, %v6104
        %v6106 = vrot.slane %v6105, 1
        %v6107 = vmax.f32 %v6105, %v6106
        %v6108 = vsel %vm5331, %v5800, -inf
        %v6109 = vrot.slane %v6108, 4
        %v6110 = vmax.f32 %v6108, %v6109
        %v6111 = vrot.slane %v6110, 2
        %v6112 = vmax.f32 %v6110, %v6111
        %v6113 = vrot.slane %v6112, 1
        %v6114 = vmax.f32 %v6112, %v6113
        %v6115 = vsel %vm5331, %v5862, -inf
        %v6116 = vrot.slane %v6115, 4
        %v6117 = vmax.f32 %v6115, %v6116
        %v6118 = vrot.slane %v6117, 2
        %v6119 = vmax.f32 %v6117, %v6118
        %v6120 = vrot.slane %v6119, 1
        %v6121 = vmax.f32 %v6119, %v6120
        %v6122 = vsel %vm5331, %v5863, -inf
        %v6123 = vrot.slane %v6122, 4
        %v6124 = vmax.f32 %v6122, %v6123
        %v6125 = vrot.slane %v6124, 2
        %v6126 = vmax.f32 %v6124, %v6125
        %v6127 = vrot.slane %v6126, 1
        %v6128 = vmax.f32 %v6126, %v6127
        %v6129 = vsel %vm5331, %v5864, -inf
        %v6130 = vrot.slane %v6129, 4
        %v6131 = vmax.f32 %v6129, %v6130
        %v6132 = vrot.slane %v6131, 2
        %v6133 = vmax.f32 %v6131, %v6132
        %v6134 = vrot.slane %v6133, 1
        %v6135 = vmax.f32 %v6133, %v6134
        %v6136 = vsel %vm5331, %v5803, -inf
        %v6137 = vrot.slane %v6136, 4
        %v6138 = vmax.f32 %v6136, %v6137
        %v6139 = vrot.slane %v6138, 2
        %v6140 = vmax.f32 %v6138, %v6139
        %v6141 = vrot.slane %v6140, 1
        %v6142 = vmax.f32 %v6140, %v6141
        %v6143 = vsel %vm5331, %v5865, -inf
        %v6144 = vrot.slane %v6143, 4
        %v6145 = vmax.f32 %v6143, %v6144
        %v6146 = vrot.slane %v6145, 2
        %v6147 = vmax.f32 %v6145, %v6146
        %v6148 = vrot.slane %v6147, 1
        %v6149 = vmax.f32 %v6147, %v6148
        %v6150 = vsel %vm5331, %v5866, -inf
        %v6151 = vrot.slane %v6150, 4
        %v6152 = vmax.f32 %v6150, %v6151
        %v6153 = vrot.slane %v6152, 2
        %v6154 = vmax.f32 %v6152, %v6153
        %v6155 = vrot.slane %v6154, 1
        %v6156 = vmax.f32 %v6154, %v6155
        %v6157 = vsel %vm5331, %v5867, -inf
        %v6158 = vrot.slane %v6157, 4
        %v6159 = vmax.f32 %v6157, %v6158
        %v6160 = vrot.slane %v6159, 2
        %v6161 = vmax.f32 %v6159, %v6160
        %v6162 = vrot.slane %v6161, 1
        %v6163 = vmax.f32 %v6161, %v6162
        %v6164 = vsel %vm5331, %v5806, -inf
        %v6165 = vrot.slane %v6164, 4
        %v6166 = vmax.f32 %v6164, %v6165
        %v6167 = vrot.slane %v6166, 2
        %v6168 = vmax.f32 %v6166, %v6167
        %v6169 = vrot.slane %v6168, 1
        %v6170 = vmax.f32 %v6168, %v6169
        %v6171 = vsel %vm5331, %v5868, -inf
        %v6172 = vrot.slane %v6171, 4
        %v6173 = vmax.f32 %v6171, %v6172
        %v6174 = vrot.slane %v6173, 2
        %v6175 = vmax.f32 %v6173, %v6174
        %v6176 = vrot.slane %v6175, 1
        %v6177 = vmax.f32 %v6175, %v6176
        %v6178 = vsel %vm5331, %v5869, -inf
        %v6179 = vrot.slane %v6178, 4
        %v6180 = vmax.f32 %v6178, %v6179
        %v6181 = vrot.slane %v6180, 2
        %v6182 = vmax.f32 %v6180, %v6181
        %v6183 = vrot.slane %v6182, 1
        %v6184 = vmax.f32 %v6182, %v6183
        %v6185 = vsel %vm5331, %v5870, -inf
        %v6186 = vrot.slane %v6185, 4
        %v6187 = vmax.f32 %v6185, %v6186
        %v6188 = vrot.slane %v6187, 2
        %v6189 = vmax.f32 %v6187, %v6188
        %v6190 = vrot.slane %v6189, 1
        %v6191 = vmax.f32 %v6189, %v6190
        %v6192 = vsel %vm5331, %v5809, -inf
        %v6193 = vrot.slane %v6192, 4
        %v6194 = vmax.f32 %v6192, %v6193
        %v6195 = vrot.slane %v6194, 2
        %v6196 = vmax.f32 %v6194, %v6195
        %v6197 = vrot.slane %v6196, 1
        %v6198 = vmax.f32 %v6196, %v6197
        %v6199 = vsel %vm5331, %v5871, -inf
        %v6200 = vrot.slane %v6199, 4
        %v6201 = vmax.f32 %v6199, %v6200
        %v6202 = vrot.slane %v6201, 2
        %v6203 = vmax.f32 %v6201, %v6202
        %v6204 = vrot.slane %v6203, 1
        %v6205 = vmax.f32 %v6203, %v6204
        %v6206 = vsel %vm5331, %v5872, -inf
        %v6207 = vrot.slane %v6206, 4
        %v6208 = vmax.f32 %v6206, %v6207
        %v6209 = vrot.slane %v6208, 2
        %v6210 = vmax.f32 %v6208, %v6209
        %v6211 = vrot.slane %v6210, 1
        %v6212 = vmax.f32 %v6210, %v6211
        %v6213 = vsel %vm5331, %v5873, -inf
        %v6214 = vrot.slane %v6213, 4
        %v6215 = vmax.f32 %v6213, %v6214
        %v6216 = vrot.slane %v6215, 2
        %v6217 = vmax.f32 %v6215, %v6216
        %v6218 = vrot.slane %v6217, 1
        %v6219 = vmax.f32 %v6217, %v6218
        %v6220 = vsel %vm5331, %v5812, -inf
        %v6221 = vrot.slane %v6220, 4
        %v6222 = vmax.f32 %v6220, %v6221
        %v6223 = vrot.slane %v6222, 2
        %v6224 = vmax.f32 %v6222, %v6223
        %v6225 = vrot.slane %v6224, 1
        %v6226 = vmax.f32 %v6224, %v6225
        %v6227 = vsel %vm5331, %v5874, -inf
        %v6228 = vrot.slane %v6227, 4
        %v6229 = vmax.f32 %v6227, %v6228
        %v6230 = vrot.slane %v6229, 2
        %v6231 = vmax.f32 %v6229, %v6230
        %v6232 = vrot.slane %v6231, 1
        %v6233 = vmax.f32 %v6231, %v6232
        %v6234 = vsel %vm5331, %v5875, -inf
        %v6235 = vrot.slane %v6234, 4
        %v6236 = vmax.f32 %v6234, %v6235
        %v6237 = vrot.slane %v6236, 2
        %v6238 = vmax.f32 %v6236, %v6237
        %v6239 = vrot.slane %v6238, 1
        %v6240 = vmax.f32 %v6238, %v6239
        %v6241 = vsel %vm5331, %v5876, -inf
        %v6242 = vrot.slane %v6241, 4
        %v6243 = vmax.f32 %v6241, %v6242
        %v6244 = vrot.slane %v6243, 2
        %v6245 = vmax.f32 %v6243, %v6244
        %v6246 = vrot.slane %v6245, 1
        %v6247 = vmax.f32 %v6245, %v6246
        %v6248 = vsel %vm5331, %v5815, -inf
        %v6249 = vrot.slane %v6248, 4
        %v6250 = vmax.f32 %v6248, %v6249
        %v6251 = vrot.slane %v6250, 2
        %v6252 = vmax.f32 %v6250, %v6251
        %v6253 = vrot.slane %v6252, 1
        %v6254 = vmax.f32 %v6252, %v6253
        %v6255 = vsel %vm5331, %v5877, -inf
        %v6256 = vrot.slane %v6255, 4
        %v6257 = vmax.f32 %v6255, %v6256
        %v6258 = vrot.slane %v6257, 2
        %v6259 = vmax.f32 %v6257, %v6258
        %v6260 = vrot.slane %v6259, 1
        %v6261 = vmax.f32 %v6259, %v6260
        %v6262 = vsel %vm5331, %v5878, -inf
        %v6263 = vrot.slane %v6262, 4
        %v6264 = vmax.f32 %v6262, %v6263
        %v6265 = vrot.slane %v6264, 2
        %v6266 = vmax.f32 %v6264, %v6265
        %v6267 = vrot.slane %v6266, 1
        %v6268 = vmax.f32 %v6266, %v6267
        %v6269 = vsel %vm5331, %v5879, -inf
        %v6270 = vrot.slane %v6269, 4
        %v6271 = vmax.f32 %v6269, %v6270
        %v6272 = vrot.slane %v6271, 2
        %v6273 = vmax.f32 %v6271, %v6272
        %v6274 = vrot.slane %v6273, 1
        %v6275 = vmax.f32 %v6273, %v6274
        %v6276 = vsel %vm5331, %v5818, -inf
        %v6277 = vrot.slane %v6276, 4
        %v6278 = vmax.f32 %v6276, %v6277
        %v6279 = vrot.slane %v6278, 2
        %v6280 = vmax.f32 %v6278, %v6279
        %v6281 = vrot.slane %v6280, 1
        %v6282 = vmax.f32 %v6280, %v6281
        %v6283 = vsel %vm5331, %v5880, -inf
        %v6284 = vrot.slane %v6283, 4
        %v6285 = vmax.f32 %v6283, %v6284
        %v6286 = vrot.slane %v6285, 2
        %v6287 = vmax.f32 %v6285, %v6286
        %v6288 = vrot.slane %v6287, 1
        %v6289 = vmax.f32 %v6287, %v6288
        %v6290 = vsel %vm5331, %v5881, -inf
        %v6291 = vrot.slane %v6290, 4
        %v6292 = vmax.f32 %v6290, %v6291
        %v6293 = vrot.slane %v6292, 2
        %v6294 = vmax.f32 %v6292, %v6293
        %v6295 = vrot.slane %v6294, 1
        %v6296 = vmax.f32 %v6294, %v6295
        %v6297 = vsel %vm5331, %v5882, -inf
        %v6298 = vrot.slane %v6297, 4
        %v6299 = vmax.f32 %v6297, %v6298
        %v6300 = vrot.slane %v6299, 2
        %v6301 = vmax.f32 %v6299, %v6300
        %v6302 = vrot.slane %v6301, 1
        %v6303 = vmax.f32 %v6301, %v6302
        %v6304 = vsel %vm5331, %v5821, -inf
        %v6305 = vrot.slane %v6304, 4
        %v6306 = vmax.f32 %v6304, %v6305
        %v6307 = vrot.slane %v6306, 2
        %v6308 = vmax.f32 %v6306, %v6307
        %v6309 = vrot.slane %v6308, 1
        %v6310 = vmax.f32 %v6308, %v6309
        %v6311 = vsel %vm5331, %v5883, -inf
        %v6312 = vrot.slane %v6311, 4
        %v6313 = vmax.f32 %v6311, %v6312
        %v6314 = vrot.slane %v6313, 2
        %v6315 = vmax.f32 %v6313, %v6314
        %v6316 = vrot.slane %v6315, 1
        %v6317 = vmax.f32 %v6315, %v6316
        %v6318 = vsel %vm5331, %v5884, -inf
        %v6319 = vrot.slane %v6318, 4
        %v6320 = vmax.f32 %v6318, %v6319
        %v6321 = vrot.slane %v6320, 2
        %v6322 = vmax.f32 %v6320, %v6321
        %v6323 = vrot.slane %v6322, 1
        %v6324 = vmax.f32 %v6322, %v6323
        %v6325 = vsel %vm5331, %v5885, -inf
        %v6326 = vrot.slane %v6325, 4
        %v6327 = vmax.f32 %v6325, %v6326
        %v6328 = vrot.slane %v6327, 2
        %v6329 = vmax.f32 %v6327, %v6328
        %v6330 = vrot.slane %v6329, 1
        %v6331 = vmax.f32 %v6329, %v6330
        %v6332 = vsel %vm5331, %v5824, -inf
        %v6333 = vrot.slane %v6332, 4
        %v6334 = vmax.f32 %v6332, %v6333
        %v6335 = vrot.slane %v6334, 2
        %v6336 = vmax.f32 %v6334, %v6335
        %v6337 = vrot.slane %v6336, 1
        %v6338 = vmax.f32 %v6336, %v6337
        %v6339 = vsel %vm5331, %v5886, -inf
        %v6340 = vrot.slane %v6339, 4
        %v6341 = vmax.f32 %v6339, %v6340
        %v6342 = vrot.slane %v6341, 2
        %v6343 = vmax.f32 %v6341, %v6342
        %v6344 = vrot.slane %v6343, 1
        %v6345 = vmax.f32 %v6343, %v6344
        %v6346 = vsel %vm5331, %v5887, -inf
        %v6347 = vrot.slane %v6346, 4
        %v6348 = vmax.f32 %v6346, %v6347
        %v6349 = vrot.slane %v6348, 2
        %v6350 = vmax.f32 %v6348, %v6349
        %v6351 = vrot.slane %v6350, 1
        %v6352 = vmax.f32 %v6350, %v6351
        %v6353 = vsel %vm5331, %v5888, -inf
        %v6354 = vrot.slane %v6353, 4
        %v6355 = vmax.f32 %v6353, %v6354
        %v6356 = vrot.slane %v6355, 2
        %v6357 = vmax.f32 %v6355, %v6356
        %v6358 = vrot.slane %v6357, 1
        %v6359 = vmax.f32 %v6357, %v6358
        %v6360 = vsel %vm5331, %v5827, -inf
        %v6361 = vrot.slane %v6360, 4
        %v6362 = vmax.f32 %v6360, %v6361
        %v6363 = vrot.slane %v6362, 2
        %v6364 = vmax.f32 %v6362, %v6363
        %v6365 = vrot.slane %v6364, 1
        %v6366 = vmax.f32 %v6364, %v6365
        %v6367 = vsel %vm5331, %v5889, -inf
        %v6368 = vrot.slane %v6367, 4
        %v6369 = vmax.f32 %v6367, %v6368
        %v6370 = vrot.slane %v6369, 2
        %v6371 = vmax.f32 %v6369, %v6370
        %v6372 = vrot.slane %v6371, 1
        %v6373 = vmax.f32 %v6371, %v6372
        %v6374 = vsel %vm5331, %v5890, -inf
        %v6375 = vrot.slane %v6374, 4
        %v6376 = vmax.f32 %v6374, %v6375
        %v6377 = vrot.slane %v6376, 2
        %v6378 = vmax.f32 %v6376, %v6377
        %v6379 = vrot.slane %v6378, 1
        %v6380 = vmax.f32 %v6378, %v6379
        %v6381 = vsel %vm5331, %v5891, -inf
        %v6382 = vrot.slane %v6381, 4
        %v6383 = vmax.f32 %v6381, %v6382
        %v6384 = vrot.slane %v6383, 2
        %v6385 = vmax.f32 %v6383, %v6384
        %v6386 = vrot.slane %v6385, 1
        %v6387 = vmax.f32 %v6385, %v6386
        %6388 = vst.msk [vmem:[#allocation5] sm:$0xff] %vm2655, 0.0
        %6389 = vst.msk [vmem:[#allocation5 + $0x8] sm:$0xff] %vm2655, 0.0
        %6390 = vst.msk [vmem:[#allocation5 + $0xb0] sm:$0xff] %vm2655, 0.0
        %6391 = vst.msk [vmem:[#allocation5 + $0xb8] sm:$0xff] %vm2655, 0.0
        %s6392 = scalar_lea.vmem [#allocation5], 144
        %6393 = vst.msk [vmem:[%s6392] sm:$0xff] %vm2655, 0.0
        %6394 = vst.msk [vmem:[%s6392 + $0x8] sm:$0xff] %vm2655, 0.0
        %6395 = vst.msk [vmem:[%s6392 + $0x10] sm:$0xff] %vm2655, 0.0
        %6396 = vst.msk [vmem:[%s6392 + $0x18] sm:$0xff] %vm2655, 0.0
        %6397 = vst.msk [vmem:[%s6392 + $0xb0] sm:$0xff] %vm2655, 0.0
        %6398 = vst.msk [vmem:[%s6392 + $0xb8] sm:$0xff] %vm2655, 0.0
        %6399 = vst.msk [vmem:[%s6392 + $0xc0] sm:$0xff] %vm2655, 0.0
        %6400 = vst.msk [vmem:[%s6392 + $0xc8] sm:$0xff] %vm2655, 0.0
        %s6401 = scalar_lea.vmem [#allocation5], 16
        %vm6402 = vcmask 253952
        %6403 = vst.msk [vmem:[%s6401] sm:$0x1] %vm6402, 0.0
        %6404 = vst.msk [vmem:[%s6401 + $0x10] sm:$0x1] %vm6402, 0.0
        %6405 = vst.msk [vmem:[%s6401 + $0x20] sm:$0x1] %vm6402, 0.0
        %6406 = vst.msk [vmem:[%s6401 + $0x30] sm:$0x1] %vm6402, 0.0
        %6407 = vst.msk [vmem:[%s6401 + $0x40] sm:$0x1] %vm6402, 0.0
        %6408 = vst.msk [vmem:[%s6401 + $0x50] sm:$0x1] %vm6402, 0.0
        %6409 = vst.msk [vmem:[%s6401 + $0x60] sm:$0x1] %vm6402, 0.0
        %6410 = vst.msk [vmem:[%s6401 + $0x70] sm:$0x1] %vm6402, 0.0
        %6411 = vst.msk [vmem:[%s6401 + $0xb0] sm:$0x1] %vm6402, 0.0
        %6412 = vst.msk [vmem:[%s6401 + $0xc0] sm:$0x1] %vm6402, 0.0
        %6413 = vst.msk [vmem:[%s6401 + $0xd0] sm:$0x1] %vm6402, 0.0
        %6414 = vst.msk [vmem:[%s6401 + $0xe0] sm:$0x1] %vm6402, 0.0
        %6415 = vst.msk [vmem:[%s6401 + $0xf0] sm:$0x1] %vm6402, 0.0
        %6416 = vst.msk [vmem:[%s6401 + $0x100] sm:$0x1] %vm6402, 0.0
        %6417 = vst.msk [vmem:[%s6401 + $0x110] sm:$0x1] %vm6402, 0.0
        %6418 = vst.msk [vmem:[%s6401 + $0x120] sm:$0x1] %vm6402, 0.0
        %vm6419 = vcmask 260096
        %6420 = vst.msk [vmem:[%s6401 + $0x9] sm:$0x7f] %vm6419, 0.0
        %6421 = vst.msk [vmem:[%s6401 + $0x19] sm:$0x7f] %vm6419, 0.0
        %6422 = vst.msk [vmem:[%s6401 + $0x29] sm:$0x7f] %vm6419, 0.0
        %6423 = vst.msk [vmem:[%s6401 + $0x39] sm:$0x7f] %vm6419, 0.0
        %6424 = vst.msk [vmem:[%s6401 + $0x49] sm:$0x7f] %vm6419, 0.0
        %6425 = vst.msk [vmem:[%s6401 + $0x59] sm:$0x7f] %vm6419, 0.0
        %6426 = vst.msk [vmem:[%s6401 + $0x69] sm:$0x7f] %vm6419, 0.0
        %6427 = vst.msk [vmem:[%s6401 + $0x79] sm:$0x7f] %vm6419, 0.0
        %6428 = vst.msk [vmem:[%s6401 + $0xb9] sm:$0x7f] %vm6419, 0.0
        %6429 = vst.msk [vmem:[%s6401 + $0xc9] sm:$0x7f] %vm6419, 0.0
        %6430 = vst.msk [vmem:[%s6401 + $0xd9] sm:$0x7f] %vm6419, 0.0
        %6431 = vst.msk [vmem:[%s6401 + $0xe9] sm:$0x7f] %vm6419, 0.0
        %6432 = vst.msk [vmem:[%s6401 + $0xf9] sm:$0x7f] %vm6419, 0.0
        %6433 = vst.msk [vmem:[%s6401 + $0x109] sm:$0x7f] %vm6419, 0.0
        %6434 = vst.msk [vmem:[%s6401 + $0x119] sm:$0x7f] %vm6419, 0.0
        %6435 = vst.msk [vmem:[%s6401 + $0x129] sm:$0x7f] %vm6419, 0.0
        %v6564 = vrot.slane %v5345, 7
        %vm6565 = vcmask 1041409
        %v6566 = vsel %vm6565, %v6564, %v5338
        %v6567 = vrot.slane %v5352, 6
        %vm6568 = vcmask 1042434
        %v6569 = vsel %vm6568, %v6567, %v6566
        %v6570 = vrot.slane %v5359, 5
        %vm6571 = vcmask 1043459
        %v6572 = vsel %vm6571, %v6570, %v6569
        %v6573 = vrot.slane %v5366, 4
        %vm6574 = vcmask 1044484
        %v6575 = vsel %vm6574, %v6573, %v6572
        %v6576 = vrot.slane %v5373, 3
        %vm6577 = vcmask 1045509
        %v6578 = vsel %vm6577, %v6576, %v6575
        %v6579 = vrot.slane %v5380, 2
        %vm6580 = vcmask 1046534
        %v6581 = vsel %vm6580, %v6579, %v6578
        %v6582 = vrot.slane %v5387, 1
        %vm6583 = vcmask 1047559
        %v6584 = vsel %vm6583, %v6582, %v6581
        %v6585 = vrot.slane %v5401, 7
        %v6586 = vsel %vm6565, %v6585, %v5394
        %v6587 = vrot.slane %v5408, 6
        %v6588 = vsel %vm6568, %v6587, %v6586
        %v6589 = vrot.slane %v5415, 5
        %v6590 = vsel %vm6571, %v6589, %v6588
        %v6591 = vrot.slane %v5422, 4
        %v6592 = vsel %vm6574, %v6591, %v6590
        %v6593 = vrot.slane %v5429, 3
        %v6594 = vsel %vm6577, %v6593, %v6592
        %v6595 = vrot.slane %v5436, 2
        %v6596 = vsel %vm6580, %v6595, %v6594
        %v6597 = vrot.slane %v5443, 1
        %v6598 = vsel %vm6583, %v6597, %v6596
        %v6599 = vrot.slane %v5457, 7
        %v6600 = vsel %vm6565, %v6599, %v5450
        %v6601 = vrot.slane %v5464, 6
        %v6602 = vsel %vm6568, %v6601, %v6600
        %v6603 = vrot.slane %v5471, 5
        %v6604 = vsel %vm6571, %v6603, %v6602
        %v6605 = vrot.slane %v5478, 4
        %v6606 = vsel %vm6574, %v6605, %v6604
        %v6607 = vrot.slane %v5485, 3
        %v6608 = vsel %vm6577, %v6607, %v6606
        %v6609 = vrot.slane %v5492, 2
        %v6610 = vsel %vm6580, %v6609, %v6608
        %v6611 = vrot.slane %v5499, 1
        %v6612 = vsel %vm6583, %v6611, %v6610
        %v6613 = vrot.slane %v5513, 7
        %v6614 = vsel %vm6565, %v6613, %v5506
        %v6615 = vrot.slane %v5520, 6
        %v6616 = vsel %vm6568, %v6615, %v6614
        %v6617 = vrot.slane %v5527, 5
        %v6618 = vsel %vm6571, %v6617, %v6616
        %v6619 = vrot.slane %v5534, 4
        %v6620 = vsel %vm6574, %v6619, %v6618
        %v6621 = vrot.slane %v5541, 3
        %v6622 = vsel %vm6577, %v6621, %v6620
        %v6623 = vrot.slane %v5548, 2
        %v6624 = vsel %vm6580, %v6623, %v6622
        %v6625 = vrot.slane %v5555, 1
        %v6626 = vsel %vm6583, %v6625, %v6624
        %v6627 = vrot.slane %v5569, 7
        %v6628 = vsel %vm6565, %v6627, %v5562
        %v6629 = vrot.slane %v5576, 6
        %v6630 = vsel %vm6568, %v6629, %v6628
        %v6631 = vrot.slane %v5583, 5
        %v6632 = vsel %vm6571, %v6631, %v6630
        %v6633 = vrot.slane %v5590, 4
        %v6634 = vsel %vm6574, %v6633, %v6632
        %v6635 = vrot.slane %v5597, 3
        %v6636 = vsel %vm6577, %v6635, %v6634
        %v6637 = vrot.slane %v5604, 2
        %v6638 = vsel %vm6580, %v6637, %v6636
        %v6639 = vrot.slane %v5611, 1
        %v6640 = vsel %vm6583, %v6639, %v6638
        %v6641 = vrot.slane %v5625, 7
        %v6642 = vsel %vm6565, %v6641, %v5618
        %v6643 = vrot.slane %v5632, 6
        %v6644 = vsel %vm6568, %v6643, %v6642
        %v6645 = vrot.slane %v5639, 5
        %v6646 = vsel %vm6571, %v6645, %v6644
        %v6647 = vrot.slane %v5646, 4
        %v6648 = vsel %vm6574, %v6647, %v6646
        %v6649 = vrot.slane %v5653, 3
        %v6650 = vsel %vm6577, %v6649, %v6648
        %v6651 = vrot.slane %v5660, 2
        %v6652 = vsel %vm6580, %v6651, %v6650
        %v6653 = vrot.slane %v5667, 1
        %v6654 = vsel %vm6583, %v6653, %v6652
        %v6655 = vrot.slane %v5681, 7
        %v6656 = vsel %vm6565, %v6655, %v5674
        %v6657 = vrot.slane %v5688, 6
        %v6658 = vsel %vm6568, %v6657, %v6656
        %v6659 = vrot.slane %v5695, 5
        %v6660 = vsel %vm6571, %v6659, %v6658
        %v6661 = vrot.slane %v5702, 4
        %v6662 = vsel %vm6574, %v6661, %v6660
        %v6663 = vrot.slane %v5709, 3
        %v6664 = vsel %vm6577, %v6663, %v6662
        %v6665 = vrot.slane %v5716, 2
        %v6666 = vsel %vm6580, %v6665, %v6664
        %v6667 = vrot.slane %v5723, 1
        %v6668 = vsel %vm6583, %v6667, %v6666
        %v6669 = vrot.slane %v5737, 7
        %v6670 = vsel %vm6565, %v6669, %v5730
        %v6671 = vrot.slane %v5744, 6
        %v6672 = vsel %vm6568, %v6671, %v6670
        %v6673 = vrot.slane %v5751, 5
        %v6674 = vsel %vm6571, %v6673, %v6672
        %v6675 = vrot.slane %v5758, 4
        %v6676 = vsel %vm6574, %v6675, %v6674
        %v6677 = vrot.slane %v5765, 3
        %v6678 = vsel %vm6577, %v6677, %v6676
        %v6679 = vrot.slane %v5772, 2
        %v6680 = vsel %vm6580, %v6679, %v6678
        %v6681 = vrot.slane %v5779, 1
        %v6682 = vsel %vm6583, %v6681, %v6680
        %v6683 = vrot.slane %v5953, 7
        %v6684 = vsel %vm6565, %v6683, %v5946
        %v6685 = vrot.slane %v5960, 6
        %v6686 = vsel %vm6568, %v6685, %v6684
        %v6687 = vrot.slane %v5967, 5
        %v6688 = vsel %vm6571, %v6687, %v6686
        %v6689 = vrot.slane %v5974, 4
        %v6690 = vsel %vm6574, %v6689, %v6688
        %v6691 = vrot.slane %v5981, 3
        %v6692 = vsel %vm6577, %v6691, %v6690
        %v6693 = vrot.slane %v5988, 2
        %v6694 = vsel %vm6580, %v6693, %v6692
        %v6695 = vrot.slane %v5995, 1
        %v6696 = vsel %vm6583, %v6695, %v6694
        %v6697 = vrot.slane %v6009, 7
        %v6698 = vsel %vm6565, %v6697, %v6002
        %v6699 = vrot.slane %v6016, 6
        %v6700 = vsel %vm6568, %v6699, %v6698
        %v6701 = vrot.slane %v6023, 5
        %v6702 = vsel %vm6571, %v6701, %v6700
        %v6703 = vrot.slane %v6030, 4
        %v6704 = vsel %vm6574, %v6703, %v6702
        %v6705 = vrot.slane %v6037, 3
        %v6706 = vsel %vm6577, %v6705, %v6704
        %v6707 = vrot.slane %v6044, 2
        %v6708 = vsel %vm6580, %v6707, %v6706
        %v6709 = vrot.slane %v6051, 1
        %v6710 = vsel %vm6583, %v6709, %v6708
        %v6711 = vrot.slane %v6065, 7
        %v6712 = vsel %vm6565, %v6711, %v6058
        %v6713 = vrot.slane %v6072, 6
        %v6714 = vsel %vm6568, %v6713, %v6712
        %v6715 = vrot.slane %v6079, 5
        %v6716 = vsel %vm6571, %v6715, %v6714
        %v6717 = vrot.slane %v6086, 4
        %v6718 = vsel %vm6574, %v6717, %v6716
        %v6719 = vrot.slane %v6093, 3
        %v6720 = vsel %vm6577, %v6719, %v6718
        %v6721 = vrot.slane %v6100, 2
        %v6722 = vsel %vm6580, %v6721, %v6720
        %v6723 = vrot.slane %v6107, 1
        %v6724 = vsel %vm6583, %v6723, %v6722
        %v6725 = vrot.slane %v6121, 7
        %v6726 = vsel %vm6565, %v6725, %v6114
        %v6727 = vrot.slane %v6128, 6
        %v6728 = vsel %vm6568, %v6727, %v6726
        %v6729 = vrot.slane %v6135, 5
        %v6730 = vsel %vm6571, %v6729, %v6728
        %v6731 = vrot.slane %v6142, 4
        %v6732 = vsel %vm6574, %v6731, %v6730
        %v6733 = vrot.slane %v6149, 3
        %v6734 = vsel %vm6577, %v6733, %v6732
        %v6735 = vrot.slane %v6156, 2
        %v6736 = vsel %vm6580, %v6735, %v6734
        %v6737 = vrot.slane %v6163, 1
        %v6738 = vsel %vm6583, %v6737, %v6736
        %v6739 = vrot.slane %v6177, 7
        %v6740 = vsel %vm6565, %v6739, %v6170
        %v6741 = vrot.slane %v6184, 6
        %v6742 = vsel %vm6568, %v6741, %v6740
        %v6743 = vrot.slane %v6191, 5
        %v6744 = vsel %vm6571, %v6743, %v6742
        %v6745 = vrot.slane %v6198, 4
        %v6746 = vsel %vm6574, %v6745, %v6744
        %v6747 = vrot.slane %v6205, 3
        %v6748 = vsel %vm6577, %v6747, %v6746
        %v6749 = vrot.slane %v6212, 2
        %v6750 = vsel %vm6580, %v6749, %v6748
        %v6751 = vrot.slane %v6219, 1
        %v6752 = vsel %vm6583, %v6751, %v6750
        %v6753 = vrot.slane %v6233, 7
        %v6754 = vsel %vm6565, %v6753, %v6226
        %v6755 = vrot.slane %v6240, 6
        %v6756 = vsel %vm6568, %v6755, %v6754
        %v6757 = vrot.slane %v6247, 5
        %v6758 = vsel %vm6571, %v6757, %v6756
        %v6759 = vrot.slane %v6254, 4
        %v6760 = vsel %vm6574, %v6759, %v6758
        %v6761 = vrot.slane %v6261, 3
        %v6762 = vsel %vm6577, %v6761, %v6760
        %v6763 = vrot.slane %v6268, 2
        %v6764 = vsel %vm6580, %v6763, %v6762
        %v6765 = vrot.slane %v6275, 1
        %v6766 = vsel %vm6583, %v6765, %v6764
        %v6767 = vrot.slane %v6289, 7
        %v6768 = vsel %vm6565, %v6767, %v6282
        %v6769 = vrot.slane %v6296, 6
        %v6770 = vsel %vm6568, %v6769, %v6768
        %v6771 = vrot.slane %v6303, 5
        %v6772 = vsel %vm6571, %v6771, %v6770
        %v6773 = vrot.slane %v6310, 4
        %v6774 = vsel %vm6574, %v6773, %v6772
        %v6775 = vrot.slane %v6317, 3
        %v6776 = vsel %vm6577, %v6775, %v6774
        %v6777 = vrot.slane %v6324, 2
        %v6778 = vsel %vm6580, %v6777, %v6776
        %v6779 = vrot.slane %v6331, 1
        %v6780 = vsel %vm6583, %v6779, %v6778
        %v6781 = vrot.slane %v6345, 7
        %v6782 = vsel %vm6565, %v6781, %v6338
        %v6783 = vrot.slane %v6352, 6
        %v6784 = vsel %vm6568, %v6783, %v6782
        %v6785 = vrot.slane %v6359, 5
        %v6786 = vsel %vm6571, %v6785, %v6784
        %v6787 = vrot.slane %v6366, 4
        %v6788 = vsel %vm6574, %v6787, %v6786
        %v6789 = vrot.slane %v6373, 3
        %v6790 = vsel %vm6577, %v6789, %v6788
        %v6791 = vrot.slane %v6380, 2
        %v6792 = vsel %vm6580, %v6791, %v6790
        %v6793 = vrot.slane %v6387, 1
        %v6794 = vsel %vm6583, %v6793, %v6792
        %6811 = vst.msk [vmem:[%s6401 + $0x1] sm:$0xff] %vm2655, %v6584
        %6812 = vst.msk [vmem:[%s6401 + $0x11] sm:$0xff] %vm2655, %v6598
        %6813 = vst.msk [vmem:[%s6401 + $0x21] sm:$0xff] %vm2655, %v6612
        %6814 = vst.msk [vmem:[%s6401 + $0x31] sm:$0xff] %vm2655, %v6626
        %6815 = vst.msk [vmem:[%s6401 + $0x41] sm:$0xff] %vm2655, %v6640
        %6816 = vst.msk [vmem:[%s6401 + $0x51] sm:$0xff] %vm2655, %v6654
        %6817 = vst.msk [vmem:[%s6401 + $0x61] sm:$0xff] %vm2655, %v6668
        %6818 = vst.msk [vmem:[%s6401 + $0x71] sm:$0xff] %vm2655, %v6682
        %6819 = vst.msk [vmem:[%s6401 + $0xb1] sm:$0xff] %vm2655, %v6696
        %6820 = vst.msk [vmem:[%s6401 + $0xc1] sm:$0xff] %vm2655, %v6710
        %6821 = vst.msk [vmem:[%s6401 + $0xd1] sm:$0xff] %vm2655, %v6724
        %6822 = vst.msk [vmem:[%s6401 + $0xe1] sm:$0xff] %vm2655, %v6738
        %6823 = vst.msk [vmem:[%s6401 + $0xf1] sm:$0xff] %vm2655, %v6752
        %6824 = vst.msk [vmem:[%s6401 + $0x101] sm:$0xff] %vm2655, %v6766
        %6825 = vst.msk [vmem:[%s6401 + $0x111] sm:$0xff] %vm2655, %v6780
        %6826 = vst.msk [vmem:[%s6401 + $0x121] sm:$0xff] %vm2655, %v6794
        %v6827 = vld [vmem:[#allocation5] sm:$0xff]
        %v6828 = vld [vmem:[#allocation5 + $0x8] sm:$0xff]
        %v6829 = vld [vmem:[#allocation5 + $0x10] sm:$0xff]
        %v6830 = vld [vmem:[#allocation5 + $0x18] sm:$0xff]
        %v6831 = vld [vmem:[#allocation5 + $0x20] sm:$0xff]
        %v6832 = vld [vmem:[#allocation5 + $0x28] sm:$0xff]
        %v6833 = vld [vmem:[#allocation5 + $0x30] sm:$0xff]
        %v6834 = vld [vmem:[#allocation5 + $0x38] sm:$0xff]
        %v6835 = vld [vmem:[#allocation5 + $0x40] sm:$0xff]
        %v6836 = vld [vmem:[#allocation5 + $0x48] sm:$0xff]
        %v6837 = vld [vmem:[#allocation5 + $0x50] sm:$0xff]
        %v6838 = vld [vmem:[#allocation5 + $0x58] sm:$0xff]
        %v6839 = vld [vmem:[#allocation5 + $0x60] sm:$0xff]
        %v6840 = vld [vmem:[#allocation5 + $0x68] sm:$0xff]
        %v6841 = vld [vmem:[#allocation5 + $0x70] sm:$0xff]
        %v6842 = vld [vmem:[#allocation5 + $0x78] sm:$0xff]
        %v6843 = vld [vmem:[#allocation5 + $0x80] sm:$0xff]
        %v6844 = vld [vmem:[#allocation5 + $0x88] sm:$0xff]
        %v6845 = vld [vmem:[#allocation5 + $0x90] sm:$0xff]
        %v6846 = vld [vmem:[#allocation5 + $0x98] sm:$0xff]
        %v6847 = vld [vmem:[#allocation5 + $0xa0] sm:$0xff]
        %v6848 = vld [vmem:[#allocation5 + $0xa8] sm:$0xff]
        %v6849 = vld [vmem:[#allocation5 + $0xb0] sm:$0xff]
        %v6850 = vld [vmem:[#allocation5 + $0xb8] sm:$0xff]
        %v6851 = vld [vmem:[#allocation5 + $0xc0] sm:$0xff]
        %v6852 = vld [vmem:[#allocation5 + $0xc8] sm:$0xff]
        %v6853 = vld [vmem:[#allocation5 + $0xd0] sm:$0xff]
        %v6854 = vld [vmem:[#allocation5 + $0xd8] sm:$0xff]
        %v6855 = vld [vmem:[#allocation5 + $0xe0] sm:$0xff]
        %v6856 = vld [vmem:[#allocation5 + $0xe8] sm:$0xff]
        %v6857 = vld [vmem:[#allocation5 + $0xf0] sm:$0xff]
        %v6858 = vld [vmem:[#allocation5 + $0xf8] sm:$0xff]
        %v6859 = vld [vmem:[#allocation5 + $0x100] sm:$0xff]
        %v6860 = vld [vmem:[#allocation5 + $0x108] sm:$0xff]
        %v6861 = vld [vmem:[#allocation5 + $0x110] sm:$0xff]
        %v6862 = vld [vmem:[#allocation5 + $0x118] sm:$0xff]
        %v6863 = vld [vmem:[#allocation5 + $0x120] sm:$0xff]
        %v6864 = vld [vmem:[#allocation5 + $0x128] sm:$0xff]
        %v6865 = vld [vmem:[#allocation5 + $0x130] sm:$0xff]
        %v6866 = vld [vmem:[#allocation5 + $0x138] sm:$0xff]
        %v6867 = vld [vmem:[#allocation5 + $0x140] sm:$0xff]
        %v6868 = vld [vmem:[#allocation5 + $0x148] sm:$0xff]
        %v6869 = vld [vmem:[#allocation5 + $0x150] sm:$0xff]
        %6870 = vst.msk [vmem:[#allocation6] sm:$0xff] %vm2655, %v6827
        %6871 = vst.msk [vmem:[#allocation6 + $0x8] sm:$0xff] %vm2655, %v6828
        %6872 = vst.msk [vmem:[#allocation6 + $0x10] sm:$0xff] %vm2655, %v6829
        %6873 = vst.msk [vmem:[#allocation6 + $0x18] sm:$0xff] %vm2655, %v6830
        %6874 = vst.msk [vmem:[#allocation6 + $0x20] sm:$0xff] %vm2655, %v6831
        %6875 = vst.msk [vmem:[#allocation6 + $0x28] sm:$0xff] %vm2655, %v6832
        %6876 = vst.msk [vmem:[#allocation6 + $0x30] sm:$0xff] %vm2655, %v6833
        %6877 = vst.msk [vmem:[#allocation6 + $0x38] sm:$0xff] %vm2655, %v6834
        %6878 = vst.msk [vmem:[#allocation6 + $0x40] sm:$0xff] %vm2655, %v6835
        %6879 = vst.msk [vmem:[#allocation6 + $0x48] sm:$0xff] %vm2655, %v6836
        %6880 = vst.msk [vmem:[#allocation6 + $0x50] sm:$0xff] %vm2655, %v6837
        %6881 = vst.msk [vmem:[#allocation6 + $0x58] sm:$0xff] %vm2655, %v6838
        %6882 = vst.msk [vmem:[#allocation6 + $0x60] sm:$0xff] %vm2655, %v6839
        %6883 = vst.msk [vmem:[#allocation6 + $0x68] sm:$0xff] %vm2655, %v6840
        %6884 = vst.msk [vmem:[#allocation6 + $0x70] sm:$0xff] %vm2655, %v6841
        %6885 = vst.msk [vmem:[#allocation6 + $0x78] sm:$0xff] %vm2655, %v6842
        %6886 = vst.msk [vmem:[#allocation6 + $0x80] sm:$0xff] %vm2655, %v6843
        %6887 = vst.msk [vmem:[#allocation6 + $0x88] sm:$0xff] %vm2655, %v6844
        %6888 = vst.msk [vmem:[#allocation6 + $0x90] sm:$0xff] %vm2655, %v6845
        %6889 = vst.msk [vmem:[#allocation6 + $0x98] sm:$0xff] %vm2655, %v6846
        %6890 = vst.msk [vmem:[#allocation6 + $0xa0] sm:$0xff] %vm2655, %v6847
        %6891 = vst.msk [vmem:[#allocation6 + $0xa8] sm:$0xff] %vm2655, %v6848
        %6892 = vst.msk [vmem:[#allocation6 + $0xb0] sm:$0xff] %vm2655, %v6849
        %6893 = vst.msk [vmem:[#allocation6 + $0xb8] sm:$0xff] %vm2655, %v6850
        %6894 = vst.msk [vmem:[#allocation6 + $0xc0] sm:$0xff] %vm2655, %v6851
        %6895 = vst.msk [vmem:[#allocation6 + $0xc8] sm:$0xff] %vm2655, %v6852
        %6896 = vst.msk [vmem:[#allocation6 + $0xd0] sm:$0xff] %vm2655, %v6853
        %6897 = vst.msk [vmem:[#allocation6 + $0xd8] sm:$0xff] %vm2655, %v6854
        %6898 = vst.msk [vmem:[#allocation6 + $0xe0] sm:$0xff] %vm2655, %v6855
        %6899 = vst.msk [vmem:[#allocation6 + $0xe8] sm:$0xff] %vm2655, %v6856
        %6900 = vst.msk [vmem:[#allocation6 + $0xf0] sm:$0xff] %vm2655, %v6857
        %6901 = vst.msk [vmem:[#allocation6 + $0xf8] sm:$0xff] %vm2655, %v6858
        %6902 = vst.msk [vmem:[#allocation6 + $0x100] sm:$0xff] %vm2655, %v6859
        %6903 = vst.msk [vmem:[#allocation6 + $0x108] sm:$0xff] %vm2655, %v6860
        %6904 = vst.msk [vmem:[#allocation6 + $0x110] sm:$0xff] %vm2655, %v6861
        %6905 = vst.msk [vmem:[#allocation6 + $0x118] sm:$0xff] %vm2655, %v6862
        %6906 = vst.msk [vmem:[#allocation6 + $0x120] sm:$0xff] %vm2655, %v6863
        %6907 = vst.msk [vmem:[#allocation6 + $0x128] sm:$0xff] %vm2655, %v6864
        %6908 = vst.msk [vmem:[#allocation6 + $0x130] sm:$0xff] %vm2655, %v6865
        %6909 = vst.msk [vmem:[#allocation6 + $0x138] sm:$0xff] %vm2655, %v6866
        %6910 = vst.msk [vmem:[#allocation6 + $0x140] sm:$0xff] %vm2655, %v6867
        %6911 = vst.msk [vmem:[#allocation6 + $0x148] sm:$0xff] %vm2655, %v6868
        %6955 = vrot.lane.b32.xlu0 %v6827, 32
        %v6956 = vpop.permute.xlu0 %6955
        %6957 = vrot.lane.b32.xlu0 %v6828, 32
        %v6958 = vpop.permute.xlu0 %6957
        %6959 = vrot.lane.b32.xlu0 %v6829, 32
        %v6960 = vpop.permute.xlu0 %6959
        %6961 = vrot.lane.b32.xlu0 %v6830, 32
        %v6962 = vpop.permute.xlu0 %6961
        %6963 = vrot.lane.b32.xlu0 %v6831, 32
        %v6964 = vpop.permute.xlu0 %6963
        %6965 = vrot.lane.b32.xlu0 %v6832, 32
        %v6966 = vpop.permute.xlu0 %6965
        %6967 = vrot.lane.b32.xlu0 %v6833, 32
        %v6968 = vpop.permute.xlu0 %6967
        %6969 = vrot.lane.b32.xlu0 %v6834, 32
        %v6970 = vpop.permute.xlu0 %6969
        %6971 = vrot.lane.b32.xlu0 %v6835, 32
        %v6972 = vpop.permute.xlu0 %6971
        %6973 = vrot.lane.b32.xlu0 %v6836, 32
        %v6974 = vpop.permute.xlu0 %6973
        %6975 = vrot.lane.b32.xlu0 %v6837, 32
        %v6976 = vpop.permute.xlu0 %6975
        %6977 = vrot.lane.b32.xlu0 %v6838, 32
        %v6978 = vpop.permute.xlu0 %6977
        %6979 = vrot.lane.b32.xlu0 %v6839, 32
        %v6980 = vpop.permute.xlu0 %6979
        %6981 = vrot.lane.b32.xlu0 %v6840, 32
        %v6982 = vpop.permute.xlu0 %6981
        %6983 = vrot.lane.b32.xlu0 %v6841, 32
        %v6984 = vpop.permute.xlu0 %6983
        %6985 = vrot.lane.b32.xlu0 %v6842, 32
        %v6986 = vpop.permute.xlu0 %6985
        %6987 = vrot.lane.b32.xlu0 %v6843, 32
        %v6988 = vpop.permute.xlu0 %6987
        %6989 = vrot.lane.b32.xlu0 %v6844, 32
        %v6990 = vpop.permute.xlu0 %6989
        %6991 = vrot.lane.b32.xlu0 %v6845, 32
        %v6992 = vpop.permute.xlu0 %6991
        %6993 = vrot.lane.b32.xlu0 %v6846, 32
        %v6994 = vpop.permute.xlu0 %6993
        %6995 = vrot.lane.b32.xlu0 %v6847, 32
        %v6996 = vpop.permute.xlu0 %6995
        %6997 = vrot.lane.b32.xlu0 %v6848, 32
        %v6998 = vpop.permute.xlu0 %6997
        %6999 = vrot.lane.b32.xlu0 %v6849, 32
        %v7000 = vpop.permute.xlu0 %6999
        %7001 = vrot.lane.b32.xlu0 %v6850, 32
        %v7002 = vpop.permute.xlu0 %7001
        %7003 = vrot.lane.b32.xlu0 %v6851, 32
        %v7004 = vpop.permute.xlu0 %7003
        %7005 = vrot.lane.b32.xlu0 %v6852, 32
        %v7006 = vpop.permute.xlu0 %7005
        %7007 = vrot.lane.b32.xlu0 %v6853, 32
        %v7008 = vpop.permute.xlu0 %7007
        %7009 = vrot.lane.b32.xlu0 %v6854, 32
        %v7010 = vpop.permute.xlu0 %7009
        %7011 = vrot.lane.b32.xlu0 %v6855, 32
        %v7012 = vpop.permute.xlu0 %7011
        %7013 = vrot.lane.b32.xlu0 %v6856, 32
        %v7014 = vpop.permute.xlu0 %7013
        %7015 = vrot.lane.b32.xlu0 %v6857, 32
        %v7016 = vpop.permute.xlu0 %7015
        %7017 = vrot.lane.b32.xlu0 %v6858, 32
        %v7018 = vpop.permute.xlu0 %7017
        %7019 = vrot.lane.b32.xlu0 %v6859, 32
        %v7020 = vpop.permute.xlu0 %7019
        %7021 = vrot.lane.b32.xlu0 %v6860, 32
        %v7022 = vpop.permute.xlu0 %7021
        %7023 = vrot.lane.b32.xlu0 %v6861, 32
        %v7024 = vpop.permute.xlu0 %7023
        %7025 = vrot.lane.b32.xlu0 %v6862, 32
        %v7026 = vpop.permute.xlu0 %7025
        %7027 = vrot.lane.b32.xlu0 %v6863, 32
        %v7028 = vpop.permute.xlu0 %7027
        %7029 = vrot.lane.b32.xlu0 %v6864, 32
        %v7030 = vpop.permute.xlu0 %7029
        %7031 = vrot.lane.b32.xlu0 %v6865, 32
        %v7032 = vpop.permute.xlu0 %7031
        %7033 = vrot.lane.b32.xlu0 %v6866, 32
        %v7034 = vpop.permute.xlu0 %7033
        %7035 = vrot.lane.b32.xlu0 %v6867, 32
        %v7036 = vpop.permute.xlu0 %7035
        %7037 = vrot.lane.b32.xlu0 %v6868, 32
        %v7038 = vpop.permute.xlu0 %7037
        %7039 = vrot.lane.b32.xlu0 %v6869, 32
        %v7040 = vpop.permute.xlu0 %7039
        %vm7084 = vcmask 523521
        %7085 = vst.msk [vmem:[#allocation6 - $0x1] sm:$0xfe] %vm7084, %v6956
        %vm7086 = vcmask 523520
        %7087 = vst.msk [vmem:[#allocation6 + $0x7] sm:$0xff] %vm7086, %v6958
        %7088 = vst.msk [vmem:[#allocation6 + $0xf] sm:$0xff] %vm7086, %v6960
        %7089 = vst.msk [vmem:[#allocation6 + $0x17] sm:$0xff] %vm7086, %v6962
        %7090 = vst.msk [vmem:[#allocation6 + $0x1f] sm:$0xff] %vm7086, %v6964
        %7091 = vst.msk [vmem:[#allocation6 + $0x27] sm:$0xff] %vm7086, %v6966
        %7092 = vst.msk [vmem:[#allocation6 + $0x2f] sm:$0xff] %vm7086, %v6968
        %7093 = vst.msk [vmem:[#allocation6 + $0x37] sm:$0xff] %vm7086, %v6970
        %7094 = vst.msk [vmem:[#allocation6 + $0x3f] sm:$0xff] %vm7086, %v6972
        %7095 = vst.msk [vmem:[#allocation6 + $0x47] sm:$0xff] %vm7086, %v6974
        %7096 = vst.msk [vmem:[#allocation6 + $0x4f] sm:$0xff] %vm7086, %v6976
        %7097 = vst.msk [vmem:[#allocation6 + $0x57] sm:$0xff] %vm7086, %v6978
        %7098 = vst.msk [vmem:[#allocation6 + $0x5f] sm:$0xff] %vm7086, %v6980
        %7099 = vst.msk [vmem:[#allocation6 + $0x67] sm:$0xff] %vm7086, %v6982
        %7100 = vst.msk [vmem:[#allocation6 + $0x6f] sm:$0xff] %vm7086, %v6984
        %7101 = vst.msk [vmem:[#allocation6 + $0x77] sm:$0xff] %vm7086, %v6986
        %7102 = vst.msk [vmem:[#allocation6 + $0x7f] sm:$0xff] %vm7086, %v6988
        %7103 = vst.msk [vmem:[#allocation6 + $0x87] sm:$0xff] %vm7086, %v6990
        %7104 = vst.msk [vmem:[#allocation6 + $0x8f] sm:$0xff] %vm7086, %v6992
        %7105 = vst.msk [vmem:[#allocation6 + $0x97] sm:$0xff] %vm7086, %v6994
        %7106 = vst.msk [vmem:[#allocation6 + $0x9f] sm:$0xff] %vm7086, %v6996
        %7107 = vst.msk [vmem:[#allocation6 + $0xa7] sm:$0xff] %vm7086, %v6998
        %7108 = vst.msk [vmem:[#allocation6 + $0xaf] sm:$0xff] %vm7086, %v7000
        %7109 = vst.msk [vmem:[#allocation6 + $0xb7] sm:$0xff] %vm7086, %v7002
        %7110 = vst.msk [vmem:[#allocation6 + $0xbf] sm:$0xff] %vm7086, %v7004
        %7111 = vst.msk [vmem:[#allocation6 + $0xc7] sm:$0xff] %vm7086, %v7006
        %7112 = vst.msk [vmem:[#allocation6 + $0xcf] sm:$0xff] %vm7086, %v7008
        %7113 = vst.msk [vmem:[#allocation6 + $0xd7] sm:$0xff] %vm7086, %v7010
        %7114 = vst.msk [vmem:[#allocation6 + $0xdf] sm:$0xff] %vm7086, %v7012
        %7115 = vst.msk [vmem:[#allocation6 + $0xe7] sm:$0xff] %vm7086, %v7014
        %7116 = vst.msk [vmem:[#allocation6 + $0xef] sm:$0xff] %vm7086, %v7016
        %7117 = vst.msk [vmem:[#allocation6 + $0xf7] sm:$0xff] %vm7086, %v7018
        %7118 = vst.msk [vmem:[#allocation6 + $0xff] sm:$0xff] %vm7086, %v7020
        %7119 = vst.msk [vmem:[#allocation6 + $0x107] sm:$0xff] %vm7086, %v7022
        %7120 = vst.msk [vmem:[#allocation6 + $0x10f] sm:$0xff] %vm7086, %v7024
        %7121 = vst.msk [vmem:[#allocation6 + $0x117] sm:$0xff] %vm7086, %v7026
        %7122 = vst.msk [vmem:[#allocation6 + $0x11f] sm:$0xff] %vm7086, %v7028
        %7123 = vst.msk [vmem:[#allocation6 + $0x127] sm:$0xff] %vm7086, %v7030
        %7124 = vst.msk [vmem:[#allocation6 + $0x12f] sm:$0xff] %vm7086, %v7032
        %7125 = vst.msk [vmem:[#allocation6 + $0x137] sm:$0xff] %vm7086, %v7034
        %7126 = vst.msk [vmem:[#allocation6 + $0x13f] sm:$0xff] %vm7086, %v7036
        %7127 = vst.msk [vmem:[#allocation6 + $0x147] sm:$0xff] %vm7086, %v7038
        %vm7128 = vcmask 516352
        %7129 = vst.msk [vmem:[#allocation6 + $0x14f] sm:$0x1] %vm7128, %v7040
        %7130 = vrot.lane.b32.xlu0 %v6827, 64
        %v7131 = vpop.permute.xlu0 %7130
        %7132 = vrot.lane.b32.xlu0 %v6828, 64
        %v7133 = vpop.permute.xlu0 %7132
        %7134 = vrot.lane.b32.xlu0 %v6829, 64
        %v7135 = vpop.permute.xlu0 %7134
        %7136 = vrot.lane.b32.xlu0 %v6830, 64
        %v7137 = vpop.permute.xlu0 %7136
        %7138 = vrot.lane.b32.xlu0 %v6831, 64
        %v7139 = vpop.permute.xlu0 %7138
        %7140 = vrot.lane.b32.xlu0 %v6832, 64
        %v7141 = vpop.permute.xlu0 %7140
        %7142 = vrot.lane.b32.xlu0 %v6833, 64
        %v7143 = vpop.permute.xlu0 %7142
        %7144 = vrot.lane.b32.xlu0 %v6834, 64
        %v7145 = vpop.permute.xlu0 %7144
        %7146 = vrot.lane.b32.xlu0 %v6835, 64
        %v7147 = vpop.permute.xlu0 %7146
        %7148 = vrot.lane.b32.xlu0 %v6836, 64
        %v7149 = vpop.permute.xlu0 %7148
        %7150 = vrot.lane.b32.xlu0 %v6837, 64
        %v7151 = vpop.permute.xlu0 %7150
        %7152 = vrot.lane.b32.xlu0 %v6838, 64
        %v7153 = vpop.permute.xlu0 %7152
        %7154 = vrot.lane.b32.xlu0 %v6839, 64
        %v7155 = vpop.permute.xlu0 %7154
        %7156 = vrot.lane.b32.xlu0 %v6840, 64
        %v7157 = vpop.permute.xlu0 %7156
        %7158 = vrot.lane.b32.xlu0 %v6841, 64
        %v7159 = vpop.permute.xlu0 %7158
        %7160 = vrot.lane.b32.xlu0 %v6842, 64
        %v7161 = vpop.permute.xlu0 %7160
        %7162 = vrot.lane.b32.xlu0 %v6843, 64
        %v7163 = vpop.permute.xlu0 %7162
        %7164 = vrot.lane.b32.xlu0 %v6844, 64
        %v7165 = vpop.permute.xlu0 %7164
        %7166 = vrot.lane.b32.xlu0 %v6845, 64
        %v7167 = vpop.permute.xlu0 %7166
        %7168 = vrot.lane.b32.xlu0 %v6846, 64
        %v7169 = vpop.permute.xlu0 %7168
        %7170 = vrot.lane.b32.xlu0 %v6847, 64
        %v7171 = vpop.permute.xlu0 %7170
        %7172 = vrot.lane.b32.xlu0 %v6848, 64
        %v7173 = vpop.permute.xlu0 %7172
        %7174 = vrot.lane.b32.xlu0 %v6849, 64
        %v7175 = vpop.permute.xlu0 %7174
        %7176 = vrot.lane.b32.xlu0 %v6850, 64
        %v7177 = vpop.permute.xlu0 %7176
        %7178 = vrot.lane.b32.xlu0 %v6851, 64
        %v7179 = vpop.permute.xlu0 %7178
        %7180 = vrot.lane.b32.xlu0 %v6852, 64
        %v7181 = vpop.permute.xlu0 %7180
        %7182 = vrot.lane.b32.xlu0 %v6853, 64
        %v7183 = vpop.permute.xlu0 %7182
        %7184 = vrot.lane.b32.xlu0 %v6854, 64
        %v7185 = vpop.permute.xlu0 %7184
        %7186 = vrot.lane.b32.xlu0 %v6855, 64
        %v7187 = vpop.permute.xlu0 %7186
        %7188 = vrot.lane.b32.xlu0 %v6856, 64
        %v7189 = vpop.permute.xlu0 %7188
        %7190 = vrot.lane.b32.xlu0 %v6857, 64
        %v7191 = vpop.permute.xlu0 %7190
        %7192 = vrot.lane.b32.xlu0 %v6858, 64
        %v7193 = vpop.permute.xlu0 %7192
        %7194 = vrot.lane.b32.xlu0 %v6859, 64
        %v7195 = vpop.permute.xlu0 %7194
        %7196 = vrot.lane.b32.xlu0 %v6860, 64
        %v7197 = vpop.permute.xlu0 %7196
        %7198 = vrot.lane.b32.xlu0 %v6861, 64
        %v7199 = vpop.permute.xlu0 %7198
        %7200 = vrot.lane.b32.xlu0 %v6862, 64
        %v7201 = vpop.permute.xlu0 %7200
        %7202 = vrot.lane.b32.xlu0 %v6863, 64
        %v7203 = vpop.permute.xlu0 %7202
        %7204 = vrot.lane.b32.xlu0 %v6864, 64
        %v7205 = vpop.permute.xlu0 %7204
        %7206 = vrot.lane.b32.xlu0 %v6865, 64
        %v7207 = vpop.permute.xlu0 %7206
        %7208 = vrot.lane.b32.xlu0 %v6866, 64
        %v7209 = vpop.permute.xlu0 %7208
        %7210 = vrot.lane.b32.xlu0 %v6867, 64
        %v7211 = vpop.permute.xlu0 %7210
        %7212 = vrot.lane.b32.xlu0 %v6868, 64
        %v7213 = vpop.permute.xlu0 %7212
        %7214 = vrot.lane.b32.xlu0 %v6869, 64
        %v7215 = vpop.permute.xlu0 %7214
        %vm7259 = vcmask 785922
        %7260 = vst.msk [vmem:[#allocation6 - $0x2] sm:$0xfc] %vm7259, %v7131
        %vm7261 = vcmask 785920
        %7262 = vst.msk [vmem:[#allocation6 + $0x6] sm:$0xff] %vm7261, %v7133
        %7263 = vst.msk [vmem:[#allocation6 + $0xe] sm:$0xff] %vm7261, %v7135
        %7264 = vst.msk [vmem:[#allocation6 + $0x16] sm:$0xff] %vm7261, %v7137
        %7265 = vst.msk [vmem:[#allocation6 + $0x1e] sm:$0xff] %vm7261, %v7139
        %7266 = vst.msk [vmem:[#allocation6 + $0x26] sm:$0xff] %vm7261, %v7141
        %7267 = vst.msk [vmem:[#allocation6 + $0x2e] sm:$0xff] %vm7261, %v7143
        %7268 = vst.msk [vmem:[#allocation6 + $0x36] sm:$0xff] %vm7261, %v7145
        %7269 = vst.msk [vmem:[#allocation6 + $0x3e] sm:$0xff] %vm7261, %v7147
        %7270 = vst.msk [vmem:[#allocation6 + $0x46] sm:$0xff] %vm7261, %v7149
        %7271 = vst.msk [vmem:[#allocation6 + $0x4e] sm:$0xff] %vm7261, %v7151
        %7272 = vst.msk [vmem:[#allocation6 + $0x56] sm:$0xff] %vm7261, %v7153
        %7273 = vst.msk [vmem:[#allocation6 + $0x5e] sm:$0xff] %vm7261, %v7155
        %7274 = vst.msk [vmem:[#allocation6 + $0x66] sm:$0xff] %vm7261, %v7157
        %7275 = vst.msk [vmem:[#allocation6 + $0x6e] sm:$0xff] %vm7261, %v7159
        %7276 = vst.msk [vmem:[#allocation6 + $0x76] sm:$0xff] %vm7261, %v7161
        %7277 = vst.msk [vmem:[#allocation6 + $0x7e] sm:$0xff] %vm7261, %v7163
        %7278 = vst.msk [vmem:[#allocation6 + $0x86] sm:$0xff] %vm7261, %v7165
        %7279 = vst.msk [vmem:[#allocation6 + $0x8e] sm:$0xff] %vm7261, %v7167
        %7280 = vst.msk [vmem:[#allocation6 + $0x96] sm:$0xff] %vm7261, %v7169
        %7281 = vst.msk [vmem:[#allocation6 + $0x9e] sm:$0xff] %vm7261, %v7171
        %7282 = vst.msk [vmem:[#allocation6 + $0xa6] sm:$0xff] %vm7261, %v7173
        %7283 = vst.msk [vmem:[#allocation6 + $0xae] sm:$0xff] %vm7261, %v7175
        %7284 = vst.msk [vmem:[#allocation6 + $0xb6] sm:$0xff] %vm7261, %v7177
        %7285 = vst.msk [vmem:[#allocation6 + $0xbe] sm:$0xff] %vm7261, %v7179
        %7286 = vst.msk [vmem:[#allocation6 + $0xc6] sm:$0xff] %vm7261, %v7181
        %7287 = vst.msk [vmem:[#allocation6 + $0xce] sm:$0xff] %vm7261, %v7183
        %7288 = vst.msk [vmem:[#allocation6 + $0xd6] sm:$0xff] %vm7261, %v7185
        %7289 = vst.msk [vmem:[#allocation6 + $0xde] sm:$0xff] %vm7261, %v7187
        %7290 = vst.msk [vmem:[#allocation6 + $0xe6] sm:$0xff] %vm7261, %v7189
        %7291 = vst.msk [vmem:[#allocation6 + $0xee] sm:$0xff] %vm7261, %v7191
        %7292 = vst.msk [vmem:[#allocation6 + $0xf6] sm:$0xff] %vm7261, %v7193
        %7293 = vst.msk [vmem:[#allocation6 + $0xfe] sm:$0xff] %vm7261, %v7195
        %7294 = vst.msk [vmem:[#allocation6 + $0x106] sm:$0xff] %vm7261, %v7197
        %7295 = vst.msk [vmem:[#allocation6 + $0x10e] sm:$0xff] %vm7261, %v7199
        %7296 = vst.msk [vmem:[#allocation6 + $0x116] sm:$0xff] %vm7261, %v7201
        %7297 = vst.msk [vmem:[#allocation6 + $0x11e] sm:$0xff] %vm7261, %v7203
        %7298 = vst.msk [vmem:[#allocation6 + $0x126] sm:$0xff] %vm7261, %v7205
        %7299 = vst.msk [vmem:[#allocation6 + $0x12e] sm:$0xff] %vm7261, %v7207
        %7300 = vst.msk [vmem:[#allocation6 + $0x136] sm:$0xff] %vm7261, %v7209
        %7301 = vst.msk [vmem:[#allocation6 + $0x13e] sm:$0xff] %vm7261, %v7211
        %7302 = vst.msk [vmem:[#allocation6 + $0x146] sm:$0xff] %vm7261, %v7213
        %vm7303 = vcmask 779776
        %7304 = vst.msk [vmem:[#allocation6 + $0x14e] sm:$0x3] %vm7303, %v7215
        %v7305 = vld [vmem:[#allocation6] sm:$0xff]
        %v7306 = vld [vmem:[#allocation6 + $0x8] sm:$0xff]
        %v7307 = vld [vmem:[#allocation6 + $0x10] sm:$0xff]
        %v7308 = vld [vmem:[#allocation6 + $0x18] sm:$0xff]
        %v7309 = vld [vmem:[#allocation6 + $0x20] sm:$0xff]
        %v7310 = vld [vmem:[#allocation6 + $0x28] sm:$0xff]
        %v7311 = vld [vmem:[#allocation6 + $0x30] sm:$0xff]
        %v7312 = vld [vmem:[#allocation6 + $0x38] sm:$0xff]
        %v7313 = vld [vmem:[#allocation6 + $0x40] sm:$0xff]
        %v7314 = vld [vmem:[#allocation6 + $0x48] sm:$0xff]
        %v7315 = vld [vmem:[#allocation6 + $0x50] sm:$0xff]
        %v7316 = vld [vmem:[#allocation6 + $0x58] sm:$0xff]
        %v7317 = vld [vmem:[#allocation6 + $0x60] sm:$0xff]
        %v7318 = vld [vmem:[#allocation6 + $0x68] sm:$0xff]
        %v7319 = vld [vmem:[#allocation6 + $0x70] sm:$0xff]
        %v7320 = vld [vmem:[#allocation6 + $0x78] sm:$0xff]
        %v7321 = vld [vmem:[#allocation6 + $0x80] sm:$0xff]
        %v7322 = vld [vmem:[#allocation6 + $0x88] sm:$0xff]
        %v7323 = vld [vmem:[#allocation6 + $0x90] sm:$0xff]
        %v7324 = vld [vmem:[#allocation6 + $0x98] sm:$0xff]
        %v7325 = vld [vmem:[#allocation6 + $0xa0] sm:$0xff]
        %v7326 = vld [vmem:[#allocation6 + $0xa8] sm:$0xff]
        %v7327 = vld [vmem:[#allocation6 + $0xb0] sm:$0xff]
        %v7328 = vld [vmem:[#allocation6 + $0xb8] sm:$0xff]
        %v7329 = vld [vmem:[#allocation6 + $0xc0] sm:$0xff]
        %v7330 = vld [vmem:[#allocation6 + $0xc8] sm:$0xff]
        %v7331 = vld [vmem:[#allocation6 + $0xd0] sm:$0xff]
        %v7332 = vld [vmem:[#allocation6 + $0xd8] sm:$0xff]
        %v7333 = vld [vmem:[#allocation6 + $0xe0] sm:$0xff]
        %v7334 = vld [vmem:[#allocation6 + $0xe8] sm:$0xff]
        %v7335 = vld [vmem:[#allocation6 + $0xf0] sm:$0xff]
        %v7336 = vld [vmem:[#allocation6 + $0xf8] sm:$0xff]
        %v7337 = vld [vmem:[#allocation6 + $0x100] sm:$0xff]
        %v7338 = vld [vmem:[#allocation6 + $0x108] sm:$0xff]
        %v7339 = vld [vmem:[#allocation6 + $0x110] sm:$0xff]
        %v7340 = vld [vmem:[#allocation6 + $0x118] sm:$0xff]
        %v7341 = vld [vmem:[#allocation6 + $0x120] sm:$0xff]
        %v7342 = vld [vmem:[#allocation6 + $0x128] sm:$0xff]
        %v7343 = vld [vmem:[%s4] sm:$0xff]
        %v7344 = vld [vmem:[%s4 + $0x8] sm:$0xff]
        %v7345 = vld [vmem:[%s4 + $0x10] sm:$0xff]
        %v7346 = vld [vmem:[%s4 + $0x18] sm:$0xff]
        %v7347 = vld [vmem:[%s4 + $0x20] sm:$0xff]
        %v7348 = vld [vmem:[%s4 + $0x28] sm:$0xff]
        %v7349 = vld [vmem:[%s4 + $0x30] sm:$0xff]
        %v7350 = vld [vmem:[%s4 + $0x38] sm:$0xff]
        %v7351 = vld [vmem:[%s4 + $0x40] sm:$0xff]
        %v7352 = vld [vmem:[%s4 + $0x48] sm:$0xff]
        %v7353 = vld [vmem:[%s4 + $0x50] sm:$0xff]
        %v7354 = vld [vmem:[%s4 + $0x58] sm:$0xff]
        %vm7355 = vcmask 785408
        %v7357 = vsel %vm7355, %v7305, 0
        %v7360 = vsel %vm7355, %v7306, 0
        %v7363 = vsel %vm7355, %v7307, 0
        %v7366 = vsel %vm7355, %v7308, 0
        %v7369 = vsel %vm7355, %v7309, 0
        %v7372 = vsel %vm7355, %v7310, 0
        %v7375 = vsel %vm7355, %v7311, 0
        %v7378 = vsel %vm7355, %v7312, 0
        %v7381 = vsel %vm7355, %v7313, 0
        %v7384 = vsel %vm7355, %v7314, 0
        %v7387 = vsel %vm7355, %v7315, 0
        %v7390 = vsel %vm7355, %v7316, 0
        %v7393 = vsel %vm7355, %v7317, 0
        %v7396 = vsel %vm7355, %v7318, 0
        %v7399 = vsel %vm7355, %v7319, 0
        %v7402 = vsel %vm7355, %v7320, 0
        %v7405 = vsel %vm7355, %v7321, 0
        %v7408 = vsel %vm7355, %v7322, 0
        %v7411 = vsel %vm7355, %v7323, 0
        %v7414 = vsel %vm7355, %v7324, 0
        %v7417 = vsel %vm7355, %v7325, 0
        %v7420 = vsel %vm7355, %v7326, 0
        %v7423 = vsel %vm7355, %v7327, 0
        %v7426 = vsel %vm7355, %v7328, 0
        %v7429 = vsel %vm7355, %v7329, 0
        %v7432 = vsel %vm7355, %v7330, 0
        %v7435 = vsel %vm7355, %v7331, 0
        %v7438 = vsel %vm7355, %v7332, 0
        %v7441 = vsel %vm7355, %v7333, 0
        %v7444 = vsel %vm7355, %v7334, 0
        %v7447 = vsel %vm7355, %v7335, 0
        %v7450 = vsel %vm7355, %v7336, 0
        %v7453 = vsel %vm7355, %v7337, 0
        %v7456 = vsel %vm7355, %v7338, 0
        %v7459 = vsel %vm7355, %v7339, 0
        %v7462 = vsel %vm7355, %v7340, 0
        %v7465 = vsel %vm7355, %v7341, 0
        %v7468 = vsel %vm7355, %v7342, 0
        %7470 = vmatpush.msra.mxu0 0.0
        %7471 = vmatpush.msra.mxu0 0.0
        %7472 = vmatpush.msra.mxu0 0.0
        %7473 = vmatpush.msra.mxu0 0.0
        %7474 = vmatpush.msra.mxu0 %v7354
        %7475 = vmatpush.msra.mxu0 %v7353
        %7476 = vmatpush.msra.mxu0 %v7352
        %7477 = vmatpush.msra.mxu0 %v7351
        %7478 = vmatpush.msra.mxu0 %v7350
        %7479 = vmatpush.msra.mxu0 %v7349
        %7480 = vmatpush.msra.mxu0 %v7348
        %7481 = vmatpush.msra.mxu0 %v7347
        %7482 = vmatpush.msra.mxu0 %v7346
        %7483 = vmatpush.msra.mxu0 %v7345
        %7484 = vmatpush.msra.mxu0 %v7344
        %7485 = vmatpush.msra.mxu0 %v7343
        %7486 = vmatmul.f32.gmra.mxu0 %v7357
        %v7487 = vpop.f32.mrf.mxu0
        %v7488 = vadd.f32 0.0, %v7487
        %7489 = vmatmul.f32.gmra.mxu0 %v7360
        %v7490 = vpop.f32.mrf.mxu0
        %v7491 = vadd.f32 0.0, %v7490
        %7492 = vmatmul.f32.gmra.mxu0 %v7363
        %v7493 = vpop.f32.mrf.mxu0
        %v7494 = vadd.f32 0.0, %v7493
        %7495 = vmatmul.f32.gmra.mxu0 %v7366
        %v7496 = vpop.f32.mrf.mxu0
        %v7497 = vadd.f32 0.0, %v7496
        %7498 = vmatmul.f32.gmra.mxu0 %v7369
        %v7499 = vpop.f32.mrf.mxu0
        %v7500 = vadd.f32 0.0, %v7499
        %7501 = vmatmul.f32.gmra.mxu0 %v7372
        %v7502 = vpop.f32.mrf.mxu0
        %v7503 = vadd.f32 0.0, %v7502
        %7504 = vmatmul.f32.gmra.mxu0 %v7375
        %v7505 = vpop.f32.mrf.mxu0
        %v7506 = vadd.f32 0.0, %v7505
        %7507 = vmatmul.f32.gmra.mxu0 %v7378
        %v7508 = vpop.f32.mrf.mxu0
        %v7509 = vadd.f32 0.0, %v7508
        %7510 = vmatmul.f32.gmra.mxu0 %v7381
        %v7511 = vpop.f32.mrf.mxu0
        %v7512 = vadd.f32 0.0, %v7511
        %7513 = vmatmul.f32.gmra.mxu0 %v7384
        %v7514 = vpop.f32.mrf.mxu0
        %v7515 = vadd.f32 0.0, %v7514
        %7516 = vmatmul.f32.gmra.mxu0 %v7387
        %v7517 = vpop.f32.mrf.mxu0
        %v7518 = vadd.f32 0.0, %v7517
        %7519 = vmatmul.f32.gmra.mxu0 %v7390
        %v7520 = vpop.f32.mrf.mxu0
        %v7521 = vadd.f32 0.0, %v7520
        %7522 = vmatmul.f32.gmra.mxu0 %v7393
        %v7523 = vpop.f32.mrf.mxu0
        %v7524 = vadd.f32 0.0, %v7523
        %7525 = vmatmul.f32.gmra.mxu0 %v7396
        %v7526 = vpop.f32.mrf.mxu0
        %v7527 = vadd.f32 0.0, %v7526
        %7528 = vmatmul.f32.gmra.mxu0 %v7399
        %v7529 = vpop.f32.mrf.mxu0
        %v7530 = vadd.f32 0.0, %v7529
        %7531 = vmatmul.f32.gmra.mxu0 %v7402
        %v7532 = vpop.f32.mrf.mxu0
        %v7533 = vadd.f32 0.0, %v7532
        %7534 = vmatmul.f32.gmra.mxu0 %v7405
        %v7535 = vpop.f32.mrf.mxu0
        %v7536 = vadd.f32 0.0, %v7535
        %7537 = vmatmul.f32.gmra.mxu0 %v7408
        %v7538 = vpop.f32.mrf.mxu0
        %v7539 = vadd.f32 0.0, %v7538
        %7540 = vmatmul.f32.gmra.mxu0 %v7411
        %v7541 = vpop.f32.mrf.mxu0
        %v7542 = vadd.f32 0.0, %v7541
        %7543 = vmatmul.f32.gmra.mxu0 %v7414
        %v7544 = vpop.f32.mrf.mxu0
        %v7545 = vadd.f32 0.0, %v7544
        %7546 = vmatmul.f32.gmra.mxu0 %v7417
        %v7547 = vpop.f32.mrf.mxu0
        %v7548 = vadd.f32 0.0, %v7547
        %7549 = vmatmul.f32.gmra.mxu0 %v7420
        %v7550 = vpop.f32.mrf.mxu0
        %v7551 = vadd.f32 0.0, %v7550
        %7552 = vmatmul.f32.gmra.mxu0 %v7423
        %v7553 = vpop.f32.mrf.mxu0
        %v7554 = vadd.f32 0.0, %v7553
        %7555 = vmatmul.f32.gmra.mxu0 %v7426
        %v7556 = vpop.f32.mrf.mxu0
        %v7557 = vadd.f32 0.0, %v7556
        %7558 = vmatmul.f32.gmra.mxu0 %v7429
        %v7559 = vpop.f32.mrf.mxu0
        %v7560 = vadd.f32 0.0, %v7559
        %7561 = vmatmul.f32.gmra.mxu0 %v7432
        %v7562 = vpop.f32.mrf.mxu0
        %v7563 = vadd.f32 0.0, %v7562
        %7564 = vmatmul.f32.gmra.mxu0 %v7435
        %v7565 = vpop.f32.mrf.mxu0
        %v7566 = vadd.f32 0.0, %v7565
        %7567 = vmatmul.f32.gmra.mxu0 %v7438
        %v7568 = vpop.f32.mrf.mxu0
        %v7569 = vadd.f32 0.0, %v7568
        %7570 = vmatmul.f32.gmra.mxu0 %v7441
        %v7571 = vpop.f32.mrf.mxu0
        %v7572 = vadd.f32 0.0, %v7571
        %7573 = vmatmul.f32.gmra.mxu0 %v7444
        %v7574 = vpop.f32.mrf.mxu0
        %v7575 = vadd.f32 0.0, %v7574
        %7576 = vmatmul.f32.gmra.mxu0 %v7447
        %v7577 = vpop.f32.mrf.mxu0
        %v7578 = vadd.f32 0.0, %v7577
        %7579 = vmatmul.f32.gmra.mxu0 %v7450
        %v7580 = vpop.f32.mrf.mxu0
        %v7581 = vadd.f32 0.0, %v7580
        %7582 = vmatmul.f32.gmra.mxu0 %v7453
        %v7583 = vpop.f32.mrf.mxu0
        %v7584 = vadd.f32 0.0, %v7583
        %7585 = vmatmul.f32.gmra.mxu0 %v7456
        %v7586 = vpop.f32.mrf.mxu0
        %v7587 = vadd.f32 0.0, %v7586
        %7588 = vmatmul.f32.gmra.mxu0 %v7459
        %v7589 = vpop.f32.mrf.mxu0
        %v7590 = vadd.f32 0.0, %v7589
        %7591 = vmatmul.f32.gmra.mxu0 %v7462
        %v7592 = vpop.f32.mrf.mxu0
        %v7593 = vadd.f32 0.0, %v7592
        %7594 = vmatmul.f32.gmra.mxu0 %v7465
        %v7595 = vpop.f32.mrf.mxu0
        %v7596 = vadd.f32 0.0, %v7595
        %7597 = vmatmul.f32.gmra.mxu0 %v7468
        %v7598 = vpop.f32.mrf.mxu0
        %v7599 = vadd.f32 0.0, %v7598
        %7600 = vdwg.mxu0
        %7601 = vst.msk [vmem:[#allocation7] sm:$0xff] %vm2655, %v7488
        %7602 = vst.msk [vmem:[#allocation7 + $0x8] sm:$0xff] %vm2655, %v7491
        %7603 = vst.msk [vmem:[#allocation7 + $0x10] sm:$0xff] %vm2655, %v7494
        %7604 = vst.msk [vmem:[#allocation7 + $0x18] sm:$0xff] %vm2655, %v7497
        %7605 = vst.msk [vmem:[#allocation7 + $0x20] sm:$0xff] %vm2655, %v7500
        %7606 = vst.msk [vmem:[#allocation7 + $0x28] sm:$0xff] %vm2655, %v7503
        %7607 = vst.msk [vmem:[#allocation7 + $0x30] sm:$0xff] %vm2655, %v7506
        %7608 = vst.msk [vmem:[#allocation7 + $0x38] sm:$0xff] %vm2655, %v7509
        %7609 = vst.msk [vmem:[#allocation7 + $0x40] sm:$0xff] %vm2655, %v7512
        %7610 = vst.msk [vmem:[#allocation7 + $0x48] sm:$0xff] %vm2655, %v7515
        %7611 = vst.msk [vmem:[#allocation7 + $0x50] sm:$0xff] %vm2655, %v7518
        %7612 = vst.msk [vmem:[#allocation7 + $0x58] sm:$0xff] %vm2655, %v7521
        %7613 = vst.msk [vmem:[#allocation7 + $0x60] sm:$0xff] %vm2655, %v7524
        %7614 = vst.msk [vmem:[#allocation7 + $0x68] sm:$0xff] %vm2655, %v7527
        %7615 = vst.msk [vmem:[#allocation7 + $0x70] sm:$0xff] %vm2655, %v7530
        %7616 = vst.msk [vmem:[#allocation7 + $0x78] sm:$0xff] %vm2655, %v7533
        %7617 = vst.msk [vmem:[#allocation7 + $0x80] sm:$0xff] %vm2655, %v7536
        %7618 = vst.msk [vmem:[#allocation7 + $0x88] sm:$0xff] %vm2655, %v7539
        %7619 = vst.msk [vmem:[#allocation7 + $0x90] sm:$0xff] %vm2655, %v7542
        %7620 = vst.msk [vmem:[#allocation7 + $0x98] sm:$0xff] %vm2655, %v7545
        %7621 = vst.msk [vmem:[#allocation7 + $0xa0] sm:$0xff] %vm2655, %v7548
        %7622 = vst.msk [vmem:[#allocation7 + $0xa8] sm:$0xff] %vm2655, %v7551
        %7623 = vst.msk [vmem:[#allocation7 + $0xb0] sm:$0xff] %vm2655, %v7554
        %7624 = vst.msk [vmem:[#allocation7 + $0xb8] sm:$0xff] %vm2655, %v7557
        %7625 = vst.msk [vmem:[#allocation7 + $0xc0] sm:$0xff] %vm2655, %v7560
        %7626 = vst.msk [vmem:[#allocation7 + $0xc8] sm:$0xff] %vm2655, %v7563
        %7627 = vst.msk [vmem:[#allocation7 + $0xd0] sm:$0xff] %vm2655, %v7566
        %7628 = vst.msk [vmem:[#allocation7 + $0xd8] sm:$0xff] %vm2655, %v7569
        %7629 = vst.msk [vmem:[#allocation7 + $0xe0] sm:$0xff] %vm2655, %v7572
        %7630 = vst.msk [vmem:[#allocation7 + $0xe8] sm:$0xff] %vm2655, %v7575
        %7631 = vst.msk [vmem:[#allocation7 + $0xf0] sm:$0xff] %vm2655, %v7578
        %7632 = vst.msk [vmem:[#allocation7 + $0xf8] sm:$0xff] %vm2655, %v7581
        %7633 = vst.msk [vmem:[#allocation7 + $0x100] sm:$0xff] %vm2655, %v7584
        %7634 = vst.msk [vmem:[#allocation7 + $0x108] sm:$0xff] %vm2655, %v7587
        %7635 = vst.msk [vmem:[#allocation7 + $0x110] sm:$0xff] %vm2655, %v7590
        %7636 = vst.msk [vmem:[#allocation7 + $0x118] sm:$0xff] %vm2655, %v7593
        %7637 = vst.msk [vmem:[#allocation7 + $0x120] sm:$0xff] %vm2655, %v7596
        %7638 = vst.msk [vmem:[#allocation7 + $0x128] sm:$0xff] %vm2655, %v7599
        %v7639 = vld [vmem:[#allocation6 + $0x10] sm:$0xff]
        %v7640 = vld [vmem:[#allocation6 + $0x18] sm:$0xff]
        %v7641 = vld [vmem:[#allocation6 + $0x20] sm:$0xff]
        %v7642 = vld [vmem:[#allocation6 + $0x28] sm:$0xff]
        %v7643 = vld [vmem:[#allocation6 + $0x30] sm:$0xff]
        %v7644 = vld [vmem:[#allocation6 + $0x38] sm:$0xff]
        %v7645 = vld [vmem:[#allocation6 + $0x40] sm:$0xff]
        %v7646 = vld [vmem:[#allocation6 + $0x48] sm:$0xff]
        %v7647 = vld [vmem:[#allocation6 + $0x50] sm:$0xff]
        %v7648 = vld [vmem:[#allocation6 + $0x58] sm:$0xff]
        %v7649 = vld [vmem:[#allocation6 + $0x60] sm:$0xff]
        %v7650 = vld [vmem:[#allocation6 + $0x68] sm:$0xff]
        %v7651 = vld [vmem:[#allocation6 + $0x70] sm:$0xff]
        %v7652 = vld [vmem:[#allocation6 + $0x78] sm:$0xff]
        %v7653 = vld [vmem:[#allocation6 + $0x80] sm:$0xff]
        %v7654 = vld [vmem:[#allocation6 + $0x88] sm:$0xff]
        %v7655 = vld [vmem:[#allocation6 + $0x90] sm:$0xff]
        %v7656 = vld [vmem:[#allocation6 + $0x98] sm:$0xff]
        %v7657 = vld [vmem:[#allocation6 + $0xa0] sm:$0xff]
        %v7658 = vld [vmem:[#allocation6 + $0xa8] sm:$0xff]
        %v7659 = vld [vmem:[#allocation6 + $0xb0] sm:$0xff]
        %v7660 = vld [vmem:[#allocation6 + $0xb8] sm:$0xff]
        %v7661 = vld [vmem:[#allocation6 + $0xc0] sm:$0xff]
        %v7662 = vld [vmem:[#allocation6 + $0xc8] sm:$0xff]
        %v7663 = vld [vmem:[#allocation6 + $0xd0] sm:$0xff]
        %v7664 = vld [vmem:[#allocation6 + $0xd8] sm:$0xff]
        %v7665 = vld [vmem:[#allocation6 + $0xe0] sm:$0xff]
        %v7666 = vld [vmem:[#allocation6 + $0xe8] sm:$0xff]
        %v7667 = vld [vmem:[#allocation6 + $0xf0] sm:$0xff]
        %v7668 = vld [vmem:[#allocation6 + $0xf8] sm:$0xff]
        %v7669 = vld [vmem:[#allocation6 + $0x100] sm:$0xff]
        %v7670 = vld [vmem:[#allocation6 + $0x108] sm:$0xff]
        %v7671 = vld [vmem:[#allocation6 + $0x110] sm:$0xff]
        %v7672 = vld [vmem:[#allocation6 + $0x118] sm:$0xff]
        %v7673 = vld [vmem:[#allocation6 + $0x120] sm:$0xff]
        %v7674 = vld [vmem:[#allocation6 + $0x128] sm:$0xff]
        %v7675 = vld [vmem:[#allocation6 + $0x130] sm:$0xff]
        %v7676 = vld [vmem:[#allocation6 + $0x138] sm:$0xff]
        %s7677 = scalar_lea.vmem %s4, 96
        %v7678 = vld [vmem:[%s7677] sm:$0xff]
        %v7679 = vld [vmem:[%s7677 + $0x8] sm:$0xff]
        %v7680 = vld [vmem:[%s7677 + $0x10] sm:$0xff]
        %v7681 = vld [vmem:[%s7677 + $0x18] sm:$0xff]
        %v7682 = vld [vmem:[%s7677 + $0x20] sm:$0xff]
        %v7683 = vld [vmem:[%s7677 + $0x28] sm:$0xff]
        %v7684 = vld [vmem:[%s7677 + $0x30] sm:$0xff]
        %v7685 = vld [vmem:[%s7677 + $0x38] sm:$0xff]
        %v7686 = vld [vmem:[%s7677 + $0x40] sm:$0xff]
        %v7687 = vld [vmem:[%s7677 + $0x48] sm:$0xff]
        %v7688 = vld [vmem:[%s7677 + $0x50] sm:$0xff]
        %v7689 = vld [vmem:[%s7677 + $0x58] sm:$0xff]
        %v7691 = vsel %vm7355, %v7639, 0
        %v7694 = vsel %vm7355, %v7640, 0
        %v7697 = vsel %vm7355, %v7641, 0
        %v7700 = vsel %vm7355, %v7642, 0
        %v7703 = vsel %vm7355, %v7643, 0
        %v7706 = vsel %vm7355, %v7644, 0
        %v7709 = vsel %vm7355, %v7645, 0
        %v7712 = vsel %vm7355, %v7646, 0
        %v7715 = vsel %vm7355, %v7647, 0
        %v7718 = vsel %vm7355, %v7648, 0
        %v7721 = vsel %vm7355, %v7649, 0
        %v7724 = vsel %vm7355, %v7650, 0
        %v7727 = vsel %vm7355, %v7651, 0
        %v7730 = vsel %vm7355, %v7652, 0
        %v7733 = vsel %vm7355, %v7653, 0
        %v7736 = vsel %vm7355, %v7654, 0
        %v7739 = vsel %vm7355, %v7655, 0
        %v7742 = vsel %vm7355, %v7656, 0
        %v7745 = vsel %vm7355, %v7657, 0
        %v7748 = vsel %vm7355, %v7658, 0
        %v7751 = vsel %vm7355, %v7659, 0
        %v7754 = vsel %vm7355, %v7660, 0
        %v7757 = vsel %vm7355, %v7661, 0
        %v7760 = vsel %vm7355, %v7662, 0
        %v7763 = vsel %vm7355, %v7663, 0
        %v7766 = vsel %vm7355, %v7664, 0
        %v7769 = vsel %vm7355, %v7665, 0
        %v7772 = vsel %vm7355, %v7666, 0
        %v7775 = vsel %vm7355, %v7667, 0
        %v7778 = vsel %vm7355, %v7668, 0
        %v7781 = vsel %vm7355, %v7669, 0
        %v7784 = vsel %vm7355, %v7670, 0
        %v7787 = vsel %vm7355, %v7671, 0
        %v7790 = vsel %vm7355, %v7672, 0
        %v7793 = vsel %vm7355, %v7673, 0
        %v7796 = vsel %vm7355, %v7674, 0
        %v7799 = vsel %vm7355, %v7675, 0
        %v7802 = vsel %vm7355, %v7676, 0
        %7804 = vmatpush.msra.mxu0 0.0
        %7805 = vmatpush.msra.mxu0 0.0
        %7806 = vmatpush.msra.mxu0 0.0
        %7807 = vmatpush.msra.mxu0 0.0
        %7808 = vmatpush.msra.mxu0 %v7689
        %7809 = vmatpush.msra.mxu0 %v7688
        %7810 = vmatpush.msra.mxu0 %v7687
        %7811 = vmatpush.msra.mxu0 %v7686
        %7812 = vmatpush.msra.mxu0 %v7685
        %7813 = vmatpush.msra.mxu0 %v7684
        %7814 = vmatpush.msra.mxu0 %v7683
        %7815 = vmatpush.msra.mxu0 %v7682
        %7816 = vmatpush.msra.mxu0 %v7681
        %7817 = vmatpush.msra.mxu0 %v7680
        %7818 = vmatpush.msra.mxu0 %v7679
        %7819 = vmatpush.msra.mxu0 %v7678
        %7820 = vmatmul.f32.gmra.mxu0 %v7691
        %v7821 = vpop.f32.mrf.mxu0
        %v7822 = vadd.f32 0.0, %v7821
        %7823 = vmatmul.f32.gmra.mxu0 %v7694
        %v7824 = vpop.f32.mrf.mxu0
        %v7825 = vadd.f32 0.0, %v7824
        %7826 = vmatmul.f32.gmra.mxu0 %v7697
        %v7827 = vpop.f32.mrf.mxu0
        %v7828 = vadd.f32 0.0, %v7827
        %7829 = vmatmul.f32.gmra.mxu0 %v7700
        %v7830 = vpop.f32.mrf.mxu0
        %v7831 = vadd.f32 0.0, %v7830
        %7832 = vmatmul.f32.gmra.mxu0 %v7703
        %v7833 = vpop.f32.mrf.mxu0
        %v7834 = vadd.f32 0.0, %v7833
        %7835 = vmatmul.f32.gmra.mxu0 %v7706
        %v7836 = vpop.f32.mrf.mxu0
        %v7837 = vadd.f32 0.0, %v7836
        %7838 = vmatmul.f32.gmra.mxu0 %v7709
        %v7839 = vpop.f32.mrf.mxu0
        %v7840 = vadd.f32 0.0, %v7839
        %7841 = vmatmul.f32.gmra.mxu0 %v7712
        %v7842 = vpop.f32.mrf.mxu0
        %v7843 = vadd.f32 0.0, %v7842
        %7844 = vmatmul.f32.gmra.mxu0 %v7715
        %v7845 = vpop.f32.mrf.mxu0
        %v7846 = vadd.f32 0.0, %v7845
        %7847 = vmatmul.f32.gmra.mxu0 %v7718
        %v7848 = vpop.f32.mrf.mxu0
        %v7849 = vadd.f32 0.0, %v7848
        %7850 = vmatmul.f32.gmra.mxu0 %v7721
        %v7851 = vpop.f32.mrf.mxu0
        %v7852 = vadd.f32 0.0, %v7851
        %7853 = vmatmul.f32.gmra.mxu0 %v7724
        %v7854 = vpop.f32.mrf.mxu0
        %v7855 = vadd.f32 0.0, %v7854
        %7856 = vmatmul.f32.gmra.mxu0 %v7727
        %v7857 = vpop.f32.mrf.mxu0
        %v7858 = vadd.f32 0.0, %v7857
        %7859 = vmatmul.f32.gmra.mxu0 %v7730
        %v7860 = vpop.f32.mrf.mxu0
        %v7861 = vadd.f32 0.0, %v7860
        %7862 = vmatmul.f32.gmra.mxu0 %v7733
        %v7863 = vpop.f32.mrf.mxu0
        %v7864 = vadd.f32 0.0, %v7863
        %7865 = vmatmul.f32.gmra.mxu0 %v7736
        %v7866 = vpop.f32.mrf.mxu0
        %v7867 = vadd.f32 0.0, %v7866
        %7868 = vmatmul.f32.gmra.mxu0 %v7739
        %v7869 = vpop.f32.mrf.mxu0
        %v7870 = vadd.f32 0.0, %v7869
        %7871 = vmatmul.f32.gmra.mxu0 %v7742
        %v7872 = vpop.f32.mrf.mxu0
        %v7873 = vadd.f32 0.0, %v7872
        %7874 = vmatmul.f32.gmra.mxu0 %v7745
        %v7875 = vpop.f32.mrf.mxu0
        %v7876 = vadd.f32 0.0, %v7875
        %7877 = vmatmul.f32.gmra.mxu0 %v7748
        %v7878 = vpop.f32.mrf.mxu0
        %v7879 = vadd.f32 0.0, %v7878
        %7880 = vmatmul.f32.gmra.mxu0 %v7751
        %v7881 = vpop.f32.mrf.mxu0
        %v7882 = vadd.f32 0.0, %v7881
        %7883 = vmatmul.f32.gmra.mxu0 %v7754
        %v7884 = vpop.f32.mrf.mxu0
        %v7885 = vadd.f32 0.0, %v7884
        %7886 = vmatmul.f32.gmra.mxu0 %v7757
        %v7887 = vpop.f32.mrf.mxu0
        %v7888 = vadd.f32 0.0, %v7887
        %7889 = vmatmul.f32.gmra.mxu0 %v7760
        %v7890 = vpop.f32.mrf.mxu0
        %v7891 = vadd.f32 0.0, %v7890
        %7892 = vmatmul.f32.gmra.mxu0 %v7763
        %v7893 = vpop.f32.mrf.mxu0
        %v7894 = vadd.f32 0.0, %v7893
        %7895 = vmatmul.f32.gmra.mxu0 %v7766
        %v7896 = vpop.f32.mrf.mxu0
        %v7897 = vadd.f32 0.0, %v7896
        %7898 = vmatmul.f32.gmra.mxu0 %v7769
        %v7899 = vpop.f32.mrf.mxu0
        %v7900 = vadd.f32 0.0, %v7899
        %7901 = vmatmul.f32.gmra.mxu0 %v7772
        %v7902 = vpop.f32.mrf.mxu0
        %v7903 = vadd.f32 0.0, %v7902
        %7904 = vmatmul.f32.gmra.mxu0 %v7775
        %v7905 = vpop.f32.mrf.mxu0
        %v7906 = vadd.f32 0.0, %v7905
        %7907 = vmatmul.f32.gmra.mxu0 %v7778
        %v7908 = vpop.f32.mrf.mxu0
        %v7909 = vadd.f32 0.0, %v7908
        %7910 = vmatmul.f32.gmra.mxu0 %v7781
        %v7911 = vpop.f32.mrf.mxu0
        %v7912 = vadd.f32 0.0, %v7911
        %7913 = vmatmul.f32.gmra.mxu0 %v7784
        %v7914 = vpop.f32.mrf.mxu0
        %v7915 = vadd.f32 0.0, %v7914
        %7916 = vmatmul.f32.gmra.mxu0 %v7787
        %v7917 = vpop.f32.mrf.mxu0
        %v7918 = vadd.f32 0.0, %v7917
        %7919 = vmatmul.f32.gmra.mxu0 %v7790
        %v7920 = vpop.f32.mrf.mxu0
        %v7921 = vadd.f32 0.0, %v7920
        %7922 = vmatmul.f32.gmra.mxu0 %v7793
        %v7923 = vpop.f32.mrf.mxu0
        %v7924 = vadd.f32 0.0, %v7923
        %7925 = vmatmul.f32.gmra.mxu0 %v7796
        %v7926 = vpop.f32.mrf.mxu0
        %v7927 = vadd.f32 0.0, %v7926
        %7928 = vmatmul.f32.gmra.mxu0 %v7799
        %v7929 = vpop.f32.mrf.mxu0
        %v7930 = vadd.f32 0.0, %v7929
        %7931 = vmatmul.f32.gmra.mxu0 %v7802
        %v7932 = vpop.f32.mrf.mxu0
        %v7933 = vadd.f32 0.0, %v7932
        %7934 = vdwg.mxu0
        %v7935 = vld [vmem:[#allocation7] sm:$0xff]
        %v7936 = vld [vmem:[#allocation7 + $0x8] sm:$0xff]
        %v7937 = vld [vmem:[#allocation7 + $0x10] sm:$0xff]
        %v7938 = vld [vmem:[#allocation7 + $0x18] sm:$0xff]
        %v7939 = vld [vmem:[#allocation7 + $0x20] sm:$0xff]
        %v7940 = vld [vmem:[#allocation7 + $0x28] sm:$0xff]
        %v7941 = vld [vmem:[#allocation7 + $0x30] sm:$0xff]
        %v7942 = vld [vmem:[#allocation7 + $0x38] sm:$0xff]
        %v7943 = vld [vmem:[#allocation7 + $0x40] sm:$0xff]
        %v7944 = vld [vmem:[#allocation7 + $0x48] sm:$0xff]
        %v7945 = vld [vmem:[#allocation7 + $0x50] sm:$0xff]
        %v7946 = vld [vmem:[#allocation7 + $0x58] sm:$0xff]
        %v7947 = vld [vmem:[#allocation7 + $0x60] sm:$0xff]
        %v7948 = vld [vmem:[#allocation7 + $0x68] sm:$0xff]
        %v7949 = vld [vmem:[#allocation7 + $0x70] sm:$0xff]
        %v7950 = vld [vmem:[#allocation7 + $0x78] sm:$0xff]
        %v7951 = vld [vmem:[#allocation7 + $0x80] sm:$0xff]
        %v7952 = vld [vmem:[#allocation7 + $0x88] sm:$0xff]
        %v7953 = vld [vmem:[#allocation7 + $0x90] sm:$0xff]
        %v7954 = vld [vmem:[#allocation7 + $0x98] sm:$0xff]
        %v7955 = vld [vmem:[#allocation7 + $0xa0] sm:$0xff]
        %v7956 = vld [vmem:[#allocation7 + $0xa8] sm:$0xff]
        %v7957 = vld [vmem:[#allocation7 + $0xb0] sm:$0xff]
        %v7958 = vld [vmem:[#allocation7 + $0xb8] sm:$0xff]
        %v7959 = vld [vmem:[#allocation7 + $0xc0] sm:$0xff]
        %v7960 = vld [vmem:[#allocation7 + $0xc8] sm:$0xff]
        %v7961 = vld [vmem:[#allocation7 + $0xd0] sm:$0xff]
        %v7962 = vld [vmem:[#allocation7 + $0xd8] sm:$0xff]
        %v7963 = vld [vmem:[#allocation7 + $0xe0] sm:$0xff]
        %v7964 = vld [vmem:[#allocation7 + $0xe8] sm:$0xff]
        %v7965 = vld [vmem:[#allocation7 + $0xf0] sm:$0xff]
        %v7966 = vld [vmem:[#allocation7 + $0xf8] sm:$0xff]
        %v7967 = vld [vmem:[#allocation7 + $0x100] sm:$0xff]
        %v7968 = vld [vmem:[#allocation7 + $0x108] sm:$0xff]
        %v7969 = vld [vmem:[#allocation7 + $0x110] sm:$0xff]
        %v7970 = vld [vmem:[#allocation7 + $0x118] sm:$0xff]
        %v7971 = vld [vmem:[#allocation7 + $0x120] sm:$0xff]
        %v7972 = vld [vmem:[#allocation7 + $0x128] sm:$0xff]
        %v7973 = vadd.f32 %v7935, %v7822
        %v7974 = vadd.f32 %v7936, %v7825
        %v7975 = vadd.f32 %v7937, %v7828
        %v7976 = vadd.f32 %v7938, %v7831
        %v7977 = vadd.f32 %v7939, %v7834
        %v7978 = vadd.f32 %v7940, %v7837
        %v7979 = vadd.f32 %v7941, %v7840
        %v7980 = vadd.f32 %v7942, %v7843
        %v7981 = vadd.f32 %v7943, %v7846
        %v7982 = vadd.f32 %v7944, %v7849
        %v7983 = vadd.f32 %v7945, %v7852
        %v7984 = vadd.f32 %v7946, %v7855
        %v7985 = vadd.f32 %v7947, %v7858
        %v7986 = vadd.f32 %v7948, %v7861
        %v7987 = vadd.f32 %v7949, %v7864
        %v7988 = vadd.f32 %v7950, %v7867
        %v7989 = vadd.f32 %v7951, %v7870
        %v7990 = vadd.f32 %v7952, %v7873
        %v7991 = vadd.f32 %v7953, %v7876
        %v7992 = vadd.f32 %v7954, %v7879
        %v7993 = vadd.f32 %v7955, %v7882
        %v7994 = vadd.f32 %v7956, %v7885
        %v7995 = vadd.f32 %v7957, %v7888
        %v7996 = vadd.f32 %v7958, %v7891
        %v7997 = vadd.f32 %v7959, %v7894
        %v7998 = vadd.f32 %v7960, %v7897
        %v7999 = vadd.f32 %v7961, %v7900
        %v8000 = vadd.f32 %v7962, %v7903
        %v8001 = vadd.f32 %v7963, %v7906
        %v8002 = vadd.f32 %v7964, %v7909
        %v8003 = vadd.f32 %v7965, %v7912
        %v8004 = vadd.f32 %v7966, %v7915
        %v8005 = vadd.f32 %v7967, %v7918
        %v8006 = vadd.f32 %v7968, %v7921
        %v8007 = vadd.f32 %v7969, %v7924
        %v8008 = vadd.f32 %v7970, %v7927
        %v8009 = vadd.f32 %v7971, %v7930
        %v8010 = vadd.f32 %v7972, %v7933
        %8011 = vst.msk [vmem:[#allocation7] sm:$0xff] %vm2655, %v7973
        %8012 = vst.msk [vmem:[#allocation7 + $0x8] sm:$0xff] %vm2655, %v7974
        %8013 = vst.msk [vmem:[#allocation7 + $0x10] sm:$0xff] %vm2655, %v7975
        %8014 = vst.msk [vmem:[#allocation7 + $0x18] sm:$0xff] %vm2655, %v7976
        %8015 = vst.msk [vmem:[#allocation7 + $0x20] sm:$0xff] %vm2655, %v7977
        %8016 = vst.msk [vmem:[#allocation7 + $0x28] sm:$0xff] %vm2655, %v7978
        %8017 = vst.msk [vmem:[#allocation7 + $0x30] sm:$0xff] %vm2655, %v7979
        %8018 = vst.msk [vmem:[#allocation7 + $0x38] sm:$0xff] %vm2655, %v7980
        %8019 = vst.msk [vmem:[#allocation7 + $0x40] sm:$0xff] %vm2655, %v7981
        %8020 = vst.msk [vmem:[#allocation7 + $0x48] sm:$0xff] %vm2655, %v7982
        %8021 = vst.msk [vmem:[#allocation7 + $0x50] sm:$0xff] %vm2655, %v7983
        %8022 = vst.msk [vmem:[#allocation7 + $0x58] sm:$0xff] %vm2655, %v7984
        %8023 = vst.msk [vmem:[#allocation7 + $0x60] sm:$0xff] %vm2655, %v7985
        %8024 = vst.msk [vmem:[#allocation7 + $0x68] sm:$0xff] %vm2655, %v7986
        %8025 = vst.msk [vmem:[#allocation7 + $0x70] sm:$0xff] %vm2655, %v7987
        %8026 = vst.msk [vmem:[#allocation7 + $0x78] sm:$0xff] %vm2655, %v7988
        %8027 = vst.msk [vmem:[#allocation7 + $0x80] sm:$0xff] %vm2655, %v7989
        %8028 = vst.msk [vmem:[#allocation7 + $0x88] sm:$0xff] %vm2655, %v7990
        %8029 = vst.msk [vmem:[#allocation7 + $0x90] sm:$0xff] %vm2655, %v7991
        %8030 = vst.msk [vmem:[#allocation7 + $0x98] sm:$0xff] %vm2655, %v7992
        %8031 = vst.msk [vmem:[#allocation7 + $0xa0] sm:$0xff] %vm2655, %v7993
        %8032 = vst.msk [vmem:[#allocation7 + $0xa8] sm:$0xff] %vm2655, %v7994
        %8033 = vst.msk [vmem:[#allocation7 + $0xb0] sm:$0xff] %vm2655, %v7995
        %8034 = vst.msk [vmem:[#allocation7 + $0xb8] sm:$0xff] %vm2655, %v7996
        %8035 = vst.msk [vmem:[#allocation7 + $0xc0] sm:$0xff] %vm2655, %v7997
        %8036 = vst.msk [vmem:[#allocation7 + $0xc8] sm:$0xff] %vm2655, %v7998
        %8037 = vst.msk [vmem:[#allocation7 + $0xd0] sm:$0xff] %vm2655, %v7999
        %8038 = vst.msk [vmem:[#allocation7 + $0xd8] sm:$0xff] %vm2655, %v8000
        %8039 = vst.msk [vmem:[#allocation7 + $0xe0] sm:$0xff] %vm2655, %v8001
        %8040 = vst.msk [vmem:[#allocation7 + $0xe8] sm:$0xff] %vm2655, %v8002
        %8041 = vst.msk [vmem:[#allocation7 + $0xf0] sm:$0xff] %vm2655, %v8003
        %8042 = vst.msk [vmem:[#allocation7 + $0xf8] sm:$0xff] %vm2655, %v8004
        %8043 = vst.msk [vmem:[#allocation7 + $0x100] sm:$0xff] %vm2655, %v8005
        %8044 = vst.msk [vmem:[#allocation7 + $0x108] sm:$0xff] %vm2655, %v8006
        %8045 = vst.msk [vmem:[#allocation7 + $0x110] sm:$0xff] %vm2655, %v8007
        %8046 = vst.msk [vmem:[#allocation7 + $0x118] sm:$0xff] %vm2655, %v8008
        %8047 = vst.msk [vmem:[#allocation7 + $0x120] sm:$0xff] %vm2655, %v8009
        %8048 = vst.msk [vmem:[#allocation7 + $0x128] sm:$0xff] %vm2655, %v8010
        %v8049 = vld [vmem:[#allocation6 + $0x20] sm:$0xff]
        %v8050 = vld [vmem:[#allocation6 + $0x28] sm:$0xff]
        %v8051 = vld [vmem:[#allocation6 + $0x30] sm:$0xff]
        %v8052 = vld [vmem:[#allocation6 + $0x38] sm:$0xff]
        %v8053 = vld [vmem:[#allocation6 + $0x40] sm:$0xff]
        %v8054 = vld [vmem:[#allocation6 + $0x48] sm:$0xff]
        %v8055 = vld [vmem:[#allocation6 + $0x50] sm:$0xff]
        %v8056 = vld [vmem:[#allocation6 + $0x58] sm:$0xff]
        %v8057 = vld [vmem:[#allocation6 + $0x60] sm:$0xff]
        %v8058 = vld [vmem:[#allocation6 + $0x68] sm:$0xff]
        %v8059 = vld [vmem:[#allocation6 + $0x70] sm:$0xff]
        %v8060 = vld [vmem:[#allocation6 + $0x78] sm:$0xff]
        %v8061 = vld [vmem:[#allocation6 + $0x80] sm:$0xff]
        %v8062 = vld [vmem:[#allocation6 + $0x88] sm:$0xff]
        %v8063 = vld [vmem:[#allocation6 + $0x90] sm:$0xff]
        %v8064 = vld [vmem:[#allocation6 + $0x98] sm:$0xff]
        %v8065 = vld [vmem:[#allocation6 + $0xa0] sm:$0xff]
        %v8066 = vld [vmem:[#allocation6 + $0xa8] sm:$0xff]
        %v8067 = vld [vmem:[#allocation6 + $0xb0] sm:$0xff]
        %v8068 = vld [vmem:[#allocation6 + $0xb8] sm:$0xff]
        %v8069 = vld [vmem:[#allocation6 + $0xc0] sm:$0xff]
        %v8070 = vld [vmem:[#allocation6 + $0xc8] sm:$0xff]
        %v8071 = vld [vmem:[#allocation6 + $0xd0] sm:$0xff]
        %v8072 = vld [vmem:[#allocation6 + $0xd8] sm:$0xff]
        %v8073 = vld [vmem:[#allocation6 + $0xe0] sm:$0xff]
        %v8074 = vld [vmem:[#allocation6 + $0xe8] sm:$0xff]
        %v8075 = vld [vmem:[#allocation6 + $0xf0] sm:$0xff]
        %v8076 = vld [vmem:[#allocation6 + $0xf8] sm:$0xff]
        %v8077 = vld [vmem:[#allocation6 + $0x100] sm:$0xff]
        %v8078 = vld [vmem:[#allocation6 + $0x108] sm:$0xff]
        %v8079 = vld [vmem:[#allocation6 + $0x110] sm:$0xff]
        %v8080 = vld [vmem:[#allocation6 + $0x118] sm:$0xff]
        %v8081 = vld [vmem:[#allocation6 + $0x120] sm:$0xff]
        %v8082 = vld [vmem:[#allocation6 + $0x128] sm:$0xff]
        %v8083 = vld [vmem:[#allocation6 + $0x130] sm:$0xff]
        %v8084 = vld [vmem:[#allocation6 + $0x138] sm:$0xff]
        %v8085 = vld [vmem:[#allocation6 + $0x140] sm:$0xff]
        %v8086 = vld [vmem:[#allocation6 + $0x148] sm:$0xff]
        %s8087 = scalar_lea.vmem %s4, 192
        %v8088 = vld [vmem:[%s8087] sm:$0xff]
        %v8089 = vld [vmem:[%s8087 + $0x8] sm:$0xff]
        %v8090 = vld [vmem:[%s8087 + $0x10] sm:$0xff]
        %v8091 = vld [vmem:[%s8087 + $0x18] sm:$0xff]
        %v8092 = vld [vmem:[%s8087 + $0x20] sm:$0xff]
        %v8093 = vld [vmem:[%s8087 + $0x28] sm:$0xff]
        %v8094 = vld [vmem:[%s8087 + $0x30] sm:$0xff]
        %v8095 = vld [vmem:[%s8087 + $0x38] sm:$0xff]
        %v8096 = vld [vmem:[%s8087 + $0x40] sm:$0xff]
        %v8097 = vld [vmem:[%s8087 + $0x48] sm:$0xff]
        %v8098 = vld [vmem:[%s8087 + $0x50] sm:$0xff]
        %v8099 = vld [vmem:[%s8087 + $0x58] sm:$0xff]
        %v8101 = vsel %vm7355, %v8049, 0
        %v8104 = vsel %vm7355, %v8050, 0
        %v8107 = vsel %vm7355, %v8051, 0
        %v8110 = vsel %vm7355, %v8052, 0
        %v8113 = vsel %vm7355, %v8053, 0
        %v8116 = vsel %vm7355, %v8054, 0
        %v8119 = vsel %vm7355, %v8055, 0
        %v8122 = vsel %vm7355, %v8056, 0
        %v8125 = vsel %vm7355, %v8057, 0
        %v8128 = vsel %vm7355, %v8058, 0
        %v8131 = vsel %vm7355, %v8059, 0
        %v8134 = vsel %vm7355, %v8060, 0
        %v8137 = vsel %vm7355, %v8061, 0
        %v8140 = vsel %vm7355, %v8062, 0
        %v8143 = vsel %vm7355, %v8063, 0
        %v8146 = vsel %vm7355, %v8064, 0
        %v8149 = vsel %vm7355, %v8065, 0
        %v8152 = vsel %vm7355, %v8066, 0
        %v8155 = vsel %vm7355, %v8067, 0
        %v8158 = vsel %vm7355, %v8068, 0
        %v8161 = vsel %vm7355, %v8069, 0
        %v8164 = vsel %vm7355, %v8070, 0
        %v8167 = vsel %vm7355, %v8071, 0
        %v8170 = vsel %vm7355, %v8072, 0
        %v8173 = vsel %vm7355, %v8073, 0
        %v8176 = vsel %vm7355, %v8074, 0
        %v8179 = vsel %vm7355, %v8075, 0
        %v8182 = vsel %vm7355, %v8076, 0
        %v8185 = vsel %vm7355, %v8077, 0
        %v8188 = vsel %vm7355, %v8078, 0
        %v8191 = vsel %vm7355, %v8079, 0
        %v8194 = vsel %vm7355, %v8080, 0
        %v8197 = vsel %vm7355, %v8081, 0
        %v8200 = vsel %vm7355, %v8082, 0
        %v8203 = vsel %vm7355, %v8083, 0
        %v8206 = vsel %vm7355, %v8084, 0
        %v8209 = vsel %vm7355, %v8085, 0
        %v8212 = vsel %vm7355, %v8086, 0
        %8214 = vmatpush.msra.mxu0 0.0
        %8215 = vmatpush.msra.mxu0 0.0
        %8216 = vmatpush.msra.mxu0 0.0
        %8217 = vmatpush.msra.mxu0 0.0
        %8218 = vmatpush.msra.mxu0 %v8099
        %8219 = vmatpush.msra.mxu0 %v8098
        %8220 = vmatpush.msra.mxu0 %v8097
        %8221 = vmatpush.msra.mxu0 %v8096
        %8222 = vmatpush.msra.mxu0 %v8095
        %8223 = vmatpush.msra.mxu0 %v8094
        %8224 = vmatpush.msra.mxu0 %v8093
        %8225 = vmatpush.msra.mxu0 %v8092
        %8226 = vmatpush.msra.mxu0 %v8091
        %8227 = vmatpush.msra.mxu0 %v8090
        %8228 = vmatpush.msra.mxu0 %v8089
        %8229 = vmatpush.msra.mxu0 %v8088
        %8230 = vmatmul.f32.gmra.mxu0 %v8101
        %v8231 = vpop.f32.mrf.mxu0
        %v8232 = vadd.f32 0.0, %v8231
        %8233 = vmatmul.f32.gmra.mxu0 %v8104
        %v8234 = vpop.f32.mrf.mxu0
        %v8235 = vadd.f32 0.0, %v8234
        %8236 = vmatmul.f32.gmra.mxu0 %v8107
        %v8237 = vpop.f32.mrf.mxu0
        %v8238 = vadd.f32 0.0, %v8237
        %8239 = vmatmul.f32.gmra.mxu0 %v8110
        %v8240 = vpop.f32.mrf.mxu0
        %v8241 = vadd.f32 0.0, %v8240
        %8242 = vmatmul.f32.gmra.mxu0 %v8113
        %v8243 = vpop.f32.mrf.mxu0
        %v8244 = vadd.f32 0.0, %v8243
        %8245 = vmatmul.f32.gmra.mxu0 %v8116
        %v8246 = vpop.f32.mrf.mxu0
        %v8247 = vadd.f32 0.0, %v8246
        %8248 = vmatmul.f32.gmra.mxu0 %v8119
        %v8249 = vpop.f32.mrf.mxu0
        %v8250 = vadd.f32 0.0, %v8249
        %8251 = vmatmul.f32.gmra.mxu0 %v8122
        %v8252 = vpop.f32.mrf.mxu0
        %v8253 = vadd.f32 0.0, %v8252
        %8254 = vmatmul.f32.gmra.mxu0 %v8125
        %v8255 = vpop.f32.mrf.mxu0
        %v8256 = vadd.f32 0.0, %v8255
        %8257 = vmatmul.f32.gmra.mxu0 %v8128
        %v8258 = vpop.f32.mrf.mxu0
        %v8259 = vadd.f32 0.0, %v8258
        %8260 = vmatmul.f32.gmra.mxu0 %v8131
        %v8261 = vpop.f32.mrf.mxu0
        %v8262 = vadd.f32 0.0, %v8261
        %8263 = vmatmul.f32.gmra.mxu0 %v8134
        %v8264 = vpop.f32.mrf.mxu0
        %v8265 = vadd.f32 0.0, %v8264
        %8266 = vmatmul.f32.gmra.mxu0 %v8137
        %v8267 = vpop.f32.mrf.mxu0
        %v8268 = vadd.f32 0.0, %v8267
        %8269 = vmatmul.f32.gmra.mxu0 %v8140
        %v8270 = vpop.f32.mrf.mxu0
        %v8271 = vadd.f32 0.0, %v8270
        %8272 = vmatmul.f32.gmra.mxu0 %v8143
        %v8273 = vpop.f32.mrf.mxu0
        %v8274 = vadd.f32 0.0, %v8273
        %8275 = vmatmul.f32.gmra.mxu0 %v8146
        %v8276 = vpop.f32.mrf.mxu0
        %v8277 = vadd.f32 0.0, %v8276
        %8278 = vmatmul.f32.gmra.mxu0 %v8149
        %v8279 = vpop.f32.mrf.mxu0
        %v8280 = vadd.f32 0.0, %v8279
        %8281 = vmatmul.f32.gmra.mxu0 %v8152
        %v8282 = vpop.f32.mrf.mxu0
        %v8283 = vadd.f32 0.0, %v8282
        %8284 = vmatmul.f32.gmra.mxu0 %v8155
        %v8285 = vpop.f32.mrf.mxu0
        %v8286 = vadd.f32 0.0, %v8285
        %8287 = vmatmul.f32.gmra.mxu0 %v8158
        %v8288 = vpop.f32.mrf.mxu0
        %v8289 = vadd.f32 0.0, %v8288
        %8290 = vmatmul.f32.gmra.mxu0 %v8161
        %v8291 = vpop.f32.mrf.mxu0
        %v8292 = vadd.f32 0.0, %v8291
        %8293 = vmatmul.f32.gmra.mxu0 %v8164
        %v8294 = vpop.f32.mrf.mxu0
        %v8295 = vadd.f32 0.0, %v8294
        %8296 = vmatmul.f32.gmra.mxu0 %v8167
        %v8297 = vpop.f32.mrf.mxu0
        %v8298 = vadd.f32 0.0, %v8297
        %8299 = vmatmul.f32.gmra.mxu0 %v8170
        %v8300 = vpop.f32.mrf.mxu0
        %v8301 = vadd.f32 0.0, %v8300
        %8302 = vmatmul.f32.gmra.mxu0 %v8173
        %v8303 = vpop.f32.mrf.mxu0
        %v8304 = vadd.f32 0.0, %v8303
        %8305 = vmatmul.f32.gmra.mxu0 %v8176
        %v8306 = vpop.f32.mrf.mxu0
        %v8307 = vadd.f32 0.0, %v8306
        %8308 = vmatmul.f32.gmra.mxu0 %v8179
        %v8309 = vpop.f32.mrf.mxu0
        %v8310 = vadd.f32 0.0, %v8309
        %8311 = vmatmul.f32.gmra.mxu0 %v8182
        %v8312 = vpop.f32.mrf.mxu0
        %v8313 = vadd.f32 0.0, %v8312
        %8314 = vmatmul.f32.gmra.mxu0 %v8185
        %v8315 = vpop.f32.mrf.mxu0
        %v8316 = vadd.f32 0.0, %v8315
        %8317 = vmatmul.f32.gmra.mxu0 %v8188
        %v8318 = vpop.f32.mrf.mxu0
        %v8319 = vadd.f32 0.0, %v8318
        %8320 = vmatmul.f32.gmra.mxu0 %v8191
        %v8321 = vpop.f32.mrf.mxu0
        %v8322 = vadd.f32 0.0, %v8321
        %8323 = vmatmul.f32.gmra.mxu0 %v8194
        %v8324 = vpop.f32.mrf.mxu0
        %v8325 = vadd.f32 0.0, %v8324
        %8326 = vmatmul.f32.gmra.mxu0 %v8197
        %v8327 = vpop.f32.mrf.mxu0
        %v8328 = vadd.f32 0.0, %v8327
        %8329 = vmatmul.f32.gmra.mxu0 %v8200
        %v8330 = vpop.f32.mrf.mxu0
        %v8331 = vadd.f32 0.0, %v8330
        %8332 = vmatmul.f32.gmra.mxu0 %v8203
        %v8333 = vpop.f32.mrf.mxu0
        %v8334 = vadd.f32 0.0, %v8333
        %8335 = vmatmul.f32.gmra.mxu0 %v8206
        %v8336 = vpop.f32.mrf.mxu0
        %v8337 = vadd.f32 0.0, %v8336
        %8338 = vmatmul.f32.gmra.mxu0 %v8209
        %v8339 = vpop.f32.mrf.mxu0
        %v8340 = vadd.f32 0.0, %v8339
        %8341 = vmatmul.f32.gmra.mxu0 %v8212
        %v8342 = vpop.f32.mrf.mxu0
        %v8343 = vadd.f32 0.0, %v8342
        %8344 = vdwg.mxu0
        %v8345 = vld [vmem:[#allocation7] sm:$0xff]
        %v8346 = vld [vmem:[#allocation7 + $0x8] sm:$0xff]
        %v8347 = vld [vmem:[#allocation7 + $0x10] sm:$0xff]
        %v8348 = vld [vmem:[#allocation7 + $0x18] sm:$0xff]
        %v8349 = vld [vmem:[#allocation7 + $0x20] sm:$0xff]
        %v8350 = vld [vmem:[#allocation7 + $0x28] sm:$0xff]
        %v8351 = vld [vmem:[#allocation7 + $0x30] sm:$0xff]
        %v8352 = vld [vmem:[#allocation7 + $0x38] sm:$0xff]
        %v8353 = vld [vmem:[#allocation7 + $0x40] sm:$0xff]
        %v8354 = vld [vmem:[#allocation7 + $0x48] sm:$0xff]
        %v8355 = vld [vmem:[#allocation7 + $0x50] sm:$0xff]
        %v8356 = vld [vmem:[#allocation7 + $0x58] sm:$0xff]
        %v8357 = vld [vmem:[#allocation7 + $0x60] sm:$0xff]
        %v8358 = vld [vmem:[#allocation7 + $0x68] sm:$0xff]
        %v8359 = vld [vmem:[#allocation7 + $0x70] sm:$0xff]
        %v8360 = vld [vmem:[#allocation7 + $0x78] sm:$0xff]
        %v8361 = vld [vmem:[#allocation7 + $0x80] sm:$0xff]
        %v8362 = vld [vmem:[#allocation7 + $0x88] sm:$0xff]
        %v8363 = vld [vmem:[#allocation7 + $0x90] sm:$0xff]
        %v8364 = vld [vmem:[#allocation7 + $0x98] sm:$0xff]
        %v8365 = vld [vmem:[#allocation7 + $0xa0] sm:$0xff]
        %v8366 = vld [vmem:[#allocation7 + $0xa8] sm:$0xff]
        %v8367 = vld [vmem:[#allocation7 + $0xb0] sm:$0xff]
        %v8368 = vld [vmem:[#allocation7 + $0xb8] sm:$0xff]
        %v8369 = vld [vmem:[#allocation7 + $0xc0] sm:$0xff]
        %v8370 = vld [vmem:[#allocation7 + $0xc8] sm:$0xff]
        %v8371 = vld [vmem:[#allocation7 + $0xd0] sm:$0xff]
        %v8372 = vld [vmem:[#allocation7 + $0xd8] sm:$0xff]
        %v8373 = vld [vmem:[#allocation7 + $0xe0] sm:$0xff]
        %v8374 = vld [vmem:[#allocation7 + $0xe8] sm:$0xff]
        %v8375 = vld [vmem:[#allocation7 + $0xf0] sm:$0xff]
        %v8376 = vld [vmem:[#allocation7 + $0xf8] sm:$0xff]
        %v8377 = vld [vmem:[#allocation7 + $0x100] sm:$0xff]
        %v8378 = vld [vmem:[#allocation7 + $0x108] sm:$0xff]
        %v8379 = vld [vmem:[#allocation7 + $0x110] sm:$0xff]
        %v8380 = vld [vmem:[#allocation7 + $0x118] sm:$0xff]
        %v8381 = vld [vmem:[#allocation7 + $0x120] sm:$0xff]
        %v8382 = vld [vmem:[#allocation7 + $0x128] sm:$0xff]
        %v8383 = vadd.f32 %v8345, %v8232
        %v8384 = vadd.f32 %v8346, %v8235
        %v8385 = vadd.f32 %v8347, %v8238
        %v8386 = vadd.f32 %v8348, %v8241
        %v8387 = vadd.f32 %v8349, %v8244
        %v8388 = vadd.f32 %v8350, %v8247
        %v8389 = vadd.f32 %v8351, %v8250
        %v8390 = vadd.f32 %v8352, %v8253
        %v8391 = vadd.f32 %v8353, %v8256
        %v8392 = vadd.f32 %v8354, %v8259
        %v8393 = vadd.f32 %v8355, %v8262
        %v8394 = vadd.f32 %v8356, %v8265
        %v8395 = vadd.f32 %v8357, %v8268
        %v8396 = vadd.f32 %v8358, %v8271
        %v8397 = vadd.f32 %v8359, %v8274
        %v8398 = vadd.f32 %v8360, %v8277
        %v8399 = vadd.f32 %v8361, %v8280
        %v8400 = vadd.f32 %v8362, %v8283
        %v8401 = vadd.f32 %v8363, %v8286
        %v8402 = vadd.f32 %v8364, %v8289
        %v8403 = vadd.f32 %v8365, %v8292
        %v8404 = vadd.f32 %v8366, %v8295
        %v8405 = vadd.f32 %v8367, %v8298
        %v8406 = vadd.f32 %v8368, %v8301
        %v8407 = vadd.f32 %v8369, %v8304
        %v8408 = vadd.f32 %v8370, %v8307
        %v8409 = vadd.f32 %v8371, %v8310
        %v8410 = vadd.f32 %v8372, %v8313
        %v8411 = vadd.f32 %v8373, %v8316
        %v8412 = vadd.f32 %v8374, %v8319
        %v8413 = vadd.f32 %v8375, %v8322
        %v8414 = vadd.f32 %v8376, %v8325
        %v8415 = vadd.f32 %v8377, %v8328
        %v8416 = vadd.f32 %v8378, %v8331
        %v8417 = vadd.f32 %v8379, %v8334
        %v8418 = vadd.f32 %v8380, %v8337
        %v8419 = vadd.f32 %v8381, %v8340
        %v8420 = vadd.f32 %v8382, %v8343
        %8421 = vst.msk [vmem:[#allocation7] sm:$0xff] %vm2655, %v8383
        %8422 = vst.msk [vmem:[#allocation7 + $0x8] sm:$0xff] %vm2655, %v8384
        %8423 = vst.msk [vmem:[#allocation7 + $0x10] sm:$0xff] %vm2655, %v8385
        %8424 = vst.msk [vmem:[#allocation7 + $0x18] sm:$0xff] %vm2655, %v8386
        %8425 = vst.msk [vmem:[#allocation7 + $0x20] sm:$0xff] %vm2655, %v8387
        %8426 = vst.msk [vmem:[#allocation7 + $0x28] sm:$0xff] %vm2655, %v8388
        %8427 = vst.msk [vmem:[#allocation7 + $0x30] sm:$0xff] %vm2655, %v8389
        %8428 = vst.msk [vmem:[#allocation7 + $0x38] sm:$0xff] %vm2655, %v8390
        %8429 = vst.msk [vmem:[#allocation7 + $0x40] sm:$0xff] %vm2655, %v8391
        %8430 = vst.msk [vmem:[#allocation7 + $0x48] sm:$0xff] %vm2655, %v8392
        %8431 = vst.msk [vmem:[#allocation7 + $0x50] sm:$0xff] %vm2655, %v8393
        %8432 = vst.msk [vmem:[#allocation7 + $0x58] sm:$0xff] %vm2655, %v8394
        %8433 = vst.msk [vmem:[#allocation7 + $0x60] sm:$0xff] %vm2655, %v8395
        %8434 = vst.msk [vmem:[#allocation7 + $0x68] sm:$0xff] %vm2655, %v8396
        %8435 = vst.msk [vmem:[#allocation7 + $0x70] sm:$0xff] %vm2655, %v8397
        %8436 = vst.msk [vmem:[#allocation7 + $0x78] sm:$0xff] %vm2655, %v8398
        %8437 = vst.msk [vmem:[#allocation7 + $0x80] sm:$0xff] %vm2655, %v8399
        %8438 = vst.msk [vmem:[#allocation7 + $0x88] sm:$0xff] %vm2655, %v8400
        %8439 = vst.msk [vmem:[#allocation7 + $0x90] sm:$0xff] %vm2655, %v8401
        %8440 = vst.msk [vmem:[#allocation7 + $0x98] sm:$0xff] %vm2655, %v8402
        %8441 = vst.msk [vmem:[#allocation7 + $0xa0] sm:$0xff] %vm2655, %v8403
        %8442 = vst.msk [vmem:[#allocation7 + $0xa8] sm:$0xff] %vm2655, %v8404
        %8443 = vst.msk [vmem:[#allocation7 + $0xb0] sm:$0xff] %vm2655, %v8405
        %8444 = vst.msk [vmem:[#allocation7 + $0xb8] sm:$0xff] %vm2655, %v8406
        %8445 = vst.msk [vmem:[#allocation7 + $0xc0] sm:$0xff] %vm2655, %v8407
        %8446 = vst.msk [vmem:[#allocation7 + $0xc8] sm:$0xff] %vm2655, %v8408
        %8447 = vst.msk [vmem:[#allocation7 + $0xd0] sm:$0xff] %vm2655, %v8409
        %8448 = vst.msk [vmem:[#allocation7 + $0xd8] sm:$0xff] %vm2655, %v8410
        %8449 = vst.msk [vmem:[#allocation7 + $0xe0] sm:$0xff] %vm2655, %v8411
        %8450 = vst.msk [vmem:[#allocation7 + $0xe8] sm:$0xff] %vm2655, %v8412
        %8451 = vst.msk [vmem:[#allocation7 + $0xf0] sm:$0xff] %vm2655, %v8413
        %8452 = vst.msk [vmem:[#allocation7 + $0xf8] sm:$0xff] %vm2655, %v8414
        %8453 = vst.msk [vmem:[#allocation7 + $0x100] sm:$0xff] %vm2655, %v8415
        %8454 = vst.msk [vmem:[#allocation7 + $0x108] sm:$0xff] %vm2655, %v8416
        %8455 = vst.msk [vmem:[#allocation7 + $0x110] sm:$0xff] %vm2655, %v8417
        %8456 = vst.msk [vmem:[#allocation7 + $0x118] sm:$0xff] %vm2655, %v8418
        %8457 = vst.msk [vmem:[#allocation7 + $0x120] sm:$0xff] %vm2655, %v8419
        %8458 = vst.msk [vmem:[#allocation7 + $0x128] sm:$0xff] %vm2655, %v8420
        %v8459 = vld [vmem:[#allocation7] sm:$0xff]
        %v8460 = vld [vmem:[#allocation7 + $0x10] sm:$0xff]
        %v8461 = vld [vmem:[#allocation7 + $0x20] sm:$0xff]
        %v8462 = vld [vmem:[#allocation7 + $0x30] sm:$0xff]
        %v8463 = vld [vmem:[#allocation7 + $0x40] sm:$0xff]
        %v8464 = vld [vmem:[#allocation7 + $0x50] sm:$0xff]
        %v8465 = vld [vmem:[#allocation7 + $0x60] sm:$0xff]
        %v8466 = vld [vmem:[#allocation7 + $0x70] sm:$0xff]
        %v8467 = vld [vmem:[#allocation7 + $0xb0] sm:$0xff]
        %v8468 = vld [vmem:[#allocation7 + $0xc0] sm:$0xff]
        %v8469 = vld [vmem:[#allocation7 + $0xd0] sm:$0xff]
        %v8470 = vld [vmem:[#allocation7 + $0xe0] sm:$0xff]
        %v8471 = vld [vmem:[#allocation7 + $0xf0] sm:$0xff]
        %v8472 = vld [vmem:[#allocation7 + $0x100] sm:$0xff]
        %v8473 = vld [vmem:[#allocation7 + $0x110] sm:$0xff]
        %v8474 = vld [vmem:[#allocation7 + $0x120] sm:$0xff]
        %v8475 = vld [vmem:[%s5] sm:$0x1]
        %v8477 = vperm.slane %v8475, 0
        %v8479 = vmul.f32 %v8459, %v8477
        %v8480 = vmul.f32 %v8460, %v8477
        %v8481 = vmul.f32 %v8461, %v8477
        %v8482 = vmul.f32 %v8462, %v8477
        %v8483 = vmul.f32 %v8463, %v8477
        %v8484 = vmul.f32 %v8464, %v8477
        %v8485 = vmul.f32 %v8465, %v8477
        %v8486 = vmul.f32 %v8466, %v8477
        %v8487 = vmul.f32 %v8467, %v8477
        %v8488 = vmul.f32 %v8468, %v8477
        %v8489 = vmul.f32 %v8469, %v8477
        %v8490 = vmul.f32 %v8470, %v8477
        %v8491 = vmul.f32 %v8471, %v8477
        %v8492 = vmul.f32 %v8472, %v8477
        %v8493 = vmul.f32 %v8473, %v8477
        %v8494 = vmul.f32 %v8474, %v8477
        %v8495 = vld [vmem:[%s6] sm:$0x1]
        %v8497 = vperm.slane %v8495, 0
        %v8499 = vadd.f32 %v8479, %v8497
        %v8500 = vadd.f32 %v8480, %v8497
        %v8501 = vadd.f32 %v8481, %v8497
        %v8502 = vadd.f32 %v8482, %v8497
        %v8503 = vadd.f32 %v8483, %v8497
        %v8504 = vadd.f32 %v8484, %v8497
        %v8505 = vadd.f32 %v8485, %v8497
        %v8506 = vadd.f32 %v8486, %v8497
        %v8507 = vadd.f32 %v8487, %v8497
        %v8508 = vadd.f32 %v8488, %v8497
        %v8509 = vadd.f32 %v8489, %v8497
        %v8510 = vadd.f32 %v8490, %v8497
        %v8511 = vadd.f32 %v8491, %v8497
        %v8512 = vadd.f32 %v8492, %v8497
        %v8513 = vadd.f32 %v8493, %v8497
        %v8514 = vadd.f32 %v8494, %v8497
        %v8515 = vmax.f32 %v8499, 0.0
        %v8516 = vmax.f32 %v8500, 0.0
        %v8517 = vmax.f32 %v8501, 0.0
        %v8518 = vmax.f32 %v8502, 0.0
        %v8519 = vmax.f32 %v8503, 0.0
        %v8520 = vmax.f32 %v8504, 0.0
        %v8521 = vmax.f32 %v8505, 0.0
        %v8522 = vmax.f32 %v8506, 0.0
        %v8523 = vmax.f32 %v8507, 0.0
        %v8524 = vmax.f32 %v8508, 0.0
        %v8525 = vmax.f32 %v8509, 0.0
        %v8526 = vmax.f32 %v8510, 0.0
        %v8527 = vmax.f32 %v8511, 0.0
        %v8528 = vmax.f32 %v8512, 0.0
        %v8529 = vmax.f32 %v8513, 0.0
        %v8530 = vmax.f32 %v8514, 0.0
        %v8531 = vsel %vm2655, %v8515, -inf
        %v8532 = vsel %vm2655, %v8516, -inf
        %v8533 = vmax.f32 %v8531, %v8532
        %v8534 = vsel %vm2655, %v8517, -inf
        %v8535 = vsel %vm2655, %v8518, -inf
        %v8536 = vmax.f32 %v8534, %v8535
        %v8537 = vsel %vm2655, %v8519, -inf
        %v8538 = vsel %vm2655, %v8520, -inf
        %v8539 = vmax.f32 %v8537, %v8538
        %v8540 = vsel %vm2655, %v8521, -inf
        %v8541 = vsel %vm2655, %v8522, -inf
        %v8542 = vmax.f32 %v8540, %v8541
        %v8547 = vrot.slane %v8533, 2
        %v8548 = vrot.slane %v8533, 4
        %v8549 = vrot.slane %v8533, 6
        %v8550 = vrot.slane %v8536, 2
        %v8551 = vrot.slane %v8536, 4
        %v8552 = vrot.slane %v8536, 6
        %v8553 = vrot.slane %v8539, 2
        %v8554 = vrot.slane %v8539, 4
        %v8555 = vrot.slane %v8539, 6
        %v8556 = vrot.slane %v8542, 2
        %v8557 = vrot.slane %v8542, 4
        %v8558 = vrot.slane %v8542, 6
        %v8571 = vsel %vm5331, %v8533, -inf
        %v8572 = vrot.slane %v8571, 4
        %v8573 = vmax.f32 %v8571, %v8572
        %v8574 = vrot.slane %v8573, 2
        %v8575 = vmax.f32 %v8573, %v8574
        %v8576 = vrot.slane %v8575, 1
        %v8577 = vmax.f32 %v8575, %v8576
        %v8578 = vsel %vm5331, %v8547, -inf
        %v8579 = vrot.slane %v8578, 4
        %v8580 = vmax.f32 %v8578, %v8579
        %v8581 = vrot.slane %v8580, 2
        %v8582 = vmax.f32 %v8580, %v8581
        %v8583 = vrot.slane %v8582, 1
        %v8584 = vmax.f32 %v8582, %v8583
        %v8585 = vsel %vm5331, %v8548, -inf
        %v8586 = vrot.slane %v8585, 4
        %v8587 = vmax.f32 %v8585, %v8586
        %v8588 = vrot.slane %v8587, 2
        %v8589 = vmax.f32 %v8587, %v8588
        %v8590 = vrot.slane %v8589, 1
        %v8591 = vmax.f32 %v8589, %v8590
        %v8592 = vsel %vm5331, %v8549, -inf
        %v8593 = vrot.slane %v8592, 4
        %v8594 = vmax.f32 %v8592, %v8593
        %v8595 = vrot.slane %v8594, 2
        %v8596 = vmax.f32 %v8594, %v8595
        %v8597 = vrot.slane %v8596, 1
        %v8598 = vmax.f32 %v8596, %v8597
        %v8599 = vsel %vm5331, %v8536, -inf
        %v8600 = vrot.slane %v8599, 4
        %v8601 = vmax.f32 %v8599, %v8600
        %v8602 = vrot.slane %v8601, 2
        %v8603 = vmax.f32 %v8601, %v8602
        %v8604 = vrot.slane %v8603, 1
        %v8605 = vmax.f32 %v8603, %v8604
        %v8606 = vsel %vm5331, %v8550, -inf
        %v8607 = vrot.slane %v8606, 4
        %v8608 = vmax.f32 %v8606, %v8607
        %v8609 = vrot.slane %v8608, 2
        %v8610 = vmax.f32 %v8608, %v8609
        %v8611 = vrot.slane %v8610, 1
        %v8612 = vmax.f32 %v8610, %v8611
        %v8613 = vsel %vm5331, %v8551, -inf
        %v8614 = vrot.slane %v8613, 4
        %v8615 = vmax.f32 %v8613, %v8614
        %v8616 = vrot.slane %v8615, 2
        %v8617 = vmax.f32 %v8615, %v8616
        %v8618 = vrot.slane %v8617, 1
        %v8619 = vmax.f32 %v8617, %v8618
        %v8620 = vsel %vm5331, %v8552, -inf
        %v8621 = vrot.slane %v8620, 4
        %v8622 = vmax.f32 %v8620, %v8621
        %v8623 = vrot.slane %v8622, 2
        %v8624 = vmax.f32 %v8622, %v8623
        %v8625 = vrot.slane %v8624, 1
        %v8626 = vmax.f32 %v8624, %v8625
        %v8627 = vsel %vm5331, %v8539, -inf
        %v8628 = vrot.slane %v8627, 4
        %v8629 = vmax.f32 %v8627, %v8628
        %v8630 = vrot.slane %v8629, 2
        %v8631 = vmax.f32 %v8629, %v8630
        %v8632 = vrot.slane %v8631, 1
        %v8633 = vmax.f32 %v8631, %v8632
        %v8634 = vsel %vm5331, %v8553, -inf
        %v8635 = vrot.slane %v8634, 4
        %v8636 = vmax.f32 %v8634, %v8635
        %v8637 = vrot.slane %v8636, 2
        %v8638 = vmax.f32 %v8636, %v8637
        %v8639 = vrot.slane %v8638, 1
        %v8640 = vmax.f32 %v8638, %v8639
        %v8641 = vsel %vm5331, %v8554, -inf
        %v8642 = vrot.slane %v8641, 4
        %v8643 = vmax.f32 %v8641, %v8642
        %v8644 = vrot.slane %v8643, 2
        %v8645 = vmax.f32 %v8643, %v8644
        %v8646 = vrot.slane %v8645, 1
        %v8647 = vmax.f32 %v8645, %v8646
        %v8648 = vsel %vm5331, %v8555, -inf
        %v8649 = vrot.slane %v8648, 4
        %v8650 = vmax.f32 %v8648, %v8649
        %v8651 = vrot.slane %v8650, 2
        %v8652 = vmax.f32 %v8650, %v8651
        %v8653 = vrot.slane %v8652, 1
        %v8654 = vmax.f32 %v8652, %v8653
        %v8655 = vsel %vm5331, %v8542, -inf
        %v8656 = vrot.slane %v8655, 4
        %v8657 = vmax.f32 %v8655, %v8656
        %v8658 = vrot.slane %v8657, 2
        %v8659 = vmax.f32 %v8657, %v8658
        %v8660 = vrot.slane %v8659, 1
        %v8661 = vmax.f32 %v8659, %v8660
        %v8662 = vsel %vm5331, %v8556, -inf
        %v8663 = vrot.slane %v8662, 4
        %v8664 = vmax.f32 %v8662, %v8663
        %v8665 = vrot.slane %v8664, 2
        %v8666 = vmax.f32 %v8664, %v8665
        %v8667 = vrot.slane %v8666, 1
        %v8668 = vmax.f32 %v8666, %v8667
        %v8669 = vsel %vm5331, %v8557, -inf
        %v8670 = vrot.slane %v8669, 4
        %v8671 = vmax.f32 %v8669, %v8670
        %v8672 = vrot.slane %v8671, 2
        %v8673 = vmax.f32 %v8671, %v8672
        %v8674 = vrot.slane %v8673, 1
        %v8675 = vmax.f32 %v8673, %v8674
        %v8676 = vsel %vm5331, %v8558, -inf
        %v8677 = vrot.slane %v8676, 4
        %v8678 = vmax.f32 %v8676, %v8677
        %v8679 = vrot.slane %v8678, 2
        %v8680 = vmax.f32 %v8678, %v8679
        %v8681 = vrot.slane %v8680, 1
        %v8682 = vmax.f32 %v8680, %v8681
        %v8683 = vsel %vm2655, %v8523, -inf
        %v8684 = vsel %vm2655, %v8524, -inf
        %v8685 = vmax.f32 %v8683, %v8684
        %v8686 = vsel %vm2655, %v8525, -inf
        %v8687 = vsel %vm2655, %v8526, -inf
        %v8688 = vmax.f32 %v8686, %v8687
        %v8689 = vsel %vm2655, %v8527, -inf
        %v8690 = vsel %vm2655, %v8528, -inf
        %v8691 = vmax.f32 %v8689, %v8690
        %v8692 = vsel %vm2655, %v8529, -inf
        %v8693 = vsel %vm2655, %v8530, -inf
        %v8694 = vmax.f32 %v8692, %v8693
        %v8699 = vrot.slane %v8685, 2
        %v8700 = vrot.slane %v8685, 4
        %v8701 = vrot.slane %v8685, 6
        %v8702 = vrot.slane %v8688, 2
        %v8703 = vrot.slane %v8688, 4
        %v8704 = vrot.slane %v8688, 6
        %v8705 = vrot.slane %v8691, 2
        %v8706 = vrot.slane %v8691, 4
        %v8707 = vrot.slane %v8691, 6
        %v8708 = vrot.slane %v8694, 2
        %v8709 = vrot.slane %v8694, 4
        %v8710 = vrot.slane %v8694, 6
        %v8723 = vsel %vm5331, %v8685, -inf
        %v8724 = vrot.slane %v8723, 4
        %v8725 = vmax.f32 %v8723, %v8724
        %v8726 = vrot.slane %v8725, 2
        %v8727 = vmax.f32 %v8725, %v8726
        %v8728 = vrot.slane %v8727, 1
        %v8729 = vmax.f32 %v8727, %v8728
        %v8730 = vsel %vm5331, %v8699, -inf
        %v8731 = vrot.slane %v8730, 4
        %v8732 = vmax.f32 %v8730, %v8731
        %v8733 = vrot.slane %v8732, 2
        %v8734 = vmax.f32 %v8732, %v8733
        %v8735 = vrot.slane %v8734, 1
        %v8736 = vmax.f32 %v8734, %v8735
        %v8737 = vsel %vm5331, %v8700, -inf
        %v8738 = vrot.slane %v8737, 4
        %v8739 = vmax.f32 %v8737, %v8738
        %v8740 = vrot.slane %v8739, 2
        %v8741 = vmax.f32 %v8739, %v8740
        %v8742 = vrot.slane %v8741, 1
        %v8743 = vmax.f32 %v8741, %v8742
        %v8744 = vsel %vm5331, %v8701, -inf
        %v8745 = vrot.slane %v8744, 4
        %v8746 = vmax.f32 %v8744, %v8745
        %v8747 = vrot.slane %v8746, 2
        %v8748 = vmax.f32 %v8746, %v8747
        %v8749 = vrot.slane %v8748, 1
        %v8750 = vmax.f32 %v8748, %v8749
        %v8751 = vsel %vm5331, %v8688, -inf
        %v8752 = vrot.slane %v8751, 4
        %v8753 = vmax.f32 %v8751, %v8752
        %v8754 = vrot.slane %v8753, 2
        %v8755 = vmax.f32 %v8753, %v8754
        %v8756 = vrot.slane %v8755, 1
        %v8757 = vmax.f32 %v8755, %v8756
        %v8758 = vsel %vm5331, %v8702, -inf
        %v8759 = vrot.slane %v8758, 4
        %v8760 = vmax.f32 %v8758, %v8759
        %v8761 = vrot.slane %v8760, 2
        %v8762 = vmax.f32 %v8760, %v8761
        %v8763 = vrot.slane %v8762, 1
        %v8764 = vmax.f32 %v8762, %v8763
        %v8765 = vsel %vm5331, %v8703, -inf
        %v8766 = vrot.slane %v8765, 4
        %v8767 = vmax.f32 %v8765, %v8766
        %v8768 = vrot.slane %v8767, 2
        %v8769 = vmax.f32 %v8767, %v8768
        %v8770 = vrot.slane %v8769, 1
        %v8771 = vmax.f32 %v8769, %v8770
        %v8772 = vsel %vm5331, %v8704, -inf
        %v8773 = vrot.slane %v8772, 4
        %v8774 = vmax.f32 %v8772, %v8773
        %v8775 = vrot.slane %v8774, 2
        %v8776 = vmax.f32 %v8774, %v8775
        %v8777 = vrot.slane %v8776, 1
        %v8778 = vmax.f32 %v8776, %v8777
        %v8779 = vsel %vm5331, %v8691, -inf
        %v8780 = vrot.slane %v8779, 4
        %v8781 = vmax.f32 %v8779, %v8780
        %v8782 = vrot.slane %v8781, 2
        %v8783 = vmax.f32 %v8781, %v8782
        %v8784 = vrot.slane %v8783, 1
        %v8785 = vmax.f32 %v8783, %v8784
        %v8786 = vsel %vm5331, %v8705, -inf
        %v8787 = vrot.slane %v8786, 4
        %v8788 = vmax.f32 %v8786, %v8787
        %v8789 = vrot.slane %v8788, 2
        %v8790 = vmax.f32 %v8788, %v8789
        %v8791 = vrot.slane %v8790, 1
        %v8792 = vmax.f32 %v8790, %v8791
        %v8793 = vsel %vm5331, %v8706, -inf
        %v8794 = vrot.slane %v8793, 4
        %v8795 = vmax.f32 %v8793, %v8794
        %v8796 = vrot.slane %v8795, 2
        %v8797 = vmax.f32 %v8795, %v8796
        %v8798 = vrot.slane %v8797, 1
        %v8799 = vmax.f32 %v8797, %v8798
        %v8800 = vsel %vm5331, %v8707, -inf
        %v8801 = vrot.slane %v8800, 4
        %v8802 = vmax.f32 %v8800, %v8801
        %v8803 = vrot.slane %v8802, 2
        %v8804 = vmax.f32 %v8802, %v8803
        %v8805 = vrot.slane %v8804, 1
        %v8806 = vmax.f32 %v8804, %v8805
        %v8807 = vsel %vm5331, %v8694, -inf
        %v8808 = vrot.slane %v8807, 4
        %v8809 = vmax.f32 %v8807, %v8808
        %v8810 = vrot.slane %v8809, 2
        %v8811 = vmax.f32 %v8809, %v8810
        %v8812 = vrot.slane %v8811, 1
        %v8813 = vmax.f32 %v8811, %v8812
        %v8814 = vsel %vm5331, %v8708, -inf
        %v8815 = vrot.slane %v8814, 4
        %v8816 = vmax.f32 %v8814, %v8815
        %v8817 = vrot.slane %v8816, 2
        %v8818 = vmax.f32 %v8816, %v8817
        %v8819 = vrot.slane %v8818, 1
        %v8820 = vmax.f32 %v8818, %v8819
        %v8821 = vsel %vm5331, %v8709, -inf
        %v8822 = vrot.slane %v8821, 4
        %v8823 = vmax.f32 %v8821, %v8822
        %v8824 = vrot.slane %v8823, 2
        %v8825 = vmax.f32 %v8823, %v8824
        %v8826 = vrot.slane %v8825, 1
        %v8827 = vmax.f32 %v8825, %v8826
        %v8828 = vsel %vm5331, %v8710, -inf
        %v8829 = vrot.slane %v8828, 4
        %v8830 = vmax.f32 %v8828, %v8829
        %v8831 = vrot.slane %v8830, 2
        %v8832 = vmax.f32 %v8830, %v8831
        %v8833 = vrot.slane %v8832, 1
        %v8834 = vmax.f32 %v8832, %v8833
        %8835 = vst.msk [vmem:[#allocation8] sm:$0xff] %vm2655, 0.0
        %8836 = vst.msk [vmem:[#allocation8 + $0x38] sm:$0xff] %vm2655, 0.0
        %s8837 = scalar_lea.vmem [#allocation8], 40
        %8838 = vst.msk [vmem:[%s8837] sm:$0xff] %vm2655, 0.0
        %8839 = vst.msk [vmem:[%s8837 + $0x8] sm:$0xff] %vm2655, 0.0
        %8840 = vst.msk [vmem:[%s8837 + $0x38] sm:$0xff] %vm2655, 0.0
        %8841 = vst.msk [vmem:[%s8837 + $0x40] sm:$0xff] %vm2655, 0.0
        %s8842 = scalar_lea.vmem [#allocation8], 8
        %8843 = vst.msk [vmem:[%s8842] sm:$0x1] %vm6402, 0.0
        %8844 = vst.msk [vmem:[%s8842 + $0x8] sm:$0x1] %vm6402, 0.0
        %8845 = vst.msk [vmem:[%s8842 + $0x10] sm:$0x1] %vm6402, 0.0
        %8846 = vst.msk [vmem:[%s8842 + $0x18] sm:$0x1] %vm6402, 0.0
        %8847 = vst.msk [vmem:[%s8842 + $0x38] sm:$0x1] %vm6402, 0.0
        %8848 = vst.msk [vmem:[%s8842 + $0x40] sm:$0x1] %vm6402, 0.0
        %8849 = vst.msk [vmem:[%s8842 + $0x48] sm:$0x1] %vm6402, 0.0
        %8850 = vst.msk [vmem:[%s8842 + $0x50] sm:$0x1] %vm6402, 0.0
        %vm8851 = vcmask 256000
        %8852 = vst.msk [vmem:[%s8842 + $0x5] sm:$0x7] %vm8851, 0.0
        %8853 = vst.msk [vmem:[%s8842 + $0xd] sm:$0x7] %vm8851, 0.0
        %8854 = vst.msk [vmem:[%s8842 + $0x15] sm:$0x7] %vm8851, 0.0
        %8855 = vst.msk [vmem:[%s8842 + $0x1d] sm:$0x7] %vm8851, 0.0
        %8856 = vst.msk [vmem:[%s8842 + $0x3d] sm:$0x7] %vm8851, 0.0
        %8857 = vst.msk [vmem:[%s8842 + $0x45] sm:$0x7] %vm8851, 0.0
        %8858 = vst.msk [vmem:[%s8842 + $0x4d] sm:$0x7] %vm8851, 0.0
        %8859 = vst.msk [vmem:[%s8842 + $0x55] sm:$0x7] %vm8851, 0.0
        %v8892 = vrot.slane %v8584, 7
        %v8893 = vsel %vm6565, %v8892, %v8577
        %v8894 = vrot.slane %v8591, 6
        %v8895 = vsel %vm6568, %v8894, %v8893
        %v8896 = vrot.slane %v8598, 5
        %v8897 = vsel %vm6571, %v8896, %v8895
        %v8898 = vrot.slane %v8612, 7
        %v8899 = vsel %vm6565, %v8898, %v8605
        %v8900 = vrot.slane %v8619, 6
        %v8901 = vsel %vm6568, %v8900, %v8899
        %v8902 = vrot.slane %v8626, 5
        %v8903 = vsel %vm6571, %v8902, %v8901
        %v8904 = vrot.slane %v8640, 7
        %v8905 = vsel %vm6565, %v8904, %v8633
        %v8906 = vrot.slane %v8647, 6
        %v8907 = vsel %vm6568, %v8906, %v8905
        %v8908 = vrot.slane %v8654, 5
        %v8909 = vsel %vm6571, %v8908, %v8907
        %v8910 = vrot.slane %v8668, 7
        %v8911 = vsel %vm6565, %v8910, %v8661
        %v8912 = vrot.slane %v8675, 6
        %v8913 = vsel %vm6568, %v8912, %v8911
        %v8914 = vrot.slane %v8682, 5
        %v8915 = vsel %vm6571, %v8914, %v8913
        %v8916 = vrot.slane %v8736, 7
        %v8917 = vsel %vm6565, %v8916, %v8729
        %v8918 = vrot.slane %v8743, 6
        %v8919 = vsel %vm6568, %v8918, %v8917
        %v8920 = vrot.slane %v8750, 5
        %v8921 = vsel %vm6571, %v8920, %v8919
        %v8922 = vrot.slane %v8764, 7
        %v8923 = vsel %vm6565, %v8922, %v8757
        %v8924 = vrot.slane %v8771, 6
        %v8925 = vsel %vm6568, %v8924, %v8923
        %v8926 = vrot.slane %v8778, 5
        %v8927 = vsel %vm6571, %v8926, %v8925
        %v8928 = vrot.slane %v8792, 7
        %v8929 = vsel %vm6565, %v8928, %v8785
        %v8930 = vrot.slane %v8799, 6
        %v8931 = vsel %vm6568, %v8930, %v8929
        %v8932 = vrot.slane %v8806, 5
        %v8933 = vsel %vm6571, %v8932, %v8931
        %v8934 = vrot.slane %v8820, 7
        %v8935 = vsel %vm6565, %v8934, %v8813
        %v8936 = vrot.slane %v8827, 6
        %v8937 = vsel %vm6568, %v8936, %v8935
        %v8938 = vrot.slane %v8834, 5
        %v8939 = vsel %vm6571, %v8938, %v8937
        %vm8948 = vcmask 257024
        %8949 = vst.msk [vmem:[%s8842 + $0x1] sm:$0xf] %vm8948, %v8897
        %8950 = vst.msk [vmem:[%s8842 + $0x9] sm:$0xf] %vm8948, %v8903
        %8951 = vst.msk [vmem:[%s8842 + $0x11] sm:$0xf] %vm8948, %v8909
        %8952 = vst.msk [vmem:[%s8842 + $0x19] sm:$0xf] %vm8948, %v8915
        %8953 = vst.msk [vmem:[%s8842 + $0x39] sm:$0xf] %vm8948, %v8921
        %8954 = vst.msk [vmem:[%s8842 + $0x41] sm:$0xf] %vm8948, %v8927
        %8955 = vst.msk [vmem:[%s8842 + $0x49] sm:$0xf] %vm8948, %v8933
        %8956 = vst.msk [vmem:[%s8842 + $0x51] sm:$0xf] %vm8948, %v8939
        %v8957 = vld [vmem:[#allocation8] sm:$0xff]
        %v8958 = vld [vmem:[#allocation8 + $0x8] sm:$0xff]
        %v8959 = vld [vmem:[#allocation8 + $0x10] sm:$0xff]
        %v8960 = vld [vmem:[#allocation8 + $0x18] sm:$0xff]
        %v8961 = vld [vmem:[#allocation8 + $0x20] sm:$0xff]
        %v8962 = vld [vmem:[#allocation8 + $0x28] sm:$0xff]
        %v8963 = vld [vmem:[#allocation8 + $0x30] sm:$0xff]
        %v8964 = vld [vmem:[#allocation8 + $0x38] sm:$0xff]
        %v8965 = vld [vmem:[#allocation8 + $0x40] sm:$0xff]
        %v8966 = vld [vmem:[#allocation8 + $0x48] sm:$0xff]
        %v8967 = vld [vmem:[#allocation8 + $0x50] sm:$0xff]
        %v8968 = vld [vmem:[#allocation8 + $0x58] sm:$0xff]
        %v8969 = vld [vmem:[#allocation8 + $0x60] sm:$0xff]
        %v8970 = vld [vmem:[#allocation8 + $0x68] sm:$0xff]
        %8971 = vst.msk [vmem:[#allocation9] sm:$0xff] %vm2655, %v8957
        %8972 = vst.msk [vmem:[#allocation9 + $0x8] sm:$0xff] %vm2655, %v8958
        %8973 = vst.msk [vmem:[#allocation9 + $0x10] sm:$0xff] %vm2655, %v8959
        %8974 = vst.msk [vmem:[#allocation9 + $0x18] sm:$0xff] %vm2655, %v8960
        %8975 = vst.msk [vmem:[#allocation9 + $0x20] sm:$0xff] %vm2655, %v8961
        %8976 = vst.msk [vmem:[#allocation9 + $0x28] sm:$0xff] %vm2655, %v8962
        %8977 = vst.msk [vmem:[#allocation9 + $0x30] sm:$0xff] %vm2655, %v8963
        %8978 = vst.msk [vmem:[#allocation9 + $0x38] sm:$0xff] %vm2655, %v8964
        %8979 = vst.msk [vmem:[#allocation9 + $0x40] sm:$0xff] %vm2655, %v8965
        %8980 = vst.msk [vmem:[#allocation9 + $0x48] sm:$0xff] %vm2655, %v8966
        %8981 = vst.msk [vmem:[#allocation9 + $0x50] sm:$0xff] %vm2655, %v8967
        %8982 = vst.msk [vmem:[#allocation9 + $0x58] sm:$0xff] %vm2655, %v8968
        %8983 = vst.msk [vmem:[#allocation9 + $0x60] sm:$0xff] %vm2655, %v8969
        %8998 = vrot.lane.b32.xlu0 %v8957, 32
        %v8999 = vpop.permute.xlu0 %8998
        %9000 = vrot.lane.b32.xlu0 %v8958, 32
        %v9001 = vpop.permute.xlu0 %9000
        %9002 = vrot.lane.b32.xlu0 %v8959, 32
        %v9003 = vpop.permute.xlu0 %9002
        %9004 = vrot.lane.b32.xlu0 %v8960, 32
        %v9005 = vpop.permute.xlu0 %9004
        %9006 = vrot.lane.b32.xlu0 %v8961, 32
        %v9007 = vpop.permute.xlu0 %9006
        %9008 = vrot.lane.b32.xlu0 %v8962, 32
        %v9009 = vpop.permute.xlu0 %9008
        %9010 = vrot.lane.b32.xlu0 %v8963, 32
        %v9011 = vpop.permute.xlu0 %9010
        %9012 = vrot.lane.b32.xlu0 %v8964, 32
        %v9013 = vpop.permute.xlu0 %9012
        %9014 = vrot.lane.b32.xlu0 %v8965, 32
        %v9015 = vpop.permute.xlu0 %9014
        %9016 = vrot.lane.b32.xlu0 %v8966, 32
        %v9017 = vpop.permute.xlu0 %9016
        %9018 = vrot.lane.b32.xlu0 %v8967, 32
        %v9019 = vpop.permute.xlu0 %9018
        %9020 = vrot.lane.b32.xlu0 %v8968, 32
        %v9021 = vpop.permute.xlu0 %9020
        %9022 = vrot.lane.b32.xlu0 %v8969, 32
        %v9023 = vpop.permute.xlu0 %9022
        %9024 = vrot.lane.b32.xlu0 %v8970, 32
        %v9025 = vpop.permute.xlu0 %9024
        %9040 = vst.msk [vmem:[#allocation9 - $0x1] sm:$0xfe] %vm7084, %v8999
        %9041 = vst.msk [vmem:[#allocation9 + $0x7] sm:$0xff] %vm7086, %v9001
        %9042 = vst.msk [vmem:[#allocation9 + $0xf] sm:$0xff] %vm7086, %v9003
        %9043 = vst.msk [vmem:[#allocation9 + $0x17] sm:$0xff] %vm7086, %v9005
        %9044 = vst.msk [vmem:[#allocation9 + $0x1f] sm:$0xff] %vm7086, %v9007
        %9045 = vst.msk [vmem:[#allocation9 + $0x27] sm:$0xff] %vm7086, %v9009
        %9046 = vst.msk [vmem:[#allocation9 + $0x2f] sm:$0xff] %vm7086, %v9011
        %9047 = vst.msk [vmem:[#allocation9 + $0x37] sm:$0xff] %vm7086, %v9013
        %9048 = vst.msk [vmem:[#allocation9 + $0x3f] sm:$0xff] %vm7086, %v9015
        %9049 = vst.msk [vmem:[#allocation9 + $0x47] sm:$0xff] %vm7086, %v9017
        %9050 = vst.msk [vmem:[#allocation9 + $0x4f] sm:$0xff] %vm7086, %v9019
        %9051 = vst.msk [vmem:[#allocation9 + $0x57] sm:$0xff] %vm7086, %v9021
        %9052 = vst.msk [vmem:[#allocation9 + $0x5f] sm:$0xff] %vm7086, %v9023
        %9053 = vst.msk [vmem:[#allocation9 + $0x67] sm:$0x1] %vm7128, %v9025
        %9054 = vrot.lane.b32.xlu0 %v8957, 64
        %v9055 = vpop.permute.xlu0 %9054
        %9056 = vrot.lane.b32.xlu0 %v8958, 64
        %v9057 = vpop.permute.xlu0 %9056
        %9058 = vrot.lane.b32.xlu0 %v8959, 64
        %v9059 = vpop.permute.xlu0 %9058
        %9060 = vrot.lane.b32.xlu0 %v8960, 64
        %v9061 = vpop.permute.xlu0 %9060
        %9062 = vrot.lane.b32.xlu0 %v8961, 64
        %v9063 = vpop.permute.xlu0 %9062
        %9064 = vrot.lane.b32.xlu0 %v8962, 64
        %v9065 = vpop.permute.xlu0 %9064
        %9066 = vrot.lane.b32.xlu0 %v8963, 64
        %v9067 = vpop.permute.xlu0 %9066
        %9068 = vrot.lane.b32.xlu0 %v8964, 64
        %v9069 = vpop.permute.xlu0 %9068
        %9070 = vrot.lane.b32.xlu0 %v8965, 64
        %v9071 = vpop.permute.xlu0 %9070
        %9072 = vrot.lane.b32.xlu0 %v8966, 64
        %v9073 = vpop.permute.xlu0 %9072
        %9074 = vrot.lane.b32.xlu0 %v8967, 64
        %v9075 = vpop.permute.xlu0 %9074
        %9076 = vrot.lane.b32.xlu0 %v8968, 64
        %v9077 = vpop.permute.xlu0 %9076
        %9078 = vrot.lane.b32.xlu0 %v8969, 64
        %v9079 = vpop.permute.xlu0 %9078
        %9080 = vrot.lane.b32.xlu0 %v8970, 64
        %v9081 = vpop.permute.xlu0 %9080
        %9096 = vst.msk [vmem:[#allocation9 - $0x2] sm:$0xfc] %vm7259, %v9055
        %9097 = vst.msk [vmem:[#allocation9 + $0x6] sm:$0xff] %vm7261, %v9057
        %9098 = vst.msk [vmem:[#allocation9 + $0xe] sm:$0xff] %vm7261, %v9059
        %9099 = vst.msk [vmem:[#allocation9 + $0x16] sm:$0xff] %vm7261, %v9061
        %9100 = vst.msk [vmem:[#allocation9 + $0x1e] sm:$0xff] %vm7261, %v9063
        %9101 = vst.msk [vmem:[#allocation9 + $0x26] sm:$0xff] %vm7261, %v9065
        %9102 = vst.msk [vmem:[#allocation9 + $0x2e] sm:$0xff] %vm7261, %v9067
        %9103 = vst.msk [vmem:[#allocation9 + $0x36] sm:$0xff] %vm7261, %v9069
        %9104 = vst.msk [vmem:[#allocation9 + $0x3e] sm:$0xff] %vm7261, %v9071
        %9105 = vst.msk [vmem:[#allocation9 + $0x46] sm:$0xff] %vm7261, %v9073
        %9106 = vst.msk [vmem:[#allocation9 + $0x4e] sm:$0xff] %vm7261, %v9075
        %9107 = vst.msk [vmem:[#allocation9 + $0x56] sm:$0xff] %vm7261, %v9077
        %9108 = vst.msk [vmem:[#allocation9 + $0x5e] sm:$0xff] %vm7261, %v9079
        %9109 = vst.msk [vmem:[#allocation9 + $0x66] sm:$0x3] %vm7303, %v9081
        %v9110 = vld [vmem:[#allocation9] sm:$0xff]
        %v9111 = vld [vmem:[#allocation9 + $0x8] sm:$0xff]
        %v9112 = vld [vmem:[#allocation9 + $0x10] sm:$0xff]
        %v9113 = vld [vmem:[#allocation9 + $0x18] sm:$0xff]
        %v9114 = vld [vmem:[#allocation9 + $0x20] sm:$0xff]
        %v9115 = vld [vmem:[#allocation9 + $0x28] sm:$0xff]
        %v9116 = vld [vmem:[#allocation9 + $0x30] sm:$0xff]
        %v9117 = vld [vmem:[#allocation9 + $0x38] sm:$0xff]
        %v9118 = vld [vmem:[#allocation9 + $0x40] sm:$0xff]
        %v9119 = vld [vmem:[#allocation9 + $0x48] sm:$0xff]
        %v9120 = vld [vmem:[#allocation9 + $0x50] sm:$0xff]
        %v9121 = vld [vmem:[%s7] sm:$0xff]
        %v9122 = vld [vmem:[%s7 + $0x8] sm:$0xff]
        %v9123 = vld [vmem:[%s7 + $0x10] sm:$0xff]
        %v9124 = vld [vmem:[%s7 + $0x18] sm:$0xff]
        %v9125 = vld [vmem:[%s7 + $0x20] sm:$0xff]
        %v9126 = vld [vmem:[%s7 + $0x28] sm:$0xff]
        %v9127 = vld [vmem:[%s7 + $0x30] sm:$0xff]
        %v9128 = vld [vmem:[%s7 + $0x38] sm:$0xff]
        %v9129 = vld [vmem:[%s7 + $0x40] sm:$0xff]
        %v9130 = vld [vmem:[%s7 + $0x48] sm:$0xff]
        %v9131 = vld [vmem:[%s7 + $0x50] sm:$0xff]
        %v9132 = vld [vmem:[%s7 + $0x58] sm:$0xff]
        %v9134 = vsel %vm7355, %v9110, 0
        %v9137 = vsel %vm7355, %v9111, 0
        %v9140 = vsel %vm7355, %v9112, 0
        %v9143 = vsel %vm7355, %v9113, 0
        %v9146 = vsel %vm7355, %v9114, 0
        %v9149 = vsel %vm7355, %v9115, 0
        %v9152 = vsel %vm7355, %v9116, 0
        %v9155 = vsel %vm7355, %v9117, 0
        %v9158 = vsel %vm7355, %v9118, 0
        %v9161 = vsel %vm7355, %v9119, 0
        %v9164 = vsel %vm7355, %v9120, 0
        %9166 = vmatpush.msra.mxu0 0.0
        %9167 = vmatpush.msra.mxu0 0.0
        %9168 = vmatpush.msra.mxu0 0.0
        %9169 = vmatpush.msra.mxu0 0.0
        %9170 = vmatpush.msra.mxu0 %v9132
        %9171 = vmatpush.msra.mxu0 %v9131
        %9172 = vmatpush.msra.mxu0 %v9130
        %9173 = vmatpush.msra.mxu0 %v9129
        %9174 = vmatpush.msra.mxu0 %v9128
        %9175 = vmatpush.msra.mxu0 %v9127
        %9176 = vmatpush.msra.mxu0 %v9126
        %9177 = vmatpush.msra.mxu0 %v9125
        %9178 = vmatpush.msra.mxu0 %v9124
        %9179 = vmatpush.msra.mxu0 %v9123
        %9180 = vmatpush.msra.mxu0 %v9122
        %9181 = vmatpush.msra.mxu0 %v9121
        %9182 = vmatmul.f32.gmra.mxu0 %v9134
        %v9183 = vpop.f32.mrf.mxu0
        %v9184 = vadd.f32 0.0, %v9183
        %9185 = vmatmul.f32.gmra.mxu0 %v9137
        %v9186 = vpop.f32.mrf.mxu0
        %v9187 = vadd.f32 0.0, %v9186
        %9188 = vmatmul.f32.gmra.mxu0 %v9140
        %v9189 = vpop.f32.mrf.mxu0
        %v9190 = vadd.f32 0.0, %v9189
        %9191 = vmatmul.f32.gmra.mxu0 %v9143
        %v9192 = vpop.f32.mrf.mxu0
        %v9193 = vadd.f32 0.0, %v9192
        %9194 = vmatmul.f32.gmra.mxu0 %v9146
        %v9195 = vpop.f32.mrf.mxu0
        %v9196 = vadd.f32 0.0, %v9195
        %9197 = vmatmul.f32.gmra.mxu0 %v9149
        %v9198 = vpop.f32.mrf.mxu0
        %v9199 = vadd.f32 0.0, %v9198
        %9200 = vmatmul.f32.gmra.mxu0 %v9152
        %v9201 = vpop.f32.mrf.mxu0
        %v9202 = vadd.f32 0.0, %v9201
        %9203 = vmatmul.f32.gmra.mxu0 %v9155
        %v9204 = vpop.f32.mrf.mxu0
        %v9205 = vadd.f32 0.0, %v9204
        %9206 = vmatmul.f32.gmra.mxu0 %v9158
        %v9207 = vpop.f32.mrf.mxu0
        %v9208 = vadd.f32 0.0, %v9207
        %9209 = vmatmul.f32.gmra.mxu0 %v9161
        %v9210 = vpop.f32.mrf.mxu0
        %v9211 = vadd.f32 0.0, %v9210
        %9212 = vmatmul.f32.gmra.mxu0 %v9164
        %v9213 = vpop.f32.mrf.mxu0
        %v9214 = vadd.f32 0.0, %v9213
        %9215 = vdwg.mxu0
        %9216 = vst.msk [vmem:[#allocation10] sm:$0xff] %vm2655, %v9184
        %9217 = vst.msk [vmem:[#allocation10 + $0x8] sm:$0xff] %vm2655, %v9187
        %9218 = vst.msk [vmem:[#allocation10 + $0x10] sm:$0xff] %vm2655, %v9190
        %9219 = vst.msk [vmem:[#allocation10 + $0x18] sm:$0xff] %vm2655, %v9193
        %9220 = vst.msk [vmem:[#allocation10 + $0x20] sm:$0xff] %vm2655, %v9196
        %9221 = vst.msk [vmem:[#allocation10 + $0x28] sm:$0xff] %vm2655, %v9199
        %9222 = vst.msk [vmem:[#allocation10 + $0x30] sm:$0xff] %vm2655, %v9202
        %9223 = vst.msk [vmem:[#allocation10 + $0x38] sm:$0xff] %vm2655, %v9205
        %9224 = vst.msk [vmem:[#allocation10 + $0x40] sm:$0xff] %vm2655, %v9208
        %9225 = vst.msk [vmem:[#allocation10 + $0x48] sm:$0xff] %vm2655, %v9211
        %9226 = vst.msk [vmem:[#allocation10 + $0x50] sm:$0xff] %vm2655, %v9214
        %v9227 = vld [vmem:[#allocation9 + $0x8] sm:$0xff]
        %v9228 = vld [vmem:[#allocation9 + $0x10] sm:$0xff]
        %v9229 = vld [vmem:[#allocation9 + $0x18] sm:$0xff]
        %v9230 = vld [vmem:[#allocation9 + $0x20] sm:$0xff]
        %v9231 = vld [vmem:[#allocation9 + $0x28] sm:$0xff]
        %v9232 = vld [vmem:[#allocation9 + $0x30] sm:$0xff]
        %v9233 = vld [vmem:[#allocation9 + $0x38] sm:$0xff]
        %v9234 = vld [vmem:[#allocation9 + $0x40] sm:$0xff]
        %v9235 = vld [vmem:[#allocation9 + $0x48] sm:$0xff]
        %v9236 = vld [vmem:[#allocation9 + $0x50] sm:$0xff]
        %v9237 = vld [vmem:[#allocation9 + $0x58] sm:$0xff]
        %s9238 = scalar_lea.vmem %s7, 96
        %v9239 = vld [vmem:[%s9238] sm:$0xff]
        %v9240 = vld [vmem:[%s9238 + $0x8] sm:$0xff]
        %v9241 = vld [vmem:[%s9238 + $0x10] sm:$0xff]
        %v9242 = vld [vmem:[%s9238 + $0x18] sm:$0xff]
        %v9243 = vld [vmem:[%s9238 + $0x20] sm:$0xff]
        %v9244 = vld [vmem:[%s9238 + $0x28] sm:$0xff]
        %v9245 = vld [vmem:[%s9238 + $0x30] sm:$0xff]
        %v9246 = vld [vmem:[%s9238 + $0x38] sm:$0xff]
        %v9247 = vld [vmem:[%s9238 + $0x40] sm:$0xff]
        %v9248 = vld [vmem:[%s9238 + $0x48] sm:$0xff]
        %v9249 = vld [vmem:[%s9238 + $0x50] sm:$0xff]
        %v9250 = vld [vmem:[%s9238 + $0x58] sm:$0xff]
        %v9252 = vsel %vm7355, %v9227, 0
        %v9255 = vsel %vm7355, %v9228, 0
        %v9258 = vsel %vm7355, %v9229, 0
        %v9261 = vsel %vm7355, %v9230, 0
        %v9264 = vsel %vm7355, %v9231, 0
        %v9267 = vsel %vm7355, %v9232, 0
        %v9270 = vsel %vm7355, %v9233, 0
        %v9273 = vsel %vm7355, %v9234, 0
        %v9276 = vsel %vm7355, %v9235, 0
        %v9279 = vsel %vm7355, %v9236, 0
        %v9282 = vsel %vm7355, %v9237, 0
        %9284 = vmatpush.msra.mxu0 0.0
        %9285 = vmatpush.msra.mxu0 0.0
        %9286 = vmatpush.msra.mxu0 0.0
        %9287 = vmatpush.msra.mxu0 0.0
        %9288 = vmatpush.msra.mxu0 %v9250
        %9289 = vmatpush.msra.mxu0 %v9249
        %9290 = vmatpush.msra.mxu0 %v9248
        %9291 = vmatpush.msra.mxu0 %v9247
        %9292 = vmatpush.msra.mxu0 %v9246
        %9293 = vmatpush.msra.mxu0 %v9245
        %9294 = vmatpush.msra.mxu0 %v9244
        %9295 = vmatpush.msra.mxu0 %v9243
        %9296 = vmatpush.msra.mxu0 %v9242
        %9297 = vmatpush.msra.mxu0 %v9241
        %9298 = vmatpush.msra.mxu0 %v9240
        %9299 = vmatpush.msra.mxu0 %v9239
        %9300 = vmatmul.f32.gmra.mxu0 %v9252
        %v9301 = vpop.f32.mrf.mxu0
        %v9302 = vadd.f32 0.0, %v9301
        %9303 = vmatmul.f32.gmra.mxu0 %v9255
        %v9304 = vpop.f32.mrf.mxu0
        %v9305 = vadd.f32 0.0, %v9304
        %9306 = vmatmul.f32.gmra.mxu0 %v9258
        %v9307 = vpop.f32.mrf.mxu0
        %v9308 = vadd.f32 0.0, %v9307
        %9309 = vmatmul.f32.gmra.mxu0 %v9261
        %v9310 = vpop.f32.mrf.mxu0
        %v9311 = vadd.f32 0.0, %v9310
        %9312 = vmatmul.f32.gmra.mxu0 %v9264
        %v9313 = vpop.f32.mrf.mxu0
        %v9314 = vadd.f32 0.0, %v9313
        %9315 = vmatmul.f32.gmra.mxu0 %v9267
        %v9316 = vpop.f32.mrf.mxu0
        %v9317 = vadd.f32 0.0, %v9316
        %9318 = vmatmul.f32.gmra.mxu0 %v9270
        %v9319 = vpop.f32.mrf.mxu0
        %v9320 = vadd.f32 0.0, %v9319
        %9321 = vmatmul.f32.gmra.mxu0 %v9273
        %v9322 = vpop.f32.mrf.mxu0
        %v9323 = vadd.f32 0.0, %v9322
        %9324 = vmatmul.f32.gmra.mxu0 %v9276
        %v9325 = vpop.f32.mrf.mxu0
        %v9326 = vadd.f32 0.0, %v9325
        %9327 = vmatmul.f32.gmra.mxu0 %v9279
        %v9328 = vpop.f32.mrf.mxu0
        %v9329 = vadd.f32 0.0, %v9328
        %9330 = vmatmul.f32.gmra.mxu0 %v9282
        %v9331 = vpop.f32.mrf.mxu0
        %v9332 = vadd.f32 0.0, %v9331
        %9333 = vdwg.mxu0
        %v9334 = vld [vmem:[#allocation10] sm:$0xff]
        %v9335 = vld [vmem:[#allocation10 + $0x8] sm:$0xff]
        %v9336 = vld [vmem:[#allocation10 + $0x10] sm:$0xff]
        %v9337 = vld [vmem:[#allocation10 + $0x18] sm:$0xff]
        %v9338 = vld [vmem:[#allocation10 + $0x20] sm:$0xff]
        %v9339 = vld [vmem:[#allocation10 + $0x28] sm:$0xff]
        %v9340 = vld [vmem:[#allocation10 + $0x30] sm:$0xff]
        %v9341 = vld [vmem:[#allocation10 + $0x38] sm:$0xff]
        %v9342 = vld [vmem:[#allocation10 + $0x40] sm:$0xff]
        %v9343 = vld [vmem:[#allocation10 + $0x48] sm:$0xff]
        %v9344 = vld [vmem:[#allocation10 + $0x50] sm:$0xff]
        %v9345 = vadd.f32 %v9334, %v9302
        %v9346 = vadd.f32 %v9335, %v9305
        %v9347 = vadd.f32 %v9336, %v9308
        %v9348 = vadd.f32 %v9337, %v9311
        %v9349 = vadd.f32 %v9338, %v9314
        %v9350 = vadd.f32 %v9339, %v9317
        %v9351 = vadd.f32 %v9340, %v9320
        %v9352 = vadd.f32 %v9341, %v9323
        %v9353 = vadd.f32 %v9342, %v9326
        %v9354 = vadd.f32 %v9343, %v9329
        %v9355 = vadd.f32 %v9344, %v9332
        %9356 = vst.msk [vmem:[#allocation10] sm:$0xff] %vm2655, %v9345
        %9357 = vst.msk [vmem:[#allocation10 + $0x8] sm:$0xff] %vm2655, %v9346
        %9358 = vst.msk [vmem:[#allocation10 + $0x10] sm:$0xff] %vm2655, %v9347
        %9359 = vst.msk [vmem:[#allocation10 + $0x18] sm:$0xff] %vm2655, %v9348
        %9360 = vst.msk [vmem:[#allocation10 + $0x20] sm:$0xff] %vm2655, %v9349
        %9361 = vst.msk [vmem:[#allocation10 + $0x28] sm:$0xff] %vm2655, %v9350
        %9362 = vst.msk [vmem:[#allocation10 + $0x30] sm:$0xff] %vm2655, %v9351
        %9363 = vst.msk [vmem:[#allocation10 + $0x38] sm:$0xff] %vm2655, %v9352
        %9364 = vst.msk [vmem:[#allocation10 + $0x40] sm:$0xff] %vm2655, %v9353
        %9365 = vst.msk [vmem:[#allocation10 + $0x48] sm:$0xff] %vm2655, %v9354
        %9366 = vst.msk [vmem:[#allocation10 + $0x50] sm:$0xff] %vm2655, %v9355
        %v9367 = vld [vmem:[#allocation9 + $0x10] sm:$0xff]
        %v9368 = vld [vmem:[#allocation9 + $0x18] sm:$0xff]
        %v9369 = vld [vmem:[#allocation9 + $0x20] sm:$0xff]
        %v9370 = vld [vmem:[#allocation9 + $0x28] sm:$0xff]
        %v9371 = vld [vmem:[#allocation9 + $0x30] sm:$0xff]
        %v9372 = vld [vmem:[#allocation9 + $0x38] sm:$0xff]
        %v9373 = vld [vmem:[#allocation9 + $0x40] sm:$0xff]
        %v9374 = vld [vmem:[#allocation9 + $0x48] sm:$0xff]
        %v9375 = vld [vmem:[#allocation9 + $0x50] sm:$0xff]
        %v9376 = vld [vmem:[#allocation9 + $0x58] sm:$0xff]
        %v9377 = vld [vmem:[#allocation9 + $0x60] sm:$0xff]
        %s9378 = scalar_lea.vmem %s7, 192
        %v9379 = vld [vmem:[%s9378] sm:$0xff]
        %v9380 = vld [vmem:[%s9378 + $0x8] sm:$0xff]
        %v9381 = vld [vmem:[%s9378 + $0x10] sm:$0xff]
        %v9382 = vld [vmem:[%s9378 + $0x18] sm:$0xff]
        %v9383 = vld [vmem:[%s9378 + $0x20] sm:$0xff]
        %v9384 = vld [vmem:[%s9378 + $0x28] sm:$0xff]
        %v9385 = vld [vmem:[%s9378 + $0x30] sm:$0xff]
        %v9386 = vld [vmem:[%s9378 + $0x38] sm:$0xff]
        %v9387 = vld [vmem:[%s9378 + $0x40] sm:$0xff]
        %v9388 = vld [vmem:[%s9378 + $0x48] sm:$0xff]
        %v9389 = vld [vmem:[%s9378 + $0x50] sm:$0xff]
        %v9390 = vld [vmem:[%s9378 + $0x58] sm:$0xff]
        %v9392 = vsel %vm7355, %v9367, 0
        %v9395 = vsel %vm7355, %v9368, 0
        %v9398 = vsel %vm7355, %v9369, 0
        %v9401 = vsel %vm7355, %v9370, 0
        %v9404 = vsel %vm7355, %v9371, 0
        %v9407 = vsel %vm7355, %v9372, 0
        %v9410 = vsel %vm7355, %v9373, 0
        %v9413 = vsel %vm7355, %v9374, 0
        %v9416 = vsel %vm7355, %v9375, 0
        %v9419 = vsel %vm7355, %v9376, 0
        %v9422 = vsel %vm7355, %v9377, 0
        %9424 = vmatpush.msra.mxu0 0.0
        %9425 = vmatpush.msra.mxu0 0.0
        %9426 = vmatpush.msra.mxu0 0.0
        %9427 = vmatpush.msra.mxu0 0.0
        %9428 = vmatpush.msra.mxu0 %v9390
        %9429 = vmatpush.msra.mxu0 %v9389
        %9430 = vmatpush.msra.mxu0 %v9388
        %9431 = vmatpush.msra.mxu0 %v9387
        %9432 = vmatpush.msra.mxu0 %v9386
        %9433 = vmatpush.msra.mxu0 %v9385
        %9434 = vmatpush.msra.mxu0 %v9384
        %9435 = vmatpush.msra.mxu0 %v9383
        %9436 = vmatpush.msra.mxu0 %v9382
        %9437 = vmatpush.msra.mxu0 %v9381
        %9438 = vmatpush.msra.mxu0 %v9380
        %9439 = vmatpush.msra.mxu0 %v9379
        %9440 = vmatmul.f32.gmra.mxu0 %v9392
        %v9441 = vpop.f32.mrf.mxu0
        %v9442 = vadd.f32 0.0, %v9441
        %9443 = vmatmul.f32.gmra.mxu0 %v9395
        %v9444 = vpop.f32.mrf.mxu0
        %v9445 = vadd.f32 0.0, %v9444
        %9446 = vmatmul.f32.gmra.mxu0 %v9398
        %v9447 = vpop.f32.mrf.mxu0
        %v9448 = vadd.f32 0.0, %v9447
        %9449 = vmatmul.f32.gmra.mxu0 %v9401
        %v9450 = vpop.f32.mrf.mxu0
        %v9451 = vadd.f32 0.0, %v9450
        %9452 = vmatmul.f32.gmra.mxu0 %v9404
        %v9453 = vpop.f32.mrf.mxu0
        %v9454 = vadd.f32 0.0, %v9453
        %9455 = vmatmul.f32.gmra.mxu0 %v9407
        %v9456 = vpop.f32.mrf.mxu0
        %v9457 = vadd.f32 0.0, %v9456
        %9458 = vmatmul.f32.gmra.mxu0 %v9410
        %v9459 = vpop.f32.mrf.mxu0
        %v9460 = vadd.f32 0.0, %v9459
        %9461 = vmatmul.f32.gmra.mxu0 %v9413
        %v9462 = vpop.f32.mrf.mxu0
        %v9463 = vadd.f32 0.0, %v9462
        %9464 = vmatmul.f32.gmra.mxu0 %v9416
        %v9465 = vpop.f32.mrf.mxu0
        %v9466 = vadd.f32 0.0, %v9465
        %9467 = vmatmul.f32.gmra.mxu0 %v9419
        %v9468 = vpop.f32.mrf.mxu0
        %v9469 = vadd.f32 0.0, %v9468
        %9470 = vmatmul.f32.gmra.mxu0 %v9422
        %v9471 = vpop.f32.mrf.mxu0
        %v9472 = vadd.f32 0.0, %v9471
        %9473 = vdwg.mxu0
        %v9474 = vld [vmem:[#allocation10] sm:$0xff]
        %v9475 = vld [vmem:[#allocation10 + $0x8] sm:$0xff]
        %v9476 = vld [vmem:[#allocation10 + $0x10] sm:$0xff]
        %v9477 = vld [vmem:[#allocation10 + $0x18] sm:$0xff]
        %v9478 = vld [vmem:[#allocation10 + $0x20] sm:$0xff]
        %v9479 = vld [vmem:[#allocation10 + $0x28] sm:$0xff]
        %v9480 = vld [vmem:[#allocation10 + $0x30] sm:$0xff]
        %v9481 = vld [vmem:[#allocation10 + $0x38] sm:$0xff]
        %v9482 = vld [vmem:[#allocation10 + $0x40] sm:$0xff]
        %v9483 = vld [vmem:[#allocation10 + $0x48] sm:$0xff]
        %v9484 = vld [vmem:[#allocation10 + $0x50] sm:$0xff]
        %v9485 = vadd.f32 %v9474, %v9442
        %v9486 = vadd.f32 %v9475, %v9445
        %v9487 = vadd.f32 %v9476, %v9448
        %v9488 = vadd.f32 %v9477, %v9451
        %v9489 = vadd.f32 %v9478, %v9454
        %v9490 = vadd.f32 %v9479, %v9457
        %v9491 = vadd.f32 %v9480, %v9460
        %v9492 = vadd.f32 %v9481, %v9463
        %v9493 = vadd.f32 %v9482, %v9466
        %v9494 = vadd.f32 %v9483, %v9469
        %v9495 = vadd.f32 %v9484, %v9472
        %9496 = vst.msk [vmem:[#allocation10] sm:$0xff] %vm2655, %v9485
        %9497 = vst.msk [vmem:[#allocation10 + $0x8] sm:$0xff] %vm2655, %v9486
        %9498 = vst.msk [vmem:[#allocation10 + $0x10] sm:$0xff] %vm2655, %v9487
        %9499 = vst.msk [vmem:[#allocation10 + $0x18] sm:$0xff] %vm2655, %v9488
        %9500 = vst.msk [vmem:[#allocation10 + $0x20] sm:$0xff] %vm2655, %v9489
        %9501 = vst.msk [vmem:[#allocation10 + $0x28] sm:$0xff] %vm2655, %v9490
        %9502 = vst.msk [vmem:[#allocation10 + $0x30] sm:$0xff] %vm2655, %v9491
        %9503 = vst.msk [vmem:[#allocation10 + $0x38] sm:$0xff] %vm2655, %v9492
        %9504 = vst.msk [vmem:[#allocation10 + $0x40] sm:$0xff] %vm2655, %v9493
        %9505 = vst.msk [vmem:[#allocation10 + $0x48] sm:$0xff] %vm2655, %v9494
        %9506 = vst.msk [vmem:[#allocation10 + $0x50] sm:$0xff] %vm2655, %v9495
        %v9507 = vld [vmem:[#allocation10] sm:$0xff]
        %v9508 = vld [vmem:[#allocation10 + $0x8] sm:$0xff]
        %v9509 = vld [vmem:[#allocation10 + $0x10] sm:$0xff]
        %v9510 = vld [vmem:[#allocation10 + $0x18] sm:$0xff]
        %v9511 = vld [vmem:[#allocation10 + $0x38] sm:$0xff]
        %v9512 = vld [vmem:[#allocation10 + $0x40] sm:$0xff]
        %v9513 = vld [vmem:[#allocation10 + $0x48] sm:$0xff]
        %v9514 = vld [vmem:[#allocation10 + $0x50] sm:$0xff]
        %v9515 = vld [vmem:[%s8] sm:$0x1]
        %v9517 = vperm.slane %v9515, 0
        %v9519 = vmul.f32 %v9507, %v9517
        %v9520 = vmul.f32 %v9508, %v9517
        %v9521 = vmul.f32 %v9509, %v9517
        %v9522 = vmul.f32 %v9510, %v9517
        %v9523 = vmul.f32 %v9511, %v9517
        %v9524 = vmul.f32 %v9512, %v9517
        %v9525 = vmul.f32 %v9513, %v9517
        %v9526 = vmul.f32 %v9514, %v9517
        %v9527 = vld [vmem:[%s9] sm:$0x1]
        %v9529 = vperm.slane %v9527, 0
        %v9531 = vadd.f32 %v9519, %v9529
        %v9532 = vadd.f32 %v9520, %v9529
        %v9533 = vadd.f32 %v9521, %v9529
        %v9534 = vadd.f32 %v9522, %v9529
        %v9535 = vadd.f32 %v9523, %v9529
        %v9536 = vadd.f32 %v9524, %v9529
        %v9537 = vadd.f32 %v9525, %v9529
        %v9538 = vadd.f32 %v9526, %v9529
        %v9539 = vmax.f32 %v9531, 0.0
        %v9540 = vmax.f32 %v9532, 0.0
        %v9541 = vmax.f32 %v9533, 0.0
        %v9542 = vmax.f32 %v9534, 0.0
        %v9543 = vmax.f32 %v9535, 0.0
        %v9544 = vmax.f32 %v9536, 0.0
        %v9545 = vmax.f32 %v9537, 0.0
        %v9546 = vmax.f32 %v9538, 0.0
        %v9547 = vsel %vm2655, %v9539, -inf
        %v9548 = vsel %vm2655, %v9540, -inf
        %v9549 = vmax.f32 %v9547, %v9548
        %v9550 = vsel %vm2655, %v9541, -inf
        %v9551 = vsel %vm2655, %v9542, -inf
        %v9552 = vmax.f32 %v9550, %v9551
        %v9555 = vrot.slane %v9549, 2
        %v9556 = vrot.slane %v9552, 2
        %v9559 = vsel %vm5331, %v9549, -inf
        %v9560 = vrot.slane %v9559, 4
        %v9561 = vmax.f32 %v9559, %v9560
        %v9562 = vrot.slane %v9561, 2
        %v9563 = vmax.f32 %v9561, %v9562
        %v9564 = vrot.slane %v9563, 1
        %v9565 = vmax.f32 %v9563, %v9564
        %v9566 = vsel %vm5331, %v9555, -inf
        %v9567 = vrot.slane %v9566, 4
        %v9568 = vmax.f32 %v9566, %v9567
        %v9569 = vrot.slane %v9568, 2
        %v9570 = vmax.f32 %v9568, %v9569
        %v9571 = vrot.slane %v9570, 1
        %v9572 = vmax.f32 %v9570, %v9571
        %v9573 = vsel %vm5331, %v9552, -inf
        %v9574 = vrot.slane %v9573, 4
        %v9575 = vmax.f32 %v9573, %v9574
        %v9576 = vrot.slane %v9575, 2
        %v9577 = vmax.f32 %v9575, %v9576
        %v9578 = vrot.slane %v9577, 1
        %v9579 = vmax.f32 %v9577, %v9578
        %v9580 = vsel %vm5331, %v9556, -inf
        %v9581 = vrot.slane %v9580, 4
        %v9582 = vmax.f32 %v9580, %v9581
        %v9583 = vrot.slane %v9582, 2
        %v9584 = vmax.f32 %v9582, %v9583
        %v9585 = vrot.slane %v9584, 1
        %v9586 = vmax.f32 %v9584, %v9585
        %v9587 = vsel %vm2655, %v9543, -inf
        %v9588 = vsel %vm2655, %v9544, -inf
        %v9589 = vmax.f32 %v9587, %v9588
        %v9590 = vsel %vm2655, %v9545, -inf
        %v9591 = vsel %vm2655, %v9546, -inf
        %v9592 = vmax.f32 %v9590, %v9591
        %v9595 = vrot.slane %v9589, 2
        %v9596 = vrot.slane %v9592, 2
        %v9599 = vsel %vm5331, %v9589, -inf
        %v9600 = vrot.slane %v9599, 4
        %v9601 = vmax.f32 %v9599, %v9600
        %v9602 = vrot.slane %v9601, 2
        %v9603 = vmax.f32 %v9601, %v9602
        %v9604 = vrot.slane %v9603, 1
        %v9605 = vmax.f32 %v9603, %v9604
        %v9606 = vsel %vm5331, %v9595, -inf
        %v9607 = vrot.slane %v9606, 4
        %v9608 = vmax.f32 %v9606, %v9607
        %v9609 = vrot.slane %v9608, 2
        %v9610 = vmax.f32 %v9608, %v9609
        %v9611 = vrot.slane %v9610, 1
        %v9612 = vmax.f32 %v9610, %v9611
        %v9613 = vsel %vm5331, %v9592, -inf
        %v9614 = vrot.slane %v9613, 4
        %v9615 = vmax.f32 %v9613, %v9614
        %v9616 = vrot.slane %v9615, 2
        %v9617 = vmax.f32 %v9615, %v9616
        %v9618 = vrot.slane %v9617, 1
        %v9619 = vmax.f32 %v9617, %v9618
        %v9620 = vsel %vm5331, %v9596, -inf
        %v9621 = vrot.slane %v9620, 4
        %v9622 = vmax.f32 %v9620, %v9621
        %v9623 = vrot.slane %v9622, 2
        %v9624 = vmax.f32 %v9622, %v9623
        %v9625 = vrot.slane %v9624, 1
        %v9626 = vmax.f32 %v9624, %v9625
        %9627 = vst.msk [vmem:[#allocation11] sm:$0xff] %vm2655, 0.0
        %9628 = vst.msk [vmem:[#allocation11 + $0x28] sm:$0xff] %vm2655, 0.0
        %s9629 = scalar_lea.vmem [#allocation11], 24
        %9630 = vst.msk [vmem:[%s9629] sm:$0xff] %vm2655, 0.0
        %9631 = vst.msk [vmem:[%s9629 + $0x8] sm:$0xff] %vm2655, 0.0
        %9632 = vst.msk [vmem:[%s9629 + $0x28] sm:$0xff] %vm2655, 0.0
        %9633 = vst.msk [vmem:[%s9629 + $0x30] sm:$0xff] %vm2655, 0.0
        %s9634 = scalar_lea.vmem [#allocation11], 8
        %9635 = vst.msk [vmem:[%s9634] sm:$0x1] %vm6402, 0.0
        %9636 = vst.msk [vmem:[%s9634 + $0x8] sm:$0x1] %vm6402, 0.0
        %9637 = vst.msk [vmem:[%s9634 + $0x28] sm:$0x1] %vm6402, 0.0
        %9638 = vst.msk [vmem:[%s9634 + $0x30] sm:$0x1] %vm6402, 0.0
        %vm9639 = vcmask 258048
        %9640 = vst.msk [vmem:[%s9634 + $0x3] sm:$0x1f] %vm9639, 0.0
        %9641 = vst.msk [vmem:[%s9634 + $0xb] sm:$0x1f] %vm9639, 0.0
        %9642 = vst.msk [vmem:[%s9634 + $0x2b] sm:$0x1f] %vm9639, 0.0
        %9643 = vst.msk [vmem:[%s9634 + $0x33] sm:$0x1f] %vm9639, 0.0
        %v9652 = vrot.slane %v9572, 7
        %v9653 = vsel %vm6565, %v9652, %v9565
        %v9654 = vrot.slane %v9586, 7
        %v9655 = vsel %vm6565, %v9654, %v9579
        %v9656 = vrot.slane %v9612, 7
        %v9657 = vsel %vm6565, %v9656, %v9605
        %v9658 = vrot.slane %v9626, 7
        %v9659 = vsel %vm6565, %v9658, %v9619
        %9664 = vst.msk [vmem:[%s9634 + $0x1] sm:$0x3] %vm5331, %v9653
        %9665 = vst.msk [vmem:[%s9634 + $0x9] sm:$0x3] %vm5331, %v9655
        %9666 = vst.msk [vmem:[%s9634 + $0x29] sm:$0x3] %vm5331, %v9657
        %9667 = vst.msk [vmem:[%s9634 + $0x31] sm:$0x3] %vm5331, %v9659
        %v9668 = vld [vmem:[#allocation11] sm:$0xff]
        %v9669 = vld [vmem:[#allocation11 + $0x8] sm:$0xff]
        %v9670 = vld [vmem:[#allocation11 + $0x10] sm:$0xff]
        %v9671 = vld [vmem:[#allocation11 + $0x18] sm:$0xff]
        %v9672 = vld [vmem:[#allocation11 + $0x20] sm:$0xff]
        %v9673 = vld [vmem:[#allocation11 + $0x28] sm:$0xff]
        %v9674 = vld [vmem:[#allocation11 + $0x30] sm:$0xff]
        %v9675 = vld [vmem:[#allocation11 + $0x38] sm:$0xff]
        %v9676 = vld [vmem:[#allocation11 + $0x40] sm:$0xff]
        %v9677 = vld [vmem:[#allocation11 + $0x48] sm:$0xff]
        %9678 = vst.msk [vmem:[#allocation12] sm:$0xff] %vm2655, %v9668
        %9679 = vst.msk [vmem:[#allocation12 + $0x8] sm:$0xff] %vm2655, %v9669
        %9680 = vst.msk [vmem:[#allocation12 + $0x10] sm:$0xff] %vm2655, %v9670
        %9681 = vst.msk [vmem:[#allocation12 + $0x18] sm:$0xff] %vm2655, %v9671
        %9682 = vst.msk [vmem:[#allocation12 + $0x20] sm:$0xff] %vm2655, %v9672
        %9683 = vst.msk [vmem:[#allocation12 + $0x28] sm:$0xff] %vm2655, %v9673
        %9684 = vst.msk [vmem:[#allocation12 + $0x30] sm:$0xff] %vm2655, %v9674
        %9685 = vst.msk [vmem:[#allocation12 + $0x38] sm:$0xff] %vm2655, %v9675
        %9686 = vst.msk [vmem:[#allocation12 + $0x40] sm:$0xff] %vm2655, %v9676
        %9697 = vrot.lane.b32.xlu0 %v9668, 32
        %v9698 = vpop.permute.xlu0 %9697
        %9699 = vrot.lane.b32.xlu0 %v9669, 32
        %v9700 = vpop.permute.xlu0 %9699
        %9701 = vrot.lane.b32.xlu0 %v9670, 32
        %v9702 = vpop.permute.xlu0 %9701
        %9703 = vrot.lane.b32.xlu0 %v9671, 32
        %v9704 = vpop.permute.xlu0 %9703
        %9705 = vrot.lane.b32.xlu0 %v9672, 32
        %v9706 = vpop.permute.xlu0 %9705
        %9707 = vrot.lane.b32.xlu0 %v9673, 32
        %v9708 = vpop.permute.xlu0 %9707
        %9709 = vrot.lane.b32.xlu0 %v9674, 32
        %v9710 = vpop.permute.xlu0 %9709
        %9711 = vrot.lane.b32.xlu0 %v9675, 32
        %v9712 = vpop.permute.xlu0 %9711
        %9713 = vrot.lane.b32.xlu0 %v9676, 32
        %v9714 = vpop.permute.xlu0 %9713
        %9715 = vrot.lane.b32.xlu0 %v9677, 32
        %v9716 = vpop.permute.xlu0 %9715
        %9727 = vst.msk [vmem:[#allocation12 - $0x1] sm:$0xfe] %vm7084, %v9698
        %9728 = vst.msk [vmem:[#allocation12 + $0x7] sm:$0xff] %vm7086, %v9700
        %9729 = vst.msk [vmem:[#allocation12 + $0xf] sm:$0xff] %vm7086, %v9702
        %9730 = vst.msk [vmem:[#allocation12 + $0x17] sm:$0xff] %vm7086, %v9704
        %9731 = vst.msk [vmem:[#allocation12 + $0x1f] sm:$0xff] %vm7086, %v9706
        %9732 = vst.msk [vmem:[#allocation12 + $0x27] sm:$0xff] %vm7086, %v9708
        %9733 = vst.msk [vmem:[#allocation12 + $0x2f] sm:$0xff] %vm7086, %v9710
        %9734 = vst.msk [vmem:[#allocation12 + $0x37] sm:$0xff] %vm7086, %v9712
        %9735 = vst.msk [vmem:[#allocation12 + $0x3f] sm:$0xff] %vm7086, %v9714
        %9736 = vst.msk [vmem:[#allocation12 + $0x47] sm:$0x1] %vm7128, %v9716
        %9737 = vrot.lane.b32.xlu0 %v9668, 64
        %v9738 = vpop.permute.xlu0 %9737
        %9739 = vrot.lane.b32.xlu0 %v9669, 64
        %v9740 = vpop.permute.xlu0 %9739
        %9741 = vrot.lane.b32.xlu0 %v9670, 64
        %v9742 = vpop.permute.xlu0 %9741
        %9743 = vrot.lane.b32.xlu0 %v9671, 64
        %v9744 = vpop.permute.xlu0 %9743
        %9745 = vrot.lane.b32.xlu0 %v9672, 64
        %v9746 = vpop.permute.xlu0 %9745
        %9747 = vrot.lane.b32.xlu0 %v9673, 64
        %v9748 = vpop.permute.xlu0 %9747
        %9749 = vrot.lane.b32.xlu0 %v9674, 64
        %v9750 = vpop.permute.xlu0 %9749
        %9751 = vrot.lane.b32.xlu0 %v9675, 64
        %v9752 = vpop.permute.xlu0 %9751
        %9753 = vrot.lane.b32.xlu0 %v9676, 64
        %v9754 = vpop.permute.xlu0 %9753
        %9755 = vrot.lane.b32.xlu0 %v9677, 64
        %v9756 = vpop.permute.xlu0 %9755
        %9767 = vst.msk [vmem:[#allocation12 - $0x2] sm:$0xfc] %vm7259, %v9738
        %9768 = vst.msk [vmem:[#allocation12 + $0x6] sm:$0xff] %vm7261, %v9740
        %9769 = vst.msk [vmem:[#allocation12 + $0xe] sm:$0xff] %vm7261, %v9742
        %9770 = vst.msk [vmem:[#allocation12 + $0x16] sm:$0xff] %vm7261, %v9744
        %9771 = vst.msk [vmem:[#allocation12 + $0x1e] sm:$0xff] %vm7261, %v9746
        %9772 = vst.msk [vmem:[#allocation12 + $0x26] sm:$0xff] %vm7261, %v9748
        %9773 = vst.msk [vmem:[#allocation12 + $0x2e] sm:$0xff] %vm7261, %v9750
        %9774 = vst.msk [vmem:[#allocation12 + $0x36] sm:$0xff] %vm7261, %v9752
        %9775 = vst.msk [vmem:[#allocation12 + $0x3e] sm:$0xff] %vm7261, %v9754
        %9776 = vst.msk [vmem:[#allocation12 + $0x46] sm:$0x3] %vm7303, %v9756
        %v9777 = vld [vmem:[#allocation12] sm:$0xff]
        %v9778 = vld [vmem:[#allocation12 + $0x8] sm:$0xff]
        %v9779 = vld [vmem:[#allocation12 + $0x10] sm:$0xff]
        %v9780 = vld [vmem:[#allocation12 + $0x18] sm:$0xff]
        %v9781 = vld [vmem:[#allocation12 + $0x20] sm:$0xff]
        %v9782 = vld [vmem:[#allocation12 + $0x28] sm:$0xff]
        %v9783 = vld [vmem:[#allocation12 + $0x30] sm:$0xff]
        %v9784 = vld [vmem:[%s10] sm:$0xff]
        %v9785 = vld [vmem:[%s10 + $0x8] sm:$0xff]
        %v9786 = vld [vmem:[%s10 + $0x10] sm:$0xff]
        %v9787 = vld [vmem:[%s10 + $0x18] sm:$0xff]
        %v9788 = vld [vmem:[%s10 + $0x20] sm:$0xff]
        %v9789 = vld [vmem:[%s10 + $0x28] sm:$0xff]
        %v9790 = vld [vmem:[%s10 + $0x30] sm:$0xff]
        %v9791 = vld [vmem:[%s10 + $0x38] sm:$0xff]
        %v9792 = vld [vmem:[%s10 + $0x40] sm:$0xff]
        %v9793 = vld [vmem:[%s10 + $0x48] sm:$0xff]
        %v9794 = vld [vmem:[%s10 + $0x50] sm:$0xff]
        %v9795 = vld [vmem:[%s10 + $0x58] sm:$0xff]
        %v9797 = vsel %vm7355, %v9777, 0
        %v9800 = vsel %vm7355, %v9778, 0
        %v9803 = vsel %vm7355, %v9779, 0
        %v9806 = vsel %vm7355, %v9780, 0
        %v9809 = vsel %vm7355, %v9781, 0
        %v9812 = vsel %vm7355, %v9782, 0
        %v9815 = vsel %vm7355, %v9783, 0
        %9817 = vmatpush.msra.mxu0 0.0
        %9818 = vmatpush.msra.mxu0 0.0
        %9819 = vmatpush.msra.mxu0 0.0
        %9820 = vmatpush.msra.mxu0 0.0
        %9821 = vmatpush.msra.mxu0 %v9795
        %9822 = vmatpush.msra.mxu0 %v9794
        %9823 = vmatpush.msra.mxu0 %v9793
        %9824 = vmatpush.msra.mxu0 %v9792
        %9825 = vmatpush.msra.mxu0 %v9791
        %9826 = vmatpush.msra.mxu0 %v9790
        %9827 = vmatpush.msra.mxu0 %v9789
        %9828 = vmatpush.msra.mxu0 %v9788
        %9829 = vmatpush.msra.mxu0 %v9787
        %9830 = vmatpush.msra.mxu0 %v9786
        %9831 = vmatpush.msra.mxu0 %v9785
        %9832 = vmatpush.msra.mxu0 %v9784
        %9833 = vmatmul.f32.gmra.mxu0 %v9797
        %v9834 = vpop.f32.mrf.mxu0
        %v9835 = vadd.f32 0.0, %v9834
        %9836 = vmatmul.f32.gmra.mxu0 %v9800
        %v9837 = vpop.f32.mrf.mxu0
        %v9838 = vadd.f32 0.0, %v9837
        %9839 = vmatmul.f32.gmra.mxu0 %v9803
        %v9840 = vpop.f32.mrf.mxu0
        %v9841 = vadd.f32 0.0, %v9840
        %9842 = vmatmul.f32.gmra.mxu0 %v9806
        %v9843 = vpop.f32.mrf.mxu0
        %v9844 = vadd.f32 0.0, %v9843
        %9845 = vmatmul.f32.gmra.mxu0 %v9809
        %v9846 = vpop.f32.mrf.mxu0
        %v9847 = vadd.f32 0.0, %v9846
        %9848 = vmatmul.f32.gmra.mxu0 %v9812
        %v9849 = vpop.f32.mrf.mxu0
        %v9850 = vadd.f32 0.0, %v9849
        %9851 = vmatmul.f32.gmra.mxu0 %v9815
        %v9852 = vpop.f32.mrf.mxu0
        %v9853 = vadd.f32 0.0, %v9852
        %9854 = vdwg.mxu0
        %9855 = vst.msk [vmem:[#allocation13] sm:$0xff] %vm2655, %v9835
        %9856 = vst.msk [vmem:[#allocation13 + $0x8] sm:$0xff] %vm2655, %v9838
        %9857 = vst.msk [vmem:[#allocation13 + $0x10] sm:$0xff] %vm2655, %v9841
        %9858 = vst.msk [vmem:[#allocation13 + $0x18] sm:$0xff] %vm2655, %v9844
        %9859 = vst.msk [vmem:[#allocation13 + $0x20] sm:$0xff] %vm2655, %v9847
        %9860 = vst.msk [vmem:[#allocation13 + $0x28] sm:$0xff] %vm2655, %v9850
        %9861 = vst.msk [vmem:[#allocation13 + $0x30] sm:$0xff] %vm2655, %v9853
        %v9862 = vld [vmem:[#allocation12 + $0x8] sm:$0xff]
        %v9863 = vld [vmem:[#allocation12 + $0x10] sm:$0xff]
        %v9864 = vld [vmem:[#allocation12 + $0x18] sm:$0xff]
        %v9865 = vld [vmem:[#allocation12 + $0x20] sm:$0xff]
        %v9866 = vld [vmem:[#allocation12 + $0x28] sm:$0xff]
        %v9867 = vld [vmem:[#allocation12 + $0x30] sm:$0xff]
        %v9868 = vld [vmem:[#allocation12 + $0x38] sm:$0xff]
        %s9869 = scalar_lea.vmem %s10, 96
        %v9870 = vld [vmem:[%s9869] sm:$0xff]
        %v9871 = vld [vmem:[%s9869 + $0x8] sm:$0xff]
        %v9872 = vld [vmem:[%s9869 + $0x10] sm:$0xff]
        %v9873 = vld [vmem:[%s9869 + $0x18] sm:$0xff]
        %v9874 = vld [vmem:[%s9869 + $0x20] sm:$0xff]
        %v9875 = vld [vmem:[%s9869 + $0x28] sm:$0xff]
        %v9876 = vld [vmem:[%s9869 + $0x30] sm:$0xff]
        %v9877 = vld [vmem:[%s9869 + $0x38] sm:$0xff]
        %v9878 = vld [vmem:[%s9869 + $0x40] sm:$0xff]
        %v9879 = vld [vmem:[%s9869 + $0x48] sm:$0xff]
        %v9880 = vld [vmem:[%s9869 + $0x50] sm:$0xff]
        %v9881 = vld [vmem:[%s9869 + $0x58] sm:$0xff]
        %v9883 = vsel %vm7355, %v9862, 0
        %v9886 = vsel %vm7355, %v9863, 0
        %v9889 = vsel %vm7355, %v9864, 0
        %v9892 = vsel %vm7355, %v9865, 0
        %v9895 = vsel %vm7355, %v9866, 0
        %v9898 = vsel %vm7355, %v9867, 0
        %v9901 = vsel %vm7355, %v9868, 0
        %9903 = vmatpush.msra.mxu0 0.0
        %9904 = vmatpush.msra.mxu0 0.0
        %9905 = vmatpush.msra.mxu0 0.0
        %9906 = vmatpush.msra.mxu0 0.0
        %9907 = vmatpush.msra.mxu0 %v9881
        %9908 = vmatpush.msra.mxu0 %v9880
        %9909 = vmatpush.msra.mxu0 %v9879
        %9910 = vmatpush.msra.mxu0 %v9878
        %9911 = vmatpush.msra.mxu0 %v9877
        %9912 = vmatpush.msra.mxu0 %v9876
        %9913 = vmatpush.msra.mxu0 %v9875
        %9914 = vmatpush.msra.mxu0 %v9874
        %9915 = vmatpush.msra.mxu0 %v9873
        %9916 = vmatpush.msra.mxu0 %v9872
        %9917 = vmatpush.msra.mxu0 %v9871
        %9918 = vmatpush.msra.mxu0 %v9870
        %9919 = vmatmul.f32.gmra.mxu0 %v9883
        %v9920 = vpop.f32.mrf.mxu0
        %v9921 = vadd.f32 0.0, %v9920
        %9922 = vmatmul.f32.gmra.mxu0 %v9886
        %v9923 = vpop.f32.mrf.mxu0
        %v9924 = vadd.f32 0.0, %v9923
        %9925 = vmatmul.f32.gmra.mxu0 %v9889
        %v9926 = vpop.f32.mrf.mxu0
        %v9927 = vadd.f32 0.0, %v9926
        %9928 = vmatmul.f32.gmra.mxu0 %v9892
        %v9929 = vpop.f32.mrf.mxu0
        %v9930 = vadd.f32 0.0, %v9929
        %9931 = vmatmul.f32.gmra.mxu0 %v9895
        %v9932 = vpop.f32.mrf.mxu0
        %v9933 = vadd.f32 0.0, %v9932
        %9934 = vmatmul.f32.gmra.mxu0 %v9898
        %v9935 = vpop.f32.mrf.mxu0
        %v9936 = vadd.f32 0.0, %v9935
        %9937 = vmatmul.f32.gmra.mxu0 %v9901
        %v9938 = vpop.f32.mrf.mxu0
        %v9939 = vadd.f32 0.0, %v9938
        %9940 = vdwg.mxu0
        %v9941 = vld [vmem:[#allocation13] sm:$0xff]
        %v9942 = vld [vmem:[#allocation13 + $0x8] sm:$0xff]
        %v9943 = vld [vmem:[#allocation13 + $0x10] sm:$0xff]
        %v9944 = vld [vmem:[#allocation13 + $0x18] sm:$0xff]
        %v9945 = vld [vmem:[#allocation13 + $0x20] sm:$0xff]
        %v9946 = vld [vmem:[#allocation13 + $0x28] sm:$0xff]
        %v9947 = vld [vmem:[#allocation13 + $0x30] sm:$0xff]
        %v9948 = vadd.f32 %v9941, %v9921
        %v9949 = vadd.f32 %v9942, %v9924
        %v9950 = vadd.f32 %v9943, %v9927
        %v9951 = vadd.f32 %v9944, %v9930
        %v9952 = vadd.f32 %v9945, %v9933
        %v9953 = vadd.f32 %v9946, %v9936
        %v9954 = vadd.f32 %v9947, %v9939
        %9955 = vst.msk [vmem:[#allocation13] sm:$0xff] %vm2655, %v9948
        %9956 = vst.msk [vmem:[#allocation13 + $0x8] sm:$0xff] %vm2655, %v9949
        %9957 = vst.msk [vmem:[#allocation13 + $0x10] sm:$0xff] %vm2655, %v9950
        %9958 = vst.msk [vmem:[#allocation13 + $0x18] sm:$0xff] %vm2655, %v9951
        %9959 = vst.msk [vmem:[#allocation13 + $0x20] sm:$0xff] %vm2655, %v9952
        %9960 = vst.msk [vmem:[#allocation13 + $0x28] sm:$0xff] %vm2655, %v9953
        %9961 = vst.msk [vmem:[#allocation13 + $0x30] sm:$0xff] %vm2655, %v9954
        %v9962 = vld [vmem:[#allocation12 + $0x10] sm:$0xff]
        %v9963 = vld [vmem:[#allocation12 + $0x18] sm:$0xff]
        %v9964 = vld [vmem:[#allocation12 + $0x20] sm:$0xff]
        %v9965 = vld [vmem:[#allocation12 + $0x28] sm:$0xff]
        %v9966 = vld [vmem:[#allocation12 + $0x30] sm:$0xff]
        %v9967 = vld [vmem:[#allocation12 + $0x38] sm:$0xff]
        %v9968 = vld [vmem:[#allocation12 + $0x40] sm:$0xff]
        %s9969 = scalar_lea.vmem %s10, 192
        %v9970 = vld [vmem:[%s9969] sm:$0xff]
        %v9971 = vld [vmem:[%s9969 + $0x8] sm:$0xff]
        %v9972 = vld [vmem:[%s9969 + $0x10] sm:$0xff]
        %v9973 = vld [vmem:[%s9969 + $0x18] sm:$0xff]
        %v9974 = vld [vmem:[%s9969 + $0x20] sm:$0xff]
        %v9975 = vld [vmem:[%s9969 + $0x28] sm:$0xff]
        %v9976 = vld [vmem:[%s9969 + $0x30] sm:$0xff]
        %v9977 = vld [vmem:[%s9969 + $0x38] sm:$0xff]
        %v9978 = vld [vmem:[%s9969 + $0x40] sm:$0xff]
        %v9979 = vld [vmem:[%s9969 + $0x48] sm:$0xff]
        %v9980 = vld [vmem:[%s9969 + $0x50] sm:$0xff]
        %v9981 = vld [vmem:[%s9969 + $0x58] sm:$0xff]
        %v9983 = vsel %vm7355, %v9962, 0
        %v9986 = vsel %vm7355, %v9963, 0
        %v9989 = vsel %vm7355, %v9964, 0
        %v9992 = vsel %vm7355, %v9965, 0
        %v9995 = vsel %vm7355, %v9966, 0
        %v9998 = vsel %vm7355, %v9967, 0
        %v10001 = vsel %vm7355, %v9968, 0
        %10003 = vmatpush.msra.mxu0 0.0
        %10004 = vmatpush.msra.mxu0 0.0
        %10005 = vmatpush.msra.mxu0 0.0
        %10006 = vmatpush.msra.mxu0 0.0
        %10007 = vmatpush.msra.mxu0 %v9981
        %10008 = vmatpush.msra.mxu0 %v9980
        %10009 = vmatpush.msra.mxu0 %v9979
        %10010 = vmatpush.msra.mxu0 %v9978
        %10011 = vmatpush.msra.mxu0 %v9977
        %10012 = vmatpush.msra.mxu0 %v9976
        %10013 = vmatpush.msra.mxu0 %v9975
        %10014 = vmatpush.msra.mxu0 %v9974
        %10015 = vmatpush.msra.mxu0 %v9973
        %10016 = vmatpush.msra.mxu0 %v9972
        %10017 = vmatpush.msra.mxu0 %v9971
        %10018 = vmatpush.msra.mxu0 %v9970
        %10019 = vmatmul.f32.gmra.mxu0 %v9983
        %v10020 = vpop.f32.mrf.mxu0
        %v10021 = vadd.f32 0.0, %v10020
        %10022 = vmatmul.f32.gmra.mxu0 %v9986
        %v10023 = vpop.f32.mrf.mxu0
        %v10024 = vadd.f32 0.0, %v10023
        %10025 = vmatmul.f32.gmra.mxu0 %v9989
        %v10026 = vpop.f32.mrf.mxu0
        %v10027 = vadd.f32 0.0, %v10026
        %10028 = vmatmul.f32.gmra.mxu0 %v9992
        %v10029 = vpop.f32.mrf.mxu0
        %v10030 = vadd.f32 0.0, %v10029
        %10031 = vmatmul.f32.gmra.mxu0 %v9995
        %v10032 = vpop.f32.mrf.mxu0
        %v10033 = vadd.f32 0.0, %v10032
        %10034 = vmatmul.f32.gmra.mxu0 %v9998
        %v10035 = vpop.f32.mrf.mxu0
        %v10036 = vadd.f32 0.0, %v10035
        %10037 = vmatmul.f32.gmra.mxu0 %v10001
        %v10038 = vpop.f32.mrf.mxu0
        %v10039 = vadd.f32 0.0, %v10038
        %10040 = vdwg.mxu0
        %v10041 = vld [vmem:[#allocation13] sm:$0xff]
        %v10042 = vld [vmem:[#allocation13 + $0x8] sm:$0xff]
        %v10043 = vld [vmem:[#allocation13 + $0x10] sm:$0xff]
        %v10044 = vld [vmem:[#allocation13 + $0x18] sm:$0xff]
        %v10045 = vld [vmem:[#allocation13 + $0x20] sm:$0xff]
        %v10046 = vld [vmem:[#allocation13 + $0x28] sm:$0xff]
        %v10047 = vld [vmem:[#allocation13 + $0x30] sm:$0xff]
        %v10048 = vadd.f32 %v10041, %v10021
        %v10049 = vadd.f32 %v10042, %v10024
        %v10050 = vadd.f32 %v10043, %v10027
        %v10051 = vadd.f32 %v10044, %v10030
        %v10052 = vadd.f32 %v10045, %v10033
        %v10053 = vadd.f32 %v10046, %v10036
        %v10054 = vadd.f32 %v10047, %v10039
        %10055 = vst.msk [vmem:[#allocation13] sm:$0xff] %vm2655, %v10048
        %10056 = vst.msk [vmem:[#allocation13 + $0x8] sm:$0xff] %vm2655, %v10049
        %10057 = vst.msk [vmem:[#allocation13 + $0x10] sm:$0xff] %vm2655, %v10050
        %10058 = vst.msk [vmem:[#allocation13 + $0x18] sm:$0xff] %vm2655, %v10051
        %10059 = vst.msk [vmem:[#allocation13 + $0x20] sm:$0xff] %vm2655, %v10052
        %10060 = vst.msk [vmem:[#allocation13 + $0x28] sm:$0xff] %vm2655, %v10053
        %10061 = vst.msk [vmem:[#allocation13 + $0x30] sm:$0xff] %vm2655, %v10054
        %v10062 = vld [vmem:[#allocation13] sm:$0xff]
        %v10063 = vld [vmem:[#allocation13 + $0x8] sm:$0xff]
        %v10064 = vld [vmem:[#allocation13 + $0x28] sm:$0xff]
        %v10065 = vld [vmem:[#allocation13 + $0x30] sm:$0xff]
        %v10066 = vld [vmem:[%s11] sm:$0x1]
        %v10068 = vperm.slane %v10066, 0
        %v10070 = vmul.f32 %v10062, %v10068
        %v10071 = vmul.f32 %v10063, %v10068
        %v10072 = vmul.f32 %v10064, %v10068
        %v10073 = vmul.f32 %v10065, %v10068
        %v10074 = vld [vmem:[%s12] sm:$0x1]
        %v10076 = vperm.slane %v10074, 0
        %v10078 = vadd.f32 %v10070, %v10076
        %v10079 = vadd.f32 %v10071, %v10076
        %v10080 = vadd.f32 %v10072, %v10076
        %v10081 = vadd.f32 %v10073, %v10076
        %v10082 = vmax.f32 %v10078, 0.0
        %v10083 = vmax.f32 %v10079, 0.0
        %v10084 = vmax.f32 %v10080, 0.0
        %v10085 = vmax.f32 %v10081, 0.0
        %v10086 = vsel %vm2655, %v10082, -inf
        %v10087 = vsel %vm2655, %v10083, -inf
        %v10088 = vmax.f32 %v10086, %v10087
        %v10089 = vsel %vm5331, %v10088, -inf
        %v10090 = vrot.slane %v10089, 4
        %v10091 = vmax.f32 %v10089, %v10090
        %v10092 = vrot.slane %v10091, 2
        %v10093 = vmax.f32 %v10091, %v10092
        %v10094 = vrot.slane %v10093, 1
        %v10095 = vmax.f32 %v10093, %v10094
        %v10096 = vsel %vm2655, %v10084, -inf
        %v10097 = vsel %vm2655, %v10085, -inf
        %v10098 = vmax.f32 %v10096, %v10097
        %v10099 = vsel %vm5331, %v10098, -inf
        %v10100 = vrot.slane %v10099, 4
        %v10101 = vmax.f32 %v10099, %v10100
        %v10102 = vrot.slane %v10101, 2
        %v10103 = vmax.f32 %v10101, %v10102
        %v10104 = vrot.slane %v10103, 1
        %v10105 = vmax.f32 %v10103, %v10104
        %v10106 = vadd.f32 %v10095, 0.0
        %v10107 = vadd.f32 %v10105, 0.0
        %v10110 = vrot.slane %v10107, 7
        %v10111 = vsel %vm6565, %v10110, %v10106
        %10113 = vst.msk [vmem:[%s436] sm:$0x3] %vm5331, %v10111
        %s10114 = sand.u32 %s313, 1
        %s10115 = scalar_lea.sflag [#allocation15], %s10114
        %s10116 = sand.u32 %s313, 1
        %s10117 = smul.addr %s10116, 2
        %s10118 = scalar_lea.vmem [#allocation14], %s10117
        // Predicated region
        $region73: #{feature_extractor_forward.1} parent=71 // pred_check
          %p10119 = pneg %p323
        $region74: #{feature_extractor_forward.1} parent=71 // pred_check_branch
          %10121 = sbr.rel (%p10119) target = $region76
        $region75: #{feature_extractor_forward.1} parent=71 // pred_region
          %10123 = vsyncadd %s10115, 0
          %s10124 = smul.addr %s27, 2
          %s10125 = scalar_lea.hbm %s13, %s10124
          %s10127 = sshll.u32 %s10118, 4
          %s10128 = int_to_ptr.vmem [resolvable:$true] %s10127
          %s10129 = sshll.u32 %s10125, 4
          %s10130 = int_to_ptr.hbm [resolvable:$true] %s10129
          %10132 = dma.vmem_to_hbm [thread:$0]  %s10128, 32, %s10130, %s10115
        $region76: #{feature_extractor_forward.1} parent=71 // pred_fallthru
          _
      $region72: #{feature_extractor_forward.1} parent=5 // pred_fallthru
        _
      %p10133 = scmp.le.s32.totalorder 2, %s22
      // Predicated region
      $region77: #{feature_extractor_forward.1} parent=5 // pred_check
        %p10134 = pneg %p10133
      $region78: #{feature_extractor_forward.1} parent=5 // pred_check_branch
        %10136 = sbr.rel (%p10134) target = $region80
      $region79: #{feature_extractor_forward.1} parent=5 // pred_region
        %s10137 = ssub.s32 %s22, 2
        // Predicated region
        $region81: #{feature_extractor_forward.1} parent=79 // pred_check
          %p10138 = pneg %p329
        $region82: #{feature_extractor_forward.1} parent=79 // pred_check_branch
          %10140 = sbr.rel (%p10138) target = $region84
        $region83: #{feature_extractor_forward.1} parent=79 // pred_region
          %s10141 = sand.u32 %s314, 1
          %s10142 = scalar_lea.sflag [#allocation15], %s10141
          %s10143 = sand.u32 %s314, 1
          %s10144 = smul.addr %s10143, 2
          %s10145 = scalar_lea.vmem [#allocation14], %s10144
          %10147 = dma.done %s10142, 32
        $region84: #{feature_extractor_forward.1} parent=79 // pred_fallthru
          _
      $region80: #{feature_extractor_forward.1} parent=5 // pred_fallthru
        _
    $region6: #{feature_extractor_forward.1} parent=1 // loop_footer
      %s26 = sadd.s32 1, %s22
    $region7: #{feature_extractor_forward.1} parent=1 // loop_footer_branch
      %21 = sbr.rel target = $region3
    $region8: #{feature_extractor_forward.1} parent=1 // loop_exit
      _
    %10148 = vsyncpa [#allocation15], 1
    %s10149 = scalar_lea.sflag [#allocation15], 1
    %10150 = vsyncpa %s10149, 1

</llo_original>
